<compile_context>
chip_gen: v7x
topology: tpu7x:2x2x1
jax: 0.10.0
libtpu: 0.0.40
codegen_flags: <defaults>
</compile_context>

<pallas_src>
import functools

import jax
import jax.numpy as jnp
from jax.experimental import pallas as pl
from jax.experimental.pallas import tpu as pltpu


# ----------------------------------------------------------------------------
# helpers
# ----------------------------------------------------------------------------
def _mosaic(sem):
    return pltpu.CompilerParams(dimension_semantics=sem,
                                vmem_limit_bytes=32 * 1024 * 1024)


def _row_tile(M, cap):
    """Fixed, VMEM-budgeted row tile.

    Returns (tile, padded_M).  Uses the full M for small inputs, otherwise the
    largest multiple-of-16 divisor of M up to `cap` (zero glue), and falls back
    to `cap` with explicit zero-padding so no remainder rows are dropped.
    """
    if M <= cap:
        return M, M
    best = 0
    for t in range(16, cap + 1, 16):
        if M % t == 0:
            best = t
    if best >= 64:
        return best, M
    return cap, ((M + cap - 1) // cap) * cap


# ----------------------------------------------------------------------------
# Pallas kernels
# ----------------------------------------------------------------------------
def _matmul_bias_kernel(a_ref, w_ref, b_ref, o_ref, *, relu):
    """o = relu?(a @ w + b); a:(tm,K) bf16, w:(K,N) bf16, b:(1,N) f32."""
    acc = jnp.dot(a_ref[...], w_ref[...], preferred_element_type=jnp.float32)
    acc = acc + b_ref[...]
    if relu:
        acc = jnp.maximum(acc, 0.0)
    o_ref[...] = acc.astype(o_ref.dtype)


def _maxpool_kernel(x_ref, o_ref):
    """2x2 max pool.  x:(Hh, 2, Wh, 2C) = (out_row, vert-pair, out_col,
    [left px C ch | right px C ch]); o:(Hh, Wh, C)."""
    x = x_ref[...]
    m = jnp.maximum(x[:, 0], x[:, 1])          # vertical max   (Hh, Wh, 2C)
    C = o_ref.shape[-1]
    o_ref[...] = jnp.maximum(m[..., :C], m[..., C:])   # horizontal max


def _conv3x3_relu_kernel(x_ref, w_ref, b_ref, o_ref, y_scr, *, H, W):
    """Direct 3x3 / stride 1 / SAME conv + bias + ReLU for one image.

    x_ref : (1, (H+2)*(W+2) + 2*(W+3), Cin)  row-flattened padded image with a
            (W+3)-row zero halo on each side, so tap (dh, dw) is the slab
            shifted by dh*(W+2)+dw rows.
    o_ref : (1, H, W, Cout).  The conv is computed on the whole padded grid
            (border rows are garbage and discarded when extracting rows).
    """
    Wp = W + 2
    R = (H + 2) * Wp
    Cout = o_ref.shape[-1]
    acc = jnp.zeros((R, Cout), jnp.float32)
    for dh in range(3):
        for dw in range(3):
            off = dh * Wp + dw
            acc = acc + jnp.dot(x_ref[0, off:off + R, :], w_ref[dh * 3 + dw],
                                preferred_element_type=jnp.float32)
    y_scr[...] = jnp.maximum(acc + b_ref[...], 0.0)
    for i in range(H):                          # extract valid interior rows
        start = (i + 1) * Wp + 1
        o_ref[0, i] = y_scr[start:start + W, :].astype(o_ref.dtype)


def _fc_fused_kernel(x_ref, w1_ref, b1_ref, w2_ref, b2_ref, o_ref):
    """out = (relu(x @ w1 + b1)) @ w2 + b2 (fc2 padded to 128 lanes)."""
    h = jnp.dot(x_ref[...], w1_ref[...], preferred_element_type=jnp.float32)
    h = jnp.maximum(h + b1_ref[...], 0.0)
    out = jnp.dot(h.astype(w2_ref.dtype), w2_ref[...],
                  preferred_element_type=jnp.float32)
    o_ref[...] = out + b2_ref[...]


# ----------------------------------------------------------------------------
# wrappers
# ----------------------------------------------------------------------------
def linear_pallas(a, w, b, *, relu, out_dtype=jnp.bfloat16, cap=512):
    """(M,K) @ (K,N) + b with optional ReLU, fixed row tile, bf16 in / f32 acc."""
    M, K = a.shape
    K2, N = w.shape
    assert K == K2
    tm, Mp = _row_tile(M, cap)
    if Mp != M:
        a = jnp.pad(a, ((0, Mp - M), (0, 0)))
    out = pl.pallas_call(
        functools.partial(_matmul_bias_kernel, relu=relu),
        out_shape=jax.ShapeDtypeStruct((Mp, N), out_dtype),
        grid=(Mp // tm,),
        in_specs=[pl.BlockSpec((tm, K), lambda i: (i, 0)),
                  pl.BlockSpec((K, N), lambda i: (0, 0)),
                  pl.BlockSpec((1, N), lambda i: (0, 0))],
        out_specs=pl.BlockSpec((tm, N), lambda i: (i, 0)),
        compiler_params=_mosaic(("parallel",)),
    )(a, w, b.reshape(1, N))
    return out[:M] if Mp != M else out


def maxpool2x2_pallas(y_rows, B, H, W, C):
    """y_rows: (B*H*W, C) in (b,h,w) order -> (B*(H/2), W/2, C), same order.

    The (B*H/2, 2, W/2, 2C) view is a free row-major reshape: lanes hold
    [even-col channels | odd-col channels], axis 1 is the vertical pair.
    """
    Hh, Wh = H // 2, W // 2
    x = y_rows.reshape(B * Hh, 2, Wh, 2 * C)
    return pl.pallas_call(
        _maxpool_kernel,
        out_shape=jax.ShapeDtypeStruct((B * Hh, Wh, C), y_rows.dtype),
        grid=(B,),
        in_specs=[pl.BlockSpec((Hh, 2, Wh, 2 * C), lambda b: (b, 0, 0, 0))],
        out_specs=pl.BlockSpec((Hh, Wh, C), lambda b: (b, 0, 0)),
        compiler_params=_mosaic(("parallel",)),
    )(x)


def conv3x3_relu_pallas(x_nhwc, w_taps, bias):
    """3x3 / stride 1 / SAME conv + ReLU without materializing im2col.

    x_nhwc: (B,H,W,Cin) bf16; w_taps: (9,Cin,Cout) bf16 (tap = kh*3+kw);
    bias: (Cout,) f32.  Returns (B,H,W,Cout) bf16.
    """
    B, H, W, Cin = x_nhwc.shape
    Cout = w_taps.shape[-1]
    Hp, Wp = H + 2, W + 2
    R = Hp * Wp
    halo = Wp + 1
    xp = jnp.pad(x_nhwc, ((0, 0), (1, 1), (1, 1), (0, 0))).reshape(B, R, Cin)
    x2 = jnp.pad(xp, ((0, 0), (halo, halo), (0, 0)))        # (B, R+2*halo, Cin)
    return pl.pallas_call(
        functools.partial(_conv3x3_relu_kernel, H=H, W=W),
        out_shape=jax.ShapeDtypeStruct((B, H, W, Cout), x_nhwc.dtype),
        grid=(B,),
        in_specs=[pl.BlockSpec((1, R + 2 * halo, Cin), lambda b: (b, 0, 0)),
                  pl.BlockSpec((9, Cin, Cout), lambda b: (0, 0, 0)),
                  pl.BlockSpec((1, Cout), lambda b: (0, 0))],
        out_specs=pl.BlockSpec((1, H, W, Cout), lambda b: (b, 0, 0, 0)),
        scratch_shapes=[pltpu.VMEM((R, Cout), jnp.float32)],
        compiler_params=_mosaic(("parallel",)),
    )(x2, w_taps, bias.reshape(1, Cout))


def fc_fused_pallas(feat, w1, b1, w2, b2, *, n_out):
    """relu(feat @ w1 + b1) @ w2 + b2 in one kernel; fc2 padded to 128 lanes."""
    B, K = feat.shape
    N1 = w1.shape[1]
    N2 = w2.shape[1]
    Np = 128
    assert N2 <= Np
    w2p = jnp.pad(w2, ((0, 0), (0, Np - N2)))
    b2p = jnp.pad(b2, (0, Np - N2)).reshape(1, Np)
    tb, Bp = _row_tile(B, cap=256)
    if Bp != B:
        feat = jnp.pad(feat, ((0, Bp - B), (0, 0)))
    out = pl.pallas_call(
        _fc_fused_kernel,
        out_shape=jax.ShapeDtypeStruct((Bp, Np), jnp.float32),
        grid=(Bp // tb,),
        in_specs=[pl.BlockSpec((tb, K), lambda i: (i, 0)),
                  pl.BlockSpec((K, N1), lambda i: (0, 0)),
                  pl.BlockSpec((1, N1), lambda i: (0, 0)),
                  pl.BlockSpec((N1, Np), lambda i: (0, 0)),
                  pl.BlockSpec((1, Np), lambda i: (0, 0))],
        out_specs=pl.BlockSpec((tb, Np), lambda i: (i, 0)),
        compiler_params=_mosaic(("parallel",)),
    )(feat, w1, b1.reshape(1, N1), w2p, b2p)
    return out[:B, :n_out]


# ----------------------------------------------------------------------------
# glue: im2col only for conv1 (Cin=1, tiny)
# ----------------------------------------------------------------------------
def im2col_3x3(x):
    """x: (B,H,W,C) -> (B*H*W, 9*C), rows in (b,h,w) order, cols (kh*3+kw, c)."""
    B, H, W, C = x.shape
    xp = jnp.pad(x, ((0, 0), (1, 1), (1, 1), (0, 0)))
    cols = [xp[:, dh:dh + H, dw:dw + W, :] for dh in range(3) for dw in range(3)]
    return jnp.stack(cols, axis=3).reshape(B * H * W, 9 * C)


# ----------------------------------------------------------------------------
# parameters (bf16 weights / f32 biases).  conv weights are tap-major HWIO,
# fc1 rows are stored in (h, w, c) order so NHWC activations flatten directly.
# ----------------------------------------------------------------------------
def init_params(key):
    ks = jax.random.split(key, 8)

    def w_init(k, shape, fan_in):
        return (jax.random.normal(k, shape, jnp.float32) /
                jnp.sqrt(fan_in)).astype(jnp.bfloat16)

    def b_init(k, shape, fan_in):
        return jax.random.normal(k, shape, jnp.float32) / jnp.sqrt(fan_in)

    return dict(
        conv1_w=w_init(ks[0], (9 * 1, 32), 9.0),
        conv1_b=b_init(ks[1], (32,), 9.0),
        conv2_w=w_init(ks[2], (9, 32, 64), 9.0 * 32),
        conv2_b=b_init(ks[3], (64,), 9.0 * 32),
        fc1_w=w_init(ks[4], (7 * 7 * 64, 128), 7.0 * 7 * 64),   # (h,w,c) rows
        fc1_b=b_init(ks[5], (128,), 7.0 * 7 * 64),
        fc2_w=w_init(ks[6], (128, 10), 128.0),
        fc2_b=b_init(ks[7], (10,), 128.0),
    )


# ----------------------------------------------------------------------------
# forward pass
# ----------------------------------------------------------------------------
@jax.jit
def net_forward(x_nchw, params):
    B = x_nchw.shape[0]
    x = jnp.transpose(x_nchw, (0, 2, 3, 1)).astype(jnp.bfloat16)   # NHWC bf16

    # conv1 + relu (im2col GEMM; Cin=1 so im2col is tiny)
    p1 = im2col_3x3(x)                                             # (B*784, 9)
    y1 = linear_pallas(p1, params["conv1_w"], params["conv1_b"], relu=True)
    # pool1
    q1 = maxpool2x2_pallas(y1, B, 28, 28, 32)                      # (B*14,14,32)

    # conv2 + relu (fused, no im2col materialization)
    y2 = conv3x3_relu_pallas(q1.reshape(B, 14, 14, 32),
                             params["conv2_w"], params["conv2_b"])  # (B,14,14,64)
    # pool2
    q2 = maxpool2x2_pallas(y2.reshape(B * 14 * 14, 64), B, 14, 14, 64)  # (B*7,7,64)

    # flatten in (h,w,c) order to match pre-permuted fc1 weights (no transpose)
    feat = q2.reshape(B, 7 * 7 * 64)

    # fused fc1 + relu + fc2 (fc2 padded to 128 lanes, sliced to 10)
    return fc_fused_pallas(feat, params["fc1_w"], params["fc1_b"],
                           params["fc2_w"], params["fc2_b"], n_out=10)


# ----------------------------------------------------------------------------
# pure-JAX f32 reference (PyTorch semantics, incl. NCHW flatten for fc1)
# ----------------------------------------------------------------------------
def ref_forward(x_nchw, params):
    B = x_nchw.shape[0]
    x = jnp.transpose(x_nchw, (0, 2, 3, 1)).astype(jnp.float32)
    dn = ("NHWC", "HWIO", "NHWC")
    w1 = params["conv1_w"].astype(jnp.float32).reshape(3, 3, 1, 32)
    y = jax.lax.conv_general_dilated(x, w1, (1, 1), "SAME", dimension_numbers=dn)
    y = jax.nn.relu(y + params["conv1_b"])
    y = jax.lax.reduce_window(y, -jnp.inf, jax.lax.max,
                              (1, 2, 2, 1), (1, 2, 2, 1), "VALID")
    w2 = params["conv2_w"].astype(jnp.float32).reshape(3, 3, 32, 64)
    y = jax.lax.conv_general_dilated(y, w2, (1, 1), "SAME", dimension_numbers=dn)
    y = jax.nn.relu(y + params["conv2_b"])
    y = jax.lax.reduce_window(y, -jnp.inf, jax.lax.max,
                              (1, 2, 2, 1), (1, 2, 2, 1), "VALID")
    # PyTorch flatten order (c,h,w) with the correspondingly permuted fc1 weight
    feat = jnp.transpose(y, (0, 3, 1, 2)).reshape(B, 64 * 7 * 7)
    w_fc1 = params["fc1_w"].astype(jnp.float32).reshape(7, 7, 64, 128)
    w_fc1 = jnp.transpose(w_fc1, (2, 0, 1, 3)).reshape(64 * 7 * 7, 128)
    h = jax.nn.relu(feat @ w_fc1 + params["fc1_b"])
    return h @ params["fc2_w"].astype(jnp.float32) + params["fc2_b"]


if __name__ == "__main__":
    key = jax.random.PRNGKey(0)
    kx, kp = jax.random.split(key)
    # 28x28 input so two 2x2 pools give the 7x7 grid fc1 expects.
    x = jax.random.normal(kx, (2, 1, 28, 28), jnp.float32)   # NCHW like PyTorch
    params = init_params(kp)

    out = jax.block_until_ready(net_forward(x, params))
    ref = jax.block_until_ready(ref_forward(x, params))

    assert out.shape == (2, 10), out.shape
    assert jnp.allclose(out, ref, rtol=3e-2, atol=3e-2), (out, ref)
    print("KERNEL_OK")
</pallas_src>

<mosaic_0001>
module attributes {stable_mosaic.version = 11 : i64} {
  func.func @_matmul_bias_kernel(%arg0: i32, %arg1: memref<224x9xbf16, #tpu.memory_space<vmem>>, %arg2: memref<9x32xbf16, #tpu.memory_space<vmem>>, %arg3: memref<1x32xf32, #tpu.memory_space<vmem>>, %arg4: memref<224x32xbf16, #tpu.memory_space<vmem>>) attributes {dimension_semantics = [#tpu.dimension_semantics<parallel>], iteration_bounds = array<i64: 7>, scalar_prefetch = 0 : i64, scratch_operands = 0 : i64, tpu.core_type = #tpu.core_type<tc>, window_params = [{transform_indices = @transform_0, window_bounds = array<i64: 224, 9>}, {pipeline_mode = #tpu.pipeline_mode<synchronous>, transform_indices = @transform_1, window_bounds = array<i64: 9, 32>}, {pipeline_mode = #tpu.pipeline_mode<synchronous>, transform_indices = @transform_2, window_bounds = array<i64: 1, 32>}, {transform_indices = @transform_3, window_bounds = array<i64: 224, 32>}]} {
    %c0 = arith.constant 0 : index
    %c0_0 = arith.constant 0 : index
    %0 = vector.load %arg1[%c0, %c0_0] : memref<224x9xbf16, #tpu.memory_space<vmem>>, vector<224x9xbf16>
    %c0_1 = arith.constant 0 : index
    %c0_2 = arith.constant 0 : index
    %1 = vector.load %arg2[%c0_1, %c0_2] : memref<9x32xbf16, #tpu.memory_space<vmem>>, vector<9x32xbf16>
    %cst = arith.constant dense<0.000000e+00> : vector<224x32xf32>
    %2 = tpu.matmul %0, %1, %cst {dimension_numbers = #tpu.dot_dimension_numbers<[1], [0], [0], [1], [0, 0, 1, 1], [], []>} : vector<224x9xbf16>, vector<9x32xbf16>, vector<224x32xf32> -> vector<224x32xf32>
    %c0_3 = arith.constant 0 : index
    %c0_4 = arith.constant 0 : index
    %3 = vector.load %arg3[%c0_3, %c0_4] : memref<1x32xf32, #tpu.memory_space<vmem>>, vector<1x32xf32>
    %4 = vector.broadcast %3 : vector<1x32xf32> to vector<224x32xf32>
    %5 = arith.addf %2, %4 : vector<224x32xf32>
    %cst_5 = arith.constant 0.000000e+00 : f32
    %6 = vector.broadcast %cst_5 : f32 to vector<224x32xf32>
    %7 = arith.maximumf %5, %6 : vector<224x32xf32>
    %8 = arith.truncf %7 : vector<224x32xf32> to vector<224x32xbf16>
    %c0_6 = arith.constant 0 : index
    %c0_7 = arith.constant 0 : index
    %9 = vector.load %arg4[%c0_6, %c0_7] : memref<224x32xbf16, #tpu.memory_space<vmem>>, vector<224x32xbf16>
    tpu.vector_store %arg4[%c0_6, %c0_7], %8 {strides = array<i32>} : memref<224x32xbf16, #tpu.memory_space<vmem>>, vector<224x32xbf16>,
    return
  }
  func.func @transform_0(%arg0: i32) -> (i32, i32) {
    %c0_i32 = arith.constant 0 : i32
    %c0_i32_0 = arith.constant 0 : i32
    return %arg0, %c0_i32 : i32, i32
  }
  func.func @transform_1(%arg0: i32) -> (i32, i32) {
    %c0_i32 = arith.constant 0 : i32
    %c0_i32_0 = arith.constant 0 : i32
    %c0_i32_1 = arith.constant 0 : i32
    return %c0_i32, %c0_i32_0 : i32, i32
  }
  func.func @transform_2(%arg0: i32) -> (i32, i32) {
    %c0_i32 = arith.constant 0 : i32
    %c0_i32_0 = arith.constant 0 : i32
    %c0_i32_1 = arith.constant 0 : i32
    return %c0_i32, %c0_i32_0 : i32, i32
  }
  func.func @transform_3(%arg0: i32) -> (i32, i32) {
    %c0_i32 = arith.constant 0 : i32
    %c0_i32_0 = arith.constant 0 : i32
    return %arg0, %c0_i32 : i32, i32
  }
}

module attributes {stable_mosaic.version = 11 : i64} {
  func.func @_maxpool_kernel(%arg0: i32, %arg1: memref<14x2x14x64xbf16, #tpu.memory_space<vmem>>, %arg2: memref<14x14x32xbf16, #tpu.memory_space<vmem>>) attributes {dimension_semantics = [#tpu.dimension_semantics<parallel>], iteration_bounds = array<i64: 2>, scalar_prefetch = 0 : i64, scratch_operands = 0 : i64, tpu.core_type = #tpu.core_type<tc>, window_params = [{transform_indices = @transform_0, window_bounds = array<i64: 14, 2, 14, 64>}, {transform_indices = @transform_1, window_bounds = array<i64: 14, 14, 32>}]} {
    %c0 = arith.constant 0 : index
    %c0_0 = arith.constant 0 : index
    %c0_1 = arith.constant 0 : index
    %c0_2 = arith.constant 0 : index
    %0 = vector.load %arg1[%c0, %c0_0, %c0_1, %c0_2] : memref<14x2x14x64xbf16, #tpu.memory_space<vmem>>, vector<14x2x14x64xbf16>
    %1 = vector.extract_strided_slice %0 {offsets = [0, 0, 0, 0], sizes = [14, 1, 14, 64], strides = [1, 1, 1, 1]} : vector<14x2x14x64xbf16> to vector<14x1x14x64xbf16>
    %2 = vector.shape_cast %1 : vector<14x1x14x64xbf16> to vector<14x14x64xbf16>
    %3 = vector.extract_strided_slice %0 {offsets = [0, 1, 0, 0], sizes = [14, 1, 14, 64], strides = [1, 1, 1, 1]} : vector<14x2x14x64xbf16> to vector<14x1x14x64xbf16>
    %4 = vector.shape_cast %3 : vector<14x1x14x64xbf16> to vector<14x14x64xbf16>
    %5 = arith.maximumf %2, %4 : vector<14x14x64xbf16>
    %6 = vector.extract_strided_slice %5 {offsets = [0, 0, 0], sizes = [14, 14, 32], strides = [1, 1, 1]} : vector<14x14x64xbf16> to vector<14x14x32xbf16>
    %7 = vector.extract_strided_slice %5 {offsets = [0, 0, 32], sizes = [14, 14, 32], strides = [1, 1, 1]} : vector<14x14x64xbf16> to vector<14x14x32xbf16>
    %8 = arith.maximumf %6, %7 : vector<14x14x32xbf16>
    %c0_3 = arith.constant 0 : index
    %c0_4 = arith.constant 0 : index
    %c0_5 = arith.constant 0 : index
    %9 = vector.load %arg2[%c0_3, %c0_4, %c0_5] : memref<14x14x32xbf16, #tpu.memory_space<vmem>>, vector<14x14x32xbf16>
    tpu.vector_store %arg2[%c0_3, %c0_4, %c0_5], %8 {strides = array<i32>} : memref<14x14x32xbf16, #tpu.memory_space<vmem>>, vector<14x14x32xbf16>,
    return
  }
  func.func @transform_0(%arg0: i32) -> (i32, i32, i32, i32) {
    %c0_i32 = arith.constant 0 : i32
    %c0_i32_0 = arith.constant 0 : i32
    %c0_i32_1 = arith.constant 0 : i32
    %c0_i32_2 = arith.constant 0 : i32
    return %arg0, %c0_i32, %c0_i32_0, %c0_i32_1 : i32, i32, i32, i32
  }
  func.func @transform_1(%arg0: i32) -> (i32, i32, i32) {
    %c0_i32 = arith.constant 0 : i32
    %c0_i32_0 = arith.constant 0 : i32
    %c0_i32_1 = arith.constant 0 : i32
    return %arg0, %c0_i32, %c0_i32_0 : i32, i32, i32
  }
}

module attributes {stable_mosaic.version = 11 : i64} {
  func.func @_conv3x3_relu_kernel(%arg0: i32, %arg1: memref<1x290x32xbf16, #tpu.memory_space<vmem>>, %arg2: memref<9x32x64xbf16, #tpu.memory_space<vmem>>, %arg3: memref<1x64xf32, #tpu.memory_space<vmem>>, %arg4: memref<1x14x14x64xbf16, #tpu.memory_space<vmem>>, %arg5: memref<256x64xf32, #tpu.memory_space<vmem>>) attributes {dimension_semantics = [#tpu.dimension_semantics<parallel>], iteration_bounds = array<i64: 2>, scalar_prefetch = 0 : i64, scratch_operands = 1 : i64, tpu.core_type = #tpu.core_type<tc>, window_params = [{transform_indices = @transform_0, window_bounds = array<i64: 1, 290, 32>}, {pipeline_mode = #tpu.pipeline_mode<synchronous>, transform_indices = @transform_1, window_bounds = array<i64: 9, 32, 64>}, {pipeline_mode = #tpu.pipeline_mode<synchronous>, transform_indices = @transform_2, window_bounds = array<i64: 1, 64>}, {transform_indices = @transform_3, window_bounds = array<i64: 1, 14, 14, 64>}]} {
    %cst = arith.constant 0.000000e+00 : f32
    %0 = vector.broadcast %cst : f32 to vector<256x64xf32>
    %c0 = arith.constant 0 : index
    %c0_0 = arith.constant 0 : index
    %c0_1 = arith.constant 0 : index
    %1 = vector.load %arg1[%c0, %c0_0, %c0_1] : memref<1x290x32xbf16, #tpu.memory_space<vmem>>, vector<1x256x32xbf16>
    %2 = vector.shape_cast %1 : vector<1x256x32xbf16> to vector<256x32xbf16>
    %c0_2 = arith.constant 0 : index
    %c0_3 = arith.constant 0 : index
    %c0_4 = arith.constant 0 : index
    %3 = vector.load %arg2[%c0_2, %c0_3, %c0_4] : memref<9x32x64xbf16, #tpu.memory_space<vmem>>, vector<1x32x64xbf16>
    %4 = vector.shape_cast %3 : vector<1x32x64xbf16> to vector<32x64xbf16>
    %cst_5 = arith.constant dense<0.000000e+00> : vector<256x64xf32>
    %5 = tpu.matmul %2, %4, %cst_5 {dimension_numbers = #tpu.dot_dimension_numbers<[1], [0], [0], [1], [0, 0, 1, 1], [], []>} : vector<256x32xbf16>, vector<32x64xbf16>, vector<256x64xf32> -> vector<256x64xf32>
    %6 = arith.addf %0, %5 : vector<256x64xf32>
    %c0_6 = arith.constant 0 : index
    %c1 = arith.constant 1 : index
    %c0_7 = arith.constant 0 : index
    %7 = vector.load %arg1[%c0_6, %c1, %c0_7] : memref<1x290x32xbf16, #tpu.memory_space<vmem>>, vector<1x256x32xbf16>
    %8 = vector.shape_cast %7 : vector<1x256x32xbf16> to vector<256x32xbf16>
    %c1_8 = arith.constant 1 : index
    %c0_9 = arith.constant 0 : index
    %c0_10 = arith.constant 0 : index
    %9 = vector.load %arg2[%c1_8, %c0_9, %c0_10] : memref<9x32x64xbf16, #tpu.memory_space<vmem>>, vector<1x32x64xbf16>
    %10 = vector.shape_cast %9 : vector<1x32x64xbf16> to vector<32x64xbf16>
    %cst_11 = arith.constant dense<0.000000e+00> : vector<256x64xf32>
    %11 = tpu.matmul %8, %10, %cst_11 {dimension_numbers = #tpu.dot_dimension_numbers<[1], [0], [0], [1], [0, 0, 1, 1], [], []>} : vector<256x32xbf16>, vector<32x64xbf16>, vector<256x64xf32> -> vector<256x64xf32>
    %12 = arith.addf %6, %11 : vector<256x64xf32>
    %c0_12 = arith.constant 0 : index
    %c2 = arith.constant 2 : index
    %c0_13 = arith.constant 0 : index
    %13 = vector.load %arg1[%c0_12, %c2, %c0_13] : memref<1x290x32xbf16, #tpu.memory_space<vmem>>, vector<1x256x32xbf16>
    %14 = vector.shape_cast %13 : vector<1x256x32xbf16> to vector<256x32xbf16>
    %c2_14 = arith.constant 2 : index
    %c0_15 = arith.constant 0 : index
    %c0_16 = arith.constant 0 : index
    %15 = vector.load %arg2[%c2_14, %c0_15, %c0_16] : memref<9x32x64xbf16, #tpu.memory_space<vmem>>, vector<1x32x64xbf16>
    %16 = vector.shape_cast %15 : vector<1x32x64xbf16> to vector<32x64xbf16>
    %cst_17 = arith.constant dense<0.000000e+00> : vector<256x64xf32>
    %17 = tpu.matmul %14, %16, %cst_17 {dimension_numbers = #tpu.dot_dimension_numbers<[1], [0], [0], [1], [0, 0, 1, 1], [], []>} : vector<256x32xbf16>, vector<32x64xbf16>, vector<256x64xf32> -> vector<256x64xf32>
    %18 = arith.addf %12, %17 : vector<256x64xf32>
    %c0_18 = arith.constant 0 : index
    %c16 = arith.constant 16 : index
    %c0_19 = arith.constant 0 : index
    %19 = vector.load %arg1[%c0_18, %c16, %c0_19] : memref<1x290x32xbf16, #tpu.memory_space<vmem>>, vector<1x256x32xbf16>
    %20 = vector.shape_cast %19 : vector<1x256x32xbf16> to vector<256x32xbf16>
    %c3 = arith.constant 3 : index
    %c0_20 = arith.constant 0 : index
    %c0_21 = arith.constant 0 : index
    %21 = vector.load %arg2[%c3, %c0_20, %c0_21] : memref<9x32x64xbf16, #tpu.memory_space<vmem>>, vector<1x32x64xbf16>
    %22 = vector.shape_cast %21 : vector<1x32x64xbf16> to vector<32x64xbf16>
    %cst_22 = arith.constant dense<0.000000e+00> : vector<256x64xf32>
    %23 = tpu.matmul %20, %22, %cst_22 {dimension_numbers = #tpu.dot_dimension_numbers<[1], [0], [0], [1], [0, 0, 1, 1], [], []>} : vector<256x32xbf16>, vector<32x64xbf16>, vector<256x64xf32> -> vector<256x64xf32>
    %24 = arith.addf %18, %23 : vector<256x64xf32>
    %c0_23 = arith.constant 0 : index
    %c17 = arith.constant 17 : index
    %c0_24 = arith.constant 0 : index
    %25 = vector.load %arg1[%c0_23, %c17, %c0_24] : memref<1x290x32xbf16, #tpu.memory_space<vmem>>, vector<1x256x32xbf16>
    %26 = vector.shape_cast %25 : vector<1x256x32xbf16> to vector<256x32xbf16>
    %c4 = arith.constant 4 : index
    %c0_25 = arith.constant 0 : index
    %c0_26 = arith.constant 0 : index
    %27 = vector.load %arg2[%c4, %c0_25, %c0_26] : memref<9x32x64xbf16, #tpu.memory_space<vmem>>, vector<1x32x64xbf16>
    %28 = vector.shape_cast %27 : vector<1x32x64xbf16> to vector<32x64xbf16>
    %cst_27 = arith.constant dense<0.000000e+00> : vector<256x64xf32>
    %29 = tpu.matmul %26, %28, %cst_27 {dimension_numbers = #tpu.dot_dimension_numbers<[1], [0], [0], [1], [0, 0, 1, 1], [], []>} : vector<256x32xbf16>, vector<32x64xbf16>, vector<256x64xf32> -> vector<256x64xf32>
    %30 = arith.addf %24, %29 : vector<256x64xf32>
    %c0_28 = arith.constant 0 : index
    %c18 = arith.constant 18 : index
    %c0_29 = arith.constant 0 : index
    %31 = vector.load %arg1[%c0_28, %c18, %c0_29] : memref<1x290x32xbf16, #tpu.memory_space<vmem>>, vector<1x256x32xbf16>
    %32 = vector.shape_cast %31 : vector<1x256x32xbf16> to vector<256x32xbf16>
    %c5 = arith.constant 5 : index
    %c0_30 = arith.constant 0 : index
    %c0_31 = arith.constant 0 : index
    %33 = vector.load %arg2[%c5, %c0_30, %c0_31] : memref<9x32x64xbf16, #tpu.memory_space<vmem>>, vector<1x32x64xbf16>
    %34 = vector.shape_cast %33 : vector<1x32x64xbf16> to vector<32x64xbf16>
    %cst_32 = arith.constant dense<0.000000e+00> : vector<256x64xf32>
    %35 = tpu.matmul %32, %34, %cst_32 {dimension_numbers = #tpu.dot_dimension_numbers<[1], [0], [0], [1], [0, 0, 1, 1], [], []>} : vector<256x32xbf16>, vector<32x64xbf16>, vector<256x64xf32> -> vector<256x64xf32>
    %36 = arith.addf %30, %35 : vector<256x64xf32>
    %c0_33 = arith.constant 0 : index
    %c32 = arith.constant 32 : index
    %c0_34 = arith.constant 0 : index
    %37 = vector.load %arg1[%c0_33, %c32, %c0_34] : memref<1x290x32xbf16, #tpu.memory_space<vmem>>, vector<1x256x32xbf16>
    %38 = vector.shape_cast %37 : vector<1x256x32xbf16> to vector<256x32xbf16>
    %c6 = arith.constant 6 : index
    %c0_35 = arith.constant 0 : index
    %c0_36 = arith.constant 0 : index
    %39 = vector.load %arg2[%c6, %c0_35, %c0_36] : memref<9x32x64xbf16, #tpu.memory_space<vmem>>, vector<1x32x64xbf16>
    %40 = vector.shape_cast %39 : vector<1x32x64xbf16> to vector<32x64xbf16>
    %cst_37 = arith.constant dense<0.000000e+00> : vector<256x64xf32>
    %41 = tpu.matmul %38, %40, %cst_37 {dimension_numbers = #tpu.dot_dimension_numbers<[1], [0], [0], [1], [0, 0, 1, 1], [], []>} : vector<256x32xbf16>, vector<32x64xbf16>, vector<256x64xf32> -> vector<256x64xf32>
    %42 = arith.addf %36, %41 : vector<256x64xf32>
    %c0_38 = arith.constant 0 : index
    %c33 = arith.constant 33 : index
    %c0_39 = arith.constant 0 : index
    %43 = vector.load %arg1[%c0_38, %c33, %c0_39] : memref<1x290x32xbf16, #tpu.memory_space<vmem>>, vector<1x256x32xbf16>
    %44 = vector.shape_cast %43 : vector<1x256x32xbf16> to vector<256x32xbf16>
    %c7 = arith.constant 7 : index
    %c0_40 = arith.constant 0 : index
    %c0_41 = arith.constant 0 : index
    %45 = vector.load %arg2[%c7, %c0_40, %c0_41] : memref<9x32x64xbf16, #tpu.memory_space<vmem>>, vector<1x32x64xbf16>
    %46 = vector.shape_cast %45 : vector<1x32x64xbf16> to vector<32x64xbf16>
    %cst_42 = arith.constant dense<0.000000e+00> : vector<256x64xf32>
    %47 = tpu.matmul %44, %46, %cst_42 {dimension_numbers = #tpu.dot_dimension_numbers<[1], [0], [0], [1], [0, 0, 1, 1], [], []>} : vector<256x32xbf16>, vector<32x64xbf16>, vector<256x64xf32> -> vector<256x64xf32>
    %48 = arith.addf %42, %47 : vector<256x64xf32>
    %c0_43 = arith.constant 0 : index
    %c34 = arith.constant 34 : index
    %c0_44 = arith.constant 0 : index
    %49 = vector.load %arg1[%c0_43, %c34, %c0_44] : memref<1x290x32xbf16, #tpu.memory_space<vmem>>, vector<1x256x32xbf16>
    %50 = vector.shape_cast %49 : vector<1x256x32xbf16> to vector<256x32xbf16>
    %c8 = arith.constant 8 : index
    %c0_45 = arith.constant 0 : index
    %c0_46 = arith.constant 0 : index
    %51 = vector.load %arg2[%c8, %c0_45, %c0_46] : memref<9x32x64xbf16, #tpu.memory_space<vmem>>, vector<1x32x64xbf16>
    %52 = vector.shape_cast %51 : vector<1x32x64xbf16> to vector<32x64xbf16>
    %cst_47 = arith.constant dense<0.000000e+00> : vector<256x64xf32>
    %53 = tpu.matmul %50, %52, %cst_47 {dimension_numbers = #tpu.dot_dimension_numbers<[1], [0], [0], [1], [0, 0, 1, 1], [], []>} : vector<256x32xbf16>, vector<32x64xbf16>, vector<256x64xf32> -> vector<256x64xf32>
    %54 = arith.addf %48, %53 : vector<256x64xf32>
    %c0_48 = arith.constant 0 : index
    %c0_49 = arith.constant 0 : index
    %55 = vector.load %arg3[%c0_48, %c0_49] : memref<1x64xf32, #tpu.memory_space<vmem>>, vector<1x64xf32>
    %56 = vector.broadcast %55 : vector<1x64xf32> to vector<256x64xf32>
    %57 = arith.addf %54, %56 : vector<256x64xf32>
    %cst_50 = arith.constant 0.000000e+00 : f32
    %58 = vector.broadcast %cst_50 : f32 to vector<256x64xf32>
    %59 = arith.maximumf %57, %58 : vector<256x64xf32>
    %c0_51 = arith.constant 0 : index
    %c0_52 = arith.constant 0 : index
    %60 = vector.load %arg5[%c0_51, %c0_52] : memref<256x64xf32, #tpu.memory_space<vmem>>, vector<256x64xf32>
    tpu.vector_store %arg5[%c0_51, %c0_52], %59 {strides = array<i32>} : memref<256x64xf32, #tpu.memory_space<vmem>>, vector<256x64xf32>,
    %c17_53 = arith.constant 17 : index
    %c0_54 = arith.constant 0 : index
    %61 = vector.load %arg5[%c17_53, %c0_54] : memref<256x64xf32, #tpu.memory_space<vmem>>, vector<14x64xf32>
    %62 = arith.truncf %61 : vector<14x64xf32> to vector<14x64xbf16>
    %c0_55 = arith.constant 0 : index
    %c0_56 = arith.constant 0 : index
    %c0_57 = arith.constant 0 : index
    %c0_58 = arith.constant 0 : index
    %63 = vector.load %arg4[%c0_55, %c0_56, %c0_57, %c0_58] : memref<1x14x14x64xbf16, #tpu.memory_space<vmem>>, vector<1x1x14x64xbf16>
    %64 = vector.shape_cast %63 : vector<1x1x14x64xbf16> to vector<14x64xbf16>
    %65 = vector.shape_cast %62 : vector<14x64xbf16> to vector<1x1x14x64xbf16>
    tpu.vector_store %arg4[%c0_55, %c0_56, %c0_57, %c0_58], %65 {strides = array<i32>} : memref<1x14x14x64xbf16, #tpu.memory_space<vmem>>, vector<1x1x14x64xbf16>,
    %c33_59 = arith.constant 33 : index
    %c0_60 = arith.constant 0 : index
    %66 = vector.load %arg5[%c33_59, %c0_60] : memref<256x64xf32, #tpu.memory_space<vmem>>, vector<14x64xf32>
    %67 = arith.truncf %66 : vector<14x64xf32> to vector<14x64xbf16>
    %c0_61 = arith.constant 0 : index
    %c1_62 = arith.constant 1 : index
    %c0_63 = arith.constant 0 : index
    %c0_64 = arith.constant 0 : index
    %68 = vector.load %arg4[%c0_61, %c1_62, %c0_63, %c0_64] : memref<1x14x14x64xbf16, #tpu.memory_space<vmem>>, vector<1x1x14x64xbf16>
    %69 = vector.shape_cast %68 : vector<1x1x14x64xbf16> to vector<14x64xbf16>
    %70 = vector.shape_cast %67 : vector<14x64xbf16> to vector<1x1x14x64xbf16>
    tpu.vector_store %arg4[%c0_61, %c1_62, %c0_63, %c0_64], %70 {strides = array<i32>} : memref<1x14x14x64xbf16, #tpu.memory_space<vmem>>, vector<1x1x14x64xbf16>,
    %c49 = arith.constant 49 : index
    %c0_65 = arith.constant 0 : index
    %71 = vector.load %arg5[%c49, %c0_65] : memref<256x64xf32, #tpu.memory_space<vmem>>, vector<14x64xf32>
    %72 = arith.truncf %71 : vector<14x64xf32> to vector<14x64xbf16>
    %c0_66 = arith.constant 0 : index
    %c2_67 = arith.constant 2 : index
    %c0_68 = arith.constant 0 : index
    %c0_69 = arith.constant 0 : index
    %73 = vector.load %arg4[%c0_66, %c2_67, %c0_68, %c0_69] : memref<1x14x14x64xbf16, #tpu.memory_space<vmem>>, vector<1x1x14x64xbf16>
    %74 = vector.shape_cast %73 : vector<1x1x14x64xbf16> to vector<14x64xbf16>
    %75 = vector.shape_cast %72 : vector<14x64xbf16> to vector<1x1x14x64xbf16>
    tpu.vector_store %arg4[%c0_66, %c2_67, %c0_68, %c0_69], %75 {strides = array<i32>} : memref<1x14x14x64xbf16, #tpu.memory_space<vmem>>, vector<1x1x14x64xbf16>,
    %c65 = arith.constant 65 : index
    %c0_70 = arith.constant 0 : index
    %76 = vector.load %arg5[%c65, %c0_70] : memref<256x64xf32, #tpu.memory_space<vmem>>, vector<14x64xf32>
    %77 = arith.truncf %76 : vector<14x64xf32> to vector<14x64xbf16>
    %c0_71 = arith.constant 0 : index
    %c3_72 = arith.constant 3 : index
    %c0_73 = arith.constant 0 : index
    %c0_74 = arith.constant 0 : index
    %78 = vector.load %arg4[%c0_71, %c3_72, %c0_73, %c0_74] : memref<1x14x14x64xbf16, #tpu.memory_space<vmem>>, vector<1x1x14x64xbf16>
    %79 = vector.shape_cast %78 : vector<1x1x14x64xbf16> to vector<14x64xbf16>
    %80 = vector.shape_cast %77 : vector<14x64xbf16> to vector<1x1x14x64xbf16>
    tpu.vector_store %arg4[%c0_71, %c3_72, %c0_73, %c0_74], %80 {strides = array<i32>} : memref<1x14x14x64xbf16, #tpu.memory_space<vmem>>, vector<1x1x14x64xbf16>,
    %c81 = arith.constant 81 : index
    %c0_75 = arith.constant 0 : index
    %81 = vector.load %arg5[%c81, %c0_75] : memref<256x64xf32, #tpu.memory_space<vmem>>, vector<14x64xf32>
    %82 = arith.truncf %81 : vector<14x64xf32> to vector<14x64xbf16>
    %c0_76 = arith.constant 0 : index
    %c4_77 = arith.constant 4 : index
    %c0_78 = arith.constant 0 : index
    %c0_79 = arith.constant 0 : index
    %83 = vector.load %arg4[%c0_76, %c4_77, %c0_78, %c0_79] : memref<1x14x14x64xbf16, #tpu.memory_space<vmem>>, vector<1x1x14x64xbf16>
    %84 = vector.shape_cast %83 : vector<1x1x14x64xbf16> to vector<14x64xbf16>
    %85 = vector.shape_cast %82 : vector<14x64xbf16> to vector<1x1x14x64xbf16>
    tpu.vector_store %arg4[%c0_76, %c4_77, %c0_78, %c0_79], %85 {strides = array<i32>} : memref<1x14x14x64xbf16, #tpu.memory_space<vmem>>, vector<1x1x14x64xbf16>,
    %c97 = arith.constant 97 : index
    %c0_80 = arith.constant 0 : index
    %86 = vector.load %arg5[%c97, %c0_80] : memref<256x64xf32, #tpu.memory_space<vmem>>, vector<14x64xf32>
    %87 = arith.truncf %86 : vector<14x64xf32> to vector<14x64xbf16>
    %c0_81 = arith.constant 0 : index
    %c5_82 = arith.constant 5 : index
    %c0_83 = arith.constant 0 : index
    %c0_84 = arith.constant 0 : index
    %88 = vector.load %arg4[%c0_81, %c5_82, %c0_83, %c0_84] : memref<1x14x14x64xbf16, #tpu.memory_space<vmem>>, vector<1x1x14x64xbf16>
    %89 = vector.shape_cast %88 : vector<1x1x14x64xbf16> to vector<14x64xbf16>
    %90 = vector.shape_cast %87 : vector<14x64xbf16> to vector<1x1x14x64xbf16>
    tpu.vector_store %arg4[%c0_81, %c5_82, %c0_83, %c0_84], %90 {strides = array<i32>} : memref<1x14x14x64xbf16, #tpu.memory_space<vmem>>, vector<1x1x14x64xbf16>,
    %c113 = arith.constant 113 : index
    %c0_85 = arith.constant 0 : index
    %91 = vector.load %arg5[%c113, %c0_85] : memref<256x64xf32, #tpu.memory_space<vmem>>, vector<14x64xf32>
    %92 = arith.truncf %91 : vector<14x64xf32> to vector<14x64xbf16>
    %c0_86 = arith.constant 0 : index
    %c6_87 = arith.constant 6 : index
    %c0_88 = arith.constant 0 : index
    %c0_89 = arith.constant 0 : index
    %93 = vector.load %arg4[%c0_86, %c6_87, %c0_88, %c0_89] : memref<1x14x14x64xbf16, #tpu.memory_space<vmem>>, vector<1x1x14x64xbf16>
    %94 = vector.shape_cast %93 : vector<1x1x14x64xbf16> to vector<14x64xbf16>
    %95 = vector.shape_cast %92 : vector<14x64xbf16> to vector<1x1x14x64xbf16>
    tpu.vector_store %arg4[%c0_86, %c6_87, %c0_88, %c0_89], %95 {strides = array<i32>} : memref<1x14x14x64xbf16, #tpu.memory_space<vmem>>, vector<1x1x14x64xbf16>,
    %c129 = arith.constant 129 : index
    %c0_90 = arith.constant 0 : index
    %96 = vector.load %arg5[%c129, %c0_90] : memref<256x64xf32, #tpu.memory_space<vmem>>, vector<14x64xf32>
    %97 = arith.truncf %96 : vector<14x64xf32> to vector<14x64xbf16>
    %c0_91 = arith.constant 0 : index
    %c7_92 = arith.constant 7 : index
    %c0_93 = arith.constant 0 : index
    %c0_94 = arith.constant 0 : index
    %98 = vector.load %arg4[%c0_91, %c7_92, %c0_93, %c0_94] : memref<1x14x14x64xbf16, #tpu.memory_space<vmem>>, vector<1x1x14x64xbf16>
    %99 = vector.shape_cast %98 : vector<1x1x14x64xbf16> to vector<14x64xbf16>
    %100 = vector.shape_cast %97 : vector<14x64xbf16> to vector<1x1x14x64xbf16>
    tpu.vector_store %arg4[%c0_91, %c7_92, %c0_93, %c0_94], %100 {strides = array<i32>} : memref<1x14x14x64xbf16, #tpu.memory_space<vmem>>, vector<1x1x14x64xbf16>,
    %c145 = arith.constant 145 : index
    %c0_95 = arith.constant 0 : index
    %101 = vector.load %arg5[%c145, %c0_95] : memref<256x64xf32, #tpu.memory_space<vmem>>, vector<14x64xf32>
    %102 = arith.truncf %101 : vector<14x64xf32> to vector<14x64xbf16>
    %c0_96 = arith.constant 0 : index
    %c8_97 = arith.constant 8 : index
    %c0_98 = arith.constant 0 : index
    %c0_99 = arith.constant 0 : index
    %103 = vector.load %arg4[%c0_96, %c8_97, %c0_98, %c0_99] : memref<1x14x14x64xbf16, #tpu.memory_space<vmem>>, vector<1x1x14x64xbf16>
    %104 = vector.shape_cast %103 : vector<1x1x14x64xbf16> to vector<14x64xbf16>
    %105 = vector.shape_cast %102 : vector<14x64xbf16> to vector<1x1x14x64xbf16>
    tpu.vector_store %arg4[%c0_96, %c8_97, %c0_98, %c0_99], %105 {strides = array<i32>} : memref<1x14x14x64xbf16, #tpu.memory_space<vmem>>, vector<1x1x14x64xbf16>,
    %c161 = arith.constant 161 : index
    %c0_100 = arith.constant 0 : index
    %106 = vector.load %arg5[%c161, %c0_100] : memref<256x64xf32, #tpu.memory_space<vmem>>, vector<14x64xf32>
    %107 = arith.truncf %106 : vector<14x64xf32> to vector<14x64xbf16>
    %c0_101 = arith.constant 0 : index
    %c9 = arith.constant 9 : index
    %c0_102 = arith.constant 0 : index
    %c0_103 = arith.constant 0 : index
    %108 = vector.load %arg4[%c0_101, %c9, %c0_102, %c0_103] : memref<1x14x14x64xbf16, #tpu.memory_space<vmem>>, vector<1x1x14x64xbf16>
    %109 = vector.shape_cast %108 : vector<1x1x14x64xbf16> to vector<14x64xbf16>
    %110 = vector.shape_cast %107 : vector<14x64xbf16> to vector<1x1x14x64xbf16>
    tpu.vector_store %arg4[%c0_101, %c9, %c0_102, %c0_103], %110 {strides = array<i32>} : memref<1x14x14x64xbf16, #tpu.memory_space<vmem>>, vector<1x1x14x64xbf16>,
    %c177 = arith.constant 177 : index
    %c0_104 = arith.constant 0 : index
    %111 = vector.load %arg5[%c177, %c0_104] : memref<256x64xf32, #tpu.memory_space<vmem>>, vector<14x64xf32>
    %112 = arith.truncf %111 : vector<14x64xf32> to vector<14x64xbf16>
    %c0_105 = arith.constant 0 : index
    %c10 = arith.constant 10 : index
    %c0_106 = arith.constant 0 : index
    %c0_107 = arith.constant 0 : index
    %113 = vector.load %arg4[%c0_105, %c10, %c0_106, %c0_107] : memref<1x14x14x64xbf16, #tpu.memory_space<vmem>>, vector<1x1x14x64xbf16>
    %114 = vector.shape_cast %113 : vector<1x1x14x64xbf16> to vector<14x64xbf16>
    %115 = vector.shape_cast %112 : vector<14x64xbf16> to vector<1x1x14x64xbf16>
    tpu.vector_store %arg4[%c0_105, %c10, %c0_106, %c0_107], %115 {strides = array<i32>} : memref<1x14x14x64xbf16, #tpu.memory_space<vmem>>, vector<1x1x14x64xbf16>,
    %c193 = arith.constant 193 : index
    %c0_108 = arith.constant 0 : index
    %116 = vector.load %arg5[%c193, %c0_108] : memref<256x64xf32, #tpu.memory_space<vmem>>, vector<14x64xf32>
    %117 = arith.truncf %116 : vector<14x64xf32> to vector<14x64xbf16>
    %c0_109 = arith.constant 0 : index
    %c11 = arith.constant 11 : index
    %c0_110 = arith.constant 0 : index
    %c0_111 = arith.constant 0 : index
    %118 = vector.load %arg4[%c0_109, %c11, %c0_110, %c0_111] : memref<1x14x14x64xbf16, #tpu.memory_space<vmem>>, vector<1x1x14x64xbf16>
    %119 = vector.shape_cast %118 : vector<1x1x14x64xbf16> to vector<14x64xbf16>
    %120 = vector.shape_cast %117 : vector<14x64xbf16> to vector<1x1x14x64xbf16>
    tpu.vector_store %arg4[%c0_109, %c11, %c0_110, %c0_111], %120 {strides = array<i32>} : memref<1x14x14x64xbf16, #tpu.memory_space<vmem>>, vector<1x1x14x64xbf16>,
    %c209 = arith.constant 209 : index
    %c0_112 = arith.constant 0 : index
    %121 = vector.load %arg5[%c209, %c0_112] : memref<256x64xf32, #tpu.memory_space<vmem>>, vector<14x64xf32>
    %122 = arith.truncf %121 : vector<14x64xf32> to vector<14x64xbf16>
    %c0_113 = arith.constant 0 : index
    %c12 = arith.constant 12 : index
    %c0_114 = arith.constant 0 : index
    %c0_115 = arith.constant 0 : index
    %123 = vector.load %arg4[%c0_113, %c12, %c0_114, %c0_115] : memref<1x14x14x64xbf16, #tpu.memory_space<vmem>>, vector<1x1x14x64xbf16>
    %124 = vector.shape_cast %123 : vector<1x1x14x64xbf16> to vector<14x64xbf16>
    %125 = vector.shape_cast %122 : vector<14x64xbf16> to vector<1x1x14x64xbf16>
    tpu.vector_store %arg4[%c0_113, %c12, %c0_114, %c0_115], %125 {strides = array<i32>} : memref<1x14x14x64xbf16, #tpu.memory_space<vmem>>, vector<1x1x14x64xbf16>,
    %c225 = arith.constant 225 : index
    %c0_116 = arith.constant 0 : index
    %126 = vector.load %arg5[%c225, %c0_116] : memref<256x64xf32, #tpu.memory_space<vmem>>, vector<14x64xf32>
    %127 = arith.truncf %126 : vector<14x64xf32> to vector<14x64xbf16>
    %c0_117 = arith.constant 0 : index
    %c13 = arith.constant 13 : index
    %c0_118 = arith.constant 0 : index
    %c0_119 = arith.constant 0 : index
    %128 = vector.load %arg4[%c0_117, %c13, %c0_118, %c0_119] : memref<1x14x14x64xbf16, #tpu.memory_space<vmem>>, vector<1x1x14x64xbf16>
    %129 = vector.shape_cast %128 : vector<1x1x14x64xbf16> to vector<14x64xbf16>
    %130 = vector.shape_cast %127 : vector<14x64xbf16> to vector<1x1x14x64xbf16>
    tpu.vector_store %arg4[%c0_117, %c13, %c0_118, %c0_119], %130 {strides = array<i32>} : memref<1x14x14x64xbf16, #tpu.memory_space<vmem>>, vector<1x1x14x64xbf16>,
    return
  }
  func.func @transform_0(%arg0: i32) -> (i32, i32, i32) {
    %c0_i32 = arith.constant 0 : i32
    %c0_i32_0 = arith.constant 0 : i32
    %c0_i32_1 = arith.constant 0 : i32
    return %arg0, %c0_i32, %c0_i32_0 : i32, i32, i32
  }
  func.func @transform_1(%arg0: i32) -> (i32, i32, i32) {
    %c0_i32 = arith.constant 0 : i32
    %c0_i32_0 = arith.constant 0 : i32
    %c0_i32_1 = arith.constant 0 : i32
    %c0_i32_2 = arith.constant 0 : i32
    return %c0_i32, %c0_i32_0, %c0_i32_1 : i32, i32, i32
  }
  func.func @transform_2(%arg0: i32) -> (i32, i32) {
    %c0_i32 = arith.constant 0 : i32
    %c0_i32_0 = arith.constant 0 : i32
    %c0_i32_1 = arith.constant 0 : i32
    return %c0_i32, %c0_i32_0 : i32, i32
  }
  func.func @transform_3(%arg0: i32) -> (i32, i32, i32, i32) {
    %c0_i32 = arith.constant 0 : i32
    %c0_i32_0 = arith.constant 0 : i32
    %c0_i32_1 = arith.constant 0 : i32
    %c0_i32_2 = arith.constant 0 : i32
    return %arg0, %c0_i32, %c0_i32_0, %c0_i32_1 : i32, i32, i32, i32
  }
}

module attributes {stable_mosaic.version = 11 : i64} {
  func.func @_maxpool_kernel(%arg0: i32, %arg1: memref<7x2x7x128xbf16, #tpu.memory_space<vmem>>, %arg2: memref<7x7x64xbf16, #tpu.memory_space<vmem>>) attributes {dimension_semantics = [#tpu.dimension_semantics<parallel>], iteration_bounds = array<i64: 2>, scalar_prefetch = 0 : i64, scratch_operands = 0 : i64, tpu.core_type = #tpu.core_type<tc>, window_params = [{transform_indices = @transform_0, window_bounds = array<i64: 7, 2, 7, 128>}, {transform_indices = @transform_1, window_bounds = array<i64: 7, 7, 64>}]} {
    %c0 = arith.constant 0 : index
    %c0_0 = arith.constant 0 : index
    %c0_1 = arith.constant 0 : index
    %c0_2 = arith.constant 0 : index
    %0 = vector.load %arg1[%c0, %c0_0, %c0_1, %c0_2] : memref<7x2x7x128xbf16, #tpu.memory_space<vmem>>, vector<7x2x7x128xbf16>
    %1 = vector.extract_strided_slice %0 {offsets = [0, 0, 0, 0], sizes = [7, 1, 7, 128], strides = [1, 1, 1, 1]} : vector<7x2x7x128xbf16> to vector<7x1x7x128xbf16>
    %2 = vector.shape_cast %1 : vector<7x1x7x128xbf16> to vector<7x7x128xbf16>
    %3 = vector.extract_strided_slice %0 {offsets = [0, 1, 0, 0], sizes = [7, 1, 7, 128], strides = [1, 1, 1, 1]} : vector<7x2x7x128xbf16> to vector<7x1x7x128xbf16>
    %4 = vector.shape_cast %3 : vector<7x1x7x128xbf16> to vector<7x7x128xbf16>
    %5 = arith.maximumf %2, %4 : vector<7x7x128xbf16>
    %6 = vector.extract_strided_slice %5 {offsets = [0, 0, 0], sizes = [7, 7, 64], strides = [1, 1, 1]} : vector<7x7x128xbf16> to vector<7x7x64xbf16>
    %7 = vector.extract_strided_slice %5 {offsets = [0, 0, 64], sizes = [7, 7, 64], strides = [1, 1, 1]} : vector<7x7x128xbf16> to vector<7x7x64xbf16>
    %8 = arith.maximumf %6, %7 : vector<7x7x64xbf16>
    %c0_3 = arith.constant 0 : index
    %c0_4 = arith.constant 0 : index
    %c0_5 = arith.constant 0 : index
    %9 = vector.load %arg2[%c0_3, %c0_4, %c0_5] : memref<7x7x64xbf16, #tpu.memory_space<vmem>>, vector<7x7x64xbf16>
    tpu.vector_store %arg2[%c0_3, %c0_4, %c0_5], %8 {strides = array<i32>} : memref<7x7x64xbf16, #tpu.memory_space<vmem>>, vector<7x7x64xbf16>,
    return
  }
  func.func @transform_0(%arg0: i32) -> (i32, i32, i32, i32) {
    %c0_i32 = arith.constant 0 : i32
    %c0_i32_0 = arith.constant 0 : i32
    %c0_i32_1 = arith.constant 0 : i32
    %c0_i32_2 = arith.constant 0 : i32
    return %arg0, %c0_i32, %c0_i32_0, %c0_i32_1 : i32, i32, i32, i32
  }
  func.func @transform_1(%arg0: i32) -> (i32, i32, i32) {
    %c0_i32 = arith.constant 0 : i32
    %c0_i32_0 = arith.constant 0 : i32
    %c0_i32_1 = arith.constant 0 : i32
    return %arg0, %c0_i32, %c0_i32_0 : i32, i32, i32
  }
}

module attributes {stable_mosaic.version = 11 : i64} {
  func.func @_fc_fused_kernel(%arg0: i32, %arg1: memref<2x3136xbf16, #tpu.memory_space<vmem>>, %arg2: memref<3136x128xbf16, #tpu.memory_space<vmem>>, %arg3: memref<1x128xf32, #tpu.memory_space<vmem>>, %arg4: memref<128x128xbf16, #tpu.memory_space<vmem>>, %arg5: memref<1x128xf32, #tpu.memory_space<vmem>>, %arg6: memref<2x128xf32, #tpu.memory_space<vmem>>) attributes {dimension_semantics = [#tpu.dimension_semantics<parallel>], iteration_bounds = array<i64: 1>, scalar_prefetch = 0 : i64, scratch_operands = 0 : i64, tpu.core_type = #tpu.core_type<tc>, window_params = [{transform_indices = @transform_0, window_bounds = array<i64: 2, 3136>}, {pipeline_mode = #tpu.pipeline_mode<synchronous>, transform_indices = @transform_1, window_bounds = array<i64: 3136, 128>}, {pipeline_mode = #tpu.pipeline_mode<synchronous>, transform_indices = @transform_2, window_bounds = array<i64: 1, 128>}, {pipeline_mode = #tpu.pipeline_mode<synchronous>, transform_indices = @transform_3, window_bounds = array<i64: 128, 128>}, {pipeline_mode = #tpu.pipeline_mode<synchronous>, transform_indices = @transform_4, window_bounds = array<i64: 1, 128>}, {transform_indices = @transform_5, window_bounds = array<i64: 2, 128>}]} {
    %c0 = arith.constant 0 : index
    %c0_0 = arith.constant 0 : index
    %0 = vector.load %arg1[%c0, %c0_0] : memref<2x3136xbf16, #tpu.memory_space<vmem>>, vector<2x3136xbf16>
    %c0_1 = arith.constant 0 : index
    %c0_2 = arith.constant 0 : index
    %1 = vector.load %arg2[%c0_1, %c0_2] : memref<3136x128xbf16, #tpu.memory_space<vmem>>, vector<3136x128xbf16>
    %cst = arith.constant dense<0.000000e+00> : vector<2x128xf32>
    %2 = tpu.matmul %0, %1, %cst {dimension_numbers = #tpu.dot_dimension_numbers<[1], [0], [0], [1], [0, 0, 1, 1], [], []>} : vector<2x3136xbf16>, vector<3136x128xbf16>, vector<2x128xf32> -> vector<2x128xf32>
    %c0_3 = arith.constant 0 : index
    %c0_4 = arith.constant 0 : index
    %3 = vector.load %arg3[%c0_3, %c0_4] : memref<1x128xf32, #tpu.memory_space<vmem>>, vector<1x128xf32>
    %4 = vector.broadcast %3 : vector<1x128xf32> to vector<2x128xf32>
    %5 = arith.addf %2, %4 : vector<2x128xf32>
    %cst_5 = arith.constant 0.000000e+00 : f32
    %6 = vector.broadcast %cst_5 : f32 to vector<2x128xf32>
    %7 = arith.maximumf %5, %6 : vector<2x128xf32>
    %8 = arith.truncf %7 : vector<2x128xf32> to vector<2x128xbf16>
    %c0_6 = arith.constant 0 : index
    %c0_7 = arith.constant 0 : index
    %9 = vector.load %arg4[%c0_6, %c0_7] : memref<128x128xbf16, #tpu.memory_space<vmem>>, vector<128x128xbf16>
    %cst_8 = arith.constant dense<0.000000e+00> : vector<2x128xf32>
    %10 = tpu.matmul %8, %9, %cst_8 {dimension_numbers = #tpu.dot_dimension_numbers<[1], [0], [0], [1], [0, 0, 1, 1], [], []>} : vector<2x128xbf16>, vector<128x128xbf16>, vector<2x128xf32> -> vector<2x128xf32>
    %c0_9 = arith.constant 0 : index
    %c0_10 = arith.constant 0 : index
    %11 = vector.load %arg5[%c0_9, %c0_10] : memref<1x128xf32, #tpu.memory_space<vmem>>, vector<1x128xf32>
    %12 = vector.broadcast %11 : vector<1x128xf32> to vector<2x128xf32>
    %13 = arith.addf %10, %12 : vector<2x128xf32>
    %c0_11 = arith.constant 0 : index
    %c0_12 = arith.constant 0 : index
    %14 = vector.load %arg6[%c0_11, %c0_12] : memref<2x128xf32, #tpu.memory_space<vmem>>, vector<2x128xf32>
    tpu.vector_store %arg6[%c0_11, %c0_12], %13 {strides = array<i32>} : memref<2x128xf32, #tpu.memory_space<vmem>>, vector<2x128xf32>,
    return
  }
  func.func @transform_0(%arg0: i32) -> (i32, i32) {
    %c0_i32 = arith.constant 0 : i32
    %c0_i32_0 = arith.constant 0 : i32
    return %arg0, %c0_i32 : i32, i32
  }
  func.func @transform_1(%arg0: i32) -> (i32, i32) {
    %c0_i32 = arith.constant 0 : i32
    %c0_i32_0 = arith.constant 0 : i32
    %c0_i32_1 = arith.constant 0 : i32
    return %c0_i32, %c0_i32_0 : i32, i32
  }
  func.func @transform_2(%arg0: i32) -> (i32, i32) {
    %c0_i32 = arith.constant 0 : i32
    %c0_i32_0 = arith.constant 0 : i32
    %c0_i32_1 = arith.constant 0 : i32
    return %c0_i32, %c0_i32_0 : i32, i32
  }
  func.func @transform_3(%arg0: i32) -> (i32, i32) {
    %c0_i32 = arith.constant 0 : i32
    %c0_i32_0 = arith.constant 0 : i32
    %c0_i32_1 = arith.constant 0 : i32
    return %c0_i32, %c0_i32_0 : i32, i32
  }
  func.func @transform_4(%arg0: i32) -> (i32, i32) {
    %c0_i32 = arith.constant 0 : i32
    %c0_i32_0 = arith.constant 0 : i32
    %c0_i32_1 = arith.constant 0 : i32
    return %c0_i32, %c0_i32_0 : i32, i32
  }
  func.func @transform_5(%arg0: i32) -> (i32, i32) {
    %c0_i32 = arith.constant 0 : i32
    %c0_i32_0 = arith.constant 0 : i32
    return %arg0, %c0_i32 : i32, i32
  }
}

</mosaic_0001>

<llo_original>
// kernel: net_forward.6
$region0: #{net_forward.6}
  #allocation0 [shape = 'u32[]', space=smem, size = 0x4, offset = 0x4, fixed_abs, tag = 'smem constant byte address 0x4 - core index']
  #allocation1 [shape = 'u32[144,128]{1,0:T(1,128)}', space=vmem, size = 0x12000, scoped, tag = 'internal scratch']
  %s0 = inlined_call_operand.vmem [shape: bf16[28,2,14,64], index: 0, kind: input, shape index: {}]
  %s1 = inlined_call_operand.vmem [shape: bf16[28,14,32], index: 1, kind: output, shape index: {}]
  %s2 = sld [smem:[#allocation0]]
  $region37: #{net_forward.6} parent=0
    _
  %s4 = ssub.s32 1, %s2
  %s5 = scalar_select 0, %s4, %s2
  loop: start=0, step=1, limit=4
  $region2: #{net_forward.6} parent=0 // loop_pre_header
    _
  $region3: #{net_forward.6} parent=0 // loop_header
    %s7 = sphi 0, %s11
    %p8 = scmp.ge.s32.totalorder %s7, 4
    %s17 = sphi 0, %s19
    %s20 = sphi 0, %s17
    %s21 = sphi 0, %s20
    %s37 = sphi 0, %s21
    %s43 = sphi 0, %s45
    %s46 = sphi 0, %s43
    %s47 = sphi 0, %s46
    %s63 = sphi 0, %s47
  $region4: #{net_forward.6} parent=0 // loop_header_branch
    %10 = sbr.rel (%p8) target = $region8
  $region5: #{net_forward.6} parent=0 // loop_body
    %s12 = ssub.s32 %s7, 1
    %s13 = ssub.s32 %s7, 2
    %s14 = sadd.s32 %s7, 1
    %s15 = ssub.s32 %s7, %s14
    %p16 = scmp.eq.s32.totalorder %s15, 0
    %s18 = sadd.s32 %s17, 1
    %s19 = scalar_select %p16, %s17, %s18
    %p22 = pneg %p16
    %p23 = scmp.eq.s32.totalorder %s7, 1
    %p24 = por %p22, %p23
    %p25 = scmp.ne.s32.totalorder %s17, %s20
    %p26 = scmp.eq.s32.totalorder %s7, 0
    %p27 = por %p25, %p26
    %p28 = scmp.ne.s32.totalorder %s17, %s20
    %p29 = scmp.eq.s32.totalorder %s12, 1
    %p30 = por %p28, %p29
    %p31 = scmp.ne.s32.totalorder %s20, %s21
    %p32 = scmp.eq.s32.totalorder %s12, 0
    %p33 = por %p31, %p32
    %p34 = scmp.ne.s32.totalorder %s20, %s21
    %p35 = scmp.eq.s32.totalorder %s13, 1
    %p36 = por %p34, %p35
    %p38 = scmp.ne.s32.totalorder %s21, %s37
    %p39 = scmp.eq.s32.totalorder %s13, 0
    %p40 = por %p38, %p39
    %s41 = ssub.s32 %s7, %s14
    %p42 = scmp.eq.s32.totalorder %s41, 0
    %s44 = sadd.s32 %s43, 1
    %s45 = scalar_select %p42, %s43, %s44
    %p48 = pneg %p42
    %p49 = scmp.eq.s32.totalorder %s7, 1
    %p50 = por %p48, %p49
    %p51 = scmp.ne.s32.totalorder %s43, %s46
    %p52 = scmp.eq.s32.totalorder %s7, 0
    %p53 = por %p51, %p52
    %p54 = scmp.ne.s32.totalorder %s43, %s46
    %p55 = scmp.eq.s32.totalorder %s12, 1
    %p56 = por %p54, %p55
    %p57 = scmp.ne.s32.totalorder %s46, %s47
    %p58 = scmp.eq.s32.totalorder %s12, 0
    %p59 = por %p57, %p58
    %p60 = scmp.ne.s32.totalorder %s46, %s47
    %p61 = scmp.eq.s32.totalorder %s13, 1
    %p62 = por %p60, %p61
    %p64 = scmp.ne.s32.totalorder %s47, %s63
    %p65 = scmp.eq.s32.totalorder %s13, 0
    %p66 = por %p64, %p65
    %p67 = scmp.le.s32.totalorder 1, %s7
    %p68 = scmp.lt.s32.totalorder %s7, 3
    %p69 = pnand %p67, %p68
    %p70 = pneg %p69
    // Predicated region
    $region9: #{net_forward.6} parent=5 // pred_check
      _
    $region10: #{net_forward.6} parent=5 // pred_check_branch
      %72 = sbr.rel (%p69) target = $region12
    $region11: #{net_forward.6} parent=5 // pred_region
      %s73 = ssub.s32 %s7, 1
    $region12: #{net_forward.6} parent=5 // pred_fallthru
      _
    %p74 = scmp.lt.s32.totalorder %s7, 2
    // Predicated region
    $region13: #{net_forward.6} parent=5 // pred_check
      %p75 = pneg %p74
    $region14: #{net_forward.6} parent=5 // pred_check_branch
      %77 = sbr.rel (%p75) target = $region16
    $region15: #{net_forward.6} parent=5 // pred_region
      // Predicated region
      $region17: #{net_forward.6} parent=15 // pred_check
        %p78 = pneg %p27
      $region18: #{net_forward.6} parent=15 // pred_check_branch
        %80 = sbr.rel (%p78) target = $region20
      $region19: #{net_forward.6} parent=15 // pred_region
        %s81 = smul.u32 14, %s7
        %p82 = scmp.lt.s32.totalorder %s81, 27
        %s83 = scalar_select %p82, %s81, 27
        %s84 = smul.addr %s83, 4
        %s85 = smul.addr %s84, 4
        %s86 = scalar_lea.vmem %s0, %s85
        %s87 = smul.u32 14, %s7
      $region20: #{net_forward.6} parent=15 // pred_fallthru
        _
    $region16: #{net_forward.6} parent=5 // pred_fallthru
      _
    %p88 = scmp.le.s32.totalorder 1, %s7
    %p89 = scmp.lt.s32.totalorder %s7, 3
    %p90 = pnand %p88, %p89
    %p91 = pneg %p90
    // Predicated region
    $region21: #{net_forward.6} parent=5 // pred_check
      _
    $region22: #{net_forward.6} parent=5 // pred_check_branch
      %93 = sbr.rel (%p90) target = $region24
    $region23: #{net_forward.6} parent=5 // pred_region
      %s94 = ssub.s32 %s7, 1
      %s95 = smul.u32 14, %s12
      %p96 = scmp.lt.s32.totalorder %s95, 27
      %s97 = scalar_select %p96, %s95, 27
      %s98 = smul.addr %s97, 4
      %s99 = smul.addr %s98, 4
      %s100 = scalar_lea.vmem %s0, %s99
      %p101 = pneg %p33
      %p102 = pneg %p30
      %p103 = pneg %p59
      %p104 = pneg %p56
      %s105 = smul.u32 14, %s12
      %p106 = scmp.lt.s32.totalorder %s105, 27
      %s107 = scalar_select %p106, %s105, 27
      %s108 = smul.addr %s107, 2
      %s109 = smul.addr %s108, 4
      %s110 = scalar_lea.vmem %s1, %s109
      %s111 = smul.u32 14, %s12
      %p112 = scmp.lt.s32.totalorder %s111, 27
      %s113 = scalar_select %p112, %s111, 27
      %s114 = smul.addr %s113, 4
      %s115 = smul.addr %s114, 4
      %s116 = scalar_lea.vmem %s0, %s115
      %s117 = smul.u32 14, %s12
      %s118 = smul.u32 14, %s12
      %p119 = scmp.lt.s32.totalorder %s118, 27
      %s120 = scalar_select %p119, %s118, 27
      %s121 = smul.addr %s120, 2
      %s122 = smul.addr %s121, 4
      %s123 = scalar_lea.vmem %s1, %s122
      %s124 = smul.u32 14, %s12
      %v125 = vld [vmem:[%s116] sm:$0xf]
      %v126 = vld [vmem:[%s116 + $0x4] sm:$0x7]
      %v127 = vld [vmem:[%s116 + $0x8] sm:$0xf]
      %v128 = vld [vmem:[%s116 + $0xc] sm:$0x7]
      %v129 = vld [vmem:[%s116 + $0x10] sm:$0xf]
      %v130 = vld [vmem:[%s116 + $0x14] sm:$0x7]
      %v131 = vld [vmem:[%s116 + $0x18] sm:$0xf]
      %v132 = vld [vmem:[%s116 + $0x1c] sm:$0x7]
      %v133 = vld [vmem:[%s116 + $0x20] sm:$0xf]
      %v134 = vld [vmem:[%s116 + $0x24] sm:$0x7]
      %v135 = vld [vmem:[%s116 + $0x28] sm:$0xf]
      %v136 = vld [vmem:[%s116 + $0x2c] sm:$0x7]
      %v137 = vld [vmem:[%s116 + $0x30] sm:$0xf]
      %v138 = vld [vmem:[%s116 + $0x34] sm:$0x7]
      %v139 = vld [vmem:[%s116 + $0x38] sm:$0xf]
      %v140 = vld [vmem:[%s116 + $0x3c] sm:$0x7]
      %v141 = vld [vmem:[%s116 + $0x40] sm:$0xf]
      %v142 = vld [vmem:[%s116 + $0x44] sm:$0x7]
      %v143 = vld [vmem:[%s116 + $0x48] sm:$0xf]
      %v144 = vld [vmem:[%s116 + $0x4c] sm:$0x7]
      %v145 = vld [vmem:[%s116 + $0x50] sm:$0xf]
      %v146 = vld [vmem:[%s116 + $0x54] sm:$0x7]
      %v147 = vld [vmem:[%s116 + $0x58] sm:$0xf]
      %v148 = vld [vmem:[%s116 + $0x5c] sm:$0x7]
      %v149 = vld [vmem:[%s116 + $0x60] sm:$0xf]
      %v150 = vld [vmem:[%s116 + $0x64] sm:$0x7]
      %v151 = vld [vmem:[%s116 + $0x68] sm:$0xf]
      %v152 = vld [vmem:[%s116 + $0x6c] sm:$0x7]
      %v153 = vld [vmem:[%s116 + $0x70] sm:$0xf]
      %v154 = vld [vmem:[%s116 + $0x74] sm:$0x7]
      %v155 = vld [vmem:[%s116 + $0x78] sm:$0xf]
      %v156 = vld [vmem:[%s116 + $0x7c] sm:$0x7]
      %v157 = vld [vmem:[%s116 + $0x80] sm:$0xf]
      %v158 = vld [vmem:[%s116 + $0x84] sm:$0x7]
      %v159 = vld [vmem:[%s116 + $0x88] sm:$0xf]
      %v160 = vld [vmem:[%s116 + $0x8c] sm:$0x7]
      %v161 = vld [vmem:[%s116 + $0x90] sm:$0xf]
      %v162 = vld [vmem:[%s116 + $0x94] sm:$0x7]
      %v163 = vld [vmem:[%s116 + $0x98] sm:$0xf]
      %v164 = vld [vmem:[%s116 + $0x9c] sm:$0x7]
      %v165 = vld [vmem:[%s116 + $0xa0] sm:$0xf]
      %v166 = vld [vmem:[%s116 + $0xa4] sm:$0x7]
      %v167 = vld [vmem:[%s116 + $0xa8] sm:$0xf]
      %v168 = vld [vmem:[%s116 + $0xac] sm:$0x7]
      %v169 = vld [vmem:[%s116 + $0xb0] sm:$0xf]
      %v170 = vld [vmem:[%s116 + $0xb4] sm:$0x7]
      %v171 = vld [vmem:[%s116 + $0xb8] sm:$0xf]
      %v172 = vld [vmem:[%s116 + $0xbc] sm:$0x7]
      %v173 = vld [vmem:[%s116 + $0xc0] sm:$0xf]
      %v174 = vld [vmem:[%s116 + $0xc4] sm:$0x7]
      %v175 = vld [vmem:[%s116 + $0xc8] sm:$0xf]
      %v176 = vld [vmem:[%s116 + $0xcc] sm:$0x7]
      %v177 = vld [vmem:[%s116 + $0xd0] sm:$0xf]
      %v178 = vld [vmem:[%s116 + $0xd4] sm:$0x7]
      %v179 = vld [vmem:[%s116 + $0xd8] sm:$0xf]
      %v180 = vld [vmem:[%s116 + $0xdc] sm:$0x7]
      %v181 = vmax.bf16 %v125, %v127
      %v182 = vmax.bf16 %v126, %v128
      %v183 = vmax.bf16 %v129, %v131
      %v184 = vmax.bf16 %v130, %v132
      %v185 = vmax.bf16 %v133, %v135
      %v186 = vmax.bf16 %v134, %v136
      %v187 = vmax.bf16 %v137, %v139
      %v188 = vmax.bf16 %v138, %v140
      %v189 = vmax.bf16 %v141, %v143
      %v190 = vmax.bf16 %v142, %v144
      %v191 = vmax.bf16 %v145, %v147
      %v192 = vmax.bf16 %v146, %v148
      %v193 = vmax.bf16 %v149, %v151
      %v194 = vmax.bf16 %v150, %v152
      %v195 = vmax.bf16 %v153, %v155
      %v196 = vmax.bf16 %v154, %v156
      %v197 = vmax.bf16 %v157, %v159
      %v198 = vmax.bf16 %v158, %v160
      %v199 = vmax.bf16 %v161, %v163
      %v200 = vmax.bf16 %v162, %v164
      %v201 = vmax.bf16 %v165, %v167
      %v202 = vmax.bf16 %v166, %v168
      %v203 = vmax.bf16 %v169, %v171
      %v204 = vmax.bf16 %v170, %v172
      %v205 = vmax.bf16 %v173, %v175
      %v206 = vmax.bf16 %v174, %v176
      %v207 = vmax.bf16 %v177, %v179
      %v208 = vmax.bf16 %v178, %v180
      %237 = vrot.lane.b32.xlu0 %v181, 96
      %v238 = vpop.permute.xlu0 %237
      %239 = vrot.lane.b32.xlu0 %v182, 96
      %v240 = vpop.permute.xlu0 %239
      %241 = vrot.lane.b32.xlu0 %v183, 96
      %v242 = vpop.permute.xlu0 %241
      %243 = vrot.lane.b32.xlu0 %v184, 96
      %v244 = vpop.permute.xlu0 %243
      %245 = vrot.lane.b32.xlu0 %v185, 96
      %v246 = vpop.permute.xlu0 %245
      %247 = vrot.lane.b32.xlu0 %v186, 96
      %v248 = vpop.permute.xlu0 %247
      %249 = vrot.lane.b32.xlu0 %v187, 96
      %v250 = vpop.permute.xlu0 %249
      %251 = vrot.lane.b32.xlu0 %v188, 96
      %v252 = vpop.permute.xlu0 %251
      %253 = vrot.lane.b32.xlu0 %v189, 96
      %v254 = vpop.permute.xlu0 %253
      %255 = vrot.lane.b32.xlu0 %v190, 96
      %v256 = vpop.permute.xlu0 %255
      %257 = vrot.lane.b32.xlu0 %v191, 96
      %v258 = vpop.permute.xlu0 %257
      %259 = vrot.lane.b32.xlu0 %v192, 96
      %v260 = vpop.permute.xlu0 %259
      %261 = vrot.lane.b32.xlu0 %v193, 96
      %v262 = vpop.permute.xlu0 %261
      %263 = vrot.lane.b32.xlu0 %v194, 96
      %v264 = vpop.permute.xlu0 %263
      %265 = vrot.lane.b32.xlu0 %v195, 96
      %v266 = vpop.permute.xlu0 %265
      %267 = vrot.lane.b32.xlu0 %v196, 96
      %v268 = vpop.permute.xlu0 %267
      %269 = vrot.lane.b32.xlu0 %v197, 96
      %v270 = vpop.permute.xlu0 %269
      %271 = vrot.lane.b32.xlu0 %v198, 96
      %v272 = vpop.permute.xlu0 %271
      %273 = vrot.lane.b32.xlu0 %v199, 96
      %v274 = vpop.permute.xlu0 %273
      %275 = vrot.lane.b32.xlu0 %v200, 96
      %v276 = vpop.permute.xlu0 %275
      %277 = vrot.lane.b32.xlu0 %v201, 96
      %v278 = vpop.permute.xlu0 %277
      %279 = vrot.lane.b32.xlu0 %v202, 96
      %v280 = vpop.permute.xlu0 %279
      %281 = vrot.lane.b32.xlu0 %v203, 96
      %v282 = vpop.permute.xlu0 %281
      %283 = vrot.lane.b32.xlu0 %v204, 96
      %v284 = vpop.permute.xlu0 %283
      %285 = vrot.lane.b32.xlu0 %v205, 96
      %v286 = vpop.permute.xlu0 %285
      %287 = vrot.lane.b32.xlu0 %v206, 96
      %v288 = vpop.permute.xlu0 %287
      %289 = vrot.lane.b32.xlu0 %v207, 96
      %v290 = vpop.permute.xlu0 %289
      %291 = vrot.lane.b32.xlu0 %v208, 96
      %v292 = vpop.permute.xlu0 %291
      %v321 = vmax.bf16 %v181, %v238
      %v322 = vmax.bf16 %v182, %v240
      %v323 = vmax.bf16 %v183, %v242
      %v324 = vmax.bf16 %v184, %v244
      %v325 = vmax.bf16 %v185, %v246
      %v326 = vmax.bf16 %v186, %v248
      %v327 = vmax.bf16 %v187, %v250
      %v328 = vmax.bf16 %v188, %v252
      %v329 = vmax.bf16 %v189, %v254
      %v330 = vmax.bf16 %v190, %v256
      %v331 = vmax.bf16 %v191, %v258
      %v332 = vmax.bf16 %v192, %v260
      %v333 = vmax.bf16 %v193, %v262
      %v334 = vmax.bf16 %v194, %v264
      %v335 = vmax.bf16 %v195, %v266
      %v336 = vmax.bf16 %v196, %v268
      %v337 = vmax.bf16 %v197, %v270
      %v338 = vmax.bf16 %v198, %v272
      %v339 = vmax.bf16 %v199, %v274
      %v340 = vmax.bf16 %v200, %v276
      %v341 = vmax.bf16 %v201, %v278
      %v342 = vmax.bf16 %v202, %v280
      %v343 = vmax.bf16 %v203, %v282
      %v344 = vmax.bf16 %v204, %v284
      %v345 = vmax.bf16 %v205, %v286
      %v346 = vmax.bf16 %v206, %v288
      %v347 = vmax.bf16 %v207, %v290
      %v348 = vmax.bf16 %v208, %v292
      %vm349 = vcmask 257024
      %350 = vst.msk [vmem:[%s123] sm:$0xf] %vm349, %v321
      %vm351 = vcmask 256000
      %352 = vst.msk [vmem:[%s123 + $0x4] sm:$0x7] %vm351, %v322
      %353 = vst.msk [vmem:[%s123 + $0x8] sm:$0xf] %vm349, %v323
      %354 = vst.msk [vmem:[%s123 + $0xc] sm:$0x7] %vm351, %v324
      %355 = vst.msk [vmem:[%s123 + $0x10] sm:$0xf] %vm349, %v325
      %356 = vst.msk [vmem:[%s123 + $0x14] sm:$0x7] %vm351, %v326
      %357 = vst.msk [vmem:[%s123 + $0x18] sm:$0xf] %vm349, %v327
      %358 = vst.msk [vmem:[%s123 + $0x1c] sm:$0x7] %vm351, %v328
      %359 = vst.msk [vmem:[%s123 + $0x20] sm:$0xf] %vm349, %v329
      %360 = vst.msk [vmem:[%s123 + $0x24] sm:$0x7] %vm351, %v330
      %361 = vst.msk [vmem:[%s123 + $0x28] sm:$0xf] %vm349, %v331
      %362 = vst.msk [vmem:[%s123 + $0x2c] sm:$0x7] %vm351, %v332
      %363 = vst.msk [vmem:[%s123 + $0x30] sm:$0xf] %vm349, %v333
      %364 = vst.msk [vmem:[%s123 + $0x34] sm:$0x7] %vm351, %v334
      %365 = vst.msk [vmem:[%s123 + $0x38] sm:$0xf] %vm349, %v335
      %366 = vst.msk [vmem:[%s123 + $0x3c] sm:$0x7] %vm351, %v336
      %367 = vst.msk [vmem:[%s123 + $0x40] sm:$0xf] %vm349, %v337
      %368 = vst.msk [vmem:[%s123 + $0x44] sm:$0x7] %vm351, %v338
      %369 = vst.msk [vmem:[%s123 + $0x48] sm:$0xf] %vm349, %v339
      %370 = vst.msk [vmem:[%s123 + $0x4c] sm:$0x7] %vm351, %v340
      %371 = vst.msk [vmem:[%s123 + $0x50] sm:$0xf] %vm349, %v341
      %372 = vst.msk [vmem:[%s123 + $0x54] sm:$0x7] %vm351, %v342
      %373 = vst.msk [vmem:[%s123 + $0x58] sm:$0xf] %vm349, %v343
      %374 = vst.msk [vmem:[%s123 + $0x5c] sm:$0x7] %vm351, %v344
      %375 = vst.msk [vmem:[%s123 + $0x60] sm:$0xf] %vm349, %v345
      %376 = vst.msk [vmem:[%s123 + $0x64] sm:$0x7] %vm351, %v346
      %377 = vst.msk [vmem:[%s123 + $0x68] sm:$0xf] %vm349, %v347
      %378 = vst.msk [vmem:[%s123 + $0x6c] sm:$0x7] %vm351, %v348
      %s379 = smul.u32 14, %s12
      %p380 = scmp.lt.s32.totalorder %s379, 27
      %s381 = scalar_select %p380, %s379, 27
      %s382 = smul.addr %s381, 2
      %s383 = smul.addr %s382, 4
      %s384 = scalar_lea.vmem %s1, %s383
      // Predicated region
      $region25: #{net_forward.6} parent=23 // pred_check
        %p385 = pneg %p56
      $region26: #{net_forward.6} parent=23 // pred_check_branch
        %387 = sbr.rel (%p385) target = $region28
      $region27: #{net_forward.6} parent=23 // pred_region
        %s388 = smul.u32 14, %s12
      $region28: #{net_forward.6} parent=23 // pred_fallthru
        _
    $region24: #{net_forward.6} parent=5 // pred_fallthru
      _
    %p389 = scmp.le.s32.totalorder 2, %s7
    // Predicated region
    $region29: #{net_forward.6} parent=5 // pred_check
      %p390 = pneg %p389
    $region30: #{net_forward.6} parent=5 // pred_check_branch
      %392 = sbr.rel (%p390) target = $region32
    $region31: #{net_forward.6} parent=5 // pred_region
      %s393 = ssub.s32 %s7, 2
      // Predicated region
      $region33: #{net_forward.6} parent=31 // pred_check
        %p394 = pneg %p62
      $region34: #{net_forward.6} parent=31 // pred_check_branch
        %396 = sbr.rel (%p394) target = $region36
      $region35: #{net_forward.6} parent=31 // pred_region
        %s397 = smul.u32 14, %s13
        %p398 = scmp.lt.s32.totalorder %s397, 27
        %s399 = scalar_select %p398, %s397, 27
        %s400 = smul.addr %s399, 2
        %s401 = smul.addr %s400, 4
        %s402 = scalar_lea.vmem %s1, %s401
      $region36: #{net_forward.6} parent=31 // pred_fallthru
        _
    $region32: #{net_forward.6} parent=5 // pred_fallthru
      _
  $region6: #{net_forward.6} parent=0 // loop_footer
    %s11 = sadd.s32 1, %s7
  $region7: #{net_forward.6} parent=0 // loop_footer_branch
    %6 = sbr.rel target = $region3
  $region8: #{net_forward.6} parent=0 // loop_exit
    _

// kernel: net_forward.5
$region0: #{net_forward.5}
  #allocation0 [shape = 'u32[]', space=smem, size = 0x4, offset = 0x4, fixed_abs, tag = 'smem constant byte address 0x4 - core index']
  #allocation1 [shape = 'u32[144,128]{1,0:T(1,128)}', space=vmem, size = 0x12000, scoped, tag = 'internal scratch']
  %s0 = inlined_call_operand.vmem [shape: bf16[1568,9], index: 0, kind: input, shape index: {}]
  %s1 = inlined_call_operand.vmem [shape: bf16[9,32], index: 1, kind: input, shape index: {}]
  %s2 = inlined_call_operand.vmem [shape: f32[1,32], index: 2, kind: input, shape index: {}]
  %s3 = inlined_call_operand.vmem [shape: bf16[1568,32], index: 3, kind: output, shape index: {}]
  %s4 = sld [smem:[#allocation0]]
  $region45: #{net_forward.5} parent=0
    _
  %s6 = ssub.s32 1, %s4
  %s7 = scalar_select 0, %s6, %s4
  loop: start=0, step=1, limit=9
  $region2: #{net_forward.5} parent=0 // loop_pre_header
    _
  $region3: #{net_forward.5} parent=0 // loop_header
    %s9 = sphi 0, %s13
    %p10 = scmp.ge.s32.totalorder %s9, 9
    %s19 = sphi 0, %s21
    %s22 = sphi 0, %s19
    %s23 = sphi 0, %s22
    %s39 = sphi 0, %s23
    %s43 = sphi 0, %s43
    %s45 = sphi 0, %s43
    %s46 = sphi 0, %s45
    %s60 = sphi 0, %s46
    %s64 = sphi 0, %s64
    %s66 = sphi 0, %s64
    %s67 = sphi 0, %s66
    %s81 = sphi 0, %s67
    %s87 = sphi 0, %s89
    %s90 = sphi 0, %s87
    %s91 = sphi 0, %s90
    %s107 = sphi 0, %s91
  $region4: #{net_forward.5} parent=0 // loop_header_branch
    %12 = sbr.rel (%p10) target = $region8
  $region5: #{net_forward.5} parent=0 // loop_body
    %s14 = ssub.s32 %s9, 1
    %s15 = ssub.s32 %s9, 2
    %s16 = sadd.s32 %s9, 1
    %s17 = ssub.s32 %s9, %s16
    %p18 = scmp.eq.s32.totalorder %s17, 0
    %s20 = sadd.s32 %s19, 1
    %s21 = scalar_select %p18, %s19, %s20
    %p24 = pneg %p18
    %p25 = scmp.eq.s32.totalorder %s9, 6
    %p26 = por %p24, %p25
    %p27 = scmp.ne.s32.totalorder %s19, %s22
    %p28 = scmp.eq.s32.totalorder %s9, 0
    %p29 = por %p27, %p28
    %p30 = scmp.ne.s32.totalorder %s19, %s22
    %p31 = scmp.eq.s32.totalorder %s14, 6
    %p32 = por %p30, %p31
    %p33 = scmp.ne.s32.totalorder %s22, %s23
    %p34 = scmp.eq.s32.totalorder %s14, 0
    %p35 = por %p33, %p34
    %p36 = scmp.ne.s32.totalorder %s22, %s23
    %p37 = scmp.eq.s32.totalorder %s15, 6
    %p38 = por %p36, %p37
    %p40 = scmp.ne.s32.totalorder %s23, %s39
    %p41 = scmp.eq.s32.totalorder %s15, 0
    %p42 = por %p40, %p41
    %s44 = sadd.s32 %s43, 1
    %p47 = scmp.eq.s32.totalorder %s9, 6
    %p48 = scmp.ne.s32.totalorder %s43, %s45
    %p49 = scmp.eq.s32.totalorder %s9, 0
    %p50 = por %p48, %p49
    %p51 = scmp.ne.s32.totalorder %s43, %s45
    %p52 = scmp.eq.s32.totalorder %s14, 6
    %p53 = por %p51, %p52
    %p54 = scmp.ne.s32.totalorder %s45, %s46
    %p55 = scmp.eq.s32.totalorder %s14, 0
    %p56 = por %p54, %p55
    %p57 = scmp.ne.s32.totalorder %s45, %s46
    %p58 = scmp.eq.s32.totalorder %s15, 6
    %p59 = por %p57, %p58
    %p61 = scmp.ne.s32.totalorder %s46, %s60
    %p62 = scmp.eq.s32.totalorder %s15, 0
    %p63 = por %p61, %p62
    %s65 = sadd.s32 %s64, 1
    %p68 = scmp.eq.s32.totalorder %s9, 6
    %p69 = scmp.ne.s32.totalorder %s64, %s66
    %p70 = scmp.eq.s32.totalorder %s9, 0
    %p71 = por %p69, %p70
    %p72 = scmp.ne.s32.totalorder %s64, %s66
    %p73 = scmp.eq.s32.totalorder %s14, 6
    %p74 = por %p72, %p73
    %p75 = scmp.ne.s32.totalorder %s66, %s67
    %p76 = scmp.eq.s32.totalorder %s14, 0
    %p77 = por %p75, %p76
    %p78 = scmp.ne.s32.totalorder %s66, %s67
    %p79 = scmp.eq.s32.totalorder %s15, 6
    %p80 = por %p78, %p79
    %p82 = scmp.ne.s32.totalorder %s67, %s81
    %p83 = scmp.eq.s32.totalorder %s15, 0
    %p84 = por %p82, %p83
    %s85 = ssub.s32 %s9, %s16
    %p86 = scmp.eq.s32.totalorder %s85, 0
    %s88 = sadd.s32 %s87, 1
    %s89 = scalar_select %p86, %s87, %s88
    %p92 = pneg %p86
    %p93 = scmp.eq.s32.totalorder %s9, 6
    %p94 = por %p92, %p93
    %p95 = scmp.ne.s32.totalorder %s87, %s90
    %p96 = scmp.eq.s32.totalorder %s9, 0
    %p97 = por %p95, %p96
    %p98 = scmp.ne.s32.totalorder %s87, %s90
    %p99 = scmp.eq.s32.totalorder %s14, 6
    %p100 = por %p98, %p99
    %p101 = scmp.ne.s32.totalorder %s90, %s91
    %p102 = scmp.eq.s32.totalorder %s14, 0
    %p103 = por %p101, %p102
    %p104 = scmp.ne.s32.totalorder %s90, %s91
    %p105 = scmp.eq.s32.totalorder %s15, 6
    %p106 = por %p104, %p105
    %p108 = scmp.ne.s32.totalorder %s91, %s107
    %p109 = scmp.eq.s32.totalorder %s15, 0
    %p110 = por %p108, %p109
    %p111 = scmp.le.s32.totalorder 1, %s9
    %p112 = scmp.lt.s32.totalorder %s9, 8
    %p113 = pnand %p111, %p112
    %p114 = pneg %p113
    // Predicated region
    $region9: #{net_forward.5} parent=5 // pred_check
      _
    $region10: #{net_forward.5} parent=5 // pred_check_branch
      %116 = sbr.rel (%p113) target = $region12
    $region11: #{net_forward.5} parent=5 // pred_region
      %s117 = ssub.s32 %s9, 1
      // Predicated region
      $region13: #{net_forward.5} parent=11 // pred_check
        %p118 = pneg %p56
      $region14: #{net_forward.5} parent=11 // pred_check_branch
        %120 = sbr.rel (%p118) target = $region16
      $region15: #{net_forward.5} parent=11 // pred_region
        _
      $region16: #{net_forward.5} parent=11 // pred_fallthru
        _
      // Predicated region
      $region17: #{net_forward.5} parent=11 // pred_check
        %p121 = pneg %p77
      $region18: #{net_forward.5} parent=11 // pred_check_branch
        %123 = sbr.rel (%p121) target = $region20
      $region19: #{net_forward.5} parent=11 // pred_region
        _
      $region20: #{net_forward.5} parent=11 // pred_fallthru
        _
    $region12: #{net_forward.5} parent=5 // pred_fallthru
      _
    %p124 = scmp.lt.s32.totalorder %s9, 7
    // Predicated region
    $region21: #{net_forward.5} parent=5 // pred_check
      %p125 = pneg %p124
    $region22: #{net_forward.5} parent=5 // pred_check_branch
      %127 = sbr.rel (%p125) target = $region24
    $region23: #{net_forward.5} parent=5 // pred_region
      // Predicated region
      $region25: #{net_forward.5} parent=23 // pred_check
        %p128 = pneg %p29
      $region26: #{net_forward.5} parent=23 // pred_check_branch
        %130 = sbr.rel (%p128) target = $region28
      $region27: #{net_forward.5} parent=23 // pred_region
        %s131 = smul.u32 28, %s9
        %p132 = scmp.lt.s32.totalorder %s131, 195
        %s133 = scalar_select %p132, %s131, 195
        %s134 = smul.addr %s133, 4
        %s135 = scalar_lea.vmem %s0, %s134
        %s136 = smul.u32 28, %s9
      $region28: #{net_forward.5} parent=23 // pred_fallthru
        _
    $region24: #{net_forward.5} parent=5 // pred_fallthru
      _
    %p137 = scmp.le.s32.totalorder 1, %s9
    %p138 = scmp.lt.s32.totalorder %s9, 8
    %p139 = pnand %p137, %p138
    %p140 = pneg %p139
    // Predicated region
    $region29: #{net_forward.5} parent=5 // pred_check
      _
    $region30: #{net_forward.5} parent=5 // pred_check_branch
      %142 = sbr.rel (%p139) target = $region32
    $region31: #{net_forward.5} parent=5 // pred_region
      %s143 = ssub.s32 %s9, 1
      %s144 = smul.u32 28, %s14
      %p145 = scmp.lt.s32.totalorder %s144, 195
      %s146 = scalar_select %p145, %s144, 195
      %s147 = smul.addr %s146, 4
      %s148 = scalar_lea.vmem %s0, %s147
      %p149 = pneg %p35
      %p150 = pneg %p32
      %p151 = pneg %p56
      %p152 = pneg %p53
      %p153 = pneg %p77
      %p154 = pneg %p74
      %p155 = pneg %p103
      %p156 = pneg %p100
      %s157 = smul.u32 28, %s14
      %p158 = scmp.lt.s32.totalorder %s157, 195
      %s159 = scalar_select %p158, %s157, 195
      %s160 = smul.addr %s159, 4
      %s161 = scalar_lea.vmem %s3, %s160
      %s162 = smul.u32 28, %s14
      %p163 = scmp.lt.s32.totalorder %s162, 195
      %s164 = scalar_select %p163, %s162, 195
      %s165 = smul.addr %s164, 4
      %s166 = scalar_lea.vmem %s0, %s165
      %s167 = smul.u32 28, %s14
      %s168 = smul.u32 28, %s14
      %p169 = scmp.lt.s32.totalorder %s168, 195
      %s170 = scalar_select %p169, %s168, 195
      %s171 = smul.addr %s170, 4
      %s172 = scalar_lea.vmem %s3, %s171
      %s173 = smul.u32 28, %s14
      %v175 = vld [vmem:[%s166] sm:$0xf]
      %v176 = vld [vmem:[%s166 + $0x4] sm:$0xf]
      %v177 = vld [vmem:[%s166 + $0x8] sm:$0xf]
      %v178 = vld [vmem:[%s166 + $0xc] sm:$0xf]
      %v179 = vld [vmem:[%s166 + $0x10] sm:$0xf]
      %v180 = vld [vmem:[%s166 + $0x14] sm:$0xf]
      %v181 = vld [vmem:[%s166 + $0x18] sm:$0xf]
      %v182 = vld [vmem:[%s166 + $0x1c] sm:$0xf]
      %v183 = vld [vmem:[%s166 + $0x20] sm:$0xf]
      %v184 = vld [vmem:[%s166 + $0x24] sm:$0xf]
      %v185 = vld [vmem:[%s166 + $0x28] sm:$0xf]
      %v186 = vld [vmem:[%s166 + $0x2c] sm:$0xf]
      %v187 = vld [vmem:[%s166 + $0x30] sm:$0xf]
      %v188 = vld [vmem:[%s166 + $0x34] sm:$0xf]
      %v189 = vld [vmem:[%s166 + $0x38] sm:$0xf]
      %v190 = vld [vmem:[%s166 + $0x3c] sm:$0xf]
      %v191 = vld [vmem:[%s166 + $0x40] sm:$0xf]
      %v192 = vld [vmem:[%s166 + $0x44] sm:$0xf]
      %v193 = vld [vmem:[%s166 + $0x48] sm:$0xf]
      %v194 = vld [vmem:[%s166 + $0x4c] sm:$0xf]
      %v195 = vld [vmem:[%s166 + $0x50] sm:$0xf]
      %v196 = vld [vmem:[%s166 + $0x54] sm:$0xf]
      %v197 = vld [vmem:[%s166 + $0x58] sm:$0xf]
      %v198 = vld [vmem:[%s166 + $0x5c] sm:$0xf]
      %v199 = vld [vmem:[%s166 + $0x60] sm:$0xf]
      %v200 = vld [vmem:[%s166 + $0x64] sm:$0xf]
      %v201 = vld [vmem:[%s166 + $0x68] sm:$0xf]
      %v202 = vld [vmem:[%s166 + $0x6c] sm:$0xf]
      %v203 = vld [vmem:[%s1] sm:$0xf]
      %v204 = vld [vmem:[%s1 + $0x4] sm:$0x1]
      %v205 = vld [vmem:[%s2] sm:$0x1]
      %v207 = vlaneseq
      %v208 = vshrl.u32 %v207, 7
      %v209 = vsub.s32 0, %v208
      %v210 = vrot.slane %v205, %v209
      %v240 = vunpack.c.l.b16 %v175
      %v241 = vunpack.c.l.b16 %v176
      %v242 = vunpack.c.l.b16 %v177
      %v243 = vunpack.c.l.b16 %v178
      %v244 = vunpack.c.l.b16 %v179
      %v245 = vunpack.c.l.b16 %v180
      %v246 = vunpack.c.l.b16 %v181
      %v247 = vunpack.c.l.b16 %v182
      %v248 = vunpack.c.l.b16 %v183
      %v249 = vunpack.c.l.b16 %v184
      %v250 = vunpack.c.l.b16 %v185
      %v251 = vunpack.c.l.b16 %v186
      %v252 = vunpack.c.l.b16 %v187
      %v253 = vunpack.c.l.b16 %v188
      %v254 = vunpack.c.l.b16 %v189
      %v255 = vunpack.c.l.b16 %v190
      %v256 = vunpack.c.l.b16 %v191
      %v257 = vunpack.c.l.b16 %v192
      %v258 = vunpack.c.l.b16 %v193
      %v259 = vunpack.c.l.b16 %v194
      %v260 = vunpack.c.l.b16 %v195
      %v261 = vunpack.c.l.b16 %v196
      %v262 = vunpack.c.l.b16 %v197
      %v263 = vunpack.c.l.b16 %v198
      %v264 = vunpack.c.l.b16 %v199
      %v265 = vunpack.c.l.b16 %v200
      %v266 = vunpack.c.l.b16 %v201
      %v267 = vunpack.c.l.b16 %v202
      %v268 = vpack.c.b16 %v241, %v240
      %v269 = vpack.c.b16 %v243, %v242
      %v270 = vpack.c.b16 %v245, %v244
      %v271 = vpack.c.b16 %v247, %v246
      %v272 = vpack.c.b16 %v249, %v248
      %v273 = vpack.c.b16 %v251, %v250
      %v274 = vpack.c.b16 %v253, %v252
      %v275 = vpack.c.b16 %v255, %v254
      %v276 = vpack.c.b16 %v257, %v256
      %v277 = vpack.c.b16 %v259, %v258
      %v278 = vpack.c.b16 %v261, %v260
      %v279 = vpack.c.b16 %v263, %v262
      %v280 = vpack.c.b16 %v265, %v264
      %v281 = vpack.c.b16 %v267, %v266
      %v284 = vunpack.c.l.b16 %v203
      %v285 = vunpack.c.l.b16 %v204
      %v286 = vpack.c.b16 %v285, %v284
      %vm287 = vcmask 72704
      %v289 = vsel %vm287, %v268, 0
      %v292 = vsel %vm287, %v269, 0
      %v295 = vsel %vm287, %v270, 0
      %v298 = vsel %vm287, %v271, 0
      %v301 = vsel %vm287, %v272, 0
      %v304 = vsel %vm287, %v273, 0
      %v307 = vsel %vm287, %v274, 0
      %v310 = vsel %vm287, %v275, 0
      %v313 = vsel %vm287, %v276, 0
      %v316 = vsel %vm287, %v277, 0
      %v319 = vsel %vm287, %v278, 0
      %v322 = vsel %vm287, %v279, 0
      %v325 = vsel %vm287, %v280, 0
      %v328 = vsel %vm287, %v281, 0
      %vm330 = vcmask 1043456
      %vm331 = vcmask 1044480
      %v332 = vsel %vm330, 4294967295, 65535
      %v333 = vsel %vm331, %v332, 0
      %v335 = vand.u32 %v286, %v333
      %337 = vmatprep.subr.bf16.mxu0 0
      %338 = vmatpush1.bf16.msra.mxu0 %v335
      %339 = vmatprep.subr.bf16.mxu0 0
      %340 = vmatpush1.bf16.msra.mxu0 0
      %341 = vmatprep.subr.bf16.mxu0 0
      %342 = vmatpush1.bf16.msra.mxu0 0
      %343 = vmatprep.subr.bf16.mxu0 0
      %344 = vmatpush1.bf16.msra.mxu0 0
      %345 = vmatprep.subr.bf16.mxu0 0
      %346 = vmatpush1.bf16.msra.mxu0 0
      %347 = vmatprep.subr.bf16.mxu0 0
      %348 = vmatpush1.bf16.msra.mxu0 0
      %349 = vmatprep.subr.bf16.mxu0 0
      %350 = vmatpush1.bf16.msra.mxu0 0
      %351 = vmatprep.subr.bf16.mxu0 0
      %352 = vmatpush1.bf16.msra.mxu0 0
      %353 = vmatprep.subr.bf16.mxu0 0
      %354 = vmatpush1.bf16.msra.mxu0 0
      %355 = vmatprep.subr.bf16.mxu0 0
      %356 = vmatpush1.bf16.msra.mxu0 0
      %357 = vmatprep.subr.bf16.mxu0 0
      %358 = vmatpush1.bf16.msra.mxu0 0
      %359 = vmatprep.subr.bf16.mxu0 0
      %360 = vmatpush1.bf16.msra.mxu0 0
      %361 = vmatprep.subr.bf16.mxu0 0
      %362 = vmatpush1.bf16.msra.mxu0 0
      %363 = vmatprep.subr.bf16.mxu0 0
      %364 = vmatpush1.bf16.msra.mxu0 0
      %365 = vmatprep.subr.bf16.mxu0 0
      %366 = vmatpush1.bf16.msra.mxu0 0
      %367 = vmatprep.subr.bf16.mxu0 0
      %368 = vmatpush1.bf16.msra.mxu0 0
      %369 = vmatprep.mubr.bf16.mxu0 0
      %370 = vmatmul.mubr.bf16.gmra.mrb[0].mxu0 %v289
      %v371 = vpop.f32.mrb[0].mxu0
      %v372 = vadd.f32 %v210, %v371
      %v373 = vpop.f32.mrb[0].mxu0
      %v374 = vpop.f32.mrb[0].mxu0
      %v375 = vadd.f32 %v210, %v374
      %v376 = vpop.f32.mrb[0].mxu0
      %377 = vmatprep.mubr.bf16.mxu0 0
      %378 = vmatmul.mubr.bf16.gmra.mrb[0].mxu0 %v292
      %v379 = vpop.f32.mrb[0].mxu0
      %v380 = vadd.f32 %v210, %v379
      %v381 = vpop.f32.mrb[0].mxu0
      %v382 = vpop.f32.mrb[0].mxu0
      %v383 = vadd.f32 %v210, %v382
      %v384 = vpop.f32.mrb[0].mxu0
      %385 = vmatprep.mubr.bf16.mxu0 0
      %386 = vmatmul.mubr.bf16.gmra.mrb[0].mxu0 %v295
      %v387 = vpop.f32.mrb[0].mxu0
      %v388 = vadd.f32 %v210, %v387
      %v389 = vpop.f32.mrb[0].mxu0
      %v390 = vpop.f32.mrb[0].mxu0
      %v391 = vadd.f32 %v210, %v390
      %v392 = vpop.f32.mrb[0].mxu0
      %393 = vmatprep.mubr.bf16.mxu0 0
      %394 = vmatmul.mubr.bf16.gmra.mrb[0].mxu0 %v298
      %v395 = vpop.f32.mrb[0].mxu0
      %v396 = vadd.f32 %v210, %v395
      %v397 = vpop.f32.mrb[0].mxu0
      %v398 = vpop.f32.mrb[0].mxu0
      %v399 = vadd.f32 %v210, %v398
      %v400 = vpop.f32.mrb[0].mxu0
      %401 = vmatprep.mubr.bf16.mxu0 0
      %402 = vmatmul.mubr.bf16.gmra.mrb[0].mxu0 %v301
      %v403 = vpop.f32.mrb[0].mxu0
      %v404 = vadd.f32 %v210, %v403
      %v405 = vpop.f32.mrb[0].mxu0
      %v406 = vpop.f32.mrb[0].mxu0
      %v407 = vadd.f32 %v210, %v406
      %v408 = vpop.f32.mrb[0].mxu0
      %409 = vmatprep.mubr.bf16.mxu0 0
      %410 = vmatmul.mubr.bf16.gmra.mrb[0].mxu0 %v304
      %v411 = vpop.f32.mrb[0].mxu0
      %v412 = vadd.f32 %v210, %v411
      %v413 = vpop.f32.mrb[0].mxu0
      %v414 = vpop.f32.mrb[0].mxu0
      %v415 = vadd.f32 %v210, %v414
      %v416 = vpop.f32.mrb[0].mxu0
      %417 = vmatprep.mubr.bf16.mxu0 0
      %418 = vmatmul.mubr.bf16.gmra.mrb[0].mxu0 %v307
      %v419 = vpop.f32.mrb[0].mxu0
      %v420 = vadd.f32 %v210, %v419
      %v421 = vpop.f32.mrb[0].mxu0
      %v422 = vpop.f32.mrb[0].mxu0
      %v423 = vadd.f32 %v210, %v422
      %v424 = vpop.f32.mrb[0].mxu0
      %425 = vmatprep.mubr.bf16.mxu0 0
      %426 = vmatmul.mubr.bf16.gmra.mrb[0].mxu0 %v310
      %v427 = vpop.f32.mrb[0].mxu0
      %v428 = vadd.f32 %v210, %v427
      %v429 = vpop.f32.mrb[0].mxu0
      %v430 = vpop.f32.mrb[0].mxu0
      %v431 = vadd.f32 %v210, %v430
      %v432 = vpop.f32.mrb[0].mxu0
      %433 = vmatprep.mubr.bf16.mxu0 0
      %434 = vmatmul.mubr.bf16.gmra.mrb[0].mxu0 %v313
      %v435 = vpop.f32.mrb[0].mxu0
      %v436 = vadd.f32 %v210, %v435
      %v437 = vpop.f32.mrb[0].mxu0
      %v438 = vpop.f32.mrb[0].mxu0
      %v439 = vadd.f32 %v210, %v438
      %v440 = vpop.f32.mrb[0].mxu0
      %441 = vmatprep.mubr.bf16.mxu0 0
      %442 = vmatmul.mubr.bf16.gmra.mrb[0].mxu0 %v316
      %v443 = vpop.f32.mrb[0].mxu0
      %v444 = vadd.f32 %v210, %v443
      %v445 = vpop.f32.mrb[0].mxu0
      %v446 = vpop.f32.mrb[0].mxu0
      %v447 = vadd.f32 %v210, %v446
      %v448 = vpop.f32.mrb[0].mxu0
      %449 = vmatprep.mubr.bf16.mxu0 0
      %450 = vmatmul.mubr.bf16.gmra.mrb[0].mxu0 %v319
      %v451 = vpop.f32.mrb[0].mxu0
      %v452 = vadd.f32 %v210, %v451
      %v453 = vpop.f32.mrb[0].mxu0
      %v454 = vpop.f32.mrb[0].mxu0
      %v455 = vadd.f32 %v210, %v454
      %v456 = vpop.f32.mrb[0].mxu0
      %457 = vmatprep.mubr.bf16.mxu0 0
      %458 = vmatmul.mubr.bf16.gmra.mrb[0].mxu0 %v322
      %v459 = vpop.f32.mrb[0].mxu0
      %v460 = vadd.f32 %v210, %v459
      %v461 = vpop.f32.mrb[0].mxu0
      %v462 = vpop.f32.mrb[0].mxu0
      %v463 = vadd.f32 %v210, %v462
      %v464 = vpop.f32.mrb[0].mxu0
      %465 = vmatprep.mubr.bf16.mxu0 0
      %466 = vmatmul.mubr.bf16.gmra.mrb[0].mxu0 %v325
      %v467 = vpop.f32.mrb[0].mxu0
      %v468 = vadd.f32 %v210, %v467
      %v469 = vpop.f32.mrb[0].mxu0
      %v470 = vpop.f32.mrb[0].mxu0
      %v471 = vadd.f32 %v210, %v470
      %v472 = vpop.f32.mrb[0].mxu0
      %473 = vmatprep.mubr.bf16.mxu0 0
      %474 = vmatmul.mubr.bf16.gmra.mrb[0].mxu0 %v328
      %v475 = vpop.f32.mrb[0].mxu0
      %v476 = vadd.f32 %v210, %v475
      %v477 = vpop.f32.mrb[0].mxu0
      %v478 = vpop.f32.mrb[0].mxu0
      %v479 = vadd.f32 %v210, %v478
      %v480 = vpop.f32.mrb[0].mxu0
      %481 = vdwg.mxu0
      %v482 = vmax.f32 %v372, 0.0
      %v483 = vmax.f32 %v375, 0.0
      %v484 = vmax.f32 %v380, 0.0
      %v485 = vmax.f32 %v383, 0.0
      %v486 = vmax.f32 %v388, 0.0
      %v487 = vmax.f32 %v391, 0.0
      %v488 = vmax.f32 %v396, 0.0
      %v489 = vmax.f32 %v399, 0.0
      %v490 = vmax.f32 %v404, 0.0
      %v491 = vmax.f32 %v407, 0.0
      %v492 = vmax.f32 %v412, 0.0
      %v493 = vmax.f32 %v415, 0.0
      %v494 = vmax.f32 %v420, 0.0
      %v495 = vmax.f32 %v423, 0.0
      %v496 = vmax.f32 %v428, 0.0
      %v497 = vmax.f32 %v431, 0.0
      %v498 = vmax.f32 %v436, 0.0
      %v499 = vmax.f32 %v439, 0.0
      %v500 = vmax.f32 %v444, 0.0
      %v501 = vmax.f32 %v447, 0.0
      %v502 = vmax.f32 %v452, 0.0
      %v503 = vmax.f32 %v455, 0.0
      %v504 = vmax.f32 %v460, 0.0
      %v505 = vmax.f32 %v463, 0.0
      %v506 = vmax.f32 %v468, 0.0
      %v507 = vmax.f32 %v471, 0.0
      %v508 = vmax.f32 %v476, 0.0
      %v509 = vmax.f32 %v479, 0.0
      %v510 = vpack.c.bf16 %v483, %v482
      %v511 = vpack.c.bf16 %v485, %v484
      %v512 = vpack.c.bf16 %v487, %v486
      %v513 = vpack.c.bf16 %v489, %v488
      %v514 = vpack.c.bf16 %v491, %v490
      %v515 = vpack.c.bf16 %v493, %v492
      %v516 = vpack.c.bf16 %v495, %v494
      %v517 = vpack.c.bf16 %v497, %v496
      %v518 = vpack.c.bf16 %v499, %v498
      %v519 = vpack.c.bf16 %v501, %v500
      %v520 = vpack.c.bf16 %v503, %v502
      %v521 = vpack.c.bf16 %v505, %v504
      %v522 = vpack.c.bf16 %v507, %v506
      %v523 = vpack.c.bf16 %v509, %v508
      %v538 = vunpack.c.l.b16 %v510
      %v539 = vunpack.c.h.b16 %v510
      %v540 = vunpack.c.l.b16 %v511
      %v541 = vunpack.c.h.b16 %v511
      %v542 = vunpack.c.l.b16 %v512
      %v543 = vunpack.c.h.b16 %v512
      %v544 = vunpack.c.l.b16 %v513
      %v545 = vunpack.c.h.b16 %v513
      %v546 = vunpack.c.l.b16 %v514
      %v547 = vunpack.c.h.b16 %v514
      %v548 = vunpack.c.l.b16 %v515
      %v549 = vunpack.c.h.b16 %v515
      %v550 = vunpack.c.l.b16 %v516
      %v551 = vunpack.c.h.b16 %v516
      %v552 = vunpack.c.l.b16 %v517
      %v553 = vunpack.c.h.b16 %v517
      %v554 = vunpack.c.l.b16 %v518
      %v555 = vunpack.c.h.b16 %v518
      %v556 = vunpack.c.l.b16 %v519
      %v557 = vunpack.c.h.b16 %v519
      %v558 = vunpack.c.l.b16 %v520
      %v559 = vunpack.c.h.b16 %v520
      %v560 = vunpack.c.l.b16 %v521
      %v561 = vunpack.c.h.b16 %v521
      %v562 = vunpack.c.l.b16 %v522
      %v563 = vunpack.c.h.b16 %v522
      %v564 = vunpack.c.l.b16 %v523
      %v565 = vunpack.c.h.b16 %v523
      %v566 = vpack.c.b16 %v538, %v538
      %v567 = vpack.c.b16 %v539, %v539
      %v568 = vpack.c.b16 %v540, %v540
      %v569 = vpack.c.b16 %v541, %v541
      %v570 = vpack.c.b16 %v542, %v542
      %v571 = vpack.c.b16 %v543, %v543
      %v572 = vpack.c.b16 %v544, %v544
      %v573 = vpack.c.b16 %v545, %v545
      %v574 = vpack.c.b16 %v546, %v546
      %v575 = vpack.c.b16 %v547, %v547
      %v576 = vpack.c.b16 %v548, %v548
      %v577 = vpack.c.b16 %v549, %v549
      %v578 = vpack.c.b16 %v550, %v550
      %v579 = vpack.c.b16 %v551, %v551
      %v580 = vpack.c.b16 %v552, %v552
      %v581 = vpack.c.b16 %v553, %v553
      %v582 = vpack.c.b16 %v554, %v554
      %v583 = vpack.c.b16 %v555, %v555
      %v584 = vpack.c.b16 %v556, %v556
      %v585 = vpack.c.b16 %v557, %v557
      %v586 = vpack.c.b16 %v558, %v558
      %v587 = vpack.c.b16 %v559, %v559
      %v588 = vpack.c.b16 %v560, %v560
      %v589 = vpack.c.b16 %v561, %v561
      %v590 = vpack.c.b16 %v562, %v562
      %v591 = vpack.c.b16 %v563, %v563
      %v592 = vpack.c.b16 %v564, %v564
      %v593 = vpack.c.b16 %v565, %v565
      %vm622 = vcmask 257024
      %623 = vst.msk [vmem:[%s172] sm:$0xf] %vm622, %v566
      %624 = vst.msk [vmem:[%s172 + $0x4] sm:$0xf] %vm622, %v567
      %625 = vst.msk [vmem:[%s172 + $0x8] sm:$0xf] %vm622, %v568
      %626 = vst.msk [vmem:[%s172 + $0xc] sm:$0xf] %vm622, %v569
      %627 = vst.msk [vmem:[%s172 + $0x10] sm:$0xf] %vm622, %v570
      %628 = vst.msk [vmem:[%s172 + $0x14] sm:$0xf] %vm622, %v571
      %629 = vst.msk [vmem:[%s172 + $0x18] sm:$0xf] %vm622, %v572
      %630 = vst.msk [vmem:[%s172 + $0x1c] sm:$0xf] %vm622, %v573
      %631 = vst.msk [vmem:[%s172 + $0x20] sm:$0xf] %vm622, %v574
      %632 = vst.msk [vmem:[%s172 + $0x24] sm:$0xf] %vm622, %v575
      %633 = vst.msk [vmem:[%s172 + $0x28] sm:$0xf] %vm622, %v576
      %634 = vst.msk [vmem:[%s172 + $0x2c] sm:$0xf] %vm622, %v577
      %635 = vst.msk [vmem:[%s172 + $0x30] sm:$0xf] %vm622, %v578
      %636 = vst.msk [vmem:[%s172 + $0x34] sm:$0xf] %vm622, %v579
      %637 = vst.msk [vmem:[%s172 + $0x38] sm:$0xf] %vm622, %v580
      %638 = vst.msk [vmem:[%s172 + $0x3c] sm:$0xf] %vm622, %v581
      %639 = vst.msk [vmem:[%s172 + $0x40] sm:$0xf] %vm622, %v582
      %640 = vst.msk [vmem:[%s172 + $0x44] sm:$0xf] %vm622, %v583
      %641 = vst.msk [vmem:[%s172 + $0x48] sm:$0xf] %vm622, %v584
      %642 = vst.msk [vmem:[%s172 + $0x4c] sm:$0xf] %vm622, %v585
      %643 = vst.msk [vmem:[%s172 + $0x50] sm:$0xf] %vm622, %v586
      %644 = vst.msk [vmem:[%s172 + $0x54] sm:$0xf] %vm622, %v587
      %645 = vst.msk [vmem:[%s172 + $0x58] sm:$0xf] %vm622, %v588
      %646 = vst.msk [vmem:[%s172 + $0x5c] sm:$0xf] %vm622, %v589
      %647 = vst.msk [vmem:[%s172 + $0x60] sm:$0xf] %vm622, %v590
      %648 = vst.msk [vmem:[%s172 + $0x64] sm:$0xf] %vm622, %v591
      %649 = vst.msk [vmem:[%s172 + $0x68] sm:$0xf] %vm622, %v592
      %650 = vst.msk [vmem:[%s172 + $0x6c] sm:$0xf] %vm622, %v593
      %s651 = smul.u32 28, %s14
      %p652 = scmp.lt.s32.totalorder %s651, 195
      %s653 = scalar_select %p652, %s651, 195
      %s654 = smul.addr %s653, 4
      %s655 = scalar_lea.vmem %s3, %s654
      // Predicated region
      $region33: #{net_forward.5} parent=31 // pred_check
        %p656 = pneg %p100
      $region34: #{net_forward.5} parent=31 // pred_check_branch
        %658 = sbr.rel (%p656) target = $region36
      $region35: #{net_forward.5} parent=31 // pred_region
        %s659 = smul.u32 28, %s14
      $region36: #{net_forward.5} parent=31 // pred_fallthru
        _
    $region32: #{net_forward.5} parent=5 // pred_fallthru
      _
    %p660 = scmp.le.s32.totalorder 2, %s9
    // Predicated region
    $region37: #{net_forward.5} parent=5 // pred_check
      %p661 = pneg %p660
    $region38: #{net_forward.5} parent=5 // pred_check_branch
      %663 = sbr.rel (%p661) target = $region40
    $region39: #{net_forward.5} parent=5 // pred_region
      %s664 = ssub.s32 %s9, 2
      // Predicated region
      $region41: #{net_forward.5} parent=39 // pred_check
        %p665 = pneg %p106
      $region42: #{net_forward.5} parent=39 // pred_check_branch
        %667 = sbr.rel (%p665) target = $region44
      $region43: #{net_forward.5} parent=39 // pred_region
        %s668 = smul.u32 28, %s15
        %p669 = scmp.lt.s32.totalorder %s668, 195
        %s670 = scalar_select %p669, %s668, 195
        %s671 = smul.addr %s670, 4
        %s672 = scalar_lea.vmem %s3, %s671
      $region44: #{net_forward.5} parent=39 // pred_fallthru
        _
    $region40: #{net_forward.5} parent=5 // pred_fallthru
      _
  $region6: #{net_forward.5} parent=0 // loop_footer
    %s13 = sadd.s32 1, %s9
  $region7: #{net_forward.5} parent=0 // loop_footer_branch
    %8 = sbr.rel target = $region3
  $region8: #{net_forward.5} parent=0 // loop_exit
    _

// kernel: net_forward.8
$region0: #{net_forward.8}
  #allocation0 [shape = 'u32[]', space=smem, size = 0x4, offset = 0x4, fixed_abs, tag = 'smem constant byte address 0x4 - core index']
  #allocation1 [shape = 'u32[144,128]{1,0:T(1,128)}', space=vmem, size = 0x12000, scoped, tag = 'internal scratch']
  %s0 = inlined_call_operand.vmem [shape: bf16[14,2,7,128], index: 0, kind: input, shape index: {}]
  %s1 = inlined_call_operand.vmem [shape: bf16[14,7,64], index: 1, kind: output, shape index: {}]
  %s2 = sld [smem:[#allocation0]]
  $region37: #{net_forward.8} parent=0
    _
  %s4 = ssub.s32 1, %s2
  %s5 = scalar_select 0, %s4, %s2
  loop: start=0, step=1, limit=4
  $region2: #{net_forward.8} parent=0 // loop_pre_header
    _
  $region3: #{net_forward.8} parent=0 // loop_header
    %s7 = sphi 0, %s11
    %p8 = scmp.ge.s32.totalorder %s7, 4
    %s17 = sphi 0, %s19
    %s20 = sphi 0, %s17
    %s21 = sphi 0, %s20
    %s37 = sphi 0, %s21
    %s43 = sphi 0, %s45
    %s46 = sphi 0, %s43
    %s47 = sphi 0, %s46
    %s63 = sphi 0, %s47
  $region4: #{net_forward.8} parent=0 // loop_header_branch
    %10 = sbr.rel (%p8) target = $region8
  $region5: #{net_forward.8} parent=0 // loop_body
    %s12 = ssub.s32 %s7, 1
    %s13 = ssub.s32 %s7, 2
    %s14 = sadd.s32 %s7, 1
    %s15 = ssub.s32 %s7, %s14
    %p16 = scmp.eq.s32.totalorder %s15, 0
    %s18 = sadd.s32 %s17, 1
    %s19 = scalar_select %p16, %s17, %s18
    %p22 = pneg %p16
    %p23 = scmp.eq.s32.totalorder %s7, 1
    %p24 = por %p22, %p23
    %p25 = scmp.ne.s32.totalorder %s17, %s20
    %p26 = scmp.eq.s32.totalorder %s7, 0
    %p27 = por %p25, %p26
    %p28 = scmp.ne.s32.totalorder %s17, %s20
    %p29 = scmp.eq.s32.totalorder %s12, 1
    %p30 = por %p28, %p29
    %p31 = scmp.ne.s32.totalorder %s20, %s21
    %p32 = scmp.eq.s32.totalorder %s12, 0
    %p33 = por %p31, %p32
    %p34 = scmp.ne.s32.totalorder %s20, %s21
    %p35 = scmp.eq.s32.totalorder %s13, 1
    %p36 = por %p34, %p35
    %p38 = scmp.ne.s32.totalorder %s21, %s37
    %p39 = scmp.eq.s32.totalorder %s13, 0
    %p40 = por %p38, %p39
    %s41 = ssub.s32 %s7, %s14
    %p42 = scmp.eq.s32.totalorder %s41, 0
    %s44 = sadd.s32 %s43, 1
    %s45 = scalar_select %p42, %s43, %s44
    %p48 = pneg %p42
    %p49 = scmp.eq.s32.totalorder %s7, 1
    %p50 = por %p48, %p49
    %p51 = scmp.ne.s32.totalorder %s43, %s46
    %p52 = scmp.eq.s32.totalorder %s7, 0
    %p53 = por %p51, %p52
    %p54 = scmp.ne.s32.totalorder %s43, %s46
    %p55 = scmp.eq.s32.totalorder %s12, 1
    %p56 = por %p54, %p55
    %p57 = scmp.ne.s32.totalorder %s46, %s47
    %p58 = scmp.eq.s32.totalorder %s12, 0
    %p59 = por %p57, %p58
    %p60 = scmp.ne.s32.totalorder %s46, %s47
    %p61 = scmp.eq.s32.totalorder %s13, 1
    %p62 = por %p60, %p61
    %p64 = scmp.ne.s32.totalorder %s47, %s63
    %p65 = scmp.eq.s32.totalorder %s13, 0
    %p66 = por %p64, %p65
    %p67 = scmp.le.s32.totalorder 1, %s7
    %p68 = scmp.lt.s32.totalorder %s7, 3
    %p69 = pnand %p67, %p68
    %p70 = pneg %p69
    // Predicated region
    $region9: #{net_forward.8} parent=5 // pred_check
      _
    $region10: #{net_forward.8} parent=5 // pred_check_branch
      %72 = sbr.rel (%p69) target = $region12
    $region11: #{net_forward.8} parent=5 // pred_region
      %s73 = ssub.s32 %s7, 1
    $region12: #{net_forward.8} parent=5 // pred_fallthru
      _
    %p74 = scmp.lt.s32.totalorder %s7, 2
    // Predicated region
    $region13: #{net_forward.8} parent=5 // pred_check
      %p75 = pneg %p74
    $region14: #{net_forward.8} parent=5 // pred_check_branch
      %77 = sbr.rel (%p75) target = $region16
    $region15: #{net_forward.8} parent=5 // pred_region
      // Predicated region
      $region17: #{net_forward.8} parent=15 // pred_check
        %p78 = pneg %p27
      $region18: #{net_forward.8} parent=15 // pred_check_branch
        %80 = sbr.rel (%p78) target = $region20
      $region19: #{net_forward.8} parent=15 // pred_region
        %s81 = smul.u32 7, %s7
        %p82 = scmp.lt.s32.totalorder %s81, 13
        %s83 = scalar_select %p82, %s81, 13
        %s84 = smul.addr %s83, 2
        %s85 = smul.addr %s84, 4
        %s86 = scalar_lea.vmem %s0, %s85
        %s87 = smul.u32 7, %s7
      $region20: #{net_forward.8} parent=15 // pred_fallthru
        _
    $region16: #{net_forward.8} parent=5 // pred_fallthru
      _
    %p88 = scmp.le.s32.totalorder 1, %s7
    %p89 = scmp.lt.s32.totalorder %s7, 3
    %p90 = pnand %p88, %p89
    %p91 = pneg %p90
    // Predicated region
    $region21: #{net_forward.8} parent=5 // pred_check
      _
    $region22: #{net_forward.8} parent=5 // pred_check_branch
      %93 = sbr.rel (%p90) target = $region24
    $region23: #{net_forward.8} parent=5 // pred_region
      %s94 = ssub.s32 %s7, 1
      %s95 = smul.u32 7, %s12
      %p96 = scmp.lt.s32.totalorder %s95, 13
      %s97 = scalar_select %p96, %s95, 13
      %s98 = smul.addr %s97, 2
      %s99 = smul.addr %s98, 4
      %s100 = scalar_lea.vmem %s0, %s99
      %p101 = pneg %p33
      %p102 = pneg %p30
      %p103 = pneg %p59
      %p104 = pneg %p56
      %s105 = smul.u32 7, %s12
      %p106 = scmp.lt.s32.totalorder %s105, 13
      %s107 = scalar_select %p106, %s105, 13
      %s108 = smul.addr %s107, 4
      %s109 = scalar_lea.vmem %s1, %s108
      %s110 = smul.u32 7, %s12
      %p111 = scmp.lt.s32.totalorder %s110, 13
      %s112 = scalar_select %p111, %s110, 13
      %s113 = smul.addr %s112, 2
      %s114 = smul.addr %s113, 4
      %s115 = scalar_lea.vmem %s0, %s114
      %s116 = smul.u32 7, %s12
      %s117 = smul.u32 7, %s12
      %p118 = scmp.lt.s32.totalorder %s117, 13
      %s119 = scalar_select %p118, %s117, 13
      %s120 = smul.addr %s119, 4
      %s121 = scalar_lea.vmem %s1, %s120
      %s122 = smul.u32 7, %s12
      %v123 = vld [vmem:[%s115] sm:$0xf]
      %v124 = vld [vmem:[%s115 + $0x4] sm:$0xf]
      %v125 = vld [vmem:[%s115 + $0x8] sm:$0xf]
      %v126 = vld [vmem:[%s115 + $0xc] sm:$0xf]
      %v127 = vld [vmem:[%s115 + $0x10] sm:$0xf]
      %v128 = vld [vmem:[%s115 + $0x14] sm:$0xf]
      %v129 = vld [vmem:[%s115 + $0x18] sm:$0xf]
      %v130 = vld [vmem:[%s115 + $0x1c] sm:$0xf]
      %v131 = vld [vmem:[%s115 + $0x20] sm:$0xf]
      %v132 = vld [vmem:[%s115 + $0x24] sm:$0xf]
      %v133 = vld [vmem:[%s115 + $0x28] sm:$0xf]
      %v134 = vld [vmem:[%s115 + $0x2c] sm:$0xf]
      %v135 = vld [vmem:[%s115 + $0x30] sm:$0xf]
      %v136 = vld [vmem:[%s115 + $0x34] sm:$0xf]
      %v137 = vmax.bf16 %v123, %v124
      %v138 = vmax.bf16 %v125, %v126
      %v139 = vmax.bf16 %v127, %v128
      %v140 = vmax.bf16 %v129, %v130
      %v141 = vmax.bf16 %v131, %v132
      %v142 = vmax.bf16 %v133, %v134
      %v143 = vmax.bf16 %v135, %v136
      %151 = vrot.lane.b32.xlu0 %v137, 64
      %v152 = vpop.permute.xlu0 %151
      %153 = vrot.lane.b32.xlu0 %v138, 64
      %v154 = vpop.permute.xlu0 %153
      %155 = vrot.lane.b32.xlu0 %v139, 64
      %v156 = vpop.permute.xlu0 %155
      %157 = vrot.lane.b32.xlu0 %v140, 64
      %v158 = vpop.permute.xlu0 %157
      %159 = vrot.lane.b32.xlu0 %v141, 64
      %v160 = vpop.permute.xlu0 %159
      %161 = vrot.lane.b32.xlu0 %v142, 64
      %v162 = vpop.permute.xlu0 %161
      %163 = vrot.lane.b32.xlu0 %v143, 64
      %v164 = vpop.permute.xlu0 %163
      %v172 = vmax.bf16 %v137, %v152
      %v173 = vmax.bf16 %v138, %v154
      %v174 = vmax.bf16 %v139, %v156
      %v175 = vmax.bf16 %v140, %v158
      %v176 = vmax.bf16 %v141, %v160
      %v177 = vmax.bf16 %v142, %v162
      %v178 = vmax.bf16 %v143, %v164
      %vm179 = vcmask 519168
      %vm180 = vsmask.f32 3328
      %vm181 = vmand %vm179, %vm180
      %v182 = vld [vmem:[%s121] sm:$0xf]
      %v183 = vsel %vm181, %v172, %v182
      %184 = vst [vmem:[%s121] sm:$0xf] %v183
      %v185 = vld [vmem:[%s121 + $0x4] sm:$0xf]
      %v186 = vsel %vm181, %v173, %v185
      %187 = vst [vmem:[%s121 + $0x4] sm:$0xf] %v186
      %v188 = vld [vmem:[%s121 + $0x8] sm:$0xf]
      %v189 = vsel %vm181, %v174, %v188
      %190 = vst [vmem:[%s121 + $0x8] sm:$0xf] %v189
      %v191 = vld [vmem:[%s121 + $0xc] sm:$0xf]
      %v192 = vsel %vm181, %v175, %v191
      %193 = vst [vmem:[%s121 + $0xc] sm:$0xf] %v192
      %v194 = vld [vmem:[%s121 + $0x10] sm:$0xf]
      %v195 = vsel %vm181, %v176, %v194
      %196 = vst [vmem:[%s121 + $0x10] sm:$0xf] %v195
      %v197 = vld [vmem:[%s121 + $0x14] sm:$0xf]
      %v198 = vsel %vm181, %v177, %v197
      %199 = vst [vmem:[%s121 + $0x14] sm:$0xf] %v198
      %v200 = vld [vmem:[%s121 + $0x18] sm:$0xf]
      %v201 = vsel %vm181, %v178, %v200
      %202 = vst [vmem:[%s121 + $0x18] sm:$0xf] %v201
      %s203 = smul.u32 7, %s12
      %p204 = scmp.lt.s32.totalorder %s203, 13
      %s205 = scalar_select %p204, %s203, 13
      %s206 = smul.addr %s205, 4
      %s207 = scalar_lea.vmem %s1, %s206
      // Predicated region
      $region25: #{net_forward.8} parent=23 // pred_check
        %p208 = pneg %p56
      $region26: #{net_forward.8} parent=23 // pred_check_branch
        %210 = sbr.rel (%p208) target = $region28
      $region27: #{net_forward.8} parent=23 // pred_region
        %s211 = smul.u32 7, %s12
      $region28: #{net_forward.8} parent=23 // pred_fallthru
        _
    $region24: #{net_forward.8} parent=5 // pred_fallthru
      _
    %p212 = scmp.le.s32.totalorder 2, %s7
    // Predicated region
    $region29: #{net_forward.8} parent=5 // pred_check
      %p213 = pneg %p212
    $region30: #{net_forward.8} parent=5 // pred_check_branch
      %215 = sbr.rel (%p213) target = $region32
    $region31: #{net_forward.8} parent=5 // pred_region
      %s216 = ssub.s32 %s7, 2
      // Predicated region
      $region33: #{net_forward.8} parent=31 // pred_check
        %p217 = pneg %p62
      $region34: #{net_forward.8} parent=31 // pred_check_branch
        %219 = sbr.rel (%p217) target = $region36
      $region35: #{net_forward.8} parent=31 // pred_region
        %s220 = smul.u32 7, %s13
        %p221 = scmp.lt.s32.totalorder %s220, 13
        %s222 = scalar_select %p221, %s220, 13
        %s223 = smul.addr %s222, 4
        %s224 = scalar_lea.vmem %s1, %s223
      $region36: #{net_forward.8} parent=31 // pred_fallthru
        _
    $region32: #{net_forward.8} parent=5 // pred_fallthru
      _
  $region6: #{net_forward.8} parent=0 // loop_footer
    %s11 = sadd.s32 1, %s7
  $region7: #{net_forward.8} parent=0 // loop_footer_branch
    %6 = sbr.rel target = $region3
  $region8: #{net_forward.8} parent=0 // loop_exit
    _

// kernel: net_forward.9
$region0: #{net_forward.9}
  #allocation0 [shape = 'u32[]', space=smem, size = 0x4, offset = 0x4, fixed_abs, tag = 'smem constant byte address 0x4 - core index']
  #allocation1 [shape = 'u32[144,128]{1,0:T(1,128)}', space=vmem, size = 0x12000, scoped, tag = 'internal scratch']
  %s0 = inlined_call_operand.vmem [shape: bf16[2,3136], index: 0, kind: input, shape index: {}]
  %s1 = inlined_call_operand.vmem [shape: bf16[3136,128], index: 1, kind: input, shape index: {}]
  %s2 = inlined_call_operand.vmem [shape: f32[1,128], index: 2, kind: input, shape index: {}]
  %s3 = inlined_call_operand.vmem [shape: bf16[128,128], index: 3, kind: input, shape index: {}]
  %s4 = inlined_call_operand.vmem [shape: f32[1,128], index: 4, kind: input, shape index: {}]
  %s5 = inlined_call_operand.hbm [shape: f32[2,128], index: 5, kind: output, shape index: {}]
  %s6 = sld [smem:[#allocation0]]
  $region30: #{net_forward.9} parent=0
    _
  %s8 = ssub.s32 1, %s6
  %s9 = scalar_select 0, %s8, %s6
  $region1: #{net_forward.9} parent=0
    #allocation2 [shape = 'u8[1024]{0}', space=vmem, size = 0x400, scoped, tag = 'output window, operand 0, single buffered']
    #allocation3 [shape = 's32[1]{0}', space=sflag, size = 0x4, scoped, tag = 'scoped memory for net_forward.9']
    %10 = vsyncpa [#allocation3], 0
    // Predicated region
    $region2: #{net_forward.9} parent=1 // pred_check
      _
    $region3: #{net_forward.9} parent=1 // pred_check_branch
      %12 = sbr.rel (0) target = $region5
    $region4: #{net_forward.9} parent=1 // pred_region
      _
    $region5: #{net_forward.9} parent=1 // pred_fallthru
      _
    // Predicated region
    $region6: #{net_forward.9} parent=1 // pred_check
      _
    $region7: #{net_forward.9} parent=1 // pred_check_branch
      %14 = sbr.rel (0) target = $region9
    $region8: #{net_forward.9} parent=1 // pred_region
      _
    $region9: #{net_forward.9} parent=1 // pred_fallthru
      _
    // Predicated region
    $region10: #{net_forward.9} parent=1 // pred_check
      _
    $region11: #{net_forward.9} parent=1 // pred_check_branch
      %16 = sbr.rel (0) target = $region13
    $region12: #{net_forward.9} parent=1 // pred_region
      _
    $region13: #{net_forward.9} parent=1 // pred_fallthru
      _
    // Predicated region
    $region14: #{net_forward.9} parent=1 // pred_check
      _
    $region15: #{net_forward.9} parent=1 // pred_check_branch
      %18 = sbr.rel (0) target = $region17
    $region16: #{net_forward.9} parent=1 // pred_region
      _
    $region17: #{net_forward.9} parent=1 // pred_fallthru
      _
    // Predicated region
    $region18: #{net_forward.9} parent=1 // pred_check
      _
    $region19: #{net_forward.9} parent=1 // pred_check_branch
      %20 = sbr.rel (0) target = $region21
    $region20: #{net_forward.9} parent=1 // pred_region
      _
    $region21: #{net_forward.9} parent=1 // pred_fallthru
      _
    %v22 = vld [vmem:[%s0] sm:$0xff]
    %v23 = vld [vmem:[%s0 + $0x8] sm:$0xff]
    %v24 = vld [vmem:[%s0 + $0x10] sm:$0xff]
    %v25 = vld [vmem:[%s0 + $0x18] sm:$0x1]
    %v26 = vld [vmem:[%s1] sm:$0xf]
    %v27 = vld [vmem:[%s1 + $0x4] sm:$0xf]
    %v28 = vld [vmem:[%s1 + $0x8] sm:$0xf]
    %v29 = vld [vmem:[%s1 + $0xc] sm:$0xf]
    %v30 = vld [vmem:[%s1 + $0x10] sm:$0xf]
    %v31 = vld [vmem:[%s1 + $0x14] sm:$0xf]
    %v32 = vld [vmem:[%s1 + $0x18] sm:$0xf]
    %v33 = vld [vmem:[%s1 + $0x1c] sm:$0xf]
    %v34 = vld [vmem:[%s1 + $0x20] sm:$0xf]
    %v35 = vld [vmem:[%s1 + $0x24] sm:$0xf]
    %v36 = vld [vmem:[%s1 + $0x28] sm:$0xf]
    %v37 = vld [vmem:[%s1 + $0x2c] sm:$0xf]
    %v38 = vld [vmem:[%s1 + $0x30] sm:$0xf]
    %v39 = vld [vmem:[%s1 + $0x34] sm:$0xf]
    %v40 = vld [vmem:[%s1 + $0x38] sm:$0xf]
    %v41 = vld [vmem:[%s1 + $0x3c] sm:$0xf]
    %v42 = vld [vmem:[%s1 + $0x40] sm:$0xf]
    %v43 = vld [vmem:[%s1 + $0x44] sm:$0xf]
    %v44 = vld [vmem:[%s1 + $0x48] sm:$0xf]
    %v45 = vld [vmem:[%s1 + $0x4c] sm:$0xf]
    %v46 = vld [vmem:[%s1 + $0x50] sm:$0xf]
    %v47 = vld [vmem:[%s1 + $0x54] sm:$0xf]
    %v48 = vld [vmem:[%s1 + $0x58] sm:$0xf]
    %v49 = vld [vmem:[%s1 + $0x5c] sm:$0xf]
    %v50 = vld [vmem:[%s1 + $0x60] sm:$0xf]
    %v51 = vld [vmem:[%s1 + $0x64] sm:$0xf]
    %v52 = vld [vmem:[%s1 + $0x68] sm:$0xf]
    %v53 = vld [vmem:[%s1 + $0x6c] sm:$0xf]
    %v54 = vld [vmem:[%s1 + $0x70] sm:$0xf]
    %v55 = vld [vmem:[%s1 + $0x74] sm:$0xf]
    %v56 = vld [vmem:[%s1 + $0x78] sm:$0xf]
    %v57 = vld [vmem:[%s1 + $0x7c] sm:$0xf]
    %v58 = vld [vmem:[%s1 + $0x80] sm:$0xf]
    %v59 = vld [vmem:[%s1 + $0x84] sm:$0xf]
    %v60 = vld [vmem:[%s1 + $0x88] sm:$0xf]
    %v61 = vld [vmem:[%s1 + $0x8c] sm:$0xf]
    %v62 = vld [vmem:[%s1 + $0x90] sm:$0xf]
    %v63 = vld [vmem:[%s1 + $0x94] sm:$0xf]
    %v64 = vld [vmem:[%s1 + $0x98] sm:$0xf]
    %v65 = vld [vmem:[%s1 + $0x9c] sm:$0xf]
    %v66 = vld [vmem:[%s1 + $0xa0] sm:$0xf]
    %v67 = vld [vmem:[%s1 + $0xa4] sm:$0xf]
    %v68 = vld [vmem:[%s1 + $0xa8] sm:$0xf]
    %v69 = vld [vmem:[%s1 + $0xac] sm:$0xf]
    %v70 = vld [vmem:[%s1 + $0xb0] sm:$0xf]
    %v71 = vld [vmem:[%s1 + $0xb4] sm:$0xf]
    %v72 = vld [vmem:[%s1 + $0xb8] sm:$0xf]
    %v73 = vld [vmem:[%s1 + $0xbc] sm:$0xf]
    %v74 = vld [vmem:[%s1 + $0xc0] sm:$0xf]
    %v75 = vld [vmem:[%s1 + $0xc4] sm:$0xf]
    %v76 = vld [vmem:[%s1 + $0xc8] sm:$0xf]
    %v77 = vld [vmem:[%s1 + $0xcc] sm:$0xf]
    %v78 = vld [vmem:[%s1 + $0xd0] sm:$0xf]
    %v79 = vld [vmem:[%s1 + $0xd4] sm:$0xf]
    %v80 = vld [vmem:[%s1 + $0xd8] sm:$0xf]
    %v81 = vld [vmem:[%s1 + $0xdc] sm:$0xf]
    %v82 = vld [vmem:[%s1 + $0xe0] sm:$0xf]
    %v83 = vld [vmem:[%s1 + $0xe4] sm:$0xf]
    %v84 = vld [vmem:[%s1 + $0xe8] sm:$0xf]
    %v85 = vld [vmem:[%s1 + $0xec] sm:$0xf]
    %v86 = vld [vmem:[%s1 + $0xf0] sm:$0xf]
    %v87 = vld [vmem:[%s1 + $0xf4] sm:$0xf]
    %v88 = vld [vmem:[%s1 + $0xf8] sm:$0xf]
    %v89 = vld [vmem:[%s1 + $0xfc] sm:$0xf]
    %v90 = vld [vmem:[%s1 + $0x100] sm:$0xf]
    %v91 = vld [vmem:[%s1 + $0x104] sm:$0xf]
    %v92 = vld [vmem:[%s1 + $0x108] sm:$0xf]
    %v93 = vld [vmem:[%s1 + $0x10c] sm:$0xf]
    %v94 = vld [vmem:[%s1 + $0x110] sm:$0xf]
    %v95 = vld [vmem:[%s1 + $0x114] sm:$0xf]
    %v96 = vld [vmem:[%s1 + $0x118] sm:$0xf]
    %v97 = vld [vmem:[%s1 + $0x11c] sm:$0xf]
    %v98 = vld [vmem:[%s1 + $0x120] sm:$0xf]
    %v99 = vld [vmem:[%s1 + $0x124] sm:$0xf]
    %v100 = vld [vmem:[%s1 + $0x128] sm:$0xf]
    %v101 = vld [vmem:[%s1 + $0x12c] sm:$0xf]
    %v102 = vld [vmem:[%s1 + $0x130] sm:$0xf]
    %v103 = vld [vmem:[%s1 + $0x134] sm:$0xf]
    %v104 = vld [vmem:[%s1 + $0x138] sm:$0xf]
    %v105 = vld [vmem:[%s1 + $0x13c] sm:$0xf]
    %v106 = vld [vmem:[%s1 + $0x140] sm:$0xf]
    %v107 = vld [vmem:[%s1 + $0x144] sm:$0xf]
    %v108 = vld [vmem:[%s1 + $0x148] sm:$0xf]
    %v109 = vld [vmem:[%s1 + $0x14c] sm:$0xf]
    %v110 = vld [vmem:[%s1 + $0x150] sm:$0xf]
    %v111 = vld [vmem:[%s1 + $0x154] sm:$0xf]
    %v112 = vld [vmem:[%s1 + $0x158] sm:$0xf]
    %v113 = vld [vmem:[%s1 + $0x15c] sm:$0xf]
    %v114 = vld [vmem:[%s1 + $0x160] sm:$0xf]
    %v115 = vld [vmem:[%s1 + $0x164] sm:$0xf]
    %v116 = vld [vmem:[%s1 + $0x168] sm:$0xf]
    %v117 = vld [vmem:[%s1 + $0x16c] sm:$0xf]
    %v118 = vld [vmem:[%s1 + $0x170] sm:$0xf]
    %v119 = vld [vmem:[%s1 + $0x174] sm:$0xf]
    %v120 = vld [vmem:[%s1 + $0x178] sm:$0xf]
    %v121 = vld [vmem:[%s1 + $0x17c] sm:$0xf]
    %v122 = vld [vmem:[%s1 + $0x180] sm:$0xf]
    %v123 = vld [vmem:[%s1 + $0x184] sm:$0xf]
    %v124 = vld [vmem:[%s1 + $0x188] sm:$0xf]
    %v125 = vld [vmem:[%s1 + $0x18c] sm:$0xf]
    %v126 = vld [vmem:[%s1 + $0x190] sm:$0xf]
    %v127 = vld [vmem:[%s1 + $0x194] sm:$0xf]
    %v128 = vld [vmem:[%s1 + $0x198] sm:$0xf]
    %v129 = vld [vmem:[%s1 + $0x19c] sm:$0xf]
    %v130 = vld [vmem:[%s1 + $0x1a0] sm:$0xf]
    %v131 = vld [vmem:[%s1 + $0x1a4] sm:$0xf]
    %v132 = vld [vmem:[%s1 + $0x1a8] sm:$0xf]
    %v133 = vld [vmem:[%s1 + $0x1ac] sm:$0xf]
    %v134 = vld [vmem:[%s1 + $0x1b0] sm:$0xf]
    %v135 = vld [vmem:[%s1 + $0x1b4] sm:$0xf]
    %v136 = vld [vmem:[%s1 + $0x1b8] sm:$0xf]
    %v137 = vld [vmem:[%s1 + $0x1bc] sm:$0xf]
    %v138 = vld [vmem:[%s1 + $0x1c0] sm:$0xf]
    %v139 = vld [vmem:[%s1 + $0x1c4] sm:$0xf]
    %v140 = vld [vmem:[%s1 + $0x1c8] sm:$0xf]
    %v141 = vld [vmem:[%s1 + $0x1cc] sm:$0xf]
    %v142 = vld [vmem:[%s1 + $0x1d0] sm:$0xf]
    %v143 = vld [vmem:[%s1 + $0x1d4] sm:$0xf]
    %v144 = vld [vmem:[%s1 + $0x1d8] sm:$0xf]
    %v145 = vld [vmem:[%s1 + $0x1dc] sm:$0xf]
    %v146 = vld [vmem:[%s1 + $0x1e0] sm:$0xf]
    %v147 = vld [vmem:[%s1 + $0x1e4] sm:$0xf]
    %v148 = vld [vmem:[%s1 + $0x1e8] sm:$0xf]
    %v149 = vld [vmem:[%s1 + $0x1ec] sm:$0xf]
    %v150 = vld [vmem:[%s1 + $0x1f0] sm:$0xf]
    %v151 = vld [vmem:[%s1 + $0x1f4] sm:$0xf]
    %v152 = vld [vmem:[%s1 + $0x1f8] sm:$0xf]
    %v153 = vld [vmem:[%s1 + $0x1fc] sm:$0xf]
    %v154 = vld [vmem:[%s1 + $0x200] sm:$0xf]
    %v155 = vld [vmem:[%s1 + $0x204] sm:$0xf]
    %v156 = vld [vmem:[%s1 + $0x208] sm:$0xf]
    %v157 = vld [vmem:[%s1 + $0x20c] sm:$0xf]
    %v158 = vld [vmem:[%s1 + $0x210] sm:$0xf]
    %v159 = vld [vmem:[%s1 + $0x214] sm:$0xf]
    %v160 = vld [vmem:[%s1 + $0x218] sm:$0xf]
    %v161 = vld [vmem:[%s1 + $0x21c] sm:$0xf]
    %v162 = vld [vmem:[%s1 + $0x220] sm:$0xf]
    %v163 = vld [vmem:[%s1 + $0x224] sm:$0xf]
    %v164 = vld [vmem:[%s1 + $0x228] sm:$0xf]
    %v165 = vld [vmem:[%s1 + $0x22c] sm:$0xf]
    %v166 = vld [vmem:[%s1 + $0x230] sm:$0xf]
    %v167 = vld [vmem:[%s1 + $0x234] sm:$0xf]
    %v168 = vld [vmem:[%s1 + $0x238] sm:$0xf]
    %v169 = vld [vmem:[%s1 + $0x23c] sm:$0xf]
    %v170 = vld [vmem:[%s1 + $0x240] sm:$0xf]
    %v171 = vld [vmem:[%s1 + $0x244] sm:$0xf]
    %v172 = vld [vmem:[%s1 + $0x248] sm:$0xf]
    %v173 = vld [vmem:[%s1 + $0x24c] sm:$0xf]
    %v174 = vld [vmem:[%s1 + $0x250] sm:$0xf]
    %v175 = vld [vmem:[%s1 + $0x254] sm:$0xf]
    %v176 = vld [vmem:[%s1 + $0x258] sm:$0xf]
    %v177 = vld [vmem:[%s1 + $0x25c] sm:$0xf]
    %v178 = vld [vmem:[%s1 + $0x260] sm:$0xf]
    %v179 = vld [vmem:[%s1 + $0x264] sm:$0xf]
    %v180 = vld [vmem:[%s1 + $0x268] sm:$0xf]
    %v181 = vld [vmem:[%s1 + $0x26c] sm:$0xf]
    %v182 = vld [vmem:[%s1 + $0x270] sm:$0xf]
    %v183 = vld [vmem:[%s1 + $0x274] sm:$0xf]
    %v184 = vld [vmem:[%s1 + $0x278] sm:$0xf]
    %v185 = vld [vmem:[%s1 + $0x27c] sm:$0xf]
    %v186 = vld [vmem:[%s1 + $0x280] sm:$0xf]
    %v187 = vld [vmem:[%s1 + $0x284] sm:$0xf]
    %v188 = vld [vmem:[%s1 + $0x288] sm:$0xf]
    %v189 = vld [vmem:[%s1 + $0x28c] sm:$0xf]
    %v190 = vld [vmem:[%s1 + $0x290] sm:$0xf]
    %v191 = vld [vmem:[%s1 + $0x294] sm:$0xf]
    %v192 = vld [vmem:[%s1 + $0x298] sm:$0xf]
    %v193 = vld [vmem:[%s1 + $0x29c] sm:$0xf]
    %v194 = vld [vmem:[%s1 + $0x2a0] sm:$0xf]
    %v195 = vld [vmem:[%s1 + $0x2a4] sm:$0xf]
    %v196 = vld [vmem:[%s1 + $0x2a8] sm:$0xf]
    %v197 = vld [vmem:[%s1 + $0x2ac] sm:$0xf]
    %v198 = vld [vmem:[%s1 + $0x2b0] sm:$0xf]
    %v199 = vld [vmem:[%s1 + $0x2b4] sm:$0xf]
    %v200 = vld [vmem:[%s1 + $0x2b8] sm:$0xf]
    %v201 = vld [vmem:[%s1 + $0x2bc] sm:$0xf]
    %v202 = vld [vmem:[%s1 + $0x2c0] sm:$0xf]
    %v203 = vld [vmem:[%s1 + $0x2c4] sm:$0xf]
    %v204 = vld [vmem:[%s1 + $0x2c8] sm:$0xf]
    %v205 = vld [vmem:[%s1 + $0x2cc] sm:$0xf]
    %v206 = vld [vmem:[%s1 + $0x2d0] sm:$0xf]
    %v207 = vld [vmem:[%s1 + $0x2d4] sm:$0xf]
    %v208 = vld [vmem:[%s1 + $0x2d8] sm:$0xf]
    %v209 = vld [vmem:[%s1 + $0x2dc] sm:$0xf]
    %v210 = vld [vmem:[%s1 + $0x2e0] sm:$0xf]
    %v211 = vld [vmem:[%s1 + $0x2e4] sm:$0xf]
    %v212 = vld [vmem:[%s1 + $0x2e8] sm:$0xf]
    %v213 = vld [vmem:[%s1 + $0x2ec] sm:$0xf]
    %v214 = vld [vmem:[%s1 + $0x2f0] sm:$0xf]
    %v215 = vld [vmem:[%s1 + $0x2f4] sm:$0xf]
    %v216 = vld [vmem:[%s1 + $0x2f8] sm:$0xf]
    %v217 = vld [vmem:[%s1 + $0x2fc] sm:$0xf]
    %v218 = vld [vmem:[%s1 + $0x300] sm:$0xf]
    %v219 = vld [vmem:[%s1 + $0x304] sm:$0xf]
    %v220 = vld [vmem:[%s1 + $0x308] sm:$0xf]
    %v221 = vld [vmem:[%s1 + $0x30c] sm:$0xf]
    %v222 = vld [vmem:[%s1 + $0x310] sm:$0xf]
    %v223 = vld [vmem:[%s1 + $0x314] sm:$0xf]
    %v224 = vld [vmem:[%s1 + $0x318] sm:$0xf]
    %v225 = vld [vmem:[%s1 + $0x31c] sm:$0xf]
    %v226 = vld [vmem:[%s1 + $0x320] sm:$0xf]
    %v227 = vld [vmem:[%s1 + $0x324] sm:$0xf]
    %v228 = vld [vmem:[%s1 + $0x328] sm:$0xf]
    %v229 = vld [vmem:[%s1 + $0x32c] sm:$0xf]
    %v230 = vld [vmem:[%s1 + $0x330] sm:$0xf]
    %v231 = vld [vmem:[%s1 + $0x334] sm:$0xf]
    %v232 = vld [vmem:[%s1 + $0x338] sm:$0xf]
    %v233 = vld [vmem:[%s1 + $0x33c] sm:$0xf]
    %v234 = vld [vmem:[%s1 + $0x340] sm:$0xf]
    %v235 = vld [vmem:[%s1 + $0x344] sm:$0xf]
    %v236 = vld [vmem:[%s1 + $0x348] sm:$0xf]
    %v237 = vld [vmem:[%s1 + $0x34c] sm:$0xf]
    %v238 = vld [vmem:[%s1 + $0x350] sm:$0xf]
    %v239 = vld [vmem:[%s1 + $0x354] sm:$0xf]
    %v240 = vld [vmem:[%s1 + $0x358] sm:$0xf]
    %v241 = vld [vmem:[%s1 + $0x35c] sm:$0xf]
    %v242 = vld [vmem:[%s1 + $0x360] sm:$0xf]
    %v243 = vld [vmem:[%s1 + $0x364] sm:$0xf]
    %v244 = vld [vmem:[%s1 + $0x368] sm:$0xf]
    %v245 = vld [vmem:[%s1 + $0x36c] sm:$0xf]
    %v246 = vld [vmem:[%s1 + $0x370] sm:$0xf]
    %v247 = vld [vmem:[%s1 + $0x374] sm:$0xf]
    %v248 = vld [vmem:[%s1 + $0x378] sm:$0xf]
    %v249 = vld [vmem:[%s1 + $0x37c] sm:$0xf]
    %v250 = vld [vmem:[%s1 + $0x380] sm:$0xf]
    %v251 = vld [vmem:[%s1 + $0x384] sm:$0xf]
    %v252 = vld [vmem:[%s1 + $0x388] sm:$0xf]
    %v253 = vld [vmem:[%s1 + $0x38c] sm:$0xf]
    %v254 = vld [vmem:[%s1 + $0x390] sm:$0xf]
    %v255 = vld [vmem:[%s1 + $0x394] sm:$0xf]
    %v256 = vld [vmem:[%s1 + $0x398] sm:$0xf]
    %v257 = vld [vmem:[%s1 + $0x39c] sm:$0xf]
    %v258 = vld [vmem:[%s1 + $0x3a0] sm:$0xf]
    %v259 = vld [vmem:[%s1 + $0x3a4] sm:$0xf]
    %v260 = vld [vmem:[%s1 + $0x3a8] sm:$0xf]
    %v261 = vld [vmem:[%s1 + $0x3ac] sm:$0xf]
    %v262 = vld [vmem:[%s1 + $0x3b0] sm:$0xf]
    %v263 = vld [vmem:[%s1 + $0x3b4] sm:$0xf]
    %v264 = vld [vmem:[%s1 + $0x3b8] sm:$0xf]
    %v265 = vld [vmem:[%s1 + $0x3bc] sm:$0xf]
    %v266 = vld [vmem:[%s1 + $0x3c0] sm:$0xf]
    %v267 = vld [vmem:[%s1 + $0x3c4] sm:$0xf]
    %v268 = vld [vmem:[%s1 + $0x3c8] sm:$0xf]
    %v269 = vld [vmem:[%s1 + $0x3cc] sm:$0xf]
    %v270 = vld [vmem:[%s1 + $0x3d0] sm:$0xf]
    %v271 = vld [vmem:[%s1 + $0x3d4] sm:$0xf]
    %v272 = vld [vmem:[%s1 + $0x3d8] sm:$0xf]
    %v273 = vld [vmem:[%s1 + $0x3dc] sm:$0xf]
    %v274 = vld [vmem:[%s1 + $0x3e0] sm:$0xf]
    %v275 = vld [vmem:[%s1 + $0x3e4] sm:$0xf]
    %v276 = vld [vmem:[%s1 + $0x3e8] sm:$0xf]
    %v277 = vld [vmem:[%s1 + $0x3ec] sm:$0xf]
    %v278 = vld [vmem:[%s1 + $0x3f0] sm:$0xf]
    %v279 = vld [vmem:[%s1 + $0x3f4] sm:$0xf]
    %v280 = vld [vmem:[%s1 + $0x3f8] sm:$0xf]
    %v281 = vld [vmem:[%s1 + $0x3fc] sm:$0xf]
    %v282 = vld [vmem:[%s1 + $0x400] sm:$0xf]
    %v283 = vld [vmem:[%s1 + $0x404] sm:$0xf]
    %v284 = vld [vmem:[%s1 + $0x408] sm:$0xf]
    %v285 = vld [vmem:[%s1 + $0x40c] sm:$0xf]
    %v286 = vld [vmem:[%s1 + $0x410] sm:$0xf]
    %v287 = vld [vmem:[%s1 + $0x414] sm:$0xf]
    %v288 = vld [vmem:[%s1 + $0x418] sm:$0xf]
    %v289 = vld [vmem:[%s1 + $0x41c] sm:$0xf]
    %v290 = vld [vmem:[%s1 + $0x420] sm:$0xf]
    %v291 = vld [vmem:[%s1 + $0x424] sm:$0xf]
    %v292 = vld [vmem:[%s1 + $0x428] sm:$0xf]
    %v293 = vld [vmem:[%s1 + $0x42c] sm:$0xf]
    %v294 = vld [vmem:[%s1 + $0x430] sm:$0xf]
    %v295 = vld [vmem:[%s1 + $0x434] sm:$0xf]
    %v296 = vld [vmem:[%s1 + $0x438] sm:$0xf]
    %v297 = vld [vmem:[%s1 + $0x43c] sm:$0xf]
    %v298 = vld [vmem:[%s1 + $0x440] sm:$0xf]
    %v299 = vld [vmem:[%s1 + $0x444] sm:$0xf]
    %v300 = vld [vmem:[%s1 + $0x448] sm:$0xf]
    %v301 = vld [vmem:[%s1 + $0x44c] sm:$0xf]
    %v302 = vld [vmem:[%s1 + $0x450] sm:$0xf]
    %v303 = vld [vmem:[%s1 + $0x454] sm:$0xf]
    %v304 = vld [vmem:[%s1 + $0x458] sm:$0xf]
    %v305 = vld [vmem:[%s1 + $0x45c] sm:$0xf]
    %v306 = vld [vmem:[%s1 + $0x460] sm:$0xf]
    %v307 = vld [vmem:[%s1 + $0x464] sm:$0xf]
    %v308 = vld [vmem:[%s1 + $0x468] sm:$0xf]
    %v309 = vld [vmem:[%s1 + $0x46c] sm:$0xf]
    %v310 = vld [vmem:[%s1 + $0x470] sm:$0xf]
    %v311 = vld [vmem:[%s1 + $0x474] sm:$0xf]
    %v312 = vld [vmem:[%s1 + $0x478] sm:$0xf]
    %v313 = vld [vmem:[%s1 + $0x47c] sm:$0xf]
    %v314 = vld [vmem:[%s1 + $0x480] sm:$0xf]
    %v315 = vld [vmem:[%s1 + $0x484] sm:$0xf]
    %v316 = vld [vmem:[%s1 + $0x488] sm:$0xf]
    %v317 = vld [vmem:[%s1 + $0x48c] sm:$0xf]
    %v318 = vld [vmem:[%s1 + $0x490] sm:$0xf]
    %v319 = vld [vmem:[%s1 + $0x494] sm:$0xf]
    %v320 = vld [vmem:[%s1 + $0x498] sm:$0xf]
    %v321 = vld [vmem:[%s1 + $0x49c] sm:$0xf]
    %v322 = vld [vmem:[%s1 + $0x4a0] sm:$0xf]
    %v323 = vld [vmem:[%s1 + $0x4a4] sm:$0xf]
    %v324 = vld [vmem:[%s1 + $0x4a8] sm:$0xf]
    %v325 = vld [vmem:[%s1 + $0x4ac] sm:$0xf]
    %v326 = vld [vmem:[%s1 + $0x4b0] sm:$0xf]
    %v327 = vld [vmem:[%s1 + $0x4b4] sm:$0xf]
    %v328 = vld [vmem:[%s1 + $0x4b8] sm:$0xf]
    %v329 = vld [vmem:[%s1 + $0x4bc] sm:$0xf]
    %v330 = vld [vmem:[%s1 + $0x4c0] sm:$0xf]
    %v331 = vld [vmem:[%s1 + $0x4c4] sm:$0xf]
    %v332 = vld [vmem:[%s1 + $0x4c8] sm:$0xf]
    %v333 = vld [vmem:[%s1 + $0x4cc] sm:$0xf]
    %v334 = vld [vmem:[%s1 + $0x4d0] sm:$0xf]
    %v335 = vld [vmem:[%s1 + $0x4d4] sm:$0xf]
    %v336 = vld [vmem:[%s1 + $0x4d8] sm:$0xf]
    %v337 = vld [vmem:[%s1 + $0x4dc] sm:$0xf]
    %v338 = vld [vmem:[%s1 + $0x4e0] sm:$0xf]
    %v339 = vld [vmem:[%s1 + $0x4e4] sm:$0xf]
    %v340 = vld [vmem:[%s1 + $0x4e8] sm:$0xf]
    %v341 = vld [vmem:[%s1 + $0x4ec] sm:$0xf]
    %v342 = vld [vmem:[%s1 + $0x4f0] sm:$0xf]
    %v343 = vld [vmem:[%s1 + $0x4f4] sm:$0xf]
    %v344 = vld [vmem:[%s1 + $0x4f8] sm:$0xf]
    %v345 = vld [vmem:[%s1 + $0x4fc] sm:$0xf]
    %v346 = vld [vmem:[%s1 + $0x500] sm:$0xf]
    %v347 = vld [vmem:[%s1 + $0x504] sm:$0xf]
    %v348 = vld [vmem:[%s1 + $0x508] sm:$0xf]
    %v349 = vld [vmem:[%s1 + $0x50c] sm:$0xf]
    %v350 = vld [vmem:[%s1 + $0x510] sm:$0xf]
    %v351 = vld [vmem:[%s1 + $0x514] sm:$0xf]
    %v352 = vld [vmem:[%s1 + $0x518] sm:$0xf]
    %v353 = vld [vmem:[%s1 + $0x51c] sm:$0xf]
    %v354 = vld [vmem:[%s1 + $0x520] sm:$0xf]
    %v355 = vld [vmem:[%s1 + $0x524] sm:$0xf]
    %v356 = vld [vmem:[%s1 + $0x528] sm:$0xf]
    %v357 = vld [vmem:[%s1 + $0x52c] sm:$0xf]
    %v358 = vld [vmem:[%s1 + $0x530] sm:$0xf]
    %v359 = vld [vmem:[%s1 + $0x534] sm:$0xf]
    %v360 = vld [vmem:[%s1 + $0x538] sm:$0xf]
    %v361 = vld [vmem:[%s1 + $0x53c] sm:$0xf]
    %v362 = vld [vmem:[%s1 + $0x540] sm:$0xf]
    %v363 = vld [vmem:[%s1 + $0x544] sm:$0xf]
    %v364 = vld [vmem:[%s1 + $0x548] sm:$0xf]
    %v365 = vld [vmem:[%s1 + $0x54c] sm:$0xf]
    %v366 = vld [vmem:[%s1 + $0x550] sm:$0xf]
    %v367 = vld [vmem:[%s1 + $0x554] sm:$0xf]
    %v368 = vld [vmem:[%s1 + $0x558] sm:$0xf]
    %v369 = vld [vmem:[%s1 + $0x55c] sm:$0xf]
    %v370 = vld [vmem:[%s1 + $0x560] sm:$0xf]
    %v371 = vld [vmem:[%s1 + $0x564] sm:$0xf]
    %v372 = vld [vmem:[%s1 + $0x568] sm:$0xf]
    %v373 = vld [vmem:[%s1 + $0x56c] sm:$0xf]
    %v374 = vld [vmem:[%s1 + $0x570] sm:$0xf]
    %v375 = vld [vmem:[%s1 + $0x574] sm:$0xf]
    %v376 = vld [vmem:[%s1 + $0x578] sm:$0xf]
    %v377 = vld [vmem:[%s1 + $0x57c] sm:$0xf]
    %v378 = vld [vmem:[%s1 + $0x580] sm:$0xf]
    %v379 = vld [vmem:[%s1 + $0x584] sm:$0xf]
    %v380 = vld [vmem:[%s1 + $0x588] sm:$0xf]
    %v381 = vld [vmem:[%s1 + $0x58c] sm:$0xf]
    %v382 = vld [vmem:[%s1 + $0x590] sm:$0xf]
    %v383 = vld [vmem:[%s1 + $0x594] sm:$0xf]
    %v384 = vld [vmem:[%s1 + $0x598] sm:$0xf]
    %v385 = vld [vmem:[%s1 + $0x59c] sm:$0xf]
    %v386 = vld [vmem:[%s1 + $0x5a0] sm:$0xf]
    %v387 = vld [vmem:[%s1 + $0x5a4] sm:$0xf]
    %v388 = vld [vmem:[%s1 + $0x5a8] sm:$0xf]
    %v389 = vld [vmem:[%s1 + $0x5ac] sm:$0xf]
    %v390 = vld [vmem:[%s1 + $0x5b0] sm:$0xf]
    %v391 = vld [vmem:[%s1 + $0x5b4] sm:$0xf]
    %v392 = vld [vmem:[%s1 + $0x5b8] sm:$0xf]
    %v393 = vld [vmem:[%s1 + $0x5bc] sm:$0xf]
    %v394 = vld [vmem:[%s1 + $0x5c0] sm:$0xf]
    %v395 = vld [vmem:[%s1 + $0x5c4] sm:$0xf]
    %v396 = vld [vmem:[%s1 + $0x5c8] sm:$0xf]
    %v397 = vld [vmem:[%s1 + $0x5cc] sm:$0xf]
    %v398 = vld [vmem:[%s1 + $0x5d0] sm:$0xf]
    %v399 = vld [vmem:[%s1 + $0x5d4] sm:$0xf]
    %v400 = vld [vmem:[%s1 + $0x5d8] sm:$0xf]
    %v401 = vld [vmem:[%s1 + $0x5dc] sm:$0xf]
    %v402 = vld [vmem:[%s1 + $0x5e0] sm:$0xf]
    %v403 = vld [vmem:[%s1 + $0x5e4] sm:$0xf]
    %v404 = vld [vmem:[%s1 + $0x5e8] sm:$0xf]
    %v405 = vld [vmem:[%s1 + $0x5ec] sm:$0xf]
    %v406 = vld [vmem:[%s1 + $0x5f0] sm:$0xf]
    %v407 = vld [vmem:[%s1 + $0x5f4] sm:$0xf]
    %v408 = vld [vmem:[%s1 + $0x5f8] sm:$0xf]
    %v409 = vld [vmem:[%s1 + $0x5fc] sm:$0xf]
    %v410 = vld [vmem:[%s1 + $0x600] sm:$0xf]
    %v411 = vld [vmem:[%s1 + $0x604] sm:$0xf]
    %v412 = vld [vmem:[%s1 + $0x608] sm:$0xf]
    %v413 = vld [vmem:[%s1 + $0x60c] sm:$0xf]
    %v414 = vld [vmem:[%s1 + $0x610] sm:$0xf]
    %v415 = vld [vmem:[%s1 + $0x614] sm:$0xf]
    %v416 = vld [vmem:[%s1 + $0x618] sm:$0xf]
    %v417 = vld [vmem:[%s1 + $0x61c] sm:$0xf]
    %v418 = vld [vmem:[%s2] sm:$0x1]
    %v420 = vlaneseq
    %v421 = vshrl.u32 %v420, 7
    %v422 = vsub.s32 0, %v421
    %v423 = vrot.slane %v418, %v422
    %v429 = vcombine.high %v22, %v22
    %v431 = vunpack.c.l.s4 1966171168
    %v432 = vunpack.c.0.s8 %v431
    %v433 = vlaneseq
    %v434 = vshrl.u32 %v433, 7
    %v435 = vsub.s32 %v432, %v434
    %v436 = vrot.slane %v22, %v435
    %v438 = vunpack.c.l.s4 1966171168
    %v439 = vunpack.c.0.s8 %v438
    %v440 = vlaneseq
    %v441 = vshrl.u32 %v440, 7
    %v442 = vsub.s32 %v439, %v441
    %v443 = vrot.slane %v429, %v442
    %v444 = vcombine.high %v436, %v436
    %v445 = vcombine.high %v443, %v443
    %v447 = vunpack.c.l.s4 1966171168
    %v448 = vunpack.c.0.s8 %v447
    %v449 = vlaneseq
    %v450 = vshrl.u32 %v449, 7
    %v451 = vsub.s32 %v448, %v450
    %v452 = vrot.slane %v436, %v451
    %v454 = vunpack.c.l.s4 1966171168
    %v455 = vunpack.c.0.s8 %v454
    %v456 = vlaneseq
    %v457 = vshrl.u32 %v456, 7
    %v458 = vsub.s32 %v455, %v457
    %v459 = vrot.slane %v443, %v458
    %v461 = vunpack.c.l.s4 1966171168
    %v462 = vunpack.c.0.s8 %v461
    %v463 = vlaneseq
    %v464 = vshrl.u32 %v463, 7
    %v465 = vsub.s32 %v462, %v464
    %v466 = vrot.slane %v444, %v465
    %v468 = vunpack.c.l.s4 1966171168
    %v469 = vunpack.c.0.s8 %v468
    %v470 = vlaneseq
    %v471 = vshrl.u32 %v470, 7
    %v472 = vsub.s32 %v469, %v471
    %v473 = vrot.slane %v445, %v472
    %v474 = vcombine.high %v452, %v452
    %v475 = vcombine.high %v459, %v459
    %v476 = vcombine.high %v466, %v466
    %v477 = vcombine.high %v473, %v473
    %v478 = vcombine.high %v23, %v23
    %v480 = vunpack.c.l.s4 1966171168
    %v481 = vunpack.c.0.s8 %v480
    %v482 = vlaneseq
    %v483 = vshrl.u32 %v482, 7
    %v484 = vsub.s32 %v481, %v483
    %v485 = vrot.slane %v23, %v484
    %v487 = vunpack.c.l.s4 1966171168
    %v488 = vunpack.c.0.s8 %v487
    %v489 = vlaneseq
    %v490 = vshrl.u32 %v489, 7
    %v491 = vsub.s32 %v488, %v490
    %v492 = vrot.slane %v478, %v491
    %v493 = vcombine.high %v485, %v485
    %v494 = vcombine.high %v492, %v492
    %v496 = vunpack.c.l.s4 1966171168
    %v497 = vunpack.c.0.s8 %v496
    %v498 = vlaneseq
    %v499 = vshrl.u32 %v498, 7
    %v500 = vsub.s32 %v497, %v499
    %v501 = vrot.slane %v485, %v500
    %v503 = vunpack.c.l.s4 1966171168
    %v504 = vunpack.c.0.s8 %v503
    %v505 = vlaneseq
    %v506 = vshrl.u32 %v505, 7
    %v507 = vsub.s32 %v504, %v506
    %v508 = vrot.slane %v492, %v507
    %v510 = vunpack.c.l.s4 1966171168
    %v511 = vunpack.c.0.s8 %v510
    %v512 = vlaneseq
    %v513 = vshrl.u32 %v512, 7
    %v514 = vsub.s32 %v511, %v513
    %v515 = vrot.slane %v493, %v514
    %v517 = vunpack.c.l.s4 1966171168
    %v518 = vunpack.c.0.s8 %v517
    %v519 = vlaneseq
    %v520 = vshrl.u32 %v519, 7
    %v521 = vsub.s32 %v518, %v520
    %v522 = vrot.slane %v494, %v521
    %v523 = vcombine.high %v501, %v501
    %v524 = vcombine.high %v508, %v508
    %v525 = vcombine.high %v515, %v515
    %v526 = vcombine.high %v522, %v522
    %v527 = vcombine.high %v24, %v24
    %v529 = vunpack.c.l.s4 1966171168
    %v530 = vunpack.c.0.s8 %v529
    %v531 = vlaneseq
    %v532 = vshrl.u32 %v531, 7
    %v533 = vsub.s32 %v530, %v532
    %v534 = vrot.slane %v24, %v533
    %v536 = vunpack.c.l.s4 1966171168
    %v537 = vunpack.c.0.s8 %v536
    %v538 = vlaneseq
    %v539 = vshrl.u32 %v538, 7
    %v540 = vsub.s32 %v537, %v539
    %v541 = vrot.slane %v527, %v540
    %v542 = vcombine.high %v534, %v534
    %v543 = vcombine.high %v541, %v541
    %v545 = vunpack.c.l.s4 1966171168
    %v546 = vunpack.c.0.s8 %v545
    %v547 = vlaneseq
    %v548 = vshrl.u32 %v547, 7
    %v549 = vsub.s32 %v546, %v548
    %v550 = vrot.slane %v534, %v549
    %v552 = vunpack.c.l.s4 1966171168
    %v553 = vunpack.c.0.s8 %v552
    %v554 = vlaneseq
    %v555 = vshrl.u32 %v554, 7
    %v556 = vsub.s32 %v553, %v555
    %v557 = vrot.slane %v541, %v556
    %v559 = vunpack.c.l.s4 1966171168
    %v560 = vunpack.c.0.s8 %v559
    %v561 = vlaneseq
    %v562 = vshrl.u32 %v561, 7
    %v563 = vsub.s32 %v560, %v562
    %v564 = vrot.slane %v542, %v563
    %v566 = vunpack.c.l.s4 1966171168
    %v567 = vunpack.c.0.s8 %v566
    %v568 = vlaneseq
    %v569 = vshrl.u32 %v568, 7
    %v570 = vsub.s32 %v567, %v569
    %v571 = vrot.slane %v543, %v570
    %v572 = vcombine.high %v550, %v550
    %v573 = vcombine.high %v557, %v557
    %v574 = vcombine.high %v564, %v564
    %v575 = vcombine.high %v571, %v571
    %v577 = vunpack.c.l.s4 1966171168
    %v578 = vunpack.c.0.s8 %v577
    %v579 = vlaneseq
    %v580 = vshrl.u32 %v579, 7
    %v581 = vsub.s32 %v578, %v580
    %v582 = vrot.slane %v25, %v581
    %v584 = vunpack.c.l.s4 1966171168
    %v585 = vunpack.c.0.s8 %v584
    %v586 = vlaneseq
    %v587 = vshrl.u32 %v586, 7
    %v588 = vsub.s32 %v585, %v587
    %v589 = vrot.slane %v582, %v588
    %v1006 = vunpack.c.l.b16 %v26
    %v1007 = vunpack.c.l.b16 %v27
    %v1008 = vunpack.c.l.b16 %v28
    %v1009 = vunpack.c.l.b16 %v29
    %v1010 = vunpack.c.l.b16 %v30
    %v1011 = vunpack.c.l.b16 %v31
    %v1012 = vunpack.c.l.b16 %v32
    %v1013 = vunpack.c.l.b16 %v33
    %v1014 = vunpack.c.l.b16 %v34
    %v1015 = vunpack.c.l.b16 %v35
    %v1016 = vunpack.c.l.b16 %v36
    %v1017 = vunpack.c.l.b16 %v37
    %v1018 = vunpack.c.l.b16 %v38
    %v1019 = vunpack.c.l.b16 %v39
    %v1020 = vunpack.c.l.b16 %v40
    %v1021 = vunpack.c.l.b16 %v41
    %v1022 = vunpack.c.l.b16 %v42
    %v1023 = vunpack.c.l.b16 %v43
    %v1024 = vunpack.c.l.b16 %v44
    %v1025 = vunpack.c.l.b16 %v45
    %v1026 = vunpack.c.l.b16 %v46
    %v1027 = vunpack.c.l.b16 %v47
    %v1028 = vunpack.c.l.b16 %v48
    %v1029 = vunpack.c.l.b16 %v49
    %v1030 = vunpack.c.l.b16 %v50
    %v1031 = vunpack.c.l.b16 %v51
    %v1032 = vunpack.c.l.b16 %v52
    %v1033 = vunpack.c.l.b16 %v53
    %v1034 = vunpack.c.l.b16 %v54
    %v1035 = vunpack.c.l.b16 %v55
    %v1036 = vunpack.c.l.b16 %v56
    %v1037 = vunpack.c.l.b16 %v57
    %v1038 = vunpack.c.l.b16 %v58
    %v1039 = vunpack.c.l.b16 %v59
    %v1040 = vunpack.c.l.b16 %v60
    %v1041 = vunpack.c.l.b16 %v61
    %v1042 = vunpack.c.l.b16 %v62
    %v1043 = vunpack.c.l.b16 %v63
    %v1044 = vunpack.c.l.b16 %v64
    %v1045 = vunpack.c.l.b16 %v65
    %v1046 = vunpack.c.l.b16 %v66
    %v1047 = vunpack.c.l.b16 %v67
    %v1048 = vunpack.c.l.b16 %v68
    %v1049 = vunpack.c.l.b16 %v69
    %v1050 = vunpack.c.l.b16 %v70
    %v1051 = vunpack.c.l.b16 %v71
    %v1052 = vunpack.c.l.b16 %v72
    %v1053 = vunpack.c.l.b16 %v73
    %v1054 = vunpack.c.l.b16 %v74
    %v1055 = vunpack.c.l.b16 %v75
    %v1056 = vunpack.c.l.b16 %v76
    %v1057 = vunpack.c.l.b16 %v77
    %v1058 = vunpack.c.l.b16 %v78
    %v1059 = vunpack.c.l.b16 %v79
    %v1060 = vunpack.c.l.b16 %v80
    %v1061 = vunpack.c.l.b16 %v81
    %v1062 = vunpack.c.l.b16 %v82
    %v1063 = vunpack.c.l.b16 %v83
    %v1064 = vunpack.c.l.b16 %v84
    %v1065 = vunpack.c.l.b16 %v85
    %v1066 = vunpack.c.l.b16 %v86
    %v1067 = vunpack.c.l.b16 %v87
    %v1068 = vunpack.c.l.b16 %v88
    %v1069 = vunpack.c.l.b16 %v89
    %v1070 = vunpack.c.l.b16 %v90
    %v1071 = vunpack.c.l.b16 %v91
    %v1072 = vunpack.c.l.b16 %v92
    %v1073 = vunpack.c.l.b16 %v93
    %v1074 = vunpack.c.l.b16 %v94
    %v1075 = vunpack.c.l.b16 %v95
    %v1076 = vunpack.c.l.b16 %v96
    %v1077 = vunpack.c.l.b16 %v97
    %v1078 = vunpack.c.l.b16 %v98
    %v1079 = vunpack.c.l.b16 %v99
    %v1080 = vunpack.c.l.b16 %v100
    %v1081 = vunpack.c.l.b16 %v101
    %v1082 = vunpack.c.l.b16 %v102
    %v1083 = vunpack.c.l.b16 %v103
    %v1084 = vunpack.c.l.b16 %v104
    %v1085 = vunpack.c.l.b16 %v105
    %v1086 = vunpack.c.l.b16 %v106
    %v1087 = vunpack.c.l.b16 %v107
    %v1088 = vunpack.c.l.b16 %v108
    %v1089 = vunpack.c.l.b16 %v109
    %v1090 = vunpack.c.l.b16 %v110
    %v1091 = vunpack.c.l.b16 %v111
    %v1092 = vunpack.c.l.b16 %v112
    %v1093 = vunpack.c.l.b16 %v113
    %v1094 = vunpack.c.l.b16 %v114
    %v1095 = vunpack.c.l.b16 %v115
    %v1096 = vunpack.c.l.b16 %v116
    %v1097 = vunpack.c.l.b16 %v117
    %v1098 = vunpack.c.l.b16 %v118
    %v1099 = vunpack.c.l.b16 %v119
    %v1100 = vunpack.c.l.b16 %v120
    %v1101 = vunpack.c.l.b16 %v121
    %v1102 = vunpack.c.l.b16 %v122
    %v1103 = vunpack.c.l.b16 %v123
    %v1104 = vunpack.c.l.b16 %v124
    %v1105 = vunpack.c.l.b16 %v125
    %v1106 = vunpack.c.l.b16 %v126
    %v1107 = vunpack.c.l.b16 %v127
    %v1108 = vunpack.c.l.b16 %v128
    %v1109 = vunpack.c.l.b16 %v129
    %v1110 = vunpack.c.l.b16 %v130
    %v1111 = vunpack.c.l.b16 %v131
    %v1112 = vunpack.c.l.b16 %v132
    %v1113 = vunpack.c.l.b16 %v133
    %v1114 = vunpack.c.l.b16 %v134
    %v1115 = vunpack.c.l.b16 %v135
    %v1116 = vunpack.c.l.b16 %v136
    %v1117 = vunpack.c.l.b16 %v137
    %v1118 = vunpack.c.l.b16 %v138
    %v1119 = vunpack.c.l.b16 %v139
    %v1120 = vunpack.c.l.b16 %v140
    %v1121 = vunpack.c.l.b16 %v141
    %v1122 = vunpack.c.l.b16 %v142
    %v1123 = vunpack.c.l.b16 %v143
    %v1124 = vunpack.c.l.b16 %v144
    %v1125 = vunpack.c.l.b16 %v145
    %v1126 = vunpack.c.l.b16 %v146
    %v1127 = vunpack.c.l.b16 %v147
    %v1128 = vunpack.c.l.b16 %v148
    %v1129 = vunpack.c.l.b16 %v149
    %v1130 = vunpack.c.l.b16 %v150
    %v1131 = vunpack.c.l.b16 %v151
    %v1132 = vunpack.c.l.b16 %v152
    %v1133 = vunpack.c.l.b16 %v153
    %v1134 = vunpack.c.l.b16 %v154
    %v1135 = vunpack.c.l.b16 %v155
    %v1136 = vunpack.c.l.b16 %v156
    %v1137 = vunpack.c.l.b16 %v157
    %v1138 = vunpack.c.l.b16 %v158
    %v1139 = vunpack.c.l.b16 %v159
    %v1140 = vunpack.c.l.b16 %v160
    %v1141 = vunpack.c.l.b16 %v161
    %v1142 = vunpack.c.l.b16 %v162
    %v1143 = vunpack.c.l.b16 %v163
    %v1144 = vunpack.c.l.b16 %v164
    %v1145 = vunpack.c.l.b16 %v165
    %v1146 = vunpack.c.l.b16 %v166
    %v1147 = vunpack.c.l.b16 %v167
    %v1148 = vunpack.c.l.b16 %v168
    %v1149 = vunpack.c.l.b16 %v169
    %v1150 = vunpack.c.l.b16 %v170
    %v1151 = vunpack.c.l.b16 %v171
    %v1152 = vunpack.c.l.b16 %v172
    %v1153 = vunpack.c.l.b16 %v173
    %v1154 = vunpack.c.l.b16 %v174
    %v1155 = vunpack.c.l.b16 %v175
    %v1156 = vunpack.c.l.b16 %v176
    %v1157 = vunpack.c.l.b16 %v177
    %v1158 = vunpack.c.l.b16 %v178
    %v1159 = vunpack.c.l.b16 %v179
    %v1160 = vunpack.c.l.b16 %v180
    %v1161 = vunpack.c.l.b16 %v181
    %v1162 = vunpack.c.l.b16 %v182
    %v1163 = vunpack.c.l.b16 %v183
    %v1164 = vunpack.c.l.b16 %v184
    %v1165 = vunpack.c.l.b16 %v185
    %v1166 = vunpack.c.l.b16 %v186
    %v1167 = vunpack.c.l.b16 %v187
    %v1168 = vunpack.c.l.b16 %v188
    %v1169 = vunpack.c.l.b16 %v189
    %v1170 = vunpack.c.l.b16 %v190
    %v1171 = vunpack.c.l.b16 %v191
    %v1172 = vunpack.c.l.b16 %v192
    %v1173 = vunpack.c.l.b16 %v193
    %v1174 = vunpack.c.l.b16 %v194
    %v1175 = vunpack.c.l.b16 %v195
    %v1176 = vunpack.c.l.b16 %v196
    %v1177 = vunpack.c.l.b16 %v197
    %v1178 = vunpack.c.l.b16 %v198
    %v1179 = vunpack.c.l.b16 %v199
    %v1180 = vunpack.c.l.b16 %v200
    %v1181 = vunpack.c.l.b16 %v201
    %v1182 = vunpack.c.l.b16 %v202
    %v1183 = vunpack.c.l.b16 %v203
    %v1184 = vunpack.c.l.b16 %v204
    %v1185 = vunpack.c.l.b16 %v205
    %v1186 = vunpack.c.l.b16 %v206
    %v1187 = vunpack.c.l.b16 %v207
    %v1188 = vunpack.c.l.b16 %v208
    %v1189 = vunpack.c.l.b16 %v209
    %v1190 = vunpack.c.l.b16 %v210
    %v1191 = vunpack.c.l.b16 %v211
    %v1192 = vunpack.c.l.b16 %v212
    %v1193 = vunpack.c.l.b16 %v213
    %v1194 = vunpack.c.l.b16 %v214
    %v1195 = vunpack.c.l.b16 %v215
    %v1196 = vunpack.c.l.b16 %v216
    %v1197 = vunpack.c.l.b16 %v217
    %v1198 = vunpack.c.l.b16 %v218
    %v1199 = vunpack.c.l.b16 %v219
    %v1200 = vunpack.c.l.b16 %v220
    %v1201 = vunpack.c.l.b16 %v221
    %v1202 = vunpack.c.l.b16 %v222
    %v1203 = vunpack.c.l.b16 %v223
    %v1204 = vunpack.c.l.b16 %v224
    %v1205 = vunpack.c.l.b16 %v225
    %v1206 = vunpack.c.l.b16 %v226
    %v1207 = vunpack.c.l.b16 %v227
    %v1208 = vunpack.c.l.b16 %v228
    %v1209 = vunpack.c.l.b16 %v229
    %v1210 = vunpack.c.l.b16 %v230
    %v1211 = vunpack.c.l.b16 %v231
    %v1212 = vunpack.c.l.b16 %v232
    %v1213 = vunpack.c.l.b16 %v233
    %v1214 = vunpack.c.l.b16 %v234
    %v1215 = vunpack.c.l.b16 %v235
    %v1216 = vunpack.c.l.b16 %v236
    %v1217 = vunpack.c.l.b16 %v237
    %v1218 = vunpack.c.l.b16 %v238
    %v1219 = vunpack.c.l.b16 %v239
    %v1220 = vunpack.c.l.b16 %v240
    %v1221 = vunpack.c.l.b16 %v241
    %v1222 = vunpack.c.l.b16 %v242
    %v1223 = vunpack.c.l.b16 %v243
    %v1224 = vunpack.c.l.b16 %v244
    %v1225 = vunpack.c.l.b16 %v245
    %v1226 = vunpack.c.l.b16 %v246
    %v1227 = vunpack.c.l.b16 %v247
    %v1228 = vunpack.c.l.b16 %v248
    %v1229 = vunpack.c.l.b16 %v249
    %v1230 = vunpack.c.l.b16 %v250
    %v1231 = vunpack.c.l.b16 %v251
    %v1232 = vunpack.c.l.b16 %v252
    %v1233 = vunpack.c.l.b16 %v253
    %v1234 = vunpack.c.l.b16 %v254
    %v1235 = vunpack.c.l.b16 %v255
    %v1236 = vunpack.c.l.b16 %v256
    %v1237 = vunpack.c.l.b16 %v257
    %v1238 = vunpack.c.l.b16 %v258
    %v1239 = vunpack.c.l.b16 %v259
    %v1240 = vunpack.c.l.b16 %v260
    %v1241 = vunpack.c.l.b16 %v261
    %v1242 = vunpack.c.l.b16 %v262
    %v1243 = vunpack.c.l.b16 %v263
    %v1244 = vunpack.c.l.b16 %v264
    %v1245 = vunpack.c.l.b16 %v265
    %v1246 = vunpack.c.l.b16 %v266
    %v1247 = vunpack.c.l.b16 %v267
    %v1248 = vunpack.c.l.b16 %v268
    %v1249 = vunpack.c.l.b16 %v269
    %v1250 = vunpack.c.l.b16 %v270
    %v1251 = vunpack.c.l.b16 %v271
    %v1252 = vunpack.c.l.b16 %v272
    %v1253 = vunpack.c.l.b16 %v273
    %v1254 = vunpack.c.l.b16 %v274
    %v1255 = vunpack.c.l.b16 %v275
    %v1256 = vunpack.c.l.b16 %v276
    %v1257 = vunpack.c.l.b16 %v277
    %v1258 = vunpack.c.l.b16 %v278
    %v1259 = vunpack.c.l.b16 %v279
    %v1260 = vunpack.c.l.b16 %v280
    %v1261 = vunpack.c.l.b16 %v281
    %v1262 = vunpack.c.l.b16 %v282
    %v1263 = vunpack.c.l.b16 %v283
    %v1264 = vunpack.c.l.b16 %v284
    %v1265 = vunpack.c.l.b16 %v285
    %v1266 = vunpack.c.l.b16 %v286
    %v1267 = vunpack.c.l.b16 %v287
    %v1268 = vunpack.c.l.b16 %v288
    %v1269 = vunpack.c.l.b16 %v289
    %v1270 = vunpack.c.l.b16 %v290
    %v1271 = vunpack.c.l.b16 %v291
    %v1272 = vunpack.c.l.b16 %v292
    %v1273 = vunpack.c.l.b16 %v293
    %v1274 = vunpack.c.l.b16 %v294
    %v1275 = vunpack.c.l.b16 %v295
    %v1276 = vunpack.c.l.b16 %v296
    %v1277 = vunpack.c.l.b16 %v297
    %v1278 = vunpack.c.l.b16 %v298
    %v1279 = vunpack.c.l.b16 %v299
    %v1280 = vunpack.c.l.b16 %v300
    %v1281 = vunpack.c.l.b16 %v301
    %v1282 = vunpack.c.l.b16 %v302
    %v1283 = vunpack.c.l.b16 %v303
    %v1284 = vunpack.c.l.b16 %v304
    %v1285 = vunpack.c.l.b16 %v305
    %v1286 = vunpack.c.l.b16 %v306
    %v1287 = vunpack.c.l.b16 %v307
    %v1288 = vunpack.c.l.b16 %v308
    %v1289 = vunpack.c.l.b16 %v309
    %v1290 = vunpack.c.l.b16 %v310
    %v1291 = vunpack.c.l.b16 %v311
    %v1292 = vunpack.c.l.b16 %v312
    %v1293 = vunpack.c.l.b16 %v313
    %v1294 = vunpack.c.l.b16 %v314
    %v1295 = vunpack.c.l.b16 %v315
    %v1296 = vunpack.c.l.b16 %v316
    %v1297 = vunpack.c.l.b16 %v317
    %v1298 = vunpack.c.l.b16 %v318
    %v1299 = vunpack.c.l.b16 %v319
    %v1300 = vunpack.c.l.b16 %v320
    %v1301 = vunpack.c.l.b16 %v321
    %v1302 = vunpack.c.l.b16 %v322
    %v1303 = vunpack.c.l.b16 %v323
    %v1304 = vunpack.c.l.b16 %v324
    %v1305 = vunpack.c.l.b16 %v325
    %v1306 = vunpack.c.l.b16 %v326
    %v1307 = vunpack.c.l.b16 %v327
    %v1308 = vunpack.c.l.b16 %v328
    %v1309 = vunpack.c.l.b16 %v329
    %v1310 = vunpack.c.l.b16 %v330
    %v1311 = vunpack.c.l.b16 %v331
    %v1312 = vunpack.c.l.b16 %v332
    %v1313 = vunpack.c.l.b16 %v333
    %v1314 = vunpack.c.l.b16 %v334
    %v1315 = vunpack.c.l.b16 %v335
    %v1316 = vunpack.c.l.b16 %v336
    %v1317 = vunpack.c.l.b16 %v337
    %v1318 = vunpack.c.l.b16 %v338
    %v1319 = vunpack.c.l.b16 %v339
    %v1320 = vunpack.c.l.b16 %v340
    %v1321 = vunpack.c.l.b16 %v341
    %v1322 = vunpack.c.l.b16 %v342
    %v1323 = vunpack.c.l.b16 %v343
    %v1324 = vunpack.c.l.b16 %v344
    %v1325 = vunpack.c.l.b16 %v345
    %v1326 = vunpack.c.l.b16 %v346
    %v1327 = vunpack.c.l.b16 %v347
    %v1328 = vunpack.c.l.b16 %v348
    %v1329 = vunpack.c.l.b16 %v349
    %v1330 = vunpack.c.l.b16 %v350
    %v1331 = vunpack.c.l.b16 %v351
    %v1332 = vunpack.c.l.b16 %v352
    %v1333 = vunpack.c.l.b16 %v353
    %v1334 = vunpack.c.l.b16 %v354
    %v1335 = vunpack.c.l.b16 %v355
    %v1336 = vunpack.c.l.b16 %v356
    %v1337 = vunpack.c.l.b16 %v357
    %v1338 = vunpack.c.l.b16 %v358
    %v1339 = vunpack.c.l.b16 %v359
    %v1340 = vunpack.c.l.b16 %v360
    %v1341 = vunpack.c.l.b16 %v361
    %v1342 = vunpack.c.l.b16 %v362
    %v1343 = vunpack.c.l.b16 %v363
    %v1344 = vunpack.c.l.b16 %v364
    %v1345 = vunpack.c.l.b16 %v365
    %v1346 = vunpack.c.l.b16 %v366
    %v1347 = vunpack.c.l.b16 %v367
    %v1348 = vunpack.c.l.b16 %v368
    %v1349 = vunpack.c.l.b16 %v369
    %v1350 = vunpack.c.l.b16 %v370
    %v1351 = vunpack.c.l.b16 %v371
    %v1352 = vunpack.c.l.b16 %v372
    %v1353 = vunpack.c.l.b16 %v373
    %v1354 = vunpack.c.l.b16 %v374
    %v1355 = vunpack.c.l.b16 %v375
    %v1356 = vunpack.c.l.b16 %v376
    %v1357 = vunpack.c.l.b16 %v377
    %v1358 = vunpack.c.l.b16 %v378
    %v1359 = vunpack.c.l.b16 %v379
    %v1360 = vunpack.c.l.b16 %v380
    %v1361 = vunpack.c.l.b16 %v381
    %v1362 = vunpack.c.l.b16 %v382
    %v1363 = vunpack.c.l.b16 %v383
    %v1364 = vunpack.c.l.b16 %v384
    %v1365 = vunpack.c.l.b16 %v385
    %v1366 = vunpack.c.l.b16 %v386
    %v1367 = vunpack.c.l.b16 %v387
    %v1368 = vunpack.c.l.b16 %v388
    %v1369 = vunpack.c.l.b16 %v389
    %v1370 = vunpack.c.l.b16 %v390
    %v1371 = vunpack.c.l.b16 %v391
    %v1372 = vunpack.c.l.b16 %v392
    %v1373 = vunpack.c.l.b16 %v393
    %v1374 = vunpack.c.l.b16 %v394
    %v1375 = vunpack.c.l.b16 %v395
    %v1376 = vunpack.c.l.b16 %v396
    %v1377 = vunpack.c.l.b16 %v397
    %v1378 = vunpack.c.l.b16 %v398
    %v1379 = vunpack.c.l.b16 %v399
    %v1380 = vunpack.c.l.b16 %v400
    %v1381 = vunpack.c.l.b16 %v401
    %v1382 = vunpack.c.l.b16 %v402
    %v1383 = vunpack.c.l.b16 %v403
    %v1384 = vunpack.c.l.b16 %v404
    %v1385 = vunpack.c.l.b16 %v405
    %v1386 = vunpack.c.l.b16 %v406
    %v1387 = vunpack.c.l.b16 %v407
    %v1388 = vunpack.c.l.b16 %v408
    %v1389 = vunpack.c.l.b16 %v409
    %v1390 = vunpack.c.l.b16 %v410
    %v1391 = vunpack.c.l.b16 %v411
    %v1392 = vunpack.c.l.b16 %v412
    %v1393 = vunpack.c.l.b16 %v413
    %v1394 = vunpack.c.l.b16 %v414
    %v1395 = vunpack.c.l.b16 %v415
    %v1396 = vunpack.c.l.b16 %v416
    %v1397 = vunpack.c.l.b16 %v417
    %v1398 = vpack.c.b16 %v1007, %v1006
    %v1399 = vpack.c.b16 %v1009, %v1008
    %v1400 = vpack.c.b16 %v1011, %v1010
    %v1401 = vpack.c.b16 %v1013, %v1012
    %v1402 = vpack.c.b16 %v1015, %v1014
    %v1403 = vpack.c.b16 %v1017, %v1016
    %v1404 = vpack.c.b16 %v1019, %v1018
    %v1405 = vpack.c.b16 %v1021, %v1020
    %v1406 = vpack.c.b16 %v1023, %v1022
    %v1407 = vpack.c.b16 %v1025, %v1024
    %v1408 = vpack.c.b16 %v1027, %v1026
    %v1409 = vpack.c.b16 %v1029, %v1028
    %v1410 = vpack.c.b16 %v1031, %v1030
    %v1411 = vpack.c.b16 %v1033, %v1032
    %v1412 = vpack.c.b16 %v1035, %v1034
    %v1413 = vpack.c.b16 %v1037, %v1036
    %v1414 = vpack.c.b16 %v1039, %v1038
    %v1415 = vpack.c.b16 %v1041, %v1040
    %v1416 = vpack.c.b16 %v1043, %v1042
    %v1417 = vpack.c.b16 %v1045, %v1044
    %v1418 = vpack.c.b16 %v1047, %v1046
    %v1419 = vpack.c.b16 %v1049, %v1048
    %v1420 = vpack.c.b16 %v1051, %v1050
    %v1421 = vpack.c.b16 %v1053, %v1052
    %v1422 = vpack.c.b16 %v1055, %v1054
    %v1423 = vpack.c.b16 %v1057, %v1056
    %v1424 = vpack.c.b16 %v1059, %v1058
    %v1425 = vpack.c.b16 %v1061, %v1060
    %v1426 = vpack.c.b16 %v1063, %v1062
    %v1427 = vpack.c.b16 %v1065, %v1064
    %v1428 = vpack.c.b16 %v1067, %v1066
    %v1429 = vpack.c.b16 %v1069, %v1068
    %v1430 = vpack.c.b16 %v1071, %v1070
    %v1431 = vpack.c.b16 %v1073, %v1072
    %v1432 = vpack.c.b16 %v1075, %v1074
    %v1433 = vpack.c.b16 %v1077, %v1076
    %v1434 = vpack.c.b16 %v1079, %v1078
    %v1435 = vpack.c.b16 %v1081, %v1080
    %v1436 = vpack.c.b16 %v1083, %v1082
    %v1437 = vpack.c.b16 %v1085, %v1084
    %v1438 = vpack.c.b16 %v1087, %v1086
    %v1439 = vpack.c.b16 %v1089, %v1088
    %v1440 = vpack.c.b16 %v1091, %v1090
    %v1441 = vpack.c.b16 %v1093, %v1092
    %v1442 = vpack.c.b16 %v1095, %v1094
    %v1443 = vpack.c.b16 %v1097, %v1096
    %v1444 = vpack.c.b16 %v1099, %v1098
    %v1445 = vpack.c.b16 %v1101, %v1100
    %v1446 = vpack.c.b16 %v1103, %v1102
    %v1447 = vpack.c.b16 %v1105, %v1104
    %v1448 = vpack.c.b16 %v1107, %v1106
    %v1449 = vpack.c.b16 %v1109, %v1108
    %v1450 = vpack.c.b16 %v1111, %v1110
    %v1451 = vpack.c.b16 %v1113, %v1112
    %v1452 = vpack.c.b16 %v1115, %v1114
    %v1453 = vpack.c.b16 %v1117, %v1116
    %v1454 = vpack.c.b16 %v1119, %v1118
    %v1455 = vpack.c.b16 %v1121, %v1120
    %v1456 = vpack.c.b16 %v1123, %v1122
    %v1457 = vpack.c.b16 %v1125, %v1124
    %v1458 = vpack.c.b16 %v1127, %v1126
    %v1459 = vpack.c.b16 %v1129, %v1128
    %v1460 = vpack.c.b16 %v1131, %v1130
    %v1461 = vpack.c.b16 %v1133, %v1132
    %v1462 = vpack.c.b16 %v1135, %v1134
    %v1463 = vpack.c.b16 %v1137, %v1136
    %v1464 = vpack.c.b16 %v1139, %v1138
    %v1465 = vpack.c.b16 %v1141, %v1140
    %v1466 = vpack.c.b16 %v1143, %v1142
    %v1467 = vpack.c.b16 %v1145, %v1144
    %v1468 = vpack.c.b16 %v1147, %v1146
    %v1469 = vpack.c.b16 %v1149, %v1148
    %v1470 = vpack.c.b16 %v1151, %v1150
    %v1471 = vpack.c.b16 %v1153, %v1152
    %v1472 = vpack.c.b16 %v1155, %v1154
    %v1473 = vpack.c.b16 %v1157, %v1156
    %v1474 = vpack.c.b16 %v1159, %v1158
    %v1475 = vpack.c.b16 %v1161, %v1160
    %v1476 = vpack.c.b16 %v1163, %v1162
    %v1477 = vpack.c.b16 %v1165, %v1164
    %v1478 = vpack.c.b16 %v1167, %v1166
    %v1479 = vpack.c.b16 %v1169, %v1168
    %v1480 = vpack.c.b16 %v1171, %v1170
    %v1481 = vpack.c.b16 %v1173, %v1172
    %v1482 = vpack.c.b16 %v1175, %v1174
    %v1483 = vpack.c.b16 %v1177, %v1176
    %v1484 = vpack.c.b16 %v1179, %v1178
    %v1485 = vpack.c.b16 %v1181, %v1180
    %v1486 = vpack.c.b16 %v1183, %v1182
    %v1487 = vpack.c.b16 %v1185, %v1184
    %v1488 = vpack.c.b16 %v1187, %v1186
    %v1489 = vpack.c.b16 %v1189, %v1188
    %v1490 = vpack.c.b16 %v1191, %v1190
    %v1491 = vpack.c.b16 %v1193, %v1192
    %v1492 = vpack.c.b16 %v1195, %v1194
    %v1493 = vpack.c.b16 %v1197, %v1196
    %v1494 = vpack.c.b16 %v1199, %v1198
    %v1495 = vpack.c.b16 %v1201, %v1200
    %v1496 = vpack.c.b16 %v1203, %v1202
    %v1497 = vpack.c.b16 %v1205, %v1204
    %v1498 = vpack.c.b16 %v1207, %v1206
    %v1499 = vpack.c.b16 %v1209, %v1208
    %v1500 = vpack.c.b16 %v1211, %v1210
    %v1501 = vpack.c.b16 %v1213, %v1212
    %v1502 = vpack.c.b16 %v1215, %v1214
    %v1503 = vpack.c.b16 %v1217, %v1216
    %v1504 = vpack.c.b16 %v1219, %v1218
    %v1505 = vpack.c.b16 %v1221, %v1220
    %v1506 = vpack.c.b16 %v1223, %v1222
    %v1507 = vpack.c.b16 %v1225, %v1224
    %v1508 = vpack.c.b16 %v1227, %v1226
    %v1509 = vpack.c.b16 %v1229, %v1228
    %v1510 = vpack.c.b16 %v1231, %v1230
    %v1511 = vpack.c.b16 %v1233, %v1232
    %v1512 = vpack.c.b16 %v1235, %v1234
    %v1513 = vpack.c.b16 %v1237, %v1236
    %v1514 = vpack.c.b16 %v1239, %v1238
    %v1515 = vpack.c.b16 %v1241, %v1240
    %v1516 = vpack.c.b16 %v1243, %v1242
    %v1517 = vpack.c.b16 %v1245, %v1244
    %v1518 = vpack.c.b16 %v1247, %v1246
    %v1519 = vpack.c.b16 %v1249, %v1248
    %v1520 = vpack.c.b16 %v1251, %v1250
    %v1521 = vpack.c.b16 %v1253, %v1252
    %v1522 = vpack.c.b16 %v1255, %v1254
    %v1523 = vpack.c.b16 %v1257, %v1256
    %v1524 = vpack.c.b16 %v1259, %v1258
    %v1525 = vpack.c.b16 %v1261, %v1260
    %v1526 = vpack.c.b16 %v1263, %v1262
    %v1527 = vpack.c.b16 %v1265, %v1264
    %v1528 = vpack.c.b16 %v1267, %v1266
    %v1529 = vpack.c.b16 %v1269, %v1268
    %v1530 = vpack.c.b16 %v1271, %v1270
    %v1531 = vpack.c.b16 %v1273, %v1272
    %v1532 = vpack.c.b16 %v1275, %v1274
    %v1533 = vpack.c.b16 %v1277, %v1276
    %v1534 = vpack.c.b16 %v1279, %v1278
    %v1535 = vpack.c.b16 %v1281, %v1280
    %v1536 = vpack.c.b16 %v1283, %v1282
    %v1537 = vpack.c.b16 %v1285, %v1284
    %v1538 = vpack.c.b16 %v1287, %v1286
    %v1539 = vpack.c.b16 %v1289, %v1288
    %v1540 = vpack.c.b16 %v1291, %v1290
    %v1541 = vpack.c.b16 %v1293, %v1292
    %v1542 = vpack.c.b16 %v1295, %v1294
    %v1543 = vpack.c.b16 %v1297, %v1296
    %v1544 = vpack.c.b16 %v1299, %v1298
    %v1545 = vpack.c.b16 %v1301, %v1300
    %v1546 = vpack.c.b16 %v1303, %v1302
    %v1547 = vpack.c.b16 %v1305, %v1304
    %v1548 = vpack.c.b16 %v1307, %v1306
    %v1549 = vpack.c.b16 %v1309, %v1308
    %v1550 = vpack.c.b16 %v1311, %v1310
    %v1551 = vpack.c.b16 %v1313, %v1312
    %v1552 = vpack.c.b16 %v1315, %v1314
    %v1553 = vpack.c.b16 %v1317, %v1316
    %v1554 = vpack.c.b16 %v1319, %v1318
    %v1555 = vpack.c.b16 %v1321, %v1320
    %v1556 = vpack.c.b16 %v1323, %v1322
    %v1557 = vpack.c.b16 %v1325, %v1324
    %v1558 = vpack.c.b16 %v1327, %v1326
    %v1559 = vpack.c.b16 %v1329, %v1328
    %v1560 = vpack.c.b16 %v1331, %v1330
    %v1561 = vpack.c.b16 %v1333, %v1332
    %v1562 = vpack.c.b16 %v1335, %v1334
    %v1563 = vpack.c.b16 %v1337, %v1336
    %v1564 = vpack.c.b16 %v1339, %v1338
    %v1565 = vpack.c.b16 %v1341, %v1340
    %v1566 = vpack.c.b16 %v1343, %v1342
    %v1567 = vpack.c.b16 %v1345, %v1344
    %v1568 = vpack.c.b16 %v1347, %v1346
    %v1569 = vpack.c.b16 %v1349, %v1348
    %v1570 = vpack.c.b16 %v1351, %v1350
    %v1571 = vpack.c.b16 %v1353, %v1352
    %v1572 = vpack.c.b16 %v1355, %v1354
    %v1573 = vpack.c.b16 %v1357, %v1356
    %v1574 = vpack.c.b16 %v1359, %v1358
    %v1575 = vpack.c.b16 %v1361, %v1360
    %v1576 = vpack.c.b16 %v1363, %v1362
    %v1577 = vpack.c.b16 %v1365, %v1364
    %v1578 = vpack.c.b16 %v1367, %v1366
    %v1579 = vpack.c.b16 %v1369, %v1368
    %v1580 = vpack.c.b16 %v1371, %v1370
    %v1581 = vpack.c.b16 %v1373, %v1372
    %v1582 = vpack.c.b16 %v1375, %v1374
    %v1583 = vpack.c.b16 %v1377, %v1376
    %v1584 = vpack.c.b16 %v1379, %v1378
    %v1585 = vpack.c.b16 %v1381, %v1380
    %v1586 = vpack.c.b16 %v1383, %v1382
    %v1587 = vpack.c.b16 %v1385, %v1384
    %v1588 = vpack.c.b16 %v1387, %v1386
    %v1589 = vpack.c.b16 %v1389, %v1388
    %v1590 = vpack.c.b16 %v1391, %v1390
    %v1591 = vpack.c.b16 %v1393, %v1392
    %v1592 = vpack.c.b16 %v1395, %v1394
    %v1593 = vpack.c.b16 %v1397, %v1396
    %vm1790 = vcmask 523264
    %v1792 = vsel %vm1790, %v589, 0
    %1794 = vmatprep.subr.bf16.mxu0 0
    %1795 = vmatpush1.bf16.msra.mxu0 %v1398
    %1796 = vmatprep.subr.bf16.mxu0 0
    %1797 = vmatpush1.bf16.msra.mxu0 %v1399
    %1798 = vmatprep.subr.bf16.mxu0 0
    %1799 = vmatpush1.bf16.msra.mxu0 %v1400
    %1800 = vmatprep.subr.bf16.mxu0 0
    %1801 = vmatpush1.bf16.msra.mxu0 %v1401
    %1802 = vmatprep.subr.bf16.mxu0 0
    %1803 = vmatpush1.bf16.msra.mxu0 %v1402
    %1804 = vmatprep.subr.bf16.mxu0 0
    %1805 = vmatpush1.bf16.msra.mxu0 %v1403
    %1806 = vmatprep.subr.bf16.mxu0 0
    %1807 = vmatpush1.bf16.msra.mxu0 %v1404
    %1808 = vmatprep.subr.bf16.mxu0 0
    %1809 = vmatpush1.bf16.msra.mxu0 %v1405
    %1810 = vmatprep.subr.bf16.mxu0 0
    %1811 = vmatpush1.bf16.msra.mxu0 %v1406
    %1812 = vmatprep.subr.bf16.mxu0 0
    %1813 = vmatpush1.bf16.msra.mxu0 %v1407
    %1814 = vmatprep.subr.bf16.mxu0 0
    %1815 = vmatpush1.bf16.msra.mxu0 %v1408
    %1816 = vmatprep.subr.bf16.mxu0 0
    %1817 = vmatpush1.bf16.msra.mxu0 %v1409
    %1818 = vmatprep.subr.bf16.mxu0 0
    %1819 = vmatpush1.bf16.msra.mxu0 %v1410
    %1820 = vmatprep.subr.bf16.mxu0 0
    %1821 = vmatpush1.bf16.msra.mxu0 %v1411
    %1822 = vmatprep.subr.bf16.mxu0 0
    %1823 = vmatpush1.bf16.msra.mxu0 %v1412
    %1824 = vmatprep.subr.bf16.mxu0 0
    %1825 = vmatpush1.bf16.msra.mxu0 %v1413
    %1826 = vmatprep.mubr.bf16.mxu0 %v466
    %1827 = vmatmul.mubr.bf16.gmra.mrb[0].mxu0 %v452
    %v1828 = vpop.f32.mrb[0].mxu0
    %v1829 = vadd.f32 %v423, %v1828
    %v1830 = vpop.f32.mrb[0].mxu0
    %v1831 = vpop.f32.mrb[0].mxu0
    %v1832 = vpop.f32.mrb[0].mxu0
    %1833 = vdwg.mxu0
    %1834 = vmatprep.subr.bf16.mxu0 0
    %1835 = vmatpush1.bf16.msra.mxu0 %v1414
    %1836 = vmatprep.subr.bf16.mxu0 0
    %1837 = vmatpush1.bf16.msra.mxu0 %v1415
    %1838 = vmatprep.subr.bf16.mxu0 0
    %1839 = vmatpush1.bf16.msra.mxu0 %v1416
    %1840 = vmatprep.subr.bf16.mxu0 0
    %1841 = vmatpush1.bf16.msra.mxu0 %v1417
    %1842 = vmatprep.subr.bf16.mxu0 0
    %1843 = vmatpush1.bf16.msra.mxu0 %v1418
    %1844 = vmatprep.subr.bf16.mxu0 0
    %1845 = vmatpush1.bf16.msra.mxu0 %v1419
    %1846 = vmatprep.subr.bf16.mxu0 0
    %1847 = vmatpush1.bf16.msra.mxu0 %v1420
    %1848 = vmatprep.subr.bf16.mxu0 0
    %1849 = vmatpush1.bf16.msra.mxu0 %v1421
    %1850 = vmatprep.subr.bf16.mxu0 0
    %1851 = vmatpush1.bf16.msra.mxu0 %v1422
    %1852 = vmatprep.subr.bf16.mxu0 0
    %1853 = vmatpush1.bf16.msra.mxu0 %v1423
    %1854 = vmatprep.subr.bf16.mxu0 0
    %1855 = vmatpush1.bf16.msra.mxu0 %v1424
    %1856 = vmatprep.subr.bf16.mxu0 0
    %1857 = vmatpush1.bf16.msra.mxu0 %v1425
    %1858 = vmatprep.subr.bf16.mxu0 0
    %1859 = vmatpush1.bf16.msra.mxu0 %v1426
    %1860 = vmatprep.subr.bf16.mxu0 0
    %1861 = vmatpush1.bf16.msra.mxu0 %v1427
    %1862 = vmatprep.subr.bf16.mxu0 0
    %1863 = vmatpush1.bf16.msra.mxu0 %v1428
    %1864 = vmatprep.subr.bf16.mxu0 0
    %1865 = vmatpush1.bf16.msra.mxu0 %v1429
    %1866 = vmatprep.mubr.bf16.mxu0 %v476
    %1867 = vmatmul.mubr.bf16.gmra.mrb[0].mxu0 %v474
    %v1868 = vpop.f32.mrb[0].mxu0
    %v1869 = vadd.f32 %v1829, %v1868
    %v1870 = vpop.f32.mrb[0].mxu0
    %v1871 = vpop.f32.mrb[0].mxu0
    %v1872 = vpop.f32.mrb[0].mxu0
    %1873 = vdwg.mxu0
    %1874 = vmatprep.subr.bf16.mxu0 0
    %1875 = vmatpush1.bf16.msra.mxu0 %v1430
    %1876 = vmatprep.subr.bf16.mxu0 0
    %1877 = vmatpush1.bf16.msra.mxu0 %v1431
    %1878 = vmatprep.subr.bf16.mxu0 0
    %1879 = vmatpush1.bf16.msra.mxu0 %v1432
    %1880 = vmatprep.subr.bf16.mxu0 0
    %1881 = vmatpush1.bf16.msra.mxu0 %v1433
    %1882 = vmatprep.subr.bf16.mxu0 0
    %1883 = vmatpush1.bf16.msra.mxu0 %v1434
    %1884 = vmatprep.subr.bf16.mxu0 0
    %1885 = vmatpush1.bf16.msra.mxu0 %v1435
    %1886 = vmatprep.subr.bf16.mxu0 0
    %1887 = vmatpush1.bf16.msra.mxu0 %v1436
    %1888 = vmatprep.subr.bf16.mxu0 0
    %1889 = vmatpush1.bf16.msra.mxu0 %v1437
    %1890 = vmatprep.subr.bf16.mxu0 0
    %1891 = vmatpush1.bf16.msra.mxu0 %v1438
    %1892 = vmatprep.subr.bf16.mxu0 0
    %1893 = vmatpush1.bf16.msra.mxu0 %v1439
    %1894 = vmatprep.subr.bf16.mxu0 0
    %1895 = vmatpush1.bf16.msra.mxu0 %v1440
    %1896 = vmatprep.subr.bf16.mxu0 0
    %1897 = vmatpush1.bf16.msra.mxu0 %v1441
    %1898 = vmatprep.subr.bf16.mxu0 0
    %1899 = vmatpush1.bf16.msra.mxu0 %v1442
    %1900 = vmatprep.subr.bf16.mxu0 0
    %1901 = vmatpush1.bf16.msra.mxu0 %v1443
    %1902 = vmatprep.subr.bf16.mxu0 0
    %1903 = vmatpush1.bf16.msra.mxu0 %v1444
    %1904 = vmatprep.subr.bf16.mxu0 0
    %1905 = vmatpush1.bf16.msra.mxu0 %v1445
    %1906 = vmatprep.mubr.bf16.mxu0 %v473
    %1907 = vmatmul.mubr.bf16.gmra.mrb[0].mxu0 %v459
    %v1908 = vpop.f32.mrb[0].mxu0
    %v1909 = vadd.f32 %v1869, %v1908
    %v1910 = vpop.f32.mrb[0].mxu0
    %v1911 = vpop.f32.mrb[0].mxu0
    %v1912 = vpop.f32.mrb[0].mxu0
    %1913 = vdwg.mxu0
    %1914 = vmatprep.subr.bf16.mxu0 0
    %1915 = vmatpush1.bf16.msra.mxu0 %v1446
    %1916 = vmatprep.subr.bf16.mxu0 0
    %1917 = vmatpush1.bf16.msra.mxu0 %v1447
    %1918 = vmatprep.subr.bf16.mxu0 0
    %1919 = vmatpush1.bf16.msra.mxu0 %v1448
    %1920 = vmatprep.subr.bf16.mxu0 0
    %1921 = vmatpush1.bf16.msra.mxu0 %v1449
    %1922 = vmatprep.subr.bf16.mxu0 0
    %1923 = vmatpush1.bf16.msra.mxu0 %v1450
    %1924 = vmatprep.subr.bf16.mxu0 0
    %1925 = vmatpush1.bf16.msra.mxu0 %v1451
    %1926 = vmatprep.subr.bf16.mxu0 0
    %1927 = vmatpush1.bf16.msra.mxu0 %v1452
    %1928 = vmatprep.subr.bf16.mxu0 0
    %1929 = vmatpush1.bf16.msra.mxu0 %v1453
    %1930 = vmatprep.subr.bf16.mxu0 0
    %1931 = vmatpush1.bf16.msra.mxu0 %v1454
    %1932 = vmatprep.subr.bf16.mxu0 0
    %1933 = vmatpush1.bf16.msra.mxu0 %v1455
    %1934 = vmatprep.subr.bf16.mxu0 0
    %1935 = vmatpush1.bf16.msra.mxu0 %v1456
    %1936 = vmatprep.subr.bf16.mxu0 0
    %1937 = vmatpush1.bf16.msra.mxu0 %v1457
    %1938 = vmatprep.subr.bf16.mxu0 0
    %1939 = vmatpush1.bf16.msra.mxu0 %v1458
    %1940 = vmatprep.subr.bf16.mxu0 0
    %1941 = vmatpush1.bf16.msra.mxu0 %v1459
    %1942 = vmatprep.subr.bf16.mxu0 0
    %1943 = vmatpush1.bf16.msra.mxu0 %v1460
    %1944 = vmatprep.subr.bf16.mxu0 0
    %1945 = vmatpush1.bf16.msra.mxu0 %v1461
    %1946 = vmatprep.mubr.bf16.mxu0 %v477
    %1947 = vmatmul.mubr.bf16.gmra.mrb[0].mxu0 %v475
    %v1948 = vpop.f32.mrb[0].mxu0
    %v1949 = vadd.f32 %v1909, %v1948
    %v1950 = vpop.f32.mrb[0].mxu0
    %v1951 = vpop.f32.mrb[0].mxu0
    %v1952 = vpop.f32.mrb[0].mxu0
    %1953 = vdwg.mxu0
    %1954 = vmatprep.subr.bf16.mxu0 0
    %1955 = vmatpush1.bf16.msra.mxu0 %v1462
    %1956 = vmatprep.subr.bf16.mxu0 0
    %1957 = vmatpush1.bf16.msra.mxu0 %v1463
    %1958 = vmatprep.subr.bf16.mxu0 0
    %1959 = vmatpush1.bf16.msra.mxu0 %v1464
    %1960 = vmatprep.subr.bf16.mxu0 0
    %1961 = vmatpush1.bf16.msra.mxu0 %v1465
    %1962 = vmatprep.subr.bf16.mxu0 0
    %1963 = vmatpush1.bf16.msra.mxu0 %v1466
    %1964 = vmatprep.subr.bf16.mxu0 0
    %1965 = vmatpush1.bf16.msra.mxu0 %v1467
    %1966 = vmatprep.subr.bf16.mxu0 0
    %1967 = vmatpush1.bf16.msra.mxu0 %v1468
    %1968 = vmatprep.subr.bf16.mxu0 0
    %1969 = vmatpush1.bf16.msra.mxu0 %v1469
    %1970 = vmatprep.subr.bf16.mxu0 0
    %1971 = vmatpush1.bf16.msra.mxu0 %v1470
    %1972 = vmatprep.subr.bf16.mxu0 0
    %1973 = vmatpush1.bf16.msra.mxu0 %v1471
    %1974 = vmatprep.subr.bf16.mxu0 0
    %1975 = vmatpush1.bf16.msra.mxu0 %v1472
    %1976 = vmatprep.subr.bf16.mxu0 0
    %1977 = vmatpush1.bf16.msra.mxu0 %v1473
    %1978 = vmatprep.subr.bf16.mxu0 0
    %1979 = vmatpush1.bf16.msra.mxu0 %v1474
    %1980 = vmatprep.subr.bf16.mxu0 0
    %1981 = vmatpush1.bf16.msra.mxu0 %v1475
    %1982 = vmatprep.subr.bf16.mxu0 0
    %1983 = vmatpush1.bf16.msra.mxu0 %v1476
    %1984 = vmatprep.subr.bf16.mxu0 0
    %1985 = vmatpush1.bf16.msra.mxu0 %v1477
    %1986 = vmatprep.mubr.bf16.mxu0 %v515
    %1987 = vmatmul.mubr.bf16.gmra.mrb[0].mxu0 %v501
    %v1988 = vpop.f32.mrb[0].mxu0
    %v1989 = vadd.f32 %v1949, %v1988
    %v1990 = vpop.f32.mrb[0].mxu0
    %v1991 = vpop.f32.mrb[0].mxu0
    %v1992 = vpop.f32.mrb[0].mxu0
    %1993 = vdwg.mxu0
    %1994 = vmatprep.subr.bf16.mxu0 0
    %1995 = vmatpush1.bf16.msra.mxu0 %v1478
    %1996 = vmatprep.subr.bf16.mxu0 0
    %1997 = vmatpush1.bf16.msra.mxu0 %v1479
    %1998 = vmatprep.subr.bf16.mxu0 0
    %1999 = vmatpush1.bf16.msra.mxu0 %v1480
    %2000 = vmatprep.subr.bf16.mxu0 0
    %2001 = vmatpush1.bf16.msra.mxu0 %v1481
    %2002 = vmatprep.subr.bf16.mxu0 0
    %2003 = vmatpush1.bf16.msra.mxu0 %v1482
    %2004 = vmatprep.subr.bf16.mxu0 0
    %2005 = vmatpush1.bf16.msra.mxu0 %v1483
    %2006 = vmatprep.subr.bf16.mxu0 0
    %2007 = vmatpush1.bf16.msra.mxu0 %v1484
    %2008 = vmatprep.subr.bf16.mxu0 0
    %2009 = vmatpush1.bf16.msra.mxu0 %v1485
    %2010 = vmatprep.subr.bf16.mxu0 0
    %2011 = vmatpush1.bf16.msra.mxu0 %v1486
    %2012 = vmatprep.subr.bf16.mxu0 0
    %2013 = vmatpush1.bf16.msra.mxu0 %v1487
    %2014 = vmatprep.subr.bf16.mxu0 0
    %2015 = vmatpush1.bf16.msra.mxu0 %v1488
    %2016 = vmatprep.subr.bf16.mxu0 0
    %2017 = vmatpush1.bf16.msra.mxu0 %v1489
    %2018 = vmatprep.subr.bf16.mxu0 0
    %2019 = vmatpush1.bf16.msra.mxu0 %v1490
    %2020 = vmatprep.subr.bf16.mxu0 0
    %2021 = vmatpush1.bf16.msra.mxu0 %v1491
    %2022 = vmatprep.subr.bf16.mxu0 0
    %2023 = vmatpush1.bf16.msra.mxu0 %v1492
    %2024 = vmatprep.subr.bf16.mxu0 0
    %2025 = vmatpush1.bf16.msra.mxu0 %v1493
    %2026 = vmatprep.mubr.bf16.mxu0 %v525
    %2027 = vmatmul.mubr.bf16.gmra.mrb[0].mxu0 %v523
    %v2028 = vpop.f32.mrb[0].mxu0
    %v2029 = vadd.f32 %v1989, %v2028
    %v2030 = vpop.f32.mrb[0].mxu0
    %v2031 = vpop.f32.mrb[0].mxu0
    %v2032 = vpop.f32.mrb[0].mxu0
    %2033 = vdwg.mxu0
    %2034 = vmatprep.subr.bf16.mxu0 0
    %2035 = vmatpush1.bf16.msra.mxu0 %v1494
    %2036 = vmatprep.subr.bf16.mxu0 0
    %2037 = vmatpush1.bf16.msra.mxu0 %v1495
    %2038 = vmatprep.subr.bf16.mxu0 0
    %2039 = vmatpush1.bf16.msra.mxu0 %v1496
    %2040 = vmatprep.subr.bf16.mxu0 0
    %2041 = vmatpush1.bf16.msra.mxu0 %v1497
    %2042 = vmatprep.subr.bf16.mxu0 0
    %2043 = vmatpush1.bf16.msra.mxu0 %v1498
    %2044 = vmatprep.subr.bf16.mxu0 0
    %2045 = vmatpush1.bf16.msra.mxu0 %v1499
    %2046 = vmatprep.subr.bf16.mxu0 0
    %2047 = vmatpush1.bf16.msra.mxu0 %v1500
    %2048 = vmatprep.subr.bf16.mxu0 0
    %2049 = vmatpush1.bf16.msra.mxu0 %v1501
    %2050 = vmatprep.subr.bf16.mxu0 0
    %2051 = vmatpush1.bf16.msra.mxu0 %v1502
    %2052 = vmatprep.subr.bf16.mxu0 0
    %2053 = vmatpush1.bf16.msra.mxu0 %v1503
    %2054 = vmatprep.subr.bf16.mxu0 0
    %2055 = vmatpush1.bf16.msra.mxu0 %v1504
    %2056 = vmatprep.subr.bf16.mxu0 0
    %2057 = vmatpush1.bf16.msra.mxu0 %v1505
    %2058 = vmatprep.subr.bf16.mxu0 0
    %2059 = vmatpush1.bf16.msra.mxu0 %v1506
    %2060 = vmatprep.subr.bf16.mxu0 0
    %2061 = vmatpush1.bf16.msra.mxu0 %v1507
    %2062 = vmatprep.subr.bf16.mxu0 0
    %2063 = vmatpush1.bf16.msra.mxu0 %v1508
    %2064 = vmatprep.subr.bf16.mxu0 0
    %2065 = vmatpush1.bf16.msra.mxu0 %v1509
    %2066 = vmatprep.mubr.bf16.mxu0 %v522
    %2067 = vmatmul.mubr.bf16.gmra.mrb[0].mxu0 %v508
    %v2068 = vpop.f32.mrb[0].mxu0
    %v2069 = vadd.f32 %v2029, %v2068
    %v2070 = vpop.f32.mrb[0].mxu0
    %v2071 = vpop.f32.mrb[0].mxu0
    %v2072 = vpop.f32.mrb[0].mxu0
    %2073 = vdwg.mxu0
    %2074 = vmatprep.subr.bf16.mxu0 0
    %2075 = vmatpush1.bf16.msra.mxu0 %v1510
    %2076 = vmatprep.subr.bf16.mxu0 0
    %2077 = vmatpush1.bf16.msra.mxu0 %v1511
    %2078 = vmatprep.subr.bf16.mxu0 0
    %2079 = vmatpush1.bf16.msra.mxu0 %v1512
    %2080 = vmatprep.subr.bf16.mxu0 0
    %2081 = vmatpush1.bf16.msra.mxu0 %v1513
    %2082 = vmatprep.subr.bf16.mxu0 0
    %2083 = vmatpush1.bf16.msra.mxu0 %v1514
    %2084 = vmatprep.subr.bf16.mxu0 0
    %2085 = vmatpush1.bf16.msra.mxu0 %v1515
    %2086 = vmatprep.subr.bf16.mxu0 0
    %2087 = vmatpush1.bf16.msra.mxu0 %v1516
    %2088 = vmatprep.subr.bf16.mxu0 0
    %2089 = vmatpush1.bf16.msra.mxu0 %v1517
    %2090 = vmatprep.subr.bf16.mxu0 0
    %2091 = vmatpush1.bf16.msra.mxu0 %v1518
    %2092 = vmatprep.subr.bf16.mxu0 0
    %2093 = vmatpush1.bf16.msra.mxu0 %v1519
    %2094 = vmatprep.subr.bf16.mxu0 0
    %2095 = vmatpush1.bf16.msra.mxu0 %v1520
    %2096 = vmatprep.subr.bf16.mxu0 0
    %2097 = vmatpush1.bf16.msra.mxu0 %v1521
    %2098 = vmatprep.subr.bf16.mxu0 0
    %2099 = vmatpush1.bf16.msra.mxu0 %v1522
    %2100 = vmatprep.subr.bf16.mxu0 0
    %2101 = vmatpush1.bf16.msra.mxu0 %v1523
    %2102 = vmatprep.subr.bf16.mxu0 0
    %2103 = vmatpush1.bf16.msra.mxu0 %v1524
    %2104 = vmatprep.subr.bf16.mxu0 0
    %2105 = vmatpush1.bf16.msra.mxu0 %v1525
    %2106 = vmatprep.mubr.bf16.mxu0 %v526
    %2107 = vmatmul.mubr.bf16.gmra.mrb[0].mxu0 %v524
    %v2108 = vpop.f32.mrb[0].mxu0
    %v2109 = vadd.f32 %v2069, %v2108
    %v2110 = vpop.f32.mrb[0].mxu0
    %v2111 = vpop.f32.mrb[0].mxu0
    %v2112 = vpop.f32.mrb[0].mxu0
    %2113 = vdwg.mxu0
    %2114 = vmatprep.subr.bf16.mxu0 0
    %2115 = vmatpush1.bf16.msra.mxu0 %v1526
    %2116 = vmatprep.subr.bf16.mxu0 0
    %2117 = vmatpush1.bf16.msra.mxu0 %v1527
    %2118 = vmatprep.subr.bf16.mxu0 0
    %2119 = vmatpush1.bf16.msra.mxu0 %v1528
    %2120 = vmatprep.subr.bf16.mxu0 0
    %2121 = vmatpush1.bf16.msra.mxu0 %v1529
    %2122 = vmatprep.subr.bf16.mxu0 0
    %2123 = vmatpush1.bf16.msra.mxu0 %v1530
    %2124 = vmatprep.subr.bf16.mxu0 0
    %2125 = vmatpush1.bf16.msra.mxu0 %v1531
    %2126 = vmatprep.subr.bf16.mxu0 0
    %2127 = vmatpush1.bf16.msra.mxu0 %v1532
    %2128 = vmatprep.subr.bf16.mxu0 0
    %2129 = vmatpush1.bf16.msra.mxu0 %v1533
    %2130 = vmatprep.subr.bf16.mxu0 0
    %2131 = vmatpush1.bf16.msra.mxu0 %v1534
    %2132 = vmatprep.subr.bf16.mxu0 0
    %2133 = vmatpush1.bf16.msra.mxu0 %v1535
    %2134 = vmatprep.subr.bf16.mxu0 0
    %2135 = vmatpush1.bf16.msra.mxu0 %v1536
    %2136 = vmatprep.subr.bf16.mxu0 0
    %2137 = vmatpush1.bf16.msra.mxu0 %v1537
    %2138 = vmatprep.subr.bf16.mxu0 0
    %2139 = vmatpush1.bf16.msra.mxu0 %v1538
    %2140 = vmatprep.subr.bf16.mxu0 0
    %2141 = vmatpush1.bf16.msra.mxu0 %v1539
    %2142 = vmatprep.subr.bf16.mxu0 0
    %2143 = vmatpush1.bf16.msra.mxu0 %v1540
    %2144 = vmatprep.subr.bf16.mxu0 0
    %2145 = vmatpush1.bf16.msra.mxu0 %v1541
    %2146 = vmatprep.mubr.bf16.mxu0 %v564
    %2147 = vmatmul.mubr.bf16.gmra.mrb[0].mxu0 %v550
    %v2148 = vpop.f32.mrb[0].mxu0
    %v2149 = vadd.f32 %v2109, %v2148
    %v2150 = vpop.f32.mrb[0].mxu0
    %v2151 = vpop.f32.mrb[0].mxu0
    %v2152 = vpop.f32.mrb[0].mxu0
    %2153 = vdwg.mxu0
    %2154 = vmatprep.subr.bf16.mxu0 0
    %2155 = vmatpush1.bf16.msra.mxu0 %v1542
    %2156 = vmatprep.subr.bf16.mxu0 0
    %2157 = vmatpush1.bf16.msra.mxu0 %v1543
    %2158 = vmatprep.subr.bf16.mxu0 0
    %2159 = vmatpush1.bf16.msra.mxu0 %v1544
    %2160 = vmatprep.subr.bf16.mxu0 0
    %2161 = vmatpush1.bf16.msra.mxu0 %v1545
    %2162 = vmatprep.subr.bf16.mxu0 0
    %2163 = vmatpush1.bf16.msra.mxu0 %v1546
    %2164 = vmatprep.subr.bf16.mxu0 0
    %2165 = vmatpush1.bf16.msra.mxu0 %v1547
    %2166 = vmatprep.subr.bf16.mxu0 0
    %2167 = vmatpush1.bf16.msra.mxu0 %v1548
    %2168 = vmatprep.subr.bf16.mxu0 0
    %2169 = vmatpush1.bf16.msra.mxu0 %v1549
    %2170 = vmatprep.subr.bf16.mxu0 0
    %2171 = vmatpush1.bf16.msra.mxu0 %v1550
    %2172 = vmatprep.subr.bf16.mxu0 0
    %2173 = vmatpush1.bf16.msra.mxu0 %v1551
    %2174 = vmatprep.subr.bf16.mxu0 0
    %2175 = vmatpush1.bf16.msra.mxu0 %v1552
    %2176 = vmatprep.subr.bf16.mxu0 0
    %2177 = vmatpush1.bf16.msra.mxu0 %v1553
    %2178 = vmatprep.subr.bf16.mxu0 0
    %2179 = vmatpush1.bf16.msra.mxu0 %v1554
    %2180 = vmatprep.subr.bf16.mxu0 0
    %2181 = vmatpush1.bf16.msra.mxu0 %v1555
    %2182 = vmatprep.subr.bf16.mxu0 0
    %2183 = vmatpush1.bf16.msra.mxu0 %v1556
    %2184 = vmatprep.subr.bf16.mxu0 0
    %2185 = vmatpush1.bf16.msra.mxu0 %v1557
    %2186 = vmatprep.mubr.bf16.mxu0 %v574
    %2187 = vmatmul.mubr.bf16.gmra.mrb[0].mxu0 %v572
    %v2188 = vpop.f32.mrb[0].mxu0
    %v2189 = vadd.f32 %v2149, %v2188
    %v2190 = vpop.f32.mrb[0].mxu0
    %v2191 = vpop.f32.mrb[0].mxu0
    %v2192 = vpop.f32.mrb[0].mxu0
    %2193 = vdwg.mxu0
    %2194 = vmatprep.subr.bf16.mxu0 0
    %2195 = vmatpush1.bf16.msra.mxu0 %v1558
    %2196 = vmatprep.subr.bf16.mxu0 0
    %2197 = vmatpush1.bf16.msra.mxu0 %v1559
    %2198 = vmatprep.subr.bf16.mxu0 0
    %2199 = vmatpush1.bf16.msra.mxu0 %v1560
    %2200 = vmatprep.subr.bf16.mxu0 0
    %2201 = vmatpush1.bf16.msra.mxu0 %v1561
    %2202 = vmatprep.subr.bf16.mxu0 0
    %2203 = vmatpush1.bf16.msra.mxu0 %v1562
    %2204 = vmatprep.subr.bf16.mxu0 0
    %2205 = vmatpush1.bf16.msra.mxu0 %v1563
    %2206 = vmatprep.subr.bf16.mxu0 0
    %2207 = vmatpush1.bf16.msra.mxu0 %v1564
    %2208 = vmatprep.subr.bf16.mxu0 0
    %2209 = vmatpush1.bf16.msra.mxu0 %v1565
    %2210 = vmatprep.subr.bf16.mxu0 0
    %2211 = vmatpush1.bf16.msra.mxu0 %v1566
    %2212 = vmatprep.subr.bf16.mxu0 0
    %2213 = vmatpush1.bf16.msra.mxu0 %v1567
    %2214 = vmatprep.subr.bf16.mxu0 0
    %2215 = vmatpush1.bf16.msra.mxu0 %v1568
    %2216 = vmatprep.subr.bf16.mxu0 0
    %2217 = vmatpush1.bf16.msra.mxu0 %v1569
    %2218 = vmatprep.subr.bf16.mxu0 0
    %2219 = vmatpush1.bf16.msra.mxu0 %v1570
    %2220 = vmatprep.subr.bf16.mxu0 0
    %2221 = vmatpush1.bf16.msra.mxu0 %v1571
    %2222 = vmatprep.subr.bf16.mxu0 0
    %2223 = vmatpush1.bf16.msra.mxu0 %v1572
    %2224 = vmatprep.subr.bf16.mxu0 0
    %2225 = vmatpush1.bf16.msra.mxu0 %v1573
    %2226 = vmatprep.mubr.bf16.mxu0 %v571
    %2227 = vmatmul.mubr.bf16.gmra.mrb[0].mxu0 %v557
    %v2228 = vpop.f32.mrb[0].mxu0
    %v2229 = vadd.f32 %v2189, %v2228
    %v2230 = vpop.f32.mrb[0].mxu0
    %v2231 = vpop.f32.mrb[0].mxu0
    %v2232 = vpop.f32.mrb[0].mxu0
    %2233 = vdwg.mxu0
    %2234 = vmatprep.subr.bf16.mxu0 0
    %2235 = vmatpush1.bf16.msra.mxu0 %v1574
    %2236 = vmatprep.subr.bf16.mxu0 0
    %2237 = vmatpush1.bf16.msra.mxu0 %v1575
    %2238 = vmatprep.subr.bf16.mxu0 0
    %2239 = vmatpush1.bf16.msra.mxu0 %v1576
    %2240 = vmatprep.subr.bf16.mxu0 0
    %2241 = vmatpush1.bf16.msra.mxu0 %v1577
    %2242 = vmatprep.subr.bf16.mxu0 0
    %2243 = vmatpush1.bf16.msra.mxu0 %v1578
    %2244 = vmatprep.subr.bf16.mxu0 0
    %2245 = vmatpush1.bf16.msra.mxu0 %v1579
    %2246 = vmatprep.subr.bf16.mxu0 0
    %2247 = vmatpush1.bf16.msra.mxu0 %v1580
    %2248 = vmatprep.subr.bf16.mxu0 0
    %2249 = vmatpush1.bf16.msra.mxu0 %v1581
    %2250 = vmatprep.subr.bf16.mxu0 0
    %2251 = vmatpush1.bf16.msra.mxu0 %v1582
    %2252 = vmatprep.subr.bf16.mxu0 0
    %2253 = vmatpush1.bf16.msra.mxu0 %v1583
    %2254 = vmatprep.subr.bf16.mxu0 0
    %2255 = vmatpush1.bf16.msra.mxu0 %v1584
    %2256 = vmatprep.subr.bf16.mxu0 0
    %2257 = vmatpush1.bf16.msra.mxu0 %v1585
    %2258 = vmatprep.subr.bf16.mxu0 0
    %2259 = vmatpush1.bf16.msra.mxu0 %v1586
    %2260 = vmatprep.subr.bf16.mxu0 0
    %2261 = vmatpush1.bf16.msra.mxu0 %v1587
    %2262 = vmatprep.subr.bf16.mxu0 0
    %2263 = vmatpush1.bf16.msra.mxu0 %v1588
    %2264 = vmatprep.subr.bf16.mxu0 0
    %2265 = vmatpush1.bf16.msra.mxu0 %v1589
    %2266 = vmatprep.mubr.bf16.mxu0 %v575
    %2267 = vmatmul.mubr.bf16.gmra.mrb[0].mxu0 %v573
    %v2268 = vpop.f32.mrb[0].mxu0
    %v2269 = vadd.f32 %v2229, %v2268
    %v2270 = vpop.f32.mrb[0].mxu0
    %v2271 = vpop.f32.mrb[0].mxu0
    %v2272 = vpop.f32.mrb[0].mxu0
    %2273 = vdwg.mxu0
    %2274 = vmatprep.subr.bf16.mxu0 0
    %2275 = vmatpush1.bf16.msra.mxu0 %v1590
    %2276 = vmatprep.subr.bf16.mxu0 0
    %2277 = vmatpush1.bf16.msra.mxu0 %v1591
    %2278 = vmatprep.subr.bf16.mxu0 0
    %2279 = vmatpush1.bf16.msra.mxu0 %v1592
    %2280 = vmatprep.subr.bf16.mxu0 0
    %2281 = vmatpush1.bf16.msra.mxu0 %v1593
    %2282 = vmatprep.subr.bf16.mxu0 0
    %2283 = vmatpush1.bf16.msra.mxu0 0
    %2284 = vmatprep.subr.bf16.mxu0 0
    %2285 = vmatpush1.bf16.msra.mxu0 0
    %2286 = vmatprep.subr.bf16.mxu0 0
    %2287 = vmatpush1.bf16.msra.mxu0 0
    %2288 = vmatprep.subr.bf16.mxu0 0
    %2289 = vmatpush1.bf16.msra.mxu0 0
    %2290 = vmatprep.subr.bf16.mxu0 0
    %2291 = vmatpush1.bf16.msra.mxu0 0
    %2292 = vmatprep.subr.bf16.mxu0 0
    %2293 = vmatpush1.bf16.msra.mxu0 0
    %2294 = vmatprep.subr.bf16.mxu0 0
    %2295 = vmatpush1.bf16.msra.mxu0 0
    %2296 = vmatprep.subr.bf16.mxu0 0
    %2297 = vmatpush1.bf16.msra.mxu0 0
    %2298 = vmatprep.subr.bf16.mxu0 0
    %2299 = vmatpush1.bf16.msra.mxu0 0
    %2300 = vmatprep.subr.bf16.mxu0 0
    %2301 = vmatpush1.bf16.msra.mxu0 0
    %2302 = vmatprep.subr.bf16.mxu0 0
    %2303 = vmatpush1.bf16.msra.mxu0 0
    %2304 = vmatprep.subr.bf16.mxu0 0
    %2305 = vmatpush1.bf16.msra.mxu0 0
    %2306 = vmatprep.mubr.bf16.mxu0 0
    %2307 = vmatmul.mubr.bf16.gmra.mrb[0].mxu0 %v1792
    %v2308 = vpop.f32.mrb[0].mxu0
    %v2309 = vadd.f32 %v2269, %v2308
    %v2310 = vpop.f32.mrb[0].mxu0
    %v2311 = vpop.f32.mrb[0].mxu0
    %v2312 = vpop.f32.mrb[0].mxu0
    %2313 = vdwg.mxu0
    %v2314 = vmax.f32 %v2309, 0.0
    %v2315 = vpack.c.bf16 %v2314, %v2314
    %v2316 = vld [vmem:[%s3] sm:$0xf]
    %v2317 = vld [vmem:[%s3 + $0x4] sm:$0xf]
    %v2318 = vld [vmem:[%s3 + $0x8] sm:$0xf]
    %v2319 = vld [vmem:[%s3 + $0xc] sm:$0xf]
    %v2320 = vld [vmem:[%s3 + $0x10] sm:$0xf]
    %v2321 = vld [vmem:[%s3 + $0x14] sm:$0xf]
    %v2322 = vld [vmem:[%s3 + $0x18] sm:$0xf]
    %v2323 = vld [vmem:[%s3 + $0x1c] sm:$0xf]
    %v2324 = vld [vmem:[%s3 + $0x20] sm:$0xf]
    %v2325 = vld [vmem:[%s3 + $0x24] sm:$0xf]
    %v2326 = vld [vmem:[%s3 + $0x28] sm:$0xf]
    %v2327 = vld [vmem:[%s3 + $0x2c] sm:$0xf]
    %v2328 = vld [vmem:[%s3 + $0x30] sm:$0xf]
    %v2329 = vld [vmem:[%s3 + $0x34] sm:$0xf]
    %v2330 = vld [vmem:[%s3 + $0x38] sm:$0xf]
    %v2331 = vld [vmem:[%s3 + $0x3c] sm:$0xf]
    %v2332 = vld [vmem:[%s4] sm:$0x1]
    %v2334 = vlaneseq
    %v2335 = vshrl.u32 %v2334, 7
    %v2336 = vsub.s32 0, %v2335
    %v2337 = vrot.slane %v2332, %v2336
    %v2355 = vunpack.c.l.b16 %v2316
    %v2356 = vunpack.c.l.b16 %v2317
    %v2357 = vunpack.c.l.b16 %v2318
    %v2358 = vunpack.c.l.b16 %v2319
    %v2359 = vunpack.c.l.b16 %v2320
    %v2360 = vunpack.c.l.b16 %v2321
    %v2361 = vunpack.c.l.b16 %v2322
    %v2362 = vunpack.c.l.b16 %v2323
    %v2363 = vunpack.c.l.b16 %v2324
    %v2364 = vunpack.c.l.b16 %v2325
    %v2365 = vunpack.c.l.b16 %v2326
    %v2366 = vunpack.c.l.b16 %v2327
    %v2367 = vunpack.c.l.b16 %v2328
    %v2368 = vunpack.c.l.b16 %v2329
    %v2369 = vunpack.c.l.b16 %v2330
    %v2370 = vunpack.c.l.b16 %v2331
    %v2371 = vpack.c.b16 %v2356, %v2355
    %v2372 = vpack.c.b16 %v2358, %v2357
    %v2373 = vpack.c.b16 %v2360, %v2359
    %v2374 = vpack.c.b16 %v2362, %v2361
    %v2375 = vpack.c.b16 %v2364, %v2363
    %v2376 = vpack.c.b16 %v2366, %v2365
    %v2377 = vpack.c.b16 %v2368, %v2367
    %v2378 = vpack.c.b16 %v2370, %v2369
    %2387 = vmatprep.subr.bf16.mxu0 0
    %2388 = vmatpush1.bf16.msra.mxu0 %v2371
    %2389 = vmatprep.subr.bf16.mxu0 0
    %2390 = vmatpush1.bf16.msra.mxu0 %v2372
    %2391 = vmatprep.subr.bf16.mxu0 0
    %2392 = vmatpush1.bf16.msra.mxu0 %v2373
    %2393 = vmatprep.subr.bf16.mxu0 0
    %2394 = vmatpush1.bf16.msra.mxu0 %v2374
    %2395 = vmatprep.subr.bf16.mxu0 0
    %2396 = vmatpush1.bf16.msra.mxu0 %v2375
    %2397 = vmatprep.subr.bf16.mxu0 0
    %2398 = vmatpush1.bf16.msra.mxu0 %v2376
    %2399 = vmatprep.subr.bf16.mxu0 0
    %2400 = vmatpush1.bf16.msra.mxu0 %v2377
    %2401 = vmatprep.subr.bf16.mxu0 0
    %2402 = vmatpush1.bf16.msra.mxu0 %v2378
    %2403 = vmatprep.subr.bf16.mxu0 0
    %2404 = vmatpush1.bf16.msra.mxu0 0
    %2405 = vmatprep.subr.bf16.mxu0 0
    %2406 = vmatpush1.bf16.msra.mxu0 0
    %2407 = vmatprep.subr.bf16.mxu0 0
    %2408 = vmatpush1.bf16.msra.mxu0 0
    %2409 = vmatprep.subr.bf16.mxu0 0
    %2410 = vmatpush1.bf16.msra.mxu0 0
    %2411 = vmatprep.subr.bf16.mxu0 0
    %2412 = vmatpush1.bf16.msra.mxu0 0
    %2413 = vmatprep.subr.bf16.mxu0 0
    %2414 = vmatpush1.bf16.msra.mxu0 0
    %2415 = vmatprep.subr.bf16.mxu0 0
    %2416 = vmatpush1.bf16.msra.mxu0 0
    %2417 = vmatprep.subr.bf16.mxu0 0
    %2418 = vmatpush1.bf16.msra.mxu0 0
    %2419 = vmatprep.mubr.bf16.mxu0 0
    %2420 = vmatmul.mubr.bf16.gmra.mrb[0].mxu0 %v2315
    %v2421 = vpop.f32.mrb[0].mxu0
    %v2422 = vadd.f32 %v2337, %v2421
    %v2423 = vpop.f32.mrb[0].mxu0
    %v2424 = vpop.f32.mrb[0].mxu0
    %v2425 = vpop.f32.mrb[0].mxu0
    %2426 = vdwg.mxu0
    %2427 = vst [vmem:[#allocation2] sm:$0x3] %v2422
    // Predicated region
    $region22: #{net_forward.9} parent=1 // pred_check
      _
    $region23: #{net_forward.9} parent=1 // pred_check_branch
      %2429 = sbr.rel (0) target = $region25
    $region24: #{net_forward.9} parent=1 // pred_region
      %s2431 = ssub.s32 32, 32
      %2432 = vsyncadd [#allocation3], %s2431
      %s2434 = sshll.u32 [#allocation2], 4
      %s2435 = int_to_ptr.vmem [resolvable:$true] %s2434
      %2437 = dma.vmem_to_hbm [thread:$0]  %s2435, 32, %s5, [#allocation3]
    $region25: #{net_forward.9} parent=1 // pred_fallthru
      _
    // Predicated region
    $region26: #{net_forward.9} parent=1 // pred_check
      _
    $region27: #{net_forward.9} parent=1 // pred_check_branch
      %2439 = sbr.rel (0) target = $region29
    $region28: #{net_forward.9} parent=1 // pred_region
      %2440 = dma.done [#allocation3], 32
    $region29: #{net_forward.9} parent=1 // pred_fallthru
      _
    %2441 = vsyncpa [#allocation3], 1

// kernel: net_forward.7
$region0: #{net_forward.7}
  #allocation0 [shape = 'u32[]', space=smem, size = 0x4, offset = 0x4, fixed_abs, tag = 'smem constant byte address 0x4 - core index']
  #allocation1 [shape = 'u32[144,128]{1,0:T(1,128)}', space=vmem, size = 0x12000, scoped, tag = 'internal scratch']
  #allocation2 [shape = 'f32[256,64]{1,0:T(8,128)}', space=vmem, size = 0x20000, scoped, tag = 'scratch operand']
  %s0 = inlined_call_operand.vmem [shape: bf16[2,290,32], index: 0, kind: input, shape index: {}]
  %s1 = inlined_call_operand.vmem [shape: bf16[9,32,64], index: 1, kind: input, shape index: {}]
  %s2 = inlined_call_operand.vmem [shape: f32[1,64], index: 2, kind: input, shape index: {}]
  %s3 = inlined_call_operand.vmem [shape: bf16[2,14,14,64], index: 3, kind: output, shape index: {}]
  %s4 = sld [smem:[#allocation0]]
  $region45: #{net_forward.7} parent=0
    _
  %s6 = ssub.s32 1, %s4
  %s7 = scalar_select 0, %s6, %s4
  loop: start=0, step=1, limit=4
  $region2: #{net_forward.7} parent=0 // loop_pre_header
    _
  $region3: #{net_forward.7} parent=0 // loop_header
    %s9 = sphi 0, %s13
    %p10 = scmp.ge.s32.totalorder %s9, 4
    %s19 = sphi 0, %s21
    %s22 = sphi 0, %s19
    %s23 = sphi 0, %s22
    %s39 = sphi 0, %s23
    %s43 = sphi 0, %s43
    %s45 = sphi 0, %s43
    %s46 = sphi 0, %s45
    %s60 = sphi 0, %s46
    %s64 = sphi 0, %s64
    %s66 = sphi 0, %s64
    %s67 = sphi 0, %s66
    %s81 = sphi 0, %s67
    %s87 = sphi 0, %s89
    %s90 = sphi 0, %s87
    %s91 = sphi 0, %s90
    %s107 = sphi 0, %s91
  $region4: #{net_forward.7} parent=0 // loop_header_branch
    %12 = sbr.rel (%p10) target = $region8
  $region5: #{net_forward.7} parent=0 // loop_body
    %s14 = ssub.s32 %s9, 1
    %s15 = ssub.s32 %s9, 2
    %s16 = sadd.s32 %s9, 1
    %s17 = ssub.s32 %s9, %s16
    %p18 = scmp.eq.s32.totalorder %s17, 0
    %s20 = sadd.s32 %s19, 1
    %s21 = scalar_select %p18, %s19, %s20
    %p24 = pneg %p18
    %p25 = scmp.eq.s32.totalorder %s9, 1
    %p26 = por %p24, %p25
    %p27 = scmp.ne.s32.totalorder %s19, %s22
    %p28 = scmp.eq.s32.totalorder %s9, 0
    %p29 = por %p27, %p28
    %p30 = scmp.ne.s32.totalorder %s19, %s22
    %p31 = scmp.eq.s32.totalorder %s14, 1
    %p32 = por %p30, %p31
    %p33 = scmp.ne.s32.totalorder %s22, %s23
    %p34 = scmp.eq.s32.totalorder %s14, 0
    %p35 = por %p33, %p34
    %p36 = scmp.ne.s32.totalorder %s22, %s23
    %p37 = scmp.eq.s32.totalorder %s15, 1
    %p38 = por %p36, %p37
    %p40 = scmp.ne.s32.totalorder %s23, %s39
    %p41 = scmp.eq.s32.totalorder %s15, 0
    %p42 = por %p40, %p41
    %s44 = sadd.s32 %s43, 1
    %p47 = scmp.eq.s32.totalorder %s9, 1
    %p48 = scmp.ne.s32.totalorder %s43, %s45
    %p49 = scmp.eq.s32.totalorder %s9, 0
    %p50 = por %p48, %p49
    %p51 = scmp.ne.s32.totalorder %s43, %s45
    %p52 = scmp.eq.s32.totalorder %s14, 1
    %p53 = por %p51, %p52
    %p54 = scmp.ne.s32.totalorder %s45, %s46
    %p55 = scmp.eq.s32.totalorder %s14, 0
    %p56 = por %p54, %p55
    %p57 = scmp.ne.s32.totalorder %s45, %s46
    %p58 = scmp.eq.s32.totalorder %s15, 1
    %p59 = por %p57, %p58
    %p61 = scmp.ne.s32.totalorder %s46, %s60
    %p62 = scmp.eq.s32.totalorder %s15, 0
    %p63 = por %p61, %p62
    %s65 = sadd.s32 %s64, 1
    %p68 = scmp.eq.s32.totalorder %s9, 1
    %p69 = scmp.ne.s32.totalorder %s64, %s66
    %p70 = scmp.eq.s32.totalorder %s9, 0
    %p71 = por %p69, %p70
    %p72 = scmp.ne.s32.totalorder %s64, %s66
    %p73 = scmp.eq.s32.totalorder %s14, 1
    %p74 = por %p72, %p73
    %p75 = scmp.ne.s32.totalorder %s66, %s67
    %p76 = scmp.eq.s32.totalorder %s14, 0
    %p77 = por %p75, %p76
    %p78 = scmp.ne.s32.totalorder %s66, %s67
    %p79 = scmp.eq.s32.totalorder %s15, 1
    %p80 = por %p78, %p79
    %p82 = scmp.ne.s32.totalorder %s67, %s81
    %p83 = scmp.eq.s32.totalorder %s15, 0
    %p84 = por %p82, %p83
    %s85 = ssub.s32 %s9, %s16
    %p86 = scmp.eq.s32.totalorder %s85, 0
    %s88 = sadd.s32 %s87, 1
    %s89 = scalar_select %p86, %s87, %s88
    %p92 = pneg %p86
    %p93 = scmp.eq.s32.totalorder %s9, 1
    %p94 = por %p92, %p93
    %p95 = scmp.ne.s32.totalorder %s87, %s90
    %p96 = scmp.eq.s32.totalorder %s9, 0
    %p97 = por %p95, %p96
    %p98 = scmp.ne.s32.totalorder %s87, %s90
    %p99 = scmp.eq.s32.totalorder %s14, 1
    %p100 = por %p98, %p99
    %p101 = scmp.ne.s32.totalorder %s90, %s91
    %p102 = scmp.eq.s32.totalorder %s14, 0
    %p103 = por %p101, %p102
    %p104 = scmp.ne.s32.totalorder %s90, %s91
    %p105 = scmp.eq.s32.totalorder %s15, 1
    %p106 = por %p104, %p105
    %p108 = scmp.ne.s32.totalorder %s91, %s107
    %p109 = scmp.eq.s32.totalorder %s15, 0
    %p110 = por %p108, %p109
    %p111 = scmp.le.s32.totalorder 1, %s9
    %p112 = scmp.lt.s32.totalorder %s9, 3
    %p113 = pnand %p111, %p112
    %p114 = pneg %p113
    // Predicated region
    $region9: #{net_forward.7} parent=5 // pred_check
      _
    $region10: #{net_forward.7} parent=5 // pred_check_branch
      %116 = sbr.rel (%p113) target = $region12
    $region11: #{net_forward.7} parent=5 // pred_region
      %s117 = ssub.s32 %s9, 1
      // Predicated region
      $region13: #{net_forward.7} parent=11 // pred_check
        %p118 = pneg %p56
      $region14: #{net_forward.7} parent=11 // pred_check_branch
        %120 = sbr.rel (%p118) target = $region16
      $region15: #{net_forward.7} parent=11 // pred_region
        _
      $region16: #{net_forward.7} parent=11 // pred_fallthru
        _
      // Predicated region
      $region17: #{net_forward.7} parent=11 // pred_check
        %p121 = pneg %p77
      $region18: #{net_forward.7} parent=11 // pred_check_branch
        %123 = sbr.rel (%p121) target = $region20
      $region19: #{net_forward.7} parent=11 // pred_region
        _
      $region20: #{net_forward.7} parent=11 // pred_fallthru
        _
    $region12: #{net_forward.7} parent=5 // pred_fallthru
      _
    %p124 = scmp.lt.s32.totalorder %s9, 2
    // Predicated region
    $region21: #{net_forward.7} parent=5 // pred_check
      %p125 = pneg %p124
    $region22: #{net_forward.7} parent=5 // pred_check_branch
      %127 = sbr.rel (%p125) target = $region24
    $region23: #{net_forward.7} parent=5 // pred_region
      // Predicated region
      $region25: #{net_forward.7} parent=23 // pred_check
        %p128 = pneg %p29
      $region26: #{net_forward.7} parent=23 // pred_check_branch
        %130 = sbr.rel (%p128) target = $region28
      $region27: #{net_forward.7} parent=23 // pred_region
        %p131 = scmp.lt.s32.totalorder %s9, 1
        %s132 = scalar_select %p131, %s9, 1
        %s133 = smul.addr %s132, 37
        %s134 = smul.addr %s133, 4
        %s135 = scalar_lea.vmem %s0, %s134
      $region28: #{net_forward.7} parent=23 // pred_fallthru
        _
    $region24: #{net_forward.7} parent=5 // pred_fallthru
      _
    %p136 = scmp.le.s32.totalorder 1, %s9
    %p137 = scmp.lt.s32.totalorder %s9, 3
    %p138 = pnand %p136, %p137
    %p139 = pneg %p138
    // Predicated region
    $region29: #{net_forward.7} parent=5 // pred_check
      _
    $region30: #{net_forward.7} parent=5 // pred_check_branch
      %141 = sbr.rel (%p138) target = $region32
    $region31: #{net_forward.7} parent=5 // pred_region
      %s142 = ssub.s32 %s9, 1
      %p143 = scmp.lt.s32.totalorder %s14, 1
      %s144 = scalar_select %p143, %s14, 1
      %s145 = smul.addr %s144, 37
      %s146 = smul.addr %s145, 4
      %s147 = scalar_lea.vmem %s0, %s146
      %p148 = pneg %p35
      %p149 = pneg %p32
      %p150 = pneg %p56
      %p151 = pneg %p53
      %p152 = pneg %p77
      %p153 = pneg %p74
      %p154 = pneg %p103
      %p155 = pneg %p100
      %p156 = scmp.lt.s32.totalorder %s14, 1
      %s157 = scalar_select %p156, %s14, 1
      %s158 = smul.addr %s157, 28
      %s159 = smul.addr %s158, 4
      %s160 = scalar_lea.vmem %s3, %s159
      %p161 = scmp.lt.s32.totalorder %s14, 1
      %s162 = scalar_select %p161, %s14, 1
      %s163 = smul.addr %s162, 37
      %s164 = smul.addr %s163, 4
      %s165 = scalar_lea.vmem %s0, %s164
      %p166 = scmp.lt.s32.totalorder %s14, 1
      %s167 = scalar_select %p166, %s14, 1
      %s168 = smul.addr %s167, 28
      %s169 = smul.addr %s168, 4
      %s170 = scalar_lea.vmem %s3, %s169
      %v172 = vld [vmem:[%s165] sm:$0xf]
      %v173 = vld [vmem:[%s165 + $0x4] sm:$0xf]
      %v174 = vld [vmem:[%s165 + $0x8] sm:$0xf]
      %v175 = vld [vmem:[%s165 + $0xc] sm:$0xf]
      %v176 = vld [vmem:[%s165 + $0x10] sm:$0xf]
      %v177 = vld [vmem:[%s165 + $0x14] sm:$0xf]
      %v178 = vld [vmem:[%s165 + $0x18] sm:$0xf]
      %v179 = vld [vmem:[%s165 + $0x1c] sm:$0xf]
      %v180 = vld [vmem:[%s165 + $0x20] sm:$0xf]
      %v181 = vld [vmem:[%s165 + $0x24] sm:$0xf]
      %v182 = vld [vmem:[%s165 + $0x28] sm:$0xf]
      %v183 = vld [vmem:[%s165 + $0x2c] sm:$0xf]
      %v184 = vld [vmem:[%s165 + $0x30] sm:$0xf]
      %v185 = vld [vmem:[%s165 + $0x34] sm:$0xf]
      %v186 = vld [vmem:[%s165 + $0x38] sm:$0xf]
      %v187 = vld [vmem:[%s165 + $0x3c] sm:$0xf]
      %v188 = vld [vmem:[%s165 + $0x40] sm:$0xf]
      %v189 = vld [vmem:[%s165 + $0x44] sm:$0xf]
      %v190 = vld [vmem:[%s165 + $0x48] sm:$0xf]
      %v191 = vld [vmem:[%s165 + $0x4c] sm:$0xf]
      %v192 = vld [vmem:[%s165 + $0x50] sm:$0xf]
      %v193 = vld [vmem:[%s165 + $0x54] sm:$0xf]
      %v194 = vld [vmem:[%s165 + $0x58] sm:$0xf]
      %v195 = vld [vmem:[%s165 + $0x5c] sm:$0xf]
      %v196 = vld [vmem:[%s165 + $0x60] sm:$0xf]
      %v197 = vld [vmem:[%s165 + $0x64] sm:$0xf]
      %v198 = vld [vmem:[%s165 + $0x68] sm:$0xf]
      %v199 = vld [vmem:[%s165 + $0x6c] sm:$0xf]
      %v200 = vld [vmem:[%s165 + $0x70] sm:$0xf]
      %v201 = vld [vmem:[%s165 + $0x74] sm:$0xf]
      %v202 = vld [vmem:[%s165 + $0x78] sm:$0xf]
      %v203 = vld [vmem:[%s165 + $0x7c] sm:$0xf]
      %v204 = vld [vmem:[%s1] sm:$0xf]
      %v205 = vld [vmem:[%s1 + $0x4] sm:$0xf]
      %v206 = vld [vmem:[%s1 + $0x8] sm:$0xf]
      %v207 = vld [vmem:[%s1 + $0xc] sm:$0xf]
      %v208 = vld [vmem:[%s165 + $0x80] sm:$0x1]
      %s209 = scalar_lea.vmem %s1, 16
      %v210 = vld [vmem:[%s209] sm:$0xf]
      %v211 = vld [vmem:[%s209 + $0x4] sm:$0xf]
      %v212 = vld [vmem:[%s209 + $0x8] sm:$0xf]
      %v213 = vld [vmem:[%s209 + $0xc] sm:$0xf]
      %v247 = vunpack.c.l.b16 %v172
      %v248 = vunpack.c.l.b16 %v173
      %v249 = vunpack.c.l.b16 %v174
      %v250 = vunpack.c.l.b16 %v175
      %v251 = vunpack.c.l.b16 %v176
      %v252 = vunpack.c.l.b16 %v177
      %v253 = vunpack.c.l.b16 %v178
      %v254 = vunpack.c.l.b16 %v179
      %v255 = vunpack.c.l.b16 %v180
      %v256 = vunpack.c.l.b16 %v181
      %v257 = vunpack.c.l.b16 %v182
      %v258 = vunpack.c.l.b16 %v183
      %v259 = vunpack.c.l.b16 %v184
      %v260 = vunpack.c.l.b16 %v185
      %v261 = vunpack.c.l.b16 %v186
      %v262 = vunpack.c.l.b16 %v187
      %v263 = vunpack.c.l.b16 %v188
      %v264 = vunpack.c.l.b16 %v189
      %v265 = vunpack.c.l.b16 %v190
      %v266 = vunpack.c.l.b16 %v191
      %v267 = vunpack.c.l.b16 %v192
      %v268 = vunpack.c.l.b16 %v193
      %v269 = vunpack.c.l.b16 %v194
      %v270 = vunpack.c.l.b16 %v195
      %v271 = vunpack.c.l.b16 %v196
      %v272 = vunpack.c.l.b16 %v197
      %v273 = vunpack.c.l.b16 %v198
      %v274 = vunpack.c.l.b16 %v199
      %v275 = vunpack.c.l.b16 %v200
      %v276 = vunpack.c.l.b16 %v201
      %v277 = vunpack.c.l.b16 %v202
      %v278 = vunpack.c.l.b16 %v203
      %v279 = vunpack.c.l.b16 %v208
      %v280 = vpack.c.b16 %v248, %v247
      %v281 = vpack.c.b16 %v250, %v249
      %v282 = vpack.c.b16 %v252, %v251
      %v283 = vpack.c.b16 %v254, %v253
      %v284 = vpack.c.b16 %v256, %v255
      %v285 = vpack.c.b16 %v258, %v257
      %v286 = vpack.c.b16 %v260, %v259
      %v287 = vpack.c.b16 %v262, %v261
      %v288 = vpack.c.b16 %v264, %v263
      %v289 = vpack.c.b16 %v266, %v265
      %v290 = vpack.c.b16 %v268, %v267
      %v291 = vpack.c.b16 %v270, %v269
      %v292 = vpack.c.b16 %v272, %v271
      %v293 = vpack.c.b16 %v274, %v273
      %v294 = vpack.c.b16 %v276, %v275
      %v295 = vpack.c.b16 %v278, %v277
      %v296 = vpack.c.b16 %v279, %v279
      %vm297 = vsmask.f32 7424
      %v299 = vshrl.u32 %v280, 16
      %v301 = vshll.u32 %v280, 16
      %v303 = vrot.slane %v301, 1
      %v304 = vor.u32 %v299, %v303
      %v306 = vshll.u32 %v281, 16
      %v308 = vrot.slane %v306, 1
      %v309 = vsel %vm297, %v304, %v308
      %v310 = vshrl.u32 %v281, 16
      %v312 = vor.u32 %v310, %v308
      %v314 = vshll.u32 %v282, 16
      %v316 = vrot.slane %v314, 1
      %v317 = vsel %vm297, %v312, %v316
      %v318 = vshrl.u32 %v282, 16
      %v320 = vor.u32 %v318, %v316
      %v322 = vshll.u32 %v283, 16
      %v324 = vrot.slane %v322, 1
      %v325 = vsel %vm297, %v320, %v324
      %v326 = vshrl.u32 %v283, 16
      %v328 = vor.u32 %v326, %v324
      %v330 = vshll.u32 %v284, 16
      %v332 = vrot.slane %v330, 1
      %v333 = vsel %vm297, %v328, %v332
      %v334 = vshrl.u32 %v284, 16
      %v336 = vor.u32 %v334, %v332
      %v338 = vshll.u32 %v285, 16
      %v340 = vrot.slane %v338, 1
      %v341 = vsel %vm297, %v336, %v340
      %v342 = vshrl.u32 %v285, 16
      %v344 = vor.u32 %v342, %v340
      %v346 = vshll.u32 %v286, 16
      %v348 = vrot.slane %v346, 1
      %v349 = vsel %vm297, %v344, %v348
      %v350 = vshrl.u32 %v286, 16
      %v352 = vor.u32 %v350, %v348
      %v354 = vshll.u32 %v287, 16
      %v356 = vrot.slane %v354, 1
      %v357 = vsel %vm297, %v352, %v356
      %v358 = vshrl.u32 %v287, 16
      %v360 = vor.u32 %v358, %v356
      %v362 = vshll.u32 %v288, 16
      %v364 = vrot.slane %v362, 1
      %v365 = vsel %vm297, %v360, %v364
      %v366 = vshrl.u32 %v288, 16
      %v368 = vor.u32 %v366, %v364
      %v370 = vshll.u32 %v289, 16
      %v372 = vrot.slane %v370, 1
      %v373 = vsel %vm297, %v368, %v372
      %v374 = vshrl.u32 %v289, 16
      %v376 = vor.u32 %v374, %v372
      %v378 = vshll.u32 %v290, 16
      %v380 = vrot.slane %v378, 1
      %v381 = vsel %vm297, %v376, %v380
      %v382 = vshrl.u32 %v290, 16
      %v384 = vor.u32 %v382, %v380
      %v386 = vshll.u32 %v291, 16
      %v388 = vrot.slane %v386, 1
      %v389 = vsel %vm297, %v384, %v388
      %v390 = vshrl.u32 %v291, 16
      %v392 = vor.u32 %v390, %v388
      %v394 = vshll.u32 %v292, 16
      %v396 = vrot.slane %v394, 1
      %v397 = vsel %vm297, %v392, %v396
      %v398 = vshrl.u32 %v292, 16
      %v400 = vor.u32 %v398, %v396
      %v402 = vshll.u32 %v293, 16
      %v404 = vrot.slane %v402, 1
      %v405 = vsel %vm297, %v400, %v404
      %v406 = vshrl.u32 %v293, 16
      %v408 = vor.u32 %v406, %v404
      %v410 = vshll.u32 %v294, 16
      %v412 = vrot.slane %v410, 1
      %v413 = vsel %vm297, %v408, %v412
      %v414 = vshrl.u32 %v294, 16
      %v416 = vor.u32 %v414, %v412
      %v418 = vshll.u32 %v295, 16
      %v420 = vrot.slane %v418, 1
      %v421 = vsel %vm297, %v416, %v420
      %v422 = vshrl.u32 %v295, 16
      %v424 = vor.u32 %v422, %v420
      %v426 = vshll.u32 %v296, 16
      %v428 = vrot.slane %v426, 1
      %v429 = vsel %vm297, %v424, %v428
      %v434 = vunpack.c.l.b16 %v210
      %v435 = vunpack.c.l.b16 %v211
      %v436 = vunpack.c.l.b16 %v212
      %v437 = vunpack.c.l.b16 %v213
      %v438 = vpack.c.b16 %v435, %v434
      %v439 = vpack.c.b16 %v437, %v436
      %vm442 = vcmask 261120
      %v444 = vsel %vm442, %v309, 0
      %v447 = vsel %vm442, %v317, 0
      %v450 = vsel %vm442, %v325, 0
      %v453 = vsel %vm442, %v333, 0
      %v456 = vsel %vm442, %v341, 0
      %v459 = vsel %vm442, %v349, 0
      %v462 = vsel %vm442, %v357, 0
      %v465 = vsel %vm442, %v365, 0
      %v468 = vsel %vm442, %v373, 0
      %v471 = vsel %vm442, %v381, 0
      %v474 = vsel %vm442, %v389, 0
      %v477 = vsel %vm442, %v397, 0
      %v480 = vsel %vm442, %v405, 0
      %v483 = vsel %vm442, %v413, 0
      %v486 = vsel %vm442, %v421, 0
      %v489 = vsel %vm442, %v429, 0
      %491 = vmatprep.subr.bf16.mxu0 0
      %492 = vmatpush1.bf16.msra.mxu0 %v438
      %493 = vmatprep.subr.bf16.mxu0 0
      %494 = vmatpush1.bf16.msra.mxu0 %v439
      %495 = vmatprep.subr.bf16.mxu0 0
      %496 = vmatpush1.bf16.msra.mxu0 0
      %497 = vmatprep.subr.bf16.mxu0 0
      %498 = vmatpush1.bf16.msra.mxu0 0
      %499 = vmatprep.subr.bf16.mxu0 0
      %500 = vmatpush1.bf16.msra.mxu0 0
      %501 = vmatprep.subr.bf16.mxu0 0
      %502 = vmatpush1.bf16.msra.mxu0 0
      %503 = vmatprep.subr.bf16.mxu0 0
      %504 = vmatpush1.bf16.msra.mxu0 0
      %505 = vmatprep.subr.bf16.mxu0 0
      %506 = vmatpush1.bf16.msra.mxu0 0
      %507 = vmatprep.subr.bf16.mxu0 0
      %508 = vmatpush1.bf16.msra.mxu0 0
      %509 = vmatprep.subr.bf16.mxu0 0
      %510 = vmatpush1.bf16.msra.mxu0 0
      %511 = vmatprep.subr.bf16.mxu0 0
      %512 = vmatpush1.bf16.msra.mxu0 0
      %513 = vmatprep.subr.bf16.mxu0 0
      %514 = vmatpush1.bf16.msra.mxu0 0
      %515 = vmatprep.subr.bf16.mxu0 0
      %516 = vmatpush1.bf16.msra.mxu0 0
      %517 = vmatprep.subr.bf16.mxu0 0
      %518 = vmatpush1.bf16.msra.mxu0 0
      %519 = vmatprep.subr.bf16.mxu0 0
      %520 = vmatpush1.bf16.msra.mxu0 0
      %521 = vmatprep.subr.bf16.mxu0 0
      %522 = vmatpush1.bf16.msra.mxu0 0
      %523 = vmatprep.mubr.bf16.mxu0 0
      %524 = vmatmul.mubr.bf16.gmra.mrb[0].mxu0 %v444
      %v525 = vpop.f32.mrb[0].mxu0
      %v526 = vadd.f32 0.0, %v525
      %v527 = vpop.f32.mrb[0].mxu0
      %v528 = vpop.f32.mrb[0].mxu0
      %v529 = vadd.f32 0.0, %v528
      %v530 = vpop.f32.mrb[0].mxu0
      %531 = vmatprep.mubr.bf16.mxu0 0
      %532 = vmatmul.mubr.bf16.gmra.mrb[0].mxu0 %v447
      %v533 = vpop.f32.mrb[0].mxu0
      %v534 = vadd.f32 0.0, %v533
      %v535 = vpop.f32.mrb[0].mxu0
      %v536 = vpop.f32.mrb[0].mxu0
      %v537 = vadd.f32 0.0, %v536
      %v538 = vpop.f32.mrb[0].mxu0
      %539 = vmatprep.mubr.bf16.mxu0 0
      %540 = vmatmul.mubr.bf16.gmra.mrb[0].mxu0 %v450
      %v541 = vpop.f32.mrb[0].mxu0
      %v542 = vadd.f32 0.0, %v541
      %v543 = vpop.f32.mrb[0].mxu0
      %v544 = vpop.f32.mrb[0].mxu0
      %v545 = vadd.f32 0.0, %v544
      %v546 = vpop.f32.mrb[0].mxu0
      %547 = vmatprep.mubr.bf16.mxu0 0
      %548 = vmatmul.mubr.bf16.gmra.mrb[0].mxu0 %v453
      %v549 = vpop.f32.mrb[0].mxu0
      %v550 = vadd.f32 0.0, %v549
      %v551 = vpop.f32.mrb[0].mxu0
      %v552 = vpop.f32.mrb[0].mxu0
      %v553 = vadd.f32 0.0, %v552
      %v554 = vpop.f32.mrb[0].mxu0
      %555 = vmatprep.mubr.bf16.mxu0 0
      %556 = vmatmul.mubr.bf16.gmra.mrb[0].mxu0 %v456
      %v557 = vpop.f32.mrb[0].mxu0
      %v558 = vadd.f32 0.0, %v557
      %v559 = vpop.f32.mrb[0].mxu0
      %v560 = vpop.f32.mrb[0].mxu0
      %v561 = vadd.f32 0.0, %v560
      %v562 = vpop.f32.mrb[0].mxu0
      %563 = vmatprep.mubr.bf16.mxu0 0
      %564 = vmatmul.mubr.bf16.gmra.mrb[0].mxu0 %v459
      %v565 = vpop.f32.mrb[0].mxu0
      %v566 = vadd.f32 0.0, %v565
      %v567 = vpop.f32.mrb[0].mxu0
      %v568 = vpop.f32.mrb[0].mxu0
      %v569 = vadd.f32 0.0, %v568
      %v570 = vpop.f32.mrb[0].mxu0
      %571 = vmatprep.mubr.bf16.mxu0 0
      %572 = vmatmul.mubr.bf16.gmra.mrb[0].mxu0 %v462
      %v573 = vpop.f32.mrb[0].mxu0
      %v574 = vadd.f32 0.0, %v573
      %v575 = vpop.f32.mrb[0].mxu0
      %v576 = vpop.f32.mrb[0].mxu0
      %v577 = vadd.f32 0.0, %v576
      %v578 = vpop.f32.mrb[0].mxu0
      %579 = vmatprep.mubr.bf16.mxu0 0
      %580 = vmatmul.mubr.bf16.gmra.mrb[0].mxu0 %v465
      %v581 = vpop.f32.mrb[0].mxu0
      %v582 = vadd.f32 0.0, %v581
      %v583 = vpop.f32.mrb[0].mxu0
      %v584 = vpop.f32.mrb[0].mxu0
      %v585 = vadd.f32 0.0, %v584
      %v586 = vpop.f32.mrb[0].mxu0
      %587 = vmatprep.mubr.bf16.mxu0 0
      %588 = vmatmul.mubr.bf16.gmra.mrb[0].mxu0 %v468
      %v589 = vpop.f32.mrb[0].mxu0
      %v590 = vadd.f32 0.0, %v589
      %v591 = vpop.f32.mrb[0].mxu0
      %v592 = vpop.f32.mrb[0].mxu0
      %v593 = vadd.f32 0.0, %v592
      %v594 = vpop.f32.mrb[0].mxu0
      %595 = vmatprep.mubr.bf16.mxu0 0
      %596 = vmatmul.mubr.bf16.gmra.mrb[0].mxu0 %v471
      %v597 = vpop.f32.mrb[0].mxu0
      %v598 = vadd.f32 0.0, %v597
      %v599 = vpop.f32.mrb[0].mxu0
      %v600 = vpop.f32.mrb[0].mxu0
      %v601 = vadd.f32 0.0, %v600
      %v602 = vpop.f32.mrb[0].mxu0
      %603 = vmatprep.mubr.bf16.mxu0 0
      %604 = vmatmul.mubr.bf16.gmra.mrb[0].mxu0 %v474
      %v605 = vpop.f32.mrb[0].mxu0
      %v606 = vadd.f32 0.0, %v605
      %v607 = vpop.f32.mrb[0].mxu0
      %v608 = vpop.f32.mrb[0].mxu0
      %v609 = vadd.f32 0.0, %v608
      %v610 = vpop.f32.mrb[0].mxu0
      %611 = vmatprep.mubr.bf16.mxu0 0
      %612 = vmatmul.mubr.bf16.gmra.mrb[0].mxu0 %v477
      %v613 = vpop.f32.mrb[0].mxu0
      %v614 = vadd.f32 0.0, %v613
      %v615 = vpop.f32.mrb[0].mxu0
      %v616 = vpop.f32.mrb[0].mxu0
      %v617 = vadd.f32 0.0, %v616
      %v618 = vpop.f32.mrb[0].mxu0
      %619 = vmatprep.mubr.bf16.mxu0 0
      %620 = vmatmul.mubr.bf16.gmra.mrb[0].mxu0 %v480
      %v621 = vpop.f32.mrb[0].mxu0
      %v622 = vadd.f32 0.0, %v621
      %v623 = vpop.f32.mrb[0].mxu0
      %v624 = vpop.f32.mrb[0].mxu0
      %v625 = vadd.f32 0.0, %v624
      %v626 = vpop.f32.mrb[0].mxu0
      %627 = vmatprep.mubr.bf16.mxu0 0
      %628 = vmatmul.mubr.bf16.gmra.mrb[0].mxu0 %v483
      %v629 = vpop.f32.mrb[0].mxu0
      %v630 = vadd.f32 0.0, %v629
      %v631 = vpop.f32.mrb[0].mxu0
      %v632 = vpop.f32.mrb[0].mxu0
      %v633 = vadd.f32 0.0, %v632
      %v634 = vpop.f32.mrb[0].mxu0
      %635 = vmatprep.mubr.bf16.mxu0 0
      %636 = vmatmul.mubr.bf16.gmra.mrb[0].mxu0 %v486
      %v637 = vpop.f32.mrb[0].mxu0
      %v638 = vadd.f32 0.0, %v637
      %v639 = vpop.f32.mrb[0].mxu0
      %v640 = vpop.f32.mrb[0].mxu0
      %v641 = vadd.f32 0.0, %v640
      %v642 = vpop.f32.mrb[0].mxu0
      %643 = vmatprep.mubr.bf16.mxu0 0
      %644 = vmatmul.mubr.bf16.gmra.mrb[0].mxu0 %v489
      %v645 = vpop.f32.mrb[0].mxu0
      %v646 = vadd.f32 0.0, %v645
      %v647 = vpop.f32.mrb[0].mxu0
      %v648 = vpop.f32.mrb[0].mxu0
      %v649 = vadd.f32 0.0, %v648
      %v650 = vpop.f32.mrb[0].mxu0
      %651 = vdwg.mxu0
      %v656 = vunpack.c.l.b16 %v204
      %v657 = vunpack.c.l.b16 %v205
      %v658 = vunpack.c.l.b16 %v206
      %v659 = vunpack.c.l.b16 %v207
      %v660 = vpack.c.b16 %v657, %v656
      %v661 = vpack.c.b16 %v659, %v658
      %v664 = vsel %vm442, %v280, 0
      %v666 = vsel %vm442, %v281, 0
      %v668 = vsel %vm442, %v282, 0
      %v670 = vsel %vm442, %v283, 0
      %v672 = vsel %vm442, %v284, 0
      %v674 = vsel %vm442, %v285, 0
      %v676 = vsel %vm442, %v286, 0
      %v678 = vsel %vm442, %v287, 0
      %v680 = vsel %vm442, %v288, 0
      %v682 = vsel %vm442, %v289, 0
      %v684 = vsel %vm442, %v290, 0
      %v686 = vsel %vm442, %v291, 0
      %v688 = vsel %vm442, %v292, 0
      %v690 = vsel %vm442, %v293, 0
      %v692 = vsel %vm442, %v294, 0
      %v694 = vsel %vm442, %v295, 0
      %696 = vmatprep.subr.bf16.mxu0 0
      %697 = vmatpush1.bf16.msra.mxu0 %v660
      %698 = vmatprep.subr.bf16.mxu0 0
      %699 = vmatpush1.bf16.msra.mxu0 %v661
      %700 = vmatprep.subr.bf16.mxu0 0
      %701 = vmatpush1.bf16.msra.mxu0 0
      %702 = vmatprep.subr.bf16.mxu0 0
      %703 = vmatpush1.bf16.msra.mxu0 0
      %704 = vmatprep.subr.bf16.mxu0 0
      %705 = vmatpush1.bf16.msra.mxu0 0
      %706 = vmatprep.subr.bf16.mxu0 0
      %707 = vmatpush1.bf16.msra.mxu0 0
      %708 = vmatprep.subr.bf16.mxu0 0
      %709 = vmatpush1.bf16.msra.mxu0 0
      %710 = vmatprep.subr.bf16.mxu0 0
      %711 = vmatpush1.bf16.msra.mxu0 0
      %712 = vmatprep.subr.bf16.mxu0 0
      %713 = vmatpush1.bf16.msra.mxu0 0
      %714 = vmatprep.subr.bf16.mxu0 0
      %715 = vmatpush1.bf16.msra.mxu0 0
      %716 = vmatprep.subr.bf16.mxu0 0
      %717 = vmatpush1.bf16.msra.mxu0 0
      %718 = vmatprep.subr.bf16.mxu0 0
      %719 = vmatpush1.bf16.msra.mxu0 0
      %720 = vmatprep.subr.bf16.mxu0 0
      %721 = vmatpush1.bf16.msra.mxu0 0
      %722 = vmatprep.subr.bf16.mxu0 0
      %723 = vmatpush1.bf16.msra.mxu0 0
      %724 = vmatprep.subr.bf16.mxu0 0
      %725 = vmatpush1.bf16.msra.mxu0 0
      %726 = vmatprep.subr.bf16.mxu0 0
      %727 = vmatpush1.bf16.msra.mxu0 0
      %728 = vmatprep.mubr.bf16.mxu0 0
      %729 = vmatmul.mubr.bf16.gmra.mrb[0].mxu0 %v664
      %v730 = vpop.f32.mrb[0].mxu0
      %v731 = vadd.f32 %v526, %v730
      %v732 = vpop.f32.mrb[0].mxu0
      %v733 = vpop.f32.mrb[0].mxu0
      %v734 = vadd.f32 %v529, %v733
      %v735 = vpop.f32.mrb[0].mxu0
      %736 = vmatprep.mubr.bf16.mxu0 0
      %737 = vmatmul.mubr.bf16.gmra.mrb[0].mxu0 %v666
      %v738 = vpop.f32.mrb[0].mxu0
      %v739 = vadd.f32 %v534, %v738
      %v740 = vpop.f32.mrb[0].mxu0
      %v741 = vpop.f32.mrb[0].mxu0
      %v742 = vadd.f32 %v537, %v741
      %v743 = vpop.f32.mrb[0].mxu0
      %744 = vmatprep.mubr.bf16.mxu0 0
      %745 = vmatmul.mubr.bf16.gmra.mrb[0].mxu0 %v668
      %v746 = vpop.f32.mrb[0].mxu0
      %v747 = vadd.f32 %v542, %v746
      %v748 = vpop.f32.mrb[0].mxu0
      %v749 = vpop.f32.mrb[0].mxu0
      %v750 = vadd.f32 %v545, %v749
      %v751 = vpop.f32.mrb[0].mxu0
      %752 = vmatprep.mubr.bf16.mxu0 0
      %753 = vmatmul.mubr.bf16.gmra.mrb[0].mxu0 %v670
      %v754 = vpop.f32.mrb[0].mxu0
      %v755 = vadd.f32 %v550, %v754
      %v756 = vpop.f32.mrb[0].mxu0
      %v757 = vpop.f32.mrb[0].mxu0
      %v758 = vadd.f32 %v553, %v757
      %v759 = vpop.f32.mrb[0].mxu0
      %760 = vmatprep.mubr.bf16.mxu0 0
      %761 = vmatmul.mubr.bf16.gmra.mrb[0].mxu0 %v672
      %v762 = vpop.f32.mrb[0].mxu0
      %v763 = vadd.f32 %v558, %v762
      %v764 = vpop.f32.mrb[0].mxu0
      %v765 = vpop.f32.mrb[0].mxu0
      %v766 = vadd.f32 %v561, %v765
      %v767 = vpop.f32.mrb[0].mxu0
      %768 = vmatprep.mubr.bf16.mxu0 0
      %769 = vmatmul.mubr.bf16.gmra.mrb[0].mxu0 %v674
      %v770 = vpop.f32.mrb[0].mxu0
      %v771 = vadd.f32 %v566, %v770
      %v772 = vpop.f32.mrb[0].mxu0
      %v773 = vpop.f32.mrb[0].mxu0
      %v774 = vadd.f32 %v569, %v773
      %v775 = vpop.f32.mrb[0].mxu0
      %776 = vmatprep.mubr.bf16.mxu0 0
      %777 = vmatmul.mubr.bf16.gmra.mrb[0].mxu0 %v676
      %v778 = vpop.f32.mrb[0].mxu0
      %v779 = vadd.f32 %v574, %v778
      %v780 = vpop.f32.mrb[0].mxu0
      %v781 = vpop.f32.mrb[0].mxu0
      %v782 = vadd.f32 %v577, %v781
      %v783 = vpop.f32.mrb[0].mxu0
      %784 = vmatprep.mubr.bf16.mxu0 0
      %785 = vmatmul.mubr.bf16.gmra.mrb[0].mxu0 %v678
      %v786 = vpop.f32.mrb[0].mxu0
      %v787 = vadd.f32 %v582, %v786
      %v788 = vpop.f32.mrb[0].mxu0
      %v789 = vpop.f32.mrb[0].mxu0
      %v790 = vadd.f32 %v585, %v789
      %v791 = vpop.f32.mrb[0].mxu0
      %792 = vmatprep.mubr.bf16.mxu0 0
      %793 = vmatmul.mubr.bf16.gmra.mrb[0].mxu0 %v680
      %v794 = vpop.f32.mrb[0].mxu0
      %v795 = vadd.f32 %v590, %v794
      %v796 = vpop.f32.mrb[0].mxu0
      %v797 = vpop.f32.mrb[0].mxu0
      %v798 = vadd.f32 %v593, %v797
      %v799 = vpop.f32.mrb[0].mxu0
      %800 = vmatprep.mubr.bf16.mxu0 0
      %801 = vmatmul.mubr.bf16.gmra.mrb[0].mxu0 %v682
      %v802 = vpop.f32.mrb[0].mxu0
      %v803 = vadd.f32 %v598, %v802
      %v804 = vpop.f32.mrb[0].mxu0
      %v805 = vpop.f32.mrb[0].mxu0
      %v806 = vadd.f32 %v601, %v805
      %v807 = vpop.f32.mrb[0].mxu0
      %808 = vmatprep.mubr.bf16.mxu0 0
      %809 = vmatmul.mubr.bf16.gmra.mrb[0].mxu0 %v684
      %v810 = vpop.f32.mrb[0].mxu0
      %v811 = vadd.f32 %v606, %v810
      %v812 = vpop.f32.mrb[0].mxu0
      %v813 = vpop.f32.mrb[0].mxu0
      %v814 = vadd.f32 %v609, %v813
      %v815 = vpop.f32.mrb[0].mxu0
      %816 = vmatprep.mubr.bf16.mxu0 0
      %817 = vmatmul.mubr.bf16.gmra.mrb[0].mxu0 %v686
      %v818 = vpop.f32.mrb[0].mxu0
      %v819 = vadd.f32 %v614, %v818
      %v820 = vpop.f32.mrb[0].mxu0
      %v821 = vpop.f32.mrb[0].mxu0
      %v822 = vadd.f32 %v617, %v821
      %v823 = vpop.f32.mrb[0].mxu0
      %824 = vmatprep.mubr.bf16.mxu0 0
      %825 = vmatmul.mubr.bf16.gmra.mrb[0].mxu0 %v688
      %v826 = vpop.f32.mrb[0].mxu0
      %v827 = vadd.f32 %v622, %v826
      %v828 = vpop.f32.mrb[0].mxu0
      %v829 = vpop.f32.mrb[0].mxu0
      %v830 = vadd.f32 %v625, %v829
      %v831 = vpop.f32.mrb[0].mxu0
      %832 = vmatprep.mubr.bf16.mxu0 0
      %833 = vmatmul.mubr.bf16.gmra.mrb[0].mxu0 %v690
      %v834 = vpop.f32.mrb[0].mxu0
      %v835 = vadd.f32 %v630, %v834
      %v836 = vpop.f32.mrb[0].mxu0
      %v837 = vpop.f32.mrb[0].mxu0
      %v838 = vadd.f32 %v633, %v837
      %v839 = vpop.f32.mrb[0].mxu0
      %840 = vmatprep.mubr.bf16.mxu0 0
      %841 = vmatmul.mubr.bf16.gmra.mrb[0].mxu0 %v692
      %v842 = vpop.f32.mrb[0].mxu0
      %v843 = vadd.f32 %v638, %v842
      %v844 = vpop.f32.mrb[0].mxu0
      %v845 = vpop.f32.mrb[0].mxu0
      %v846 = vadd.f32 %v641, %v845
      %v847 = vpop.f32.mrb[0].mxu0
      %848 = vmatprep.mubr.bf16.mxu0 0
      %849 = vmatmul.mubr.bf16.gmra.mrb[0].mxu0 %v694
      %v850 = vpop.f32.mrb[0].mxu0
      %v851 = vadd.f32 %v646, %v850
      %v852 = vpop.f32.mrb[0].mxu0
      %v853 = vpop.f32.mrb[0].mxu0
      %v854 = vadd.f32 %v649, %v853
      %v855 = vpop.f32.mrb[0].mxu0
      %856 = vdwg.mxu0
      %v857 = vld [vmem:[%s165] sm:$0xe]
      %s858 = scalar_lea.vmem %s1, 32
      %v859 = vld [vmem:[%s858] sm:$0xf]
      %v860 = vld [vmem:[%s858 + $0x4] sm:$0xf]
      %v861 = vld [vmem:[%s858 + $0x8] sm:$0xf]
      %v862 = vld [vmem:[%s858 + $0xc] sm:$0xf]
      %v864 = vunpack.c.l.b16 %v857
      %v865 = vpack.c.b16 %v248, %v864
      %vm866 = vcmask 1046528
      %v867 = vrot.slane %v865, 1
      %v868 = vrot.slane %v281, 1
      %v869 = vsel %vm866, %v867, %v868
      %v870 = vrot.slane %v282, 1
      %v871 = vsel %vm866, %v868, %v870
      %v872 = vrot.slane %v283, 1
      %v873 = vsel %vm866, %v870, %v872
      %v874 = vrot.slane %v284, 1
      %v875 = vsel %vm866, %v872, %v874
      %v876 = vrot.slane %v285, 1
      %v877 = vsel %vm866, %v874, %v876
      %v878 = vrot.slane %v286, 1
      %v879 = vsel %vm866, %v876, %v878
      %v880 = vrot.slane %v287, 1
      %v881 = vsel %vm866, %v878, %v880
      %v882 = vrot.slane %v288, 1
      %v883 = vsel %vm866, %v880, %v882
      %v884 = vrot.slane %v289, 1
      %v885 = vsel %vm866, %v882, %v884
      %v886 = vrot.slane %v290, 1
      %v887 = vsel %vm866, %v884, %v886
      %v888 = vrot.slane %v291, 1
      %v889 = vsel %vm866, %v886, %v888
      %v890 = vrot.slane %v292, 1
      %v891 = vsel %vm866, %v888, %v890
      %v892 = vrot.slane %v293, 1
      %v893 = vsel %vm866, %v890, %v892
      %v894 = vrot.slane %v294, 1
      %v895 = vsel %vm866, %v892, %v894
      %v896 = vrot.slane %v295, 1
      %v897 = vsel %vm866, %v894, %v896
      %v898 = vrot.slane %v296, 1
      %v899 = vsel %vm866, %v896, %v898
      %v904 = vunpack.c.l.b16 %v859
      %v905 = vunpack.c.l.b16 %v860
      %v906 = vunpack.c.l.b16 %v861
      %v907 = vunpack.c.l.b16 %v862
      %v908 = vpack.c.b16 %v905, %v904
      %v909 = vpack.c.b16 %v907, %v906
      %v913 = vsel %vm442, %v869, 0
      %v916 = vsel %vm442, %v871, 0
      %v919 = vsel %vm442, %v873, 0
      %v922 = vsel %vm442, %v875, 0
      %v925 = vsel %vm442, %v877, 0
      %v928 = vsel %vm442, %v879, 0
      %v931 = vsel %vm442, %v881, 0
      %v934 = vsel %vm442, %v883, 0
      %v937 = vsel %vm442, %v885, 0
      %v940 = vsel %vm442, %v887, 0
      %v943 = vsel %vm442, %v889, 0
      %v946 = vsel %vm442, %v891, 0
      %v949 = vsel %vm442, %v893, 0
      %v952 = vsel %vm442, %v895, 0
      %v955 = vsel %vm442, %v897, 0
      %v958 = vsel %vm442, %v899, 0
      %960 = vmatprep.subr.bf16.mxu0 0
      %961 = vmatpush1.bf16.msra.mxu0 %v908
      %962 = vmatprep.subr.bf16.mxu0 0
      %963 = vmatpush1.bf16.msra.mxu0 %v909
      %964 = vmatprep.subr.bf16.mxu0 0
      %965 = vmatpush1.bf16.msra.mxu0 0
      %966 = vmatprep.subr.bf16.mxu0 0
      %967 = vmatpush1.bf16.msra.mxu0 0
      %968 = vmatprep.subr.bf16.mxu0 0
      %969 = vmatpush1.bf16.msra.mxu0 0
      %970 = vmatprep.subr.bf16.mxu0 0
      %971 = vmatpush1.bf16.msra.mxu0 0
      %972 = vmatprep.subr.bf16.mxu0 0
      %973 = vmatpush1.bf16.msra.mxu0 0
      %974 = vmatprep.subr.bf16.mxu0 0
      %975 = vmatpush1.bf16.msra.mxu0 0
      %976 = vmatprep.subr.bf16.mxu0 0
      %977 = vmatpush1.bf16.msra.mxu0 0
      %978 = vmatprep.subr.bf16.mxu0 0
      %979 = vmatpush1.bf16.msra.mxu0 0
      %980 = vmatprep.subr.bf16.mxu0 0
      %981 = vmatpush1.bf16.msra.mxu0 0
      %982 = vmatprep.subr.bf16.mxu0 0
      %983 = vmatpush1.bf16.msra.mxu0 0
      %984 = vmatprep.subr.bf16.mxu0 0
      %985 = vmatpush1.bf16.msra.mxu0 0
      %986 = vmatprep.subr.bf16.mxu0 0
      %987 = vmatpush1.bf16.msra.mxu0 0
      %988 = vmatprep.subr.bf16.mxu0 0
      %989 = vmatpush1.bf16.msra.mxu0 0
      %990 = vmatprep.subr.bf16.mxu0 0
      %991 = vmatpush1.bf16.msra.mxu0 0
      %992 = vmatprep.mubr.bf16.mxu0 0
      %993 = vmatmul.mubr.bf16.gmra.mrb[0].mxu0 %v913
      %v994 = vpop.f32.mrb[0].mxu0
      %v995 = vadd.f32 0.0, %v994
      %v996 = vpop.f32.mrb[0].mxu0
      %v997 = vpop.f32.mrb[0].mxu0
      %v998 = vadd.f32 0.0, %v997
      %v999 = vpop.f32.mrb[0].mxu0
      %1000 = vmatprep.mubr.bf16.mxu0 0
      %1001 = vmatmul.mubr.bf16.gmra.mrb[0].mxu0 %v916
      %v1002 = vpop.f32.mrb[0].mxu0
      %v1003 = vadd.f32 0.0, %v1002
      %v1004 = vpop.f32.mrb[0].mxu0
      %v1005 = vpop.f32.mrb[0].mxu0
      %v1006 = vadd.f32 0.0, %v1005
      %v1007 = vpop.f32.mrb[0].mxu0
      %1008 = vmatprep.mubr.bf16.mxu0 0
      %1009 = vmatmul.mubr.bf16.gmra.mrb[0].mxu0 %v919
      %v1010 = vpop.f32.mrb[0].mxu0
      %v1011 = vadd.f32 0.0, %v1010
      %v1012 = vpop.f32.mrb[0].mxu0
      %v1013 = vpop.f32.mrb[0].mxu0
      %v1014 = vadd.f32 0.0, %v1013
      %v1015 = vpop.f32.mrb[0].mxu0
      %1016 = vmatprep.mubr.bf16.mxu0 0
      %1017 = vmatmul.mubr.bf16.gmra.mrb[0].mxu0 %v922
      %v1018 = vpop.f32.mrb[0].mxu0
      %v1019 = vadd.f32 0.0, %v1018
      %v1020 = vpop.f32.mrb[0].mxu0
      %v1021 = vpop.f32.mrb[0].mxu0
      %v1022 = vadd.f32 0.0, %v1021
      %v1023 = vpop.f32.mrb[0].mxu0
      %1024 = vmatprep.mubr.bf16.mxu0 0
      %1025 = vmatmul.mubr.bf16.gmra.mrb[0].mxu0 %v925
      %v1026 = vpop.f32.mrb[0].mxu0
      %v1027 = vadd.f32 0.0, %v1026
      %v1028 = vpop.f32.mrb[0].mxu0
      %v1029 = vpop.f32.mrb[0].mxu0
      %v1030 = vadd.f32 0.0, %v1029
      %v1031 = vpop.f32.mrb[0].mxu0
      %1032 = vmatprep.mubr.bf16.mxu0 0
      %1033 = vmatmul.mubr.bf16.gmra.mrb[0].mxu0 %v928
      %v1034 = vpop.f32.mrb[0].mxu0
      %v1035 = vadd.f32 0.0, %v1034
      %v1036 = vpop.f32.mrb[0].mxu0
      %v1037 = vpop.f32.mrb[0].mxu0
      %v1038 = vadd.f32 0.0, %v1037
      %v1039 = vpop.f32.mrb[0].mxu0
      %1040 = vmatprep.mubr.bf16.mxu0 0
      %1041 = vmatmul.mubr.bf16.gmra.mrb[0].mxu0 %v931
      %v1042 = vpop.f32.mrb[0].mxu0
      %v1043 = vadd.f32 0.0, %v1042
      %v1044 = vpop.f32.mrb[0].mxu0
      %v1045 = vpop.f32.mrb[0].mxu0
      %v1046 = vadd.f32 0.0, %v1045
      %v1047 = vpop.f32.mrb[0].mxu0
      %1048 = vmatprep.mubr.bf16.mxu0 0
      %1049 = vmatmul.mubr.bf16.gmra.mrb[0].mxu0 %v934
      %v1050 = vpop.f32.mrb[0].mxu0
      %v1051 = vadd.f32 0.0, %v1050
      %v1052 = vpop.f32.mrb[0].mxu0
      %v1053 = vpop.f32.mrb[0].mxu0
      %v1054 = vadd.f32 0.0, %v1053
      %v1055 = vpop.f32.mrb[0].mxu0
      %1056 = vmatprep.mubr.bf16.mxu0 0
      %1057 = vmatmul.mubr.bf16.gmra.mrb[0].mxu0 %v937
      %v1058 = vpop.f32.mrb[0].mxu0
      %v1059 = vadd.f32 0.0, %v1058
      %v1060 = vpop.f32.mrb[0].mxu0
      %v1061 = vpop.f32.mrb[0].mxu0
      %v1062 = vadd.f32 0.0, %v1061
      %v1063 = vpop.f32.mrb[0].mxu0
      %1064 = vmatprep.mubr.bf16.mxu0 0
      %1065 = vmatmul.mubr.bf16.gmra.mrb[0].mxu0 %v940
      %v1066 = vpop.f32.mrb[0].mxu0
      %v1067 = vadd.f32 0.0, %v1066
      %v1068 = vpop.f32.mrb[0].mxu0
      %v1069 = vpop.f32.mrb[0].mxu0
      %v1070 = vadd.f32 0.0, %v1069
      %v1071 = vpop.f32.mrb[0].mxu0
      %1072 = vmatprep.mubr.bf16.mxu0 0
      %1073 = vmatmul.mubr.bf16.gmra.mrb[0].mxu0 %v943
      %v1074 = vpop.f32.mrb[0].mxu0
      %v1075 = vadd.f32 0.0, %v1074
      %v1076 = vpop.f32.mrb[0].mxu0
      %v1077 = vpop.f32.mrb[0].mxu0
      %v1078 = vadd.f32 0.0, %v1077
      %v1079 = vpop.f32.mrb[0].mxu0
      %1080 = vmatprep.mubr.bf16.mxu0 0
      %1081 = vmatmul.mubr.bf16.gmra.mrb[0].mxu0 %v946
      %v1082 = vpop.f32.mrb[0].mxu0
      %v1083 = vadd.f32 0.0, %v1082
      %v1084 = vpop.f32.mrb[0].mxu0
      %v1085 = vpop.f32.mrb[0].mxu0
      %v1086 = vadd.f32 0.0, %v1085
      %v1087 = vpop.f32.mrb[0].mxu0
      %1088 = vmatprep.mubr.bf16.mxu0 0
      %1089 = vmatmul.mubr.bf16.gmra.mrb[0].mxu0 %v949
      %v1090 = vpop.f32.mrb[0].mxu0
      %v1091 = vadd.f32 0.0, %v1090
      %v1092 = vpop.f32.mrb[0].mxu0
      %v1093 = vpop.f32.mrb[0].mxu0
      %v1094 = vadd.f32 0.0, %v1093
      %v1095 = vpop.f32.mrb[0].mxu0
      %1096 = vmatprep.mubr.bf16.mxu0 0
      %1097 = vmatmul.mubr.bf16.gmra.mrb[0].mxu0 %v952
      %v1098 = vpop.f32.mrb[0].mxu0
      %v1099 = vadd.f32 0.0, %v1098
      %v1100 = vpop.f32.mrb[0].mxu0
      %v1101 = vpop.f32.mrb[0].mxu0
      %v1102 = vadd.f32 0.0, %v1101
      %v1103 = vpop.f32.mrb[0].mxu0
      %1104 = vmatprep.mubr.bf16.mxu0 0
      %1105 = vmatmul.mubr.bf16.gmra.mrb[0].mxu0 %v955
      %v1106 = vpop.f32.mrb[0].mxu0
      %v1107 = vadd.f32 0.0, %v1106
      %v1108 = vpop.f32.mrb[0].mxu0
      %v1109 = vpop.f32.mrb[0].mxu0
      %v1110 = vadd.f32 0.0, %v1109
      %v1111 = vpop.f32.mrb[0].mxu0
      %1112 = vmatprep.mubr.bf16.mxu0 0
      %1113 = vmatmul.mubr.bf16.gmra.mrb[0].mxu0 %v958
      %v1114 = vpop.f32.mrb[0].mxu0
      %v1115 = vadd.f32 0.0, %v1114
      %v1116 = vpop.f32.mrb[0].mxu0
      %v1117 = vpop.f32.mrb[0].mxu0
      %v1118 = vadd.f32 0.0, %v1117
      %v1119 = vpop.f32.mrb[0].mxu0
      %1120 = vdwg.mxu0
      %v1121 = vadd.f32 %v731, %v995
      %v1122 = vadd.f32 %v734, %v998
      %v1123 = vadd.f32 %v739, %v1003
      %v1124 = vadd.f32 %v742, %v1006
      %v1125 = vadd.f32 %v747, %v1011
      %v1126 = vadd.f32 %v750, %v1014
      %v1127 = vadd.f32 %v755, %v1019
      %v1128 = vadd.f32 %v758, %v1022
      %v1129 = vadd.f32 %v763, %v1027
      %v1130 = vadd.f32 %v766, %v1030
      %v1131 = vadd.f32 %v771, %v1035
      %v1132 = vadd.f32 %v774, %v1038
      %v1133 = vadd.f32 %v779, %v1043
      %v1134 = vadd.f32 %v782, %v1046
      %v1135 = vadd.f32 %v787, %v1051
      %v1136 = vadd.f32 %v790, %v1054
      %v1137 = vadd.f32 %v795, %v1059
      %v1138 = vadd.f32 %v798, %v1062
      %v1139 = vadd.f32 %v803, %v1067
      %v1140 = vadd.f32 %v806, %v1070
      %v1141 = vadd.f32 %v811, %v1075
      %v1142 = vadd.f32 %v814, %v1078
      %v1143 = vadd.f32 %v819, %v1083
      %v1144 = vadd.f32 %v822, %v1086
      %v1145 = vadd.f32 %v827, %v1091
      %v1146 = vadd.f32 %v830, %v1094
      %v1147 = vadd.f32 %v835, %v1099
      %v1148 = vadd.f32 %v838, %v1102
      %v1149 = vadd.f32 %v843, %v1107
      %v1150 = vadd.f32 %v846, %v1110
      %v1151 = vadd.f32 %v851, %v1115
      %v1152 = vadd.f32 %v854, %v1118
      %v1153 = vld [vmem:[%s165 + $0x8] sm:$0xf]
      %v1154 = vld [vmem:[%s165 + $0xc] sm:$0xf]
      %v1155 = vld [vmem:[%s165 + $0x10] sm:$0xf]
      %v1156 = vld [vmem:[%s165 + $0x14] sm:$0xf]
      %v1157 = vld [vmem:[%s165 + $0x18] sm:$0xf]
      %v1158 = vld [vmem:[%s165 + $0x1c] sm:$0xf]
      %v1159 = vld [vmem:[%s165 + $0x20] sm:$0xf]
      %v1160 = vld [vmem:[%s165 + $0x24] sm:$0xf]
      %v1161 = vld [vmem:[%s165 + $0x28] sm:$0xf]
      %v1162 = vld [vmem:[%s165 + $0x2c] sm:$0xf]
      %v1163 = vld [vmem:[%s165 + $0x30] sm:$0xf]
      %v1164 = vld [vmem:[%s165 + $0x34] sm:$0xf]
      %v1165 = vld [vmem:[%s165 + $0x38] sm:$0xf]
      %v1166 = vld [vmem:[%s165 + $0x3c] sm:$0xf]
      %v1167 = vld [vmem:[%s165 + $0x40] sm:$0xf]
      %v1168 = vld [vmem:[%s165 + $0x44] sm:$0xf]
      %v1169 = vld [vmem:[%s165 + $0x48] sm:$0xf]
      %v1170 = vld [vmem:[%s165 + $0x4c] sm:$0xf]
      %v1171 = vld [vmem:[%s165 + $0x50] sm:$0xf]
      %v1172 = vld [vmem:[%s165 + $0x54] sm:$0xf]
      %v1173 = vld [vmem:[%s165 + $0x58] sm:$0xf]
      %v1174 = vld [vmem:[%s165 + $0x5c] sm:$0xf]
      %v1175 = vld [vmem:[%s165 + $0x60] sm:$0xf]
      %v1176 = vld [vmem:[%s165 + $0x64] sm:$0xf]
      %v1177 = vld [vmem:[%s165 + $0x68] sm:$0xf]
      %v1178 = vld [vmem:[%s165 + $0x6c] sm:$0xf]
      %v1179 = vld [vmem:[%s165 + $0x70] sm:$0xf]
      %v1180 = vld [vmem:[%s165 + $0x74] sm:$0xf]
      %v1181 = vld [vmem:[%s165 + $0x78] sm:$0xf]
      %v1182 = vld [vmem:[%s165 + $0x7c] sm:$0xf]
      %v1183 = vld [vmem:[%s165 + $0x80] sm:$0xf]
      %v1184 = vld [vmem:[%s165 + $0x84] sm:$0xf]
      %s1185 = scalar_lea.vmem %s1, 48
      %v1186 = vld [vmem:[%s1185] sm:$0xf]
      %v1187 = vld [vmem:[%s1185 + $0x4] sm:$0xf]
      %v1188 = vld [vmem:[%s1185 + $0x8] sm:$0xf]
      %v1189 = vld [vmem:[%s1185 + $0xc] sm:$0xf]
      %v1222 = vunpack.c.l.b16 %v1153
      %v1223 = vunpack.c.l.b16 %v1154
      %v1224 = vunpack.c.l.b16 %v1155
      %v1225 = vunpack.c.l.b16 %v1156
      %v1226 = vunpack.c.l.b16 %v1157
      %v1227 = vunpack.c.l.b16 %v1158
      %v1228 = vunpack.c.l.b16 %v1159
      %v1229 = vunpack.c.l.b16 %v1160
      %v1230 = vunpack.c.l.b16 %v1161
      %v1231 = vunpack.c.l.b16 %v1162
      %v1232 = vunpack.c.l.b16 %v1163
      %v1233 = vunpack.c.l.b16 %v1164
      %v1234 = vunpack.c.l.b16 %v1165
      %v1235 = vunpack.c.l.b16 %v1166
      %v1236 = vunpack.c.l.b16 %v1167
      %v1237 = vunpack.c.l.b16 %v1168
      %v1238 = vunpack.c.l.b16 %v1169
      %v1239 = vunpack.c.l.b16 %v1170
      %v1240 = vunpack.c.l.b16 %v1171
      %v1241 = vunpack.c.l.b16 %v1172
      %v1242 = vunpack.c.l.b16 %v1173
      %v1243 = vunpack.c.l.b16 %v1174
      %v1244 = vunpack.c.l.b16 %v1175
      %v1245 = vunpack.c.l.b16 %v1176
      %v1246 = vunpack.c.l.b16 %v1177
      %v1247 = vunpack.c.l.b16 %v1178
      %v1248 = vunpack.c.l.b16 %v1179
      %v1249 = vunpack.c.l.b16 %v1180
      %v1250 = vunpack.c.l.b16 %v1181
      %v1251 = vunpack.c.l.b16 %v1182
      %v1252 = vunpack.c.l.b16 %v1183
      %v1253 = vunpack.c.l.b16 %v1184
      %v1254 = vpack.c.b16 %v1223, %v1222
      %v1255 = vpack.c.b16 %v1225, %v1224
      %v1256 = vpack.c.b16 %v1227, %v1226
      %v1257 = vpack.c.b16 %v1229, %v1228
      %v1258 = vpack.c.b16 %v1231, %v1230
      %v1259 = vpack.c.b16 %v1233, %v1232
      %v1260 = vpack.c.b16 %v1235, %v1234
      %v1261 = vpack.c.b16 %v1237, %v1236
      %v1262 = vpack.c.b16 %v1239, %v1238
      %v1263 = vpack.c.b16 %v1241, %v1240
      %v1264 = vpack.c.b16 %v1243, %v1242
      %v1265 = vpack.c.b16 %v1245, %v1244
      %v1266 = vpack.c.b16 %v1247, %v1246
      %v1267 = vpack.c.b16 %v1249, %v1248
      %v1268 = vpack.c.b16 %v1251, %v1250
      %v1269 = vpack.c.b16 %v1253, %v1252
      %v1274 = vunpack.c.l.b16 %v1186
      %v1275 = vunpack.c.l.b16 %v1187
      %v1276 = vunpack.c.l.b16 %v1188
      %v1277 = vunpack.c.l.b16 %v1189
      %v1278 = vpack.c.b16 %v1275, %v1274
      %v1279 = vpack.c.b16 %v1277, %v1276
      %v1283 = vsel %vm442, %v1254, 0
      %v1286 = vsel %vm442, %v1255, 0
      %v1289 = vsel %vm442, %v1256, 0
      %v1292 = vsel %vm442, %v1257, 0
      %v1295 = vsel %vm442, %v1258, 0
      %v1298 = vsel %vm442, %v1259, 0
      %v1301 = vsel %vm442, %v1260, 0
      %v1304 = vsel %vm442, %v1261, 0
      %v1307 = vsel %vm442, %v1262, 0
      %v1310 = vsel %vm442, %v1263, 0
      %v1313 = vsel %vm442, %v1264, 0
      %v1316 = vsel %vm442, %v1265, 0
      %v1319 = vsel %vm442, %v1266, 0
      %v1322 = vsel %vm442, %v1267, 0
      %v1325 = vsel %vm442, %v1268, 0
      %v1328 = vsel %vm442, %v1269, 0
      %1330 = vmatprep.subr.bf16.mxu0 0
      %1331 = vmatpush1.bf16.msra.mxu0 %v1278
      %1332 = vmatprep.subr.bf16.mxu0 0
      %1333 = vmatpush1.bf16.msra.mxu0 %v1279
      %1334 = vmatprep.subr.bf16.mxu0 0
      %1335 = vmatpush1.bf16.msra.mxu0 0
      %1336 = vmatprep.subr.bf16.mxu0 0
      %1337 = vmatpush1.bf16.msra.mxu0 0
      %1338 = vmatprep.subr.bf16.mxu0 0
      %1339 = vmatpush1.bf16.msra.mxu0 0
      %1340 = vmatprep.subr.bf16.mxu0 0
      %1341 = vmatpush1.bf16.msra.mxu0 0
      %1342 = vmatprep.subr.bf16.mxu0 0
      %1343 = vmatpush1.bf16.msra.mxu0 0
      %1344 = vmatprep.subr.bf16.mxu0 0
      %1345 = vmatpush1.bf16.msra.mxu0 0
      %1346 = vmatprep.subr.bf16.mxu0 0
      %1347 = vmatpush1.bf16.msra.mxu0 0
      %1348 = vmatprep.subr.bf16.mxu0 0
      %1349 = vmatpush1.bf16.msra.mxu0 0
      %1350 = vmatprep.subr.bf16.mxu0 0
      %1351 = vmatpush1.bf16.msra.mxu0 0
      %1352 = vmatprep.subr.bf16.mxu0 0
      %1353 = vmatpush1.bf16.msra.mxu0 0
      %1354 = vmatprep.subr.bf16.mxu0 0
      %1355 = vmatpush1.bf16.msra.mxu0 0
      %1356 = vmatprep.subr.bf16.mxu0 0
      %1357 = vmatpush1.bf16.msra.mxu0 0
      %1358 = vmatprep.subr.bf16.mxu0 0
      %1359 = vmatpush1.bf16.msra.mxu0 0
      %1360 = vmatprep.subr.bf16.mxu0 0
      %1361 = vmatpush1.bf16.msra.mxu0 0
      %1362 = vmatprep.mubr.bf16.mxu0 0
      %1363 = vmatmul.mubr.bf16.gmra.mrb[0].mxu0 %v1283
      %v1364 = vpop.f32.mrb[0].mxu0
      %v1365 = vadd.f32 0.0, %v1364
      %v1366 = vpop.f32.mrb[0].mxu0
      %v1367 = vpop.f32.mrb[0].mxu0
      %v1368 = vadd.f32 0.0, %v1367
      %v1369 = vpop.f32.mrb[0].mxu0
      %1370 = vmatprep.mubr.bf16.mxu0 0
      %1371 = vmatmul.mubr.bf16.gmra.mrb[0].mxu0 %v1286
      %v1372 = vpop.f32.mrb[0].mxu0
      %v1373 = vadd.f32 0.0, %v1372
      %v1374 = vpop.f32.mrb[0].mxu0
      %v1375 = vpop.f32.mrb[0].mxu0
      %v1376 = vadd.f32 0.0, %v1375
      %v1377 = vpop.f32.mrb[0].mxu0
      %1378 = vmatprep.mubr.bf16.mxu0 0
      %1379 = vmatmul.mubr.bf16.gmra.mrb[0].mxu0 %v1289
      %v1380 = vpop.f32.mrb[0].mxu0
      %v1381 = vadd.f32 0.0, %v1380
      %v1382 = vpop.f32.mrb[0].mxu0
      %v1383 = vpop.f32.mrb[0].mxu0
      %v1384 = vadd.f32 0.0, %v1383
      %v1385 = vpop.f32.mrb[0].mxu0
      %1386 = vmatprep.mubr.bf16.mxu0 0
      %1387 = vmatmul.mubr.bf16.gmra.mrb[0].mxu0 %v1292
      %v1388 = vpop.f32.mrb[0].mxu0
      %v1389 = vadd.f32 0.0, %v1388
      %v1390 = vpop.f32.mrb[0].mxu0
      %v1391 = vpop.f32.mrb[0].mxu0
      %v1392 = vadd.f32 0.0, %v1391
      %v1393 = vpop.f32.mrb[0].mxu0
      %1394 = vmatprep.mubr.bf16.mxu0 0
      %1395 = vmatmul.mubr.bf16.gmra.mrb[0].mxu0 %v1295
      %v1396 = vpop.f32.mrb[0].mxu0
      %v1397 = vadd.f32 0.0, %v1396
      %v1398 = vpop.f32.mrb[0].mxu0
      %v1399 = vpop.f32.mrb[0].mxu0
      %v1400 = vadd.f32 0.0, %v1399
      %v1401 = vpop.f32.mrb[0].mxu0
      %1402 = vmatprep.mubr.bf16.mxu0 0
      %1403 = vmatmul.mubr.bf16.gmra.mrb[0].mxu0 %v1298
      %v1404 = vpop.f32.mrb[0].mxu0
      %v1405 = vadd.f32 0.0, %v1404
      %v1406 = vpop.f32.mrb[0].mxu0
      %v1407 = vpop.f32.mrb[0].mxu0
      %v1408 = vadd.f32 0.0, %v1407
      %v1409 = vpop.f32.mrb[0].mxu0
      %1410 = vmatprep.mubr.bf16.mxu0 0
      %1411 = vmatmul.mubr.bf16.gmra.mrb[0].mxu0 %v1301
      %v1412 = vpop.f32.mrb[0].mxu0
      %v1413 = vadd.f32 0.0, %v1412
      %v1414 = vpop.f32.mrb[0].mxu0
      %v1415 = vpop.f32.mrb[0].mxu0
      %v1416 = vadd.f32 0.0, %v1415
      %v1417 = vpop.f32.mrb[0].mxu0
      %1418 = vmatprep.mubr.bf16.mxu0 0
      %1419 = vmatmul.mubr.bf16.gmra.mrb[0].mxu0 %v1304
      %v1420 = vpop.f32.mrb[0].mxu0
      %v1421 = vadd.f32 0.0, %v1420
      %v1422 = vpop.f32.mrb[0].mxu0
      %v1423 = vpop.f32.mrb[0].mxu0
      %v1424 = vadd.f32 0.0, %v1423
      %v1425 = vpop.f32.mrb[0].mxu0
      %1426 = vmatprep.mubr.bf16.mxu0 0
      %1427 = vmatmul.mubr.bf16.gmra.mrb[0].mxu0 %v1307
      %v1428 = vpop.f32.mrb[0].mxu0
      %v1429 = vadd.f32 0.0, %v1428
      %v1430 = vpop.f32.mrb[0].mxu0
      %v1431 = vpop.f32.mrb[0].mxu0
      %v1432 = vadd.f32 0.0, %v1431
      %v1433 = vpop.f32.mrb[0].mxu0
      %1434 = vmatprep.mubr.bf16.mxu0 0
      %1435 = vmatmul.mubr.bf16.gmra.mrb[0].mxu0 %v1310
      %v1436 = vpop.f32.mrb[0].mxu0
      %v1437 = vadd.f32 0.0, %v1436
      %v1438 = vpop.f32.mrb[0].mxu0
      %v1439 = vpop.f32.mrb[0].mxu0
      %v1440 = vadd.f32 0.0, %v1439
      %v1441 = vpop.f32.mrb[0].mxu0
      %1442 = vmatprep.mubr.bf16.mxu0 0
      %1443 = vmatmul.mubr.bf16.gmra.mrb[0].mxu0 %v1313
      %v1444 = vpop.f32.mrb[0].mxu0
      %v1445 = vadd.f32 0.0, %v1444
      %v1446 = vpop.f32.mrb[0].mxu0
      %v1447 = vpop.f32.mrb[0].mxu0
      %v1448 = vadd.f32 0.0, %v1447
      %v1449 = vpop.f32.mrb[0].mxu0
      %1450 = vmatprep.mubr.bf16.mxu0 0
      %1451 = vmatmul.mubr.bf16.gmra.mrb[0].mxu0 %v1316
      %v1452 = vpop.f32.mrb[0].mxu0
      %v1453 = vadd.f32 0.0, %v1452
      %v1454 = vpop.f32.mrb[0].mxu0
      %v1455 = vpop.f32.mrb[0].mxu0
      %v1456 = vadd.f32 0.0, %v1455
      %v1457 = vpop.f32.mrb[0].mxu0
      %1458 = vmatprep.mubr.bf16.mxu0 0
      %1459 = vmatmul.mubr.bf16.gmra.mrb[0].mxu0 %v1319
      %v1460 = vpop.f32.mrb[0].mxu0
      %v1461 = vadd.f32 0.0, %v1460
      %v1462 = vpop.f32.mrb[0].mxu0
      %v1463 = vpop.f32.mrb[0].mxu0
      %v1464 = vadd.f32 0.0, %v1463
      %v1465 = vpop.f32.mrb[0].mxu0
      %1466 = vmatprep.mubr.bf16.mxu0 0
      %1467 = vmatmul.mubr.bf16.gmra.mrb[0].mxu0 %v1322
      %v1468 = vpop.f32.mrb[0].mxu0
      %v1469 = vadd.f32 0.0, %v1468
      %v1470 = vpop.f32.mrb[0].mxu0
      %v1471 = vpop.f32.mrb[0].mxu0
      %v1472 = vadd.f32 0.0, %v1471
      %v1473 = vpop.f32.mrb[0].mxu0
      %1474 = vmatprep.mubr.bf16.mxu0 0
      %1475 = vmatmul.mubr.bf16.gmra.mrb[0].mxu0 %v1325
      %v1476 = vpop.f32.mrb[0].mxu0
      %v1477 = vadd.f32 0.0, %v1476
      %v1478 = vpop.f32.mrb[0].mxu0
      %v1479 = vpop.f32.mrb[0].mxu0
      %v1480 = vadd.f32 0.0, %v1479
      %v1481 = vpop.f32.mrb[0].mxu0
      %1482 = vmatprep.mubr.bf16.mxu0 0
      %1483 = vmatmul.mubr.bf16.gmra.mrb[0].mxu0 %v1328
      %v1484 = vpop.f32.mrb[0].mxu0
      %v1485 = vadd.f32 0.0, %v1484
      %v1486 = vpop.f32.mrb[0].mxu0
      %v1487 = vpop.f32.mrb[0].mxu0
      %v1488 = vadd.f32 0.0, %v1487
      %v1489 = vpop.f32.mrb[0].mxu0
      %1490 = vdwg.mxu0
      %v1491 = vadd.f32 %v1121, %v1365
      %v1492 = vadd.f32 %v1122, %v1368
      %v1493 = vadd.f32 %v1123, %v1373
      %v1494 = vadd.f32 %v1124, %v1376
      %v1495 = vadd.f32 %v1125, %v1381
      %v1496 = vadd.f32 %v1126, %v1384
      %v1497 = vadd.f32 %v1127, %v1389
      %v1498 = vadd.f32 %v1128, %v1392
      %v1499 = vadd.f32 %v1129, %v1397
      %v1500 = vadd.f32 %v1130, %v1400
      %v1501 = vadd.f32 %v1131, %v1405
      %v1502 = vadd.f32 %v1132, %v1408
      %v1503 = vadd.f32 %v1133, %v1413
      %v1504 = vadd.f32 %v1134, %v1416
      %v1505 = vadd.f32 %v1135, %v1421
      %v1506 = vadd.f32 %v1136, %v1424
      %v1507 = vadd.f32 %v1137, %v1429
      %v1508 = vadd.f32 %v1138, %v1432
      %v1509 = vadd.f32 %v1139, %v1437
      %v1510 = vadd.f32 %v1140, %v1440
      %v1511 = vadd.f32 %v1141, %v1445
      %v1512 = vadd.f32 %v1142, %v1448
      %v1513 = vadd.f32 %v1143, %v1453
      %v1514 = vadd.f32 %v1144, %v1456
      %v1515 = vadd.f32 %v1145, %v1461
      %v1516 = vadd.f32 %v1146, %v1464
      %v1517 = vadd.f32 %v1147, %v1469
      %v1518 = vadd.f32 %v1148, %v1472
      %v1519 = vadd.f32 %v1149, %v1477
      %v1520 = vadd.f32 %v1150, %v1480
      %v1521 = vadd.f32 %v1151, %v1485
      %v1522 = vadd.f32 %v1152, %v1488
      %v1523 = vld [vmem:[%s165 + $0x8] sm:$0xf]
      %v1524 = vld [vmem:[%s165 + $0xc] sm:$0xf]
      %v1525 = vld [vmem:[%s165 + $0x10] sm:$0xf]
      %v1526 = vld [vmem:[%s165 + $0x14] sm:$0xf]
      %v1527 = vld [vmem:[%s165 + $0x18] sm:$0xf]
      %v1528 = vld [vmem:[%s165 + $0x1c] sm:$0xf]
      %v1529 = vld [vmem:[%s165 + $0x20] sm:$0xf]
      %v1530 = vld [vmem:[%s165 + $0x24] sm:$0xf]
      %v1531 = vld [vmem:[%s165 + $0x28] sm:$0xf]
      %v1532 = vld [vmem:[%s165 + $0x2c] sm:$0xf]
      %v1533 = vld [vmem:[%s165 + $0x30] sm:$0xf]
      %v1534 = vld [vmem:[%s165 + $0x34] sm:$0xf]
      %v1535 = vld [vmem:[%s165 + $0x38] sm:$0xf]
      %v1536 = vld [vmem:[%s165 + $0x3c] sm:$0xf]
      %v1537 = vld [vmem:[%s165 + $0x40] sm:$0xf]
      %v1538 = vld [vmem:[%s165 + $0x44] sm:$0xf]
      %v1539 = vld [vmem:[%s165 + $0x48] sm:$0xf]
      %v1540 = vld [vmem:[%s165 + $0x4c] sm:$0xf]
      %v1541 = vld [vmem:[%s165 + $0x50] sm:$0xf]
      %v1542 = vld [vmem:[%s165 + $0x54] sm:$0xf]
      %v1543 = vld [vmem:[%s165 + $0x58] sm:$0xf]
      %v1544 = vld [vmem:[%s165 + $0x5c] sm:$0xf]
      %v1545 = vld [vmem:[%s165 + $0x60] sm:$0xf]
      %v1546 = vld [vmem:[%s165 + $0x64] sm:$0xf]
      %v1547 = vld [vmem:[%s165 + $0x68] sm:$0xf]
      %v1548 = vld [vmem:[%s165 + $0x6c] sm:$0xf]
      %v1549 = vld [vmem:[%s165 + $0x70] sm:$0xf]
      %v1550 = vld [vmem:[%s165 + $0x74] sm:$0xf]
      %v1551 = vld [vmem:[%s165 + $0x78] sm:$0xf]
      %v1552 = vld [vmem:[%s165 + $0x7c] sm:$0xf]
      %v1553 = vld [vmem:[%s165 + $0x80] sm:$0xf]
      %v1554 = vld [vmem:[%s165 + $0x84] sm:$0xf]
      %v1555 = vld [vmem:[%s165 + $0x88] sm:$0x1]
      %s1556 = scalar_lea.vmem %s1, 64
      %v1557 = vld [vmem:[%s1556] sm:$0xf]
      %v1558 = vld [vmem:[%s1556 + $0x4] sm:$0xf]
      %v1559 = vld [vmem:[%s1556 + $0x8] sm:$0xf]
      %v1560 = vld [vmem:[%s1556 + $0xc] sm:$0xf]
      %v1594 = vunpack.c.l.b16 %v1523
      %v1595 = vunpack.c.l.b16 %v1524
      %v1596 = vunpack.c.l.b16 %v1525
      %v1597 = vunpack.c.l.b16 %v1526
      %v1598 = vunpack.c.l.b16 %v1527
      %v1599 = vunpack.c.l.b16 %v1528
      %v1600 = vunpack.c.l.b16 %v1529
      %v1601 = vunpack.c.l.b16 %v1530
      %v1602 = vunpack.c.l.b16 %v1531
      %v1603 = vunpack.c.l.b16 %v1532
      %v1604 = vunpack.c.l.b16 %v1533
      %v1605 = vunpack.c.l.b16 %v1534
      %v1606 = vunpack.c.l.b16 %v1535
      %v1607 = vunpack.c.l.b16 %v1536
      %v1608 = vunpack.c.l.b16 %v1537
      %v1609 = vunpack.c.l.b16 %v1538
      %v1610 = vunpack.c.l.b16 %v1539
      %v1611 = vunpack.c.l.b16 %v1540
      %v1612 = vunpack.c.l.b16 %v1541
      %v1613 = vunpack.c.l.b16 %v1542
      %v1614 = vunpack.c.l.b16 %v1543
      %v1615 = vunpack.c.l.b16 %v1544
      %v1616 = vunpack.c.l.b16 %v1545
      %v1617 = vunpack.c.l.b16 %v1546
      %v1618 = vunpack.c.l.b16 %v1547
      %v1619 = vunpack.c.l.b16 %v1548
      %v1620 = vunpack.c.l.b16 %v1549
      %v1621 = vunpack.c.l.b16 %v1550
      %v1622 = vunpack.c.l.b16 %v1551
      %v1623 = vunpack.c.l.b16 %v1552
      %v1624 = vunpack.c.l.b16 %v1553
      %v1625 = vunpack.c.l.b16 %v1554
      %v1626 = vunpack.c.l.b16 %v1555
      %v1627 = vpack.c.b16 %v1595, %v1594
      %v1628 = vpack.c.b16 %v1597, %v1596
      %v1629 = vpack.c.b16 %v1599, %v1598
      %v1630 = vpack.c.b16 %v1601, %v1600
      %v1631 = vpack.c.b16 %v1603, %v1602
      %v1632 = vpack.c.b16 %v1605, %v1604
      %v1633 = vpack.c.b16 %v1607, %v1606
      %v1634 = vpack.c.b16 %v1609, %v1608
      %v1635 = vpack.c.b16 %v1611, %v1610
      %v1636 = vpack.c.b16 %v1613, %v1612
      %v1637 = vpack.c.b16 %v1615, %v1614
      %v1638 = vpack.c.b16 %v1617, %v1616
      %v1639 = vpack.c.b16 %v1619, %v1618
      %v1640 = vpack.c.b16 %v1621, %v1620
      %v1641 = vpack.c.b16 %v1623, %v1622
      %v1642 = vpack.c.b16 %v1625, %v1624
      %v1643 = vpack.c.b16 %v1626, %v1626
      %v1645 = vshrl.u32 %v1627, 16
      %v1647 = vshll.u32 %v1627, 16
      %v1649 = vrot.slane %v1647, 1
      %v1650 = vor.u32 %v1645, %v1649
      %v1652 = vshll.u32 %v1628, 16
      %v1654 = vrot.slane %v1652, 1
      %v1655 = vsel %vm297, %v1650, %v1654
      %v1656 = vshrl.u32 %v1628, 16
      %v1658 = vor.u32 %v1656, %v1654
      %v1660 = vshll.u32 %v1629, 16
      %v1662 = vrot.slane %v1660, 1
      %v1663 = vsel %vm297, %v1658, %v1662
      %v1664 = vshrl.u32 %v1629, 16
      %v1666 = vor.u32 %v1664, %v1662
      %v1668 = vshll.u32 %v1630, 16
      %v1670 = vrot.slane %v1668, 1
      %v1671 = vsel %vm297, %v1666, %v1670
      %v1672 = vshrl.u32 %v1630, 16
      %v1674 = vor.u32 %v1672, %v1670
      %v1676 = vshll.u32 %v1631, 16
      %v1678 = vrot.slane %v1676, 1
      %v1679 = vsel %vm297, %v1674, %v1678
      %v1680 = vshrl.u32 %v1631, 16
      %v1682 = vor.u32 %v1680, %v1678
      %v1684 = vshll.u32 %v1632, 16
      %v1686 = vrot.slane %v1684, 1
      %v1687 = vsel %vm297, %v1682, %v1686
      %v1688 = vshrl.u32 %v1632, 16
      %v1690 = vor.u32 %v1688, %v1686
      %v1692 = vshll.u32 %v1633, 16
      %v1694 = vrot.slane %v1692, 1
      %v1695 = vsel %vm297, %v1690, %v1694
      %v1696 = vshrl.u32 %v1633, 16
      %v1698 = vor.u32 %v1696, %v1694
      %v1700 = vshll.u32 %v1634, 16
      %v1702 = vrot.slane %v1700, 1
      %v1703 = vsel %vm297, %v1698, %v1702
      %v1704 = vshrl.u32 %v1634, 16
      %v1706 = vor.u32 %v1704, %v1702
      %v1708 = vshll.u32 %v1635, 16
      %v1710 = vrot.slane %v1708, 1
      %v1711 = vsel %vm297, %v1706, %v1710
      %v1712 = vshrl.u32 %v1635, 16
      %v1714 = vor.u32 %v1712, %v1710
      %v1716 = vshll.u32 %v1636, 16
      %v1718 = vrot.slane %v1716, 1
      %v1719 = vsel %vm297, %v1714, %v1718
      %v1720 = vshrl.u32 %v1636, 16
      %v1722 = vor.u32 %v1720, %v1718
      %v1724 = vshll.u32 %v1637, 16
      %v1726 = vrot.slane %v1724, 1
      %v1727 = vsel %vm297, %v1722, %v1726
      %v1728 = vshrl.u32 %v1637, 16
      %v1730 = vor.u32 %v1728, %v1726
      %v1732 = vshll.u32 %v1638, 16
      %v1734 = vrot.slane %v1732, 1
      %v1735 = vsel %vm297, %v1730, %v1734
      %v1736 = vshrl.u32 %v1638, 16
      %v1738 = vor.u32 %v1736, %v1734
      %v1740 = vshll.u32 %v1639, 16
      %v1742 = vrot.slane %v1740, 1
      %v1743 = vsel %vm297, %v1738, %v1742
      %v1744 = vshrl.u32 %v1639, 16
      %v1746 = vor.u32 %v1744, %v1742
      %v1748 = vshll.u32 %v1640, 16
      %v1750 = vrot.slane %v1748, 1
      %v1751 = vsel %vm297, %v1746, %v1750
      %v1752 = vshrl.u32 %v1640, 16
      %v1754 = vor.u32 %v1752, %v1750
      %v1756 = vshll.u32 %v1641, 16
      %v1758 = vrot.slane %v1756, 1
      %v1759 = vsel %vm297, %v1754, %v1758
      %v1760 = vshrl.u32 %v1641, 16
      %v1762 = vor.u32 %v1760, %v1758
      %v1764 = vshll.u32 %v1642, 16
      %v1766 = vrot.slane %v1764, 1
      %v1767 = vsel %vm297, %v1762, %v1766
      %v1768 = vshrl.u32 %v1642, 16
      %v1770 = vor.u32 %v1768, %v1766
      %v1772 = vshll.u32 %v1643, 16
      %v1774 = vrot.slane %v1772, 1
      %v1775 = vsel %vm297, %v1770, %v1774
      %v1780 = vunpack.c.l.b16 %v1557
      %v1781 = vunpack.c.l.b16 %v1558
      %v1782 = vunpack.c.l.b16 %v1559
      %v1783 = vunpack.c.l.b16 %v1560
      %v1784 = vpack.c.b16 %v1781, %v1780
      %v1785 = vpack.c.b16 %v1783, %v1782
      %v1789 = vsel %vm442, %v1655, 0
      %v1792 = vsel %vm442, %v1663, 0
      %v1795 = vsel %vm442, %v1671, 0
      %v1798 = vsel %vm442, %v1679, 0
      %v1801 = vsel %vm442, %v1687, 0
      %v1804 = vsel %vm442, %v1695, 0
      %v1807 = vsel %vm442, %v1703, 0
      %v1810 = vsel %vm442, %v1711, 0
      %v1813 = vsel %vm442, %v1719, 0
      %v1816 = vsel %vm442, %v1727, 0
      %v1819 = vsel %vm442, %v1735, 0
      %v1822 = vsel %vm442, %v1743, 0
      %v1825 = vsel %vm442, %v1751, 0
      %v1828 = vsel %vm442, %v1759, 0
      %v1831 = vsel %vm442, %v1767, 0
      %v1834 = vsel %vm442, %v1775, 0
      %1836 = vmatprep.subr.bf16.mxu0 0
      %1837 = vmatpush1.bf16.msra.mxu0 %v1784
      %1838 = vmatprep.subr.bf16.mxu0 0
      %1839 = vmatpush1.bf16.msra.mxu0 %v1785
      %1840 = vmatprep.subr.bf16.mxu0 0
      %1841 = vmatpush1.bf16.msra.mxu0 0
      %1842 = vmatprep.subr.bf16.mxu0 0
      %1843 = vmatpush1.bf16.msra.mxu0 0
      %1844 = vmatprep.subr.bf16.mxu0 0
      %1845 = vmatpush1.bf16.msra.mxu0 0
      %1846 = vmatprep.subr.bf16.mxu0 0
      %1847 = vmatpush1.bf16.msra.mxu0 0
      %1848 = vmatprep.subr.bf16.mxu0 0
      %1849 = vmatpush1.bf16.msra.mxu0 0
      %1850 = vmatprep.subr.bf16.mxu0 0
      %1851 = vmatpush1.bf16.msra.mxu0 0
      %1852 = vmatprep.subr.bf16.mxu0 0
      %1853 = vmatpush1.bf16.msra.mxu0 0
      %1854 = vmatprep.subr.bf16.mxu0 0
      %1855 = vmatpush1.bf16.msra.mxu0 0
      %1856 = vmatprep.subr.bf16.mxu0 0
      %1857 = vmatpush1.bf16.msra.mxu0 0
      %1858 = vmatprep.subr.bf16.mxu0 0
      %1859 = vmatpush1.bf16.msra.mxu0 0
      %1860 = vmatprep.subr.bf16.mxu0 0
      %1861 = vmatpush1.bf16.msra.mxu0 0
      %1862 = vmatprep.subr.bf16.mxu0 0
      %1863 = vmatpush1.bf16.msra.mxu0 0
      %1864 = vmatprep.subr.bf16.mxu0 0
      %1865 = vmatpush1.bf16.msra.mxu0 0
      %1866 = vmatprep.subr.bf16.mxu0 0
      %1867 = vmatpush1.bf16.msra.mxu0 0
      %1868 = vmatprep.mubr.bf16.mxu0 0
      %1869 = vmatmul.mubr.bf16.gmra.mrb[0].mxu0 %v1789
      %v1870 = vpop.f32.mrb[0].mxu0
      %v1871 = vadd.f32 0.0, %v1870
      %v1872 = vpop.f32.mrb[0].mxu0
      %v1873 = vpop.f32.mrb[0].mxu0
      %v1874 = vadd.f32 0.0, %v1873
      %v1875 = vpop.f32.mrb[0].mxu0
      %1876 = vmatprep.mubr.bf16.mxu0 0
      %1877 = vmatmul.mubr.bf16.gmra.mrb[0].mxu0 %v1792
      %v1878 = vpop.f32.mrb[0].mxu0
      %v1879 = vadd.f32 0.0, %v1878
      %v1880 = vpop.f32.mrb[0].mxu0
      %v1881 = vpop.f32.mrb[0].mxu0
      %v1882 = vadd.f32 0.0, %v1881
      %v1883 = vpop.f32.mrb[0].mxu0
      %1884 = vmatprep.mubr.bf16.mxu0 0
      %1885 = vmatmul.mubr.bf16.gmra.mrb[0].mxu0 %v1795
      %v1886 = vpop.f32.mrb[0].mxu0
      %v1887 = vadd.f32 0.0, %v1886
      %v1888 = vpop.f32.mrb[0].mxu0
      %v1889 = vpop.f32.mrb[0].mxu0
      %v1890 = vadd.f32 0.0, %v1889
      %v1891 = vpop.f32.mrb[0].mxu0
      %1892 = vmatprep.mubr.bf16.mxu0 0
      %1893 = vmatmul.mubr.bf16.gmra.mrb[0].mxu0 %v1798
      %v1894 = vpop.f32.mrb[0].mxu0
      %v1895 = vadd.f32 0.0, %v1894
      %v1896 = vpop.f32.mrb[0].mxu0
      %v1897 = vpop.f32.mrb[0].mxu0
      %v1898 = vadd.f32 0.0, %v1897
      %v1899 = vpop.f32.mrb[0].mxu0
      %1900 = vmatprep.mubr.bf16.mxu0 0
      %1901 = vmatmul.mubr.bf16.gmra.mrb[0].mxu0 %v1801
      %v1902 = vpop.f32.mrb[0].mxu0
      %v1903 = vadd.f32 0.0, %v1902
      %v1904 = vpop.f32.mrb[0].mxu0
      %v1905 = vpop.f32.mrb[0].mxu0
      %v1906 = vadd.f32 0.0, %v1905
      %v1907 = vpop.f32.mrb[0].mxu0
      %1908 = vmatprep.mubr.bf16.mxu0 0
      %1909 = vmatmul.mubr.bf16.gmra.mrb[0].mxu0 %v1804
      %v1910 = vpop.f32.mrb[0].mxu0
      %v1911 = vadd.f32 0.0, %v1910
      %v1912 = vpop.f32.mrb[0].mxu0
      %v1913 = vpop.f32.mrb[0].mxu0
      %v1914 = vadd.f32 0.0, %v1913
      %v1915 = vpop.f32.mrb[0].mxu0
      %1916 = vmatprep.mubr.bf16.mxu0 0
      %1917 = vmatmul.mubr.bf16.gmra.mrb[0].mxu0 %v1807
      %v1918 = vpop.f32.mrb[0].mxu0
      %v1919 = vadd.f32 0.0, %v1918
      %v1920 = vpop.f32.mrb[0].mxu0
      %v1921 = vpop.f32.mrb[0].mxu0
      %v1922 = vadd.f32 0.0, %v1921
      %v1923 = vpop.f32.mrb[0].mxu0
      %1924 = vmatprep.mubr.bf16.mxu0 0
      %1925 = vmatmul.mubr.bf16.gmra.mrb[0].mxu0 %v1810
      %v1926 = vpop.f32.mrb[0].mxu0
      %v1927 = vadd.f32 0.0, %v1926
      %v1928 = vpop.f32.mrb[0].mxu0
      %v1929 = vpop.f32.mrb[0].mxu0
      %v1930 = vadd.f32 0.0, %v1929
      %v1931 = vpop.f32.mrb[0].mxu0
      %1932 = vmatprep.mubr.bf16.mxu0 0
      %1933 = vmatmul.mubr.bf16.gmra.mrb[0].mxu0 %v1813
      %v1934 = vpop.f32.mrb[0].mxu0
      %v1935 = vadd.f32 0.0, %v1934
      %v1936 = vpop.f32.mrb[0].mxu0
      %v1937 = vpop.f32.mrb[0].mxu0
      %v1938 = vadd.f32 0.0, %v1937
      %v1939 = vpop.f32.mrb[0].mxu0
      %1940 = vmatprep.mubr.bf16.mxu0 0
      %1941 = vmatmul.mubr.bf16.gmra.mrb[0].mxu0 %v1816
      %v1942 = vpop.f32.mrb[0].mxu0
      %v1943 = vadd.f32 0.0, %v1942
      %v1944 = vpop.f32.mrb[0].mxu0
      %v1945 = vpop.f32.mrb[0].mxu0
      %v1946 = vadd.f32 0.0, %v1945
      %v1947 = vpop.f32.mrb[0].mxu0
      %1948 = vmatprep.mubr.bf16.mxu0 0
      %1949 = vmatmul.mubr.bf16.gmra.mrb[0].mxu0 %v1819
      %v1950 = vpop.f32.mrb[0].mxu0
      %v1951 = vadd.f32 0.0, %v1950
      %v1952 = vpop.f32.mrb[0].mxu0
      %v1953 = vpop.f32.mrb[0].mxu0
      %v1954 = vadd.f32 0.0, %v1953
      %v1955 = vpop.f32.mrb[0].mxu0
      %1956 = vmatprep.mubr.bf16.mxu0 0
      %1957 = vmatmul.mubr.bf16.gmra.mrb[0].mxu0 %v1822
      %v1958 = vpop.f32.mrb[0].mxu0
      %v1959 = vadd.f32 0.0, %v1958
      %v1960 = vpop.f32.mrb[0].mxu0
      %v1961 = vpop.f32.mrb[0].mxu0
      %v1962 = vadd.f32 0.0, %v1961
      %v1963 = vpop.f32.mrb[0].mxu0
      %1964 = vmatprep.mubr.bf16.mxu0 0
      %1965 = vmatmul.mubr.bf16.gmra.mrb[0].mxu0 %v1825
      %v1966 = vpop.f32.mrb[0].mxu0
      %v1967 = vadd.f32 0.0, %v1966
      %v1968 = vpop.f32.mrb[0].mxu0
      %v1969 = vpop.f32.mrb[0].mxu0
      %v1970 = vadd.f32 0.0, %v1969
      %v1971 = vpop.f32.mrb[0].mxu0
      %1972 = vmatprep.mubr.bf16.mxu0 0
      %1973 = vmatmul.mubr.bf16.gmra.mrb[0].mxu0 %v1828
      %v1974 = vpop.f32.mrb[0].mxu0
      %v1975 = vadd.f32 0.0, %v1974
      %v1976 = vpop.f32.mrb[0].mxu0
      %v1977 = vpop.f32.mrb[0].mxu0
      %v1978 = vadd.f32 0.0, %v1977
      %v1979 = vpop.f32.mrb[0].mxu0
      %1980 = vmatprep.mubr.bf16.mxu0 0
      %1981 = vmatmul.mubr.bf16.gmra.mrb[0].mxu0 %v1831
      %v1982 = vpop.f32.mrb[0].mxu0
      %v1983 = vadd.f32 0.0, %v1982
      %v1984 = vpop.f32.mrb[0].mxu0
      %v1985 = vpop.f32.mrb[0].mxu0
      %v1986 = vadd.f32 0.0, %v1985
      %v1987 = vpop.f32.mrb[0].mxu0
      %1988 = vmatprep.mubr.bf16.mxu0 0
      %1989 = vmatmul.mubr.bf16.gmra.mrb[0].mxu0 %v1834
      %v1990 = vpop.f32.mrb[0].mxu0
      %v1991 = vadd.f32 0.0, %v1990
      %v1992 = vpop.f32.mrb[0].mxu0
      %v1993 = vpop.f32.mrb[0].mxu0
      %v1994 = vadd.f32 0.0, %v1993
      %v1995 = vpop.f32.mrb[0].mxu0
      %1996 = vdwg.mxu0
      %v1997 = vadd.f32 %v1491, %v1871
      %v1998 = vadd.f32 %v1492, %v1874
      %v1999 = vadd.f32 %v1493, %v1879
      %v2000 = vadd.f32 %v1494, %v1882
      %v2001 = vadd.f32 %v1495, %v1887
      %v2002 = vadd.f32 %v1496, %v1890
      %v2003 = vadd.f32 %v1497, %v1895
      %v2004 = vadd.f32 %v1498, %v1898
      %v2005 = vadd.f32 %v1499, %v1903
      %v2006 = vadd.f32 %v1500, %v1906
      %v2007 = vadd.f32 %v1501, %v1911
      %v2008 = vadd.f32 %v1502, %v1914
      %v2009 = vadd.f32 %v1503, %v1919
      %v2010 = vadd.f32 %v1504, %v1922
      %v2011 = vadd.f32 %v1505, %v1927
      %v2012 = vadd.f32 %v1506, %v1930
      %v2013 = vadd.f32 %v1507, %v1935
      %v2014 = vadd.f32 %v1508, %v1938
      %v2015 = vadd.f32 %v1509, %v1943
      %v2016 = vadd.f32 %v1510, %v1946
      %v2017 = vadd.f32 %v1511, %v1951
      %v2018 = vadd.f32 %v1512, %v1954
      %v2019 = vadd.f32 %v1513, %v1959
      %v2020 = vadd.f32 %v1514, %v1962
      %v2021 = vadd.f32 %v1515, %v1967
      %v2022 = vadd.f32 %v1516, %v1970
      %v2023 = vadd.f32 %v1517, %v1975
      %v2024 = vadd.f32 %v1518, %v1978
      %v2025 = vadd.f32 %v1519, %v1983
      %v2026 = vadd.f32 %v1520, %v1986
      %v2027 = vadd.f32 %v1521, %v1991
      %v2028 = vadd.f32 %v1522, %v1994
      %v2029 = vld [vmem:[%s165 + $0x8] sm:$0xe]
      %s2030 = scalar_lea.vmem %s1, 80
      %v2031 = vld [vmem:[%s2030] sm:$0xf]
      %v2032 = vld [vmem:[%s2030 + $0x4] sm:$0xf]
      %v2033 = vld [vmem:[%s2030 + $0x8] sm:$0xf]
      %v2034 = vld [vmem:[%s2030 + $0xc] sm:$0xf]
      %v2036 = vunpack.c.l.b16 %v2029
      %v2037 = vpack.c.b16 %v1595, %v2036
      %v2038 = vrot.slane %v2037, 1
      %v2039 = vrot.slane %v1628, 1
      %v2040 = vsel %vm866, %v2038, %v2039
      %v2041 = vrot.slane %v1629, 1
      %v2042 = vsel %vm866, %v2039, %v2041
      %v2043 = vrot.slane %v1630, 1
      %v2044 = vsel %vm866, %v2041, %v2043
      %v2045 = vrot.slane %v1631, 1
      %v2046 = vsel %vm866, %v2043, %v2045
      %v2047 = vrot.slane %v1632, 1
      %v2048 = vsel %vm866, %v2045, %v2047
      %v2049 = vrot.slane %v1633, 1
      %v2050 = vsel %vm866, %v2047, %v2049
      %v2051 = vrot.slane %v1634, 1
      %v2052 = vsel %vm866, %v2049, %v2051
      %v2053 = vrot.slane %v1635, 1
      %v2054 = vsel %vm866, %v2051, %v2053
      %v2055 = vrot.slane %v1636, 1
      %v2056 = vsel %vm866, %v2053, %v2055
      %v2057 = vrot.slane %v1637, 1
      %v2058 = vsel %vm866, %v2055, %v2057
      %v2059 = vrot.slane %v1638, 1
      %v2060 = vsel %vm866, %v2057, %v2059
      %v2061 = vrot.slane %v1639, 1
      %v2062 = vsel %vm866, %v2059, %v2061
      %v2063 = vrot.slane %v1640, 1
      %v2064 = vsel %vm866, %v2061, %v2063
      %v2065 = vrot.slane %v1641, 1
      %v2066 = vsel %vm866, %v2063, %v2065
      %v2067 = vrot.slane %v1642, 1
      %v2068 = vsel %vm866, %v2065, %v2067
      %v2069 = vrot.slane %v1643, 1
      %v2070 = vsel %vm866, %v2067, %v2069
      %v2075 = vunpack.c.l.b16 %v2031
      %v2076 = vunpack.c.l.b16 %v2032
      %v2077 = vunpack.c.l.b16 %v2033
      %v2078 = vunpack.c.l.b16 %v2034
      %v2079 = vpack.c.b16 %v2076, %v2075
      %v2080 = vpack.c.b16 %v2078, %v2077
      %v2084 = vsel %vm442, %v2040, 0
      %v2087 = vsel %vm442, %v2042, 0
      %v2090 = vsel %vm442, %v2044, 0
      %v2093 = vsel %vm442, %v2046, 0
      %v2096 = vsel %vm442, %v2048, 0
      %v2099 = vsel %vm442, %v2050, 0
      %v2102 = vsel %vm442, %v2052, 0
      %v2105 = vsel %vm442, %v2054, 0
      %v2108 = vsel %vm442, %v2056, 0
      %v2111 = vsel %vm442, %v2058, 0
      %v2114 = vsel %vm442, %v2060, 0
      %v2117 = vsel %vm442, %v2062, 0
      %v2120 = vsel %vm442, %v2064, 0
      %v2123 = vsel %vm442, %v2066, 0
      %v2126 = vsel %vm442, %v2068, 0
      %v2129 = vsel %vm442, %v2070, 0
      %2131 = vmatprep.subr.bf16.mxu0 0
      %2132 = vmatpush1.bf16.msra.mxu0 %v2079
      %2133 = vmatprep.subr.bf16.mxu0 0
      %2134 = vmatpush1.bf16.msra.mxu0 %v2080
      %2135 = vmatprep.subr.bf16.mxu0 0
      %2136 = vmatpush1.bf16.msra.mxu0 0
      %2137 = vmatprep.subr.bf16.mxu0 0
      %2138 = vmatpush1.bf16.msra.mxu0 0
      %2139 = vmatprep.subr.bf16.mxu0 0
      %2140 = vmatpush1.bf16.msra.mxu0 0
      %2141 = vmatprep.subr.bf16.mxu0 0
      %2142 = vmatpush1.bf16.msra.mxu0 0
      %2143 = vmatprep.subr.bf16.mxu0 0
      %2144 = vmatpush1.bf16.msra.mxu0 0
      %2145 = vmatprep.subr.bf16.mxu0 0
      %2146 = vmatpush1.bf16.msra.mxu0 0
      %2147 = vmatprep.subr.bf16.mxu0 0
      %2148 = vmatpush1.bf16.msra.mxu0 0
      %2149 = vmatprep.subr.bf16.mxu0 0
      %2150 = vmatpush1.bf16.msra.mxu0 0
      %2151 = vmatprep.subr.bf16.mxu0 0
      %2152 = vmatpush1.bf16.msra.mxu0 0
      %2153 = vmatprep.subr.bf16.mxu0 0
      %2154 = vmatpush1.bf16.msra.mxu0 0
      %2155 = vmatprep.subr.bf16.mxu0 0
      %2156 = vmatpush1.bf16.msra.mxu0 0
      %2157 = vmatprep.subr.bf16.mxu0 0
      %2158 = vmatpush1.bf16.msra.mxu0 0
      %2159 = vmatprep.subr.bf16.mxu0 0
      %2160 = vmatpush1.bf16.msra.mxu0 0
      %2161 = vmatprep.subr.bf16.mxu0 0
      %2162 = vmatpush1.bf16.msra.mxu0 0
      %2163 = vmatprep.mubr.bf16.mxu0 0
      %2164 = vmatmul.mubr.bf16.gmra.mrb[0].mxu0 %v2084
      %v2165 = vpop.f32.mrb[0].mxu0
      %v2166 = vadd.f32 0.0, %v2165
      %v2167 = vpop.f32.mrb[0].mxu0
      %v2168 = vpop.f32.mrb[0].mxu0
      %v2169 = vadd.f32 0.0, %v2168
      %v2170 = vpop.f32.mrb[0].mxu0
      %2171 = vmatprep.mubr.bf16.mxu0 0
      %2172 = vmatmul.mubr.bf16.gmra.mrb[0].mxu0 %v2087
      %v2173 = vpop.f32.mrb[0].mxu0
      %v2174 = vadd.f32 0.0, %v2173
      %v2175 = vpop.f32.mrb[0].mxu0
      %v2176 = vpop.f32.mrb[0].mxu0
      %v2177 = vadd.f32 0.0, %v2176
      %v2178 = vpop.f32.mrb[0].mxu0
      %2179 = vmatprep.mubr.bf16.mxu0 0
      %2180 = vmatmul.mubr.bf16.gmra.mrb[0].mxu0 %v2090
      %v2181 = vpop.f32.mrb[0].mxu0
      %v2182 = vadd.f32 0.0, %v2181
      %v2183 = vpop.f32.mrb[0].mxu0
      %v2184 = vpop.f32.mrb[0].mxu0
      %v2185 = vadd.f32 0.0, %v2184
      %v2186 = vpop.f32.mrb[0].mxu0
      %2187 = vmatprep.mubr.bf16.mxu0 0
      %2188 = vmatmul.mubr.bf16.gmra.mrb[0].mxu0 %v2093
      %v2189 = vpop.f32.mrb[0].mxu0
      %v2190 = vadd.f32 0.0, %v2189
      %v2191 = vpop.f32.mrb[0].mxu0
      %v2192 = vpop.f32.mrb[0].mxu0
      %v2193 = vadd.f32 0.0, %v2192
      %v2194 = vpop.f32.mrb[0].mxu0
      %2195 = vmatprep.mubr.bf16.mxu0 0
      %2196 = vmatmul.mubr.bf16.gmra.mrb[0].mxu0 %v2096
      %v2197 = vpop.f32.mrb[0].mxu0
      %v2198 = vadd.f32 0.0, %v2197
      %v2199 = vpop.f32.mrb[0].mxu0
      %v2200 = vpop.f32.mrb[0].mxu0
      %v2201 = vadd.f32 0.0, %v2200
      %v2202 = vpop.f32.mrb[0].mxu0
      %2203 = vmatprep.mubr.bf16.mxu0 0
      %2204 = vmatmul.mubr.bf16.gmra.mrb[0].mxu0 %v2099
      %v2205 = vpop.f32.mrb[0].mxu0
      %v2206 = vadd.f32 0.0, %v2205
      %v2207 = vpop.f32.mrb[0].mxu0
      %v2208 = vpop.f32.mrb[0].mxu0
      %v2209 = vadd.f32 0.0, %v2208
      %v2210 = vpop.f32.mrb[0].mxu0
      %2211 = vmatprep.mubr.bf16.mxu0 0
      %2212 = vmatmul.mubr.bf16.gmra.mrb[0].mxu0 %v2102
      %v2213 = vpop.f32.mrb[0].mxu0
      %v2214 = vadd.f32 0.0, %v2213
      %v2215 = vpop.f32.mrb[0].mxu0
      %v2216 = vpop.f32.mrb[0].mxu0
      %v2217 = vadd.f32 0.0, %v2216
      %v2218 = vpop.f32.mrb[0].mxu0
      %2219 = vmatprep.mubr.bf16.mxu0 0
      %2220 = vmatmul.mubr.bf16.gmra.mrb[0].mxu0 %v2105
      %v2221 = vpop.f32.mrb[0].mxu0
      %v2222 = vadd.f32 0.0, %v2221
      %v2223 = vpop.f32.mrb[0].mxu0
      %v2224 = vpop.f32.mrb[0].mxu0
      %v2225 = vadd.f32 0.0, %v2224
      %v2226 = vpop.f32.mrb[0].mxu0
      %2227 = vmatprep.mubr.bf16.mxu0 0
      %2228 = vmatmul.mubr.bf16.gmra.mrb[0].mxu0 %v2108
      %v2229 = vpop.f32.mrb[0].mxu0
      %v2230 = vadd.f32 0.0, %v2229
      %v2231 = vpop.f32.mrb[0].mxu0
      %v2232 = vpop.f32.mrb[0].mxu0
      %v2233 = vadd.f32 0.0, %v2232
      %v2234 = vpop.f32.mrb[0].mxu0
      %2235 = vmatprep.mubr.bf16.mxu0 0
      %2236 = vmatmul.mubr.bf16.gmra.mrb[0].mxu0 %v2111
      %v2237 = vpop.f32.mrb[0].mxu0
      %v2238 = vadd.f32 0.0, %v2237
      %v2239 = vpop.f32.mrb[0].mxu0
      %v2240 = vpop.f32.mrb[0].mxu0
      %v2241 = vadd.f32 0.0, %v2240
      %v2242 = vpop.f32.mrb[0].mxu0
      %2243 = vmatprep.mubr.bf16.mxu0 0
      %2244 = vmatmul.mubr.bf16.gmra.mrb[0].mxu0 %v2114
      %v2245 = vpop.f32.mrb[0].mxu0
      %v2246 = vadd.f32 0.0, %v2245
      %v2247 = vpop.f32.mrb[0].mxu0
      %v2248 = vpop.f32.mrb[0].mxu0
      %v2249 = vadd.f32 0.0, %v2248
      %v2250 = vpop.f32.mrb[0].mxu0
      %2251 = vmatprep.mubr.bf16.mxu0 0
      %2252 = vmatmul.mubr.bf16.gmra.mrb[0].mxu0 %v2117
      %v2253 = vpop.f32.mrb[0].mxu0
      %v2254 = vadd.f32 0.0, %v2253
      %v2255 = vpop.f32.mrb[0].mxu0
      %v2256 = vpop.f32.mrb[0].mxu0
      %v2257 = vadd.f32 0.0, %v2256
      %v2258 = vpop.f32.mrb[0].mxu0
      %2259 = vmatprep.mubr.bf16.mxu0 0
      %2260 = vmatmul.mubr.bf16.gmra.mrb[0].mxu0 %v2120
      %v2261 = vpop.f32.mrb[0].mxu0
      %v2262 = vadd.f32 0.0, %v2261
      %v2263 = vpop.f32.mrb[0].mxu0
      %v2264 = vpop.f32.mrb[0].mxu0
      %v2265 = vadd.f32 0.0, %v2264
      %v2266 = vpop.f32.mrb[0].mxu0
      %2267 = vmatprep.mubr.bf16.mxu0 0
      %2268 = vmatmul.mubr.bf16.gmra.mrb[0].mxu0 %v2123
      %v2269 = vpop.f32.mrb[0].mxu0
      %v2270 = vadd.f32 0.0, %v2269
      %v2271 = vpop.f32.mrb[0].mxu0
      %v2272 = vpop.f32.mrb[0].mxu0
      %v2273 = vadd.f32 0.0, %v2272
      %v2274 = vpop.f32.mrb[0].mxu0
      %2275 = vmatprep.mubr.bf16.mxu0 0
      %2276 = vmatmul.mubr.bf16.gmra.mrb[0].mxu0 %v2126
      %v2277 = vpop.f32.mrb[0].mxu0
      %v2278 = vadd.f32 0.0, %v2277
      %v2279 = vpop.f32.mrb[0].mxu0
      %v2280 = vpop.f32.mrb[0].mxu0
      %v2281 = vadd.f32 0.0, %v2280
      %v2282 = vpop.f32.mrb[0].mxu0
      %2283 = vmatprep.mubr.bf16.mxu0 0
      %2284 = vmatmul.mubr.bf16.gmra.mrb[0].mxu0 %v2129
      %v2285 = vpop.f32.mrb[0].mxu0
      %v2286 = vadd.f32 0.0, %v2285
      %v2287 = vpop.f32.mrb[0].mxu0
      %v2288 = vpop.f32.mrb[0].mxu0
      %v2289 = vadd.f32 0.0, %v2288
      %v2290 = vpop.f32.mrb[0].mxu0
      %2291 = vdwg.mxu0
      %v2292 = vadd.f32 %v1997, %v2166
      %v2293 = vadd.f32 %v1998, %v2169
      %v2294 = vadd.f32 %v1999, %v2174
      %v2295 = vadd.f32 %v2000, %v2177
      %v2296 = vadd.f32 %v2001, %v2182
      %v2297 = vadd.f32 %v2002, %v2185
      %v2298 = vadd.f32 %v2003, %v2190
      %v2299 = vadd.f32 %v2004, %v2193
      %v2300 = vadd.f32 %v2005, %v2198
      %v2301 = vadd.f32 %v2006, %v2201
      %v2302 = vadd.f32 %v2007, %v2206
      %v2303 = vadd.f32 %v2008, %v2209
      %v2304 = vadd.f32 %v2009, %v2214
      %v2305 = vadd.f32 %v2010, %v2217
      %v2306 = vadd.f32 %v2011, %v2222
      %v2307 = vadd.f32 %v2012, %v2225
      %v2308 = vadd.f32 %v2013, %v2230
      %v2309 = vadd.f32 %v2014, %v2233
      %v2310 = vadd.f32 %v2015, %v2238
      %v2311 = vadd.f32 %v2016, %v2241
      %v2312 = vadd.f32 %v2017, %v2246
      %v2313 = vadd.f32 %v2018, %v2249
      %v2314 = vadd.f32 %v2019, %v2254
      %v2315 = vadd.f32 %v2020, %v2257
      %v2316 = vadd.f32 %v2021, %v2262
      %v2317 = vadd.f32 %v2022, %v2265
      %v2318 = vadd.f32 %v2023, %v2270
      %v2319 = vadd.f32 %v2024, %v2273
      %v2320 = vadd.f32 %v2025, %v2278
      %v2321 = vadd.f32 %v2026, %v2281
      %v2322 = vadd.f32 %v2027, %v2286
      %v2323 = vadd.f32 %v2028, %v2289
      %v2324 = vld [vmem:[%s165 + $0x10] sm:$0xf]
      %v2325 = vld [vmem:[%s165 + $0x14] sm:$0xf]
      %v2326 = vld [vmem:[%s165 + $0x18] sm:$0xf]
      %v2327 = vld [vmem:[%s165 + $0x1c] sm:$0xf]
      %v2328 = vld [vmem:[%s165 + $0x20] sm:$0xf]
      %v2329 = vld [vmem:[%s165 + $0x24] sm:$0xf]
      %v2330 = vld [vmem:[%s165 + $0x28] sm:$0xf]
      %v2331 = vld [vmem:[%s165 + $0x2c] sm:$0xf]
      %v2332 = vld [vmem:[%s165 + $0x30] sm:$0xf]
      %v2333 = vld [vmem:[%s165 + $0x34] sm:$0xf]
      %v2334 = vld [vmem:[%s165 + $0x38] sm:$0xf]
      %v2335 = vld [vmem:[%s165 + $0x3c] sm:$0xf]
      %v2336 = vld [vmem:[%s165 + $0x40] sm:$0xf]
      %v2337 = vld [vmem:[%s165 + $0x44] sm:$0xf]
      %v2338 = vld [vmem:[%s165 + $0x48] sm:$0xf]
      %v2339 = vld [vmem:[%s165 + $0x4c] sm:$0xf]
      %v2340 = vld [vmem:[%s165 + $0x50] sm:$0xf]
      %v2341 = vld [vmem:[%s165 + $0x54] sm:$0xf]
      %v2342 = vld [vmem:[%s165 + $0x58] sm:$0xf]
      %v2343 = vld [vmem:[%s165 + $0x5c] sm:$0xf]
      %v2344 = vld [vmem:[%s165 + $0x60] sm:$0xf]
      %v2345 = vld [vmem:[%s165 + $0x64] sm:$0xf]
      %v2346 = vld [vmem:[%s165 + $0x68] sm:$0xf]
      %v2347 = vld [vmem:[%s165 + $0x6c] sm:$0xf]
      %v2348 = vld [vmem:[%s165 + $0x70] sm:$0xf]
      %v2349 = vld [vmem:[%s165 + $0x74] sm:$0xf]
      %v2350 = vld [vmem:[%s165 + $0x78] sm:$0xf]
      %v2351 = vld [vmem:[%s165 + $0x7c] sm:$0xf]
      %v2352 = vld [vmem:[%s165 + $0x80] sm:$0xf]
      %v2353 = vld [vmem:[%s165 + $0x84] sm:$0xf]
      %v2354 = vld [vmem:[%s165 + $0x88] sm:$0xf]
      %v2355 = vld [vmem:[%s165 + $0x8c] sm:$0xf]
      %s2356 = scalar_lea.vmem %s1, 96
      %v2357 = vld [vmem:[%s2356] sm:$0xf]
      %v2358 = vld [vmem:[%s2356 + $0x4] sm:$0xf]
      %v2359 = vld [vmem:[%s2356 + $0x8] sm:$0xf]
      %v2360 = vld [vmem:[%s2356 + $0xc] sm:$0xf]
      %v2393 = vunpack.c.l.b16 %v2324
      %v2394 = vunpack.c.l.b16 %v2325
      %v2395 = vunpack.c.l.b16 %v2326
      %v2396 = vunpack.c.l.b16 %v2327
      %v2397 = vunpack.c.l.b16 %v2328
      %v2398 = vunpack.c.l.b16 %v2329
      %v2399 = vunpack.c.l.b16 %v2330
      %v2400 = vunpack.c.l.b16 %v2331
      %v2401 = vunpack.c.l.b16 %v2332
      %v2402 = vunpack.c.l.b16 %v2333
      %v2403 = vunpack.c.l.b16 %v2334
      %v2404 = vunpack.c.l.b16 %v2335
      %v2405 = vunpack.c.l.b16 %v2336
      %v2406 = vunpack.c.l.b16 %v2337
      %v2407 = vunpack.c.l.b16 %v2338
      %v2408 = vunpack.c.l.b16 %v2339
      %v2409 = vunpack.c.l.b16 %v2340
      %v2410 = vunpack.c.l.b16 %v2341
      %v2411 = vunpack.c.l.b16 %v2342
      %v2412 = vunpack.c.l.b16 %v2343
      %v2413 = vunpack.c.l.b16 %v2344
      %v2414 = vunpack.c.l.b16 %v2345
      %v2415 = vunpack.c.l.b16 %v2346
      %v2416 = vunpack.c.l.b16 %v2347
      %v2417 = vunpack.c.l.b16 %v2348
      %v2418 = vunpack.c.l.b16 %v2349
      %v2419 = vunpack.c.l.b16 %v2350
      %v2420 = vunpack.c.l.b16 %v2351
      %v2421 = vunpack.c.l.b16 %v2352
      %v2422 = vunpack.c.l.b16 %v2353
      %v2423 = vunpack.c.l.b16 %v2354
      %v2424 = vunpack.c.l.b16 %v2355
      %v2425 = vpack.c.b16 %v2394, %v2393
      %v2426 = vpack.c.b16 %v2396, %v2395
      %v2427 = vpack.c.b16 %v2398, %v2397
      %v2428 = vpack.c.b16 %v2400, %v2399
      %v2429 = vpack.c.b16 %v2402, %v2401
      %v2430 = vpack.c.b16 %v2404, %v2403
      %v2431 = vpack.c.b16 %v2406, %v2405
      %v2432 = vpack.c.b16 %v2408, %v2407
      %v2433 = vpack.c.b16 %v2410, %v2409
      %v2434 = vpack.c.b16 %v2412, %v2411
      %v2435 = vpack.c.b16 %v2414, %v2413
      %v2436 = vpack.c.b16 %v2416, %v2415
      %v2437 = vpack.c.b16 %v2418, %v2417
      %v2438 = vpack.c.b16 %v2420, %v2419
      %v2439 = vpack.c.b16 %v2422, %v2421
      %v2440 = vpack.c.b16 %v2424, %v2423
      %v2445 = vunpack.c.l.b16 %v2357
      %v2446 = vunpack.c.l.b16 %v2358
      %v2447 = vunpack.c.l.b16 %v2359
      %v2448 = vunpack.c.l.b16 %v2360
      %v2449 = vpack.c.b16 %v2446, %v2445
      %v2450 = vpack.c.b16 %v2448, %v2447
      %v2454 = vsel %vm442, %v2425, 0
      %v2457 = vsel %vm442, %v2426, 0
      %v2460 = vsel %vm442, %v2427, 0
      %v2463 = vsel %vm442, %v2428, 0
      %v2466 = vsel %vm442, %v2429, 0
      %v2469 = vsel %vm442, %v2430, 0
      %v2472 = vsel %vm442, %v2431, 0
      %v2475 = vsel %vm442, %v2432, 0
      %v2478 = vsel %vm442, %v2433, 0
      %v2481 = vsel %vm442, %v2434, 0
      %v2484 = vsel %vm442, %v2435, 0
      %v2487 = vsel %vm442, %v2436, 0
      %v2490 = vsel %vm442, %v2437, 0
      %v2493 = vsel %vm442, %v2438, 0
      %v2496 = vsel %vm442, %v2439, 0
      %v2499 = vsel %vm442, %v2440, 0
      %2501 = vmatprep.subr.bf16.mxu0 0
      %2502 = vmatpush1.bf16.msra.mxu0 %v2449
      %2503 = vmatprep.subr.bf16.mxu0 0
      %2504 = vmatpush1.bf16.msra.mxu0 %v2450
      %2505 = vmatprep.subr.bf16.mxu0 0
      %2506 = vmatpush1.bf16.msra.mxu0 0
      %2507 = vmatprep.subr.bf16.mxu0 0
      %2508 = vmatpush1.bf16.msra.mxu0 0
      %2509 = vmatprep.subr.bf16.mxu0 0
      %2510 = vmatpush1.bf16.msra.mxu0 0
      %2511 = vmatprep.subr.bf16.mxu0 0
      %2512 = vmatpush1.bf16.msra.mxu0 0
      %2513 = vmatprep.subr.bf16.mxu0 0
      %2514 = vmatpush1.bf16.msra.mxu0 0
      %2515 = vmatprep.subr.bf16.mxu0 0
      %2516 = vmatpush1.bf16.msra.mxu0 0
      %2517 = vmatprep.subr.bf16.mxu0 0
      %2518 = vmatpush1.bf16.msra.mxu0 0
      %2519 = vmatprep.subr.bf16.mxu0 0
      %2520 = vmatpush1.bf16.msra.mxu0 0
      %2521 = vmatprep.subr.bf16.mxu0 0
      %2522 = vmatpush1.bf16.msra.mxu0 0
      %2523 = vmatprep.subr.bf16.mxu0 0
      %2524 = vmatpush1.bf16.msra.mxu0 0
      %2525 = vmatprep.subr.bf16.mxu0 0
      %2526 = vmatpush1.bf16.msra.mxu0 0
      %2527 = vmatprep.subr.bf16.mxu0 0
      %2528 = vmatpush1.bf16.msra.mxu0 0
      %2529 = vmatprep.subr.bf16.mxu0 0
      %2530 = vmatpush1.bf16.msra.mxu0 0
      %2531 = vmatprep.subr.bf16.mxu0 0
      %2532 = vmatpush1.bf16.msra.mxu0 0
      %2533 = vmatprep.mubr.bf16.mxu0 0
      %2534 = vmatmul.mubr.bf16.gmra.mrb[0].mxu0 %v2454
      %v2535 = vpop.f32.mrb[0].mxu0
      %v2536 = vadd.f32 0.0, %v2535
      %v2537 = vpop.f32.mrb[0].mxu0
      %v2538 = vpop.f32.mrb[0].mxu0
      %v2539 = vadd.f32 0.0, %v2538
      %v2540 = vpop.f32.mrb[0].mxu0
      %2541 = vmatprep.mubr.bf16.mxu0 0
      %2542 = vmatmul.mubr.bf16.gmra.mrb[0].mxu0 %v2457
      %v2543 = vpop.f32.mrb[0].mxu0
      %v2544 = vadd.f32 0.0, %v2543
      %v2545 = vpop.f32.mrb[0].mxu0
      %v2546 = vpop.f32.mrb[0].mxu0
      %v2547 = vadd.f32 0.0, %v2546
      %v2548 = vpop.f32.mrb[0].mxu0
      %2549 = vmatprep.mubr.bf16.mxu0 0
      %2550 = vmatmul.mubr.bf16.gmra.mrb[0].mxu0 %v2460
      %v2551 = vpop.f32.mrb[0].mxu0
      %v2552 = vadd.f32 0.0, %v2551
      %v2553 = vpop.f32.mrb[0].mxu0
      %v2554 = vpop.f32.mrb[0].mxu0
      %v2555 = vadd.f32 0.0, %v2554
      %v2556 = vpop.f32.mrb[0].mxu0
      %2557 = vmatprep.mubr.bf16.mxu0 0
      %2558 = vmatmul.mubr.bf16.gmra.mrb[0].mxu0 %v2463
      %v2559 = vpop.f32.mrb[0].mxu0
      %v2560 = vadd.f32 0.0, %v2559
      %v2561 = vpop.f32.mrb[0].mxu0
      %v2562 = vpop.f32.mrb[0].mxu0
      %v2563 = vadd.f32 0.0, %v2562
      %v2564 = vpop.f32.mrb[0].mxu0
      %2565 = vmatprep.mubr.bf16.mxu0 0
      %2566 = vmatmul.mubr.bf16.gmra.mrb[0].mxu0 %v2466
      %v2567 = vpop.f32.mrb[0].mxu0
      %v2568 = vadd.f32 0.0, %v2567
      %v2569 = vpop.f32.mrb[0].mxu0
      %v2570 = vpop.f32.mrb[0].mxu0
      %v2571 = vadd.f32 0.0, %v2570
      %v2572 = vpop.f32.mrb[0].mxu0
      %2573 = vmatprep.mubr.bf16.mxu0 0
      %2574 = vmatmul.mubr.bf16.gmra.mrb[0].mxu0 %v2469
      %v2575 = vpop.f32.mrb[0].mxu0
      %v2576 = vadd.f32 0.0, %v2575
      %v2577 = vpop.f32.mrb[0].mxu0
      %v2578 = vpop.f32.mrb[0].mxu0
      %v2579 = vadd.f32 0.0, %v2578
      %v2580 = vpop.f32.mrb[0].mxu0
      %2581 = vmatprep.mubr.bf16.mxu0 0
      %2582 = vmatmul.mubr.bf16.gmra.mrb[0].mxu0 %v2472
      %v2583 = vpop.f32.mrb[0].mxu0
      %v2584 = vadd.f32 0.0, %v2583
      %v2585 = vpop.f32.mrb[0].mxu0
      %v2586 = vpop.f32.mrb[0].mxu0
      %v2587 = vadd.f32 0.0, %v2586
      %v2588 = vpop.f32.mrb[0].mxu0
      %2589 = vmatprep.mubr.bf16.mxu0 0
      %2590 = vmatmul.mubr.bf16.gmra.mrb[0].mxu0 %v2475
      %v2591 = vpop.f32.mrb[0].mxu0
      %v2592 = vadd.f32 0.0, %v2591
      %v2593 = vpop.f32.mrb[0].mxu0
      %v2594 = vpop.f32.mrb[0].mxu0
      %v2595 = vadd.f32 0.0, %v2594
      %v2596 = vpop.f32.mrb[0].mxu0
      %2597 = vmatprep.mubr.bf16.mxu0 0
      %2598 = vmatmul.mubr.bf16.gmra.mrb[0].mxu0 %v2478
      %v2599 = vpop.f32.mrb[0].mxu0
      %v2600 = vadd.f32 0.0, %v2599
      %v2601 = vpop.f32.mrb[0].mxu0
      %v2602 = vpop.f32.mrb[0].mxu0
      %v2603 = vadd.f32 0.0, %v2602
      %v2604 = vpop.f32.mrb[0].mxu0
      %2605 = vmatprep.mubr.bf16.mxu0 0
      %2606 = vmatmul.mubr.bf16.gmra.mrb[0].mxu0 %v2481
      %v2607 = vpop.f32.mrb[0].mxu0
      %v2608 = vadd.f32 0.0, %v2607
      %v2609 = vpop.f32.mrb[0].mxu0
      %v2610 = vpop.f32.mrb[0].mxu0
      %v2611 = vadd.f32 0.0, %v2610
      %v2612 = vpop.f32.mrb[0].mxu0
      %2613 = vmatprep.mubr.bf16.mxu0 0
      %2614 = vmatmul.mubr.bf16.gmra.mrb[0].mxu0 %v2484
      %v2615 = vpop.f32.mrb[0].mxu0
      %v2616 = vadd.f32 0.0, %v2615
      %v2617 = vpop.f32.mrb[0].mxu0
      %v2618 = vpop.f32.mrb[0].mxu0
      %v2619 = vadd.f32 0.0, %v2618
      %v2620 = vpop.f32.mrb[0].mxu0
      %2621 = vmatprep.mubr.bf16.mxu0 0
      %2622 = vmatmul.mubr.bf16.gmra.mrb[0].mxu0 %v2487
      %v2623 = vpop.f32.mrb[0].mxu0
      %v2624 = vadd.f32 0.0, %v2623
      %v2625 = vpop.f32.mrb[0].mxu0
      %v2626 = vpop.f32.mrb[0].mxu0
      %v2627 = vadd.f32 0.0, %v2626
      %v2628 = vpop.f32.mrb[0].mxu0
      %2629 = vmatprep.mubr.bf16.mxu0 0
      %2630 = vmatmul.mubr.bf16.gmra.mrb[0].mxu0 %v2490
      %v2631 = vpop.f32.mrb[0].mxu0
      %v2632 = vadd.f32 0.0, %v2631
      %v2633 = vpop.f32.mrb[0].mxu0
      %v2634 = vpop.f32.mrb[0].mxu0
      %v2635 = vadd.f32 0.0, %v2634
      %v2636 = vpop.f32.mrb[0].mxu0
      %2637 = vmatprep.mubr.bf16.mxu0 0
      %2638 = vmatmul.mubr.bf16.gmra.mrb[0].mxu0 %v2493
      %v2639 = vpop.f32.mrb[0].mxu0
      %v2640 = vadd.f32 0.0, %v2639
      %v2641 = vpop.f32.mrb[0].mxu0
      %v2642 = vpop.f32.mrb[0].mxu0
      %v2643 = vadd.f32 0.0, %v2642
      %v2644 = vpop.f32.mrb[0].mxu0
      %2645 = vmatprep.mubr.bf16.mxu0 0
      %2646 = vmatmul.mubr.bf16.gmra.mrb[0].mxu0 %v2496
      %v2647 = vpop.f32.mrb[0].mxu0
      %v2648 = vadd.f32 0.0, %v2647
      %v2649 = vpop.f32.mrb[0].mxu0
      %v2650 = vpop.f32.mrb[0].mxu0
      %v2651 = vadd.f32 0.0, %v2650
      %v2652 = vpop.f32.mrb[0].mxu0
      %2653 = vmatprep.mubr.bf16.mxu0 0
      %2654 = vmatmul.mubr.bf16.gmra.mrb[0].mxu0 %v2499
      %v2655 = vpop.f32.mrb[0].mxu0
      %v2656 = vadd.f32 0.0, %v2655
      %v2657 = vpop.f32.mrb[0].mxu0
      %v2658 = vpop.f32.mrb[0].mxu0
      %v2659 = vadd.f32 0.0, %v2658
      %v2660 = vpop.f32.mrb[0].mxu0
      %2661 = vdwg.mxu0
      %v2662 = vadd.f32 %v2292, %v2536
      %v2663 = vadd.f32 %v2293, %v2539
      %v2664 = vadd.f32 %v2294, %v2544
      %v2665 = vadd.f32 %v2295, %v2547
      %v2666 = vadd.f32 %v2296, %v2552
      %v2667 = vadd.f32 %v2297, %v2555
      %v2668 = vadd.f32 %v2298, %v2560
      %v2669 = vadd.f32 %v2299, %v2563
      %v2670 = vadd.f32 %v2300, %v2568
      %v2671 = vadd.f32 %v2301, %v2571
      %v2672 = vadd.f32 %v2302, %v2576
      %v2673 = vadd.f32 %v2303, %v2579
      %v2674 = vadd.f32 %v2304, %v2584
      %v2675 = vadd.f32 %v2305, %v2587
      %v2676 = vadd.f32 %v2306, %v2592
      %v2677 = vadd.f32 %v2307, %v2595
      %v2678 = vadd.f32 %v2308, %v2600
      %v2679 = vadd.f32 %v2309, %v2603
      %v2680 = vadd.f32 %v2310, %v2608
      %v2681 = vadd.f32 %v2311, %v2611
      %v2682 = vadd.f32 %v2312, %v2616
      %v2683 = vadd.f32 %v2313, %v2619
      %v2684 = vadd.f32 %v2314, %v2624
      %v2685 = vadd.f32 %v2315, %v2627
      %v2686 = vadd.f32 %v2316, %v2632
      %v2687 = vadd.f32 %v2317, %v2635
      %v2688 = vadd.f32 %v2318, %v2640
      %v2689 = vadd.f32 %v2319, %v2643
      %v2690 = vadd.f32 %v2320, %v2648
      %v2691 = vadd.f32 %v2321, %v2651
      %v2692 = vadd.f32 %v2322, %v2656
      %v2693 = vadd.f32 %v2323, %v2659
      %v2694 = vld [vmem:[%s165 + $0x10] sm:$0xf]
      %v2695 = vld [vmem:[%s165 + $0x14] sm:$0xf]
      %v2696 = vld [vmem:[%s165 + $0x18] sm:$0xf]
      %v2697 = vld [vmem:[%s165 + $0x1c] sm:$0xf]
      %v2698 = vld [vmem:[%s165 + $0x20] sm:$0xf]
      %v2699 = vld [vmem:[%s165 + $0x24] sm:$0xf]
      %v2700 = vld [vmem:[%s165 + $0x28] sm:$0xf]
      %v2701 = vld [vmem:[%s165 + $0x2c] sm:$0xf]
      %v2702 = vld [vmem:[%s165 + $0x30] sm:$0xf]
      %v2703 = vld [vmem:[%s165 + $0x34] sm:$0xf]
      %v2704 = vld [vmem:[%s165 + $0x38] sm:$0xf]
      %v2705 = vld [vmem:[%s165 + $0x3c] sm:$0xf]
      %v2706 = vld [vmem:[%s165 + $0x40] sm:$0xf]
      %v2707 = vld [vmem:[%s165 + $0x44] sm:$0xf]
      %v2708 = vld [vmem:[%s165 + $0x48] sm:$0xf]
      %v2709 = vld [vmem:[%s165 + $0x4c] sm:$0xf]
      %v2710 = vld [vmem:[%s165 + $0x50] sm:$0xf]
      %v2711 = vld [vmem:[%s165 + $0x54] sm:$0xf]
      %v2712 = vld [vmem:[%s165 + $0x58] sm:$0xf]
      %v2713 = vld [vmem:[%s165 + $0x5c] sm:$0xf]
      %v2714 = vld [vmem:[%s165 + $0x60] sm:$0xf]
      %v2715 = vld [vmem:[%s165 + $0x64] sm:$0xf]
      %v2716 = vld [vmem:[%s165 + $0x68] sm:$0xf]
      %v2717 = vld [vmem:[%s165 + $0x6c] sm:$0xf]
      %v2718 = vld [vmem:[%s165 + $0x70] sm:$0xf]
      %v2719 = vld [vmem:[%s165 + $0x74] sm:$0xf]
      %v2720 = vld [vmem:[%s165 + $0x78] sm:$0xf]
      %v2721 = vld [vmem:[%s165 + $0x7c] sm:$0xf]
      %v2722 = vld [vmem:[%s165 + $0x80] sm:$0xf]
      %v2723 = vld [vmem:[%s165 + $0x84] sm:$0xf]
      %v2724 = vld [vmem:[%s165 + $0x88] sm:$0xf]
      %v2725 = vld [vmem:[%s165 + $0x8c] sm:$0xf]
      %v2726 = vld [vmem:[%s165 + $0x90] sm:$0x1]
      %s2727 = scalar_lea.vmem %s1, 112
      %v2728 = vld [vmem:[%s2727] sm:$0xf]
      %v2729 = vld [vmem:[%s2727 + $0x4] sm:$0xf]
      %v2730 = vld [vmem:[%s2727 + $0x8] sm:$0xf]
      %v2731 = vld [vmem:[%s2727 + $0xc] sm:$0xf]
      %v2765 = vunpack.c.l.b16 %v2694
      %v2766 = vunpack.c.l.b16 %v2695
      %v2767 = vunpack.c.l.b16 %v2696
      %v2768 = vunpack.c.l.b16 %v2697
      %v2769 = vunpack.c.l.b16 %v2698
      %v2770 = vunpack.c.l.b16 %v2699
      %v2771 = vunpack.c.l.b16 %v2700
      %v2772 = vunpack.c.l.b16 %v2701
      %v2773 = vunpack.c.l.b16 %v2702
      %v2774 = vunpack.c.l.b16 %v2703
      %v2775 = vunpack.c.l.b16 %v2704
      %v2776 = vunpack.c.l.b16 %v2705
      %v2777 = vunpack.c.l.b16 %v2706
      %v2778 = vunpack.c.l.b16 %v2707
      %v2779 = vunpack.c.l.b16 %v2708
      %v2780 = vunpack.c.l.b16 %v2709
      %v2781 = vunpack.c.l.b16 %v2710
      %v2782 = vunpack.c.l.b16 %v2711
      %v2783 = vunpack.c.l.b16 %v2712
      %v2784 = vunpack.c.l.b16 %v2713
      %v2785 = vunpack.c.l.b16 %v2714
      %v2786 = vunpack.c.l.b16 %v2715
      %v2787 = vunpack.c.l.b16 %v2716
      %v2788 = vunpack.c.l.b16 %v2717
      %v2789 = vunpack.c.l.b16 %v2718
      %v2790 = vunpack.c.l.b16 %v2719
      %v2791 = vunpack.c.l.b16 %v2720
      %v2792 = vunpack.c.l.b16 %v2721
      %v2793 = vunpack.c.l.b16 %v2722
      %v2794 = vunpack.c.l.b16 %v2723
      %v2795 = vunpack.c.l.b16 %v2724
      %v2796 = vunpack.c.l.b16 %v2725
      %v2797 = vunpack.c.l.b16 %v2726
      %v2798 = vpack.c.b16 %v2766, %v2765
      %v2799 = vpack.c.b16 %v2768, %v2767
      %v2800 = vpack.c.b16 %v2770, %v2769
      %v2801 = vpack.c.b16 %v2772, %v2771
      %v2802 = vpack.c.b16 %v2774, %v2773
      %v2803 = vpack.c.b16 %v2776, %v2775
      %v2804 = vpack.c.b16 %v2778, %v2777
      %v2805 = vpack.c.b16 %v2780, %v2779
      %v2806 = vpack.c.b16 %v2782, %v2781
      %v2807 = vpack.c.b16 %v2784, %v2783
      %v2808 = vpack.c.b16 %v2786, %v2785
      %v2809 = vpack.c.b16 %v2788, %v2787
      %v2810 = vpack.c.b16 %v2790, %v2789
      %v2811 = vpack.c.b16 %v2792, %v2791
      %v2812 = vpack.c.b16 %v2794, %v2793
      %v2813 = vpack.c.b16 %v2796, %v2795
      %v2814 = vpack.c.b16 %v2797, %v2797
      %v2816 = vshrl.u32 %v2798, 16
      %v2818 = vshll.u32 %v2798, 16
      %v2820 = vrot.slane %v2818, 1
      %v2821 = vor.u32 %v2816, %v2820
      %v2823 = vshll.u32 %v2799, 16
      %v2825 = vrot.slane %v2823, 1
      %v2826 = vsel %vm297, %v2821, %v2825
      %v2827 = vshrl.u32 %v2799, 16
      %v2829 = vor.u32 %v2827, %v2825
      %v2831 = vshll.u32 %v2800, 16
      %v2833 = vrot.slane %v2831, 1
      %v2834 = vsel %vm297, %v2829, %v2833
      %v2835 = vshrl.u32 %v2800, 16
      %v2837 = vor.u32 %v2835, %v2833
      %v2839 = vshll.u32 %v2801, 16
      %v2841 = vrot.slane %v2839, 1
      %v2842 = vsel %vm297, %v2837, %v2841
      %v2843 = vshrl.u32 %v2801, 16
      %v2845 = vor.u32 %v2843, %v2841
      %v2847 = vshll.u32 %v2802, 16
      %v2849 = vrot.slane %v2847, 1
      %v2850 = vsel %vm297, %v2845, %v2849
      %v2851 = vshrl.u32 %v2802, 16
      %v2853 = vor.u32 %v2851, %v2849
      %v2855 = vshll.u32 %v2803, 16
      %v2857 = vrot.slane %v2855, 1
      %v2858 = vsel %vm297, %v2853, %v2857
      %v2859 = vshrl.u32 %v2803, 16
      %v2861 = vor.u32 %v2859, %v2857
      %v2863 = vshll.u32 %v2804, 16
      %v2865 = vrot.slane %v2863, 1
      %v2866 = vsel %vm297, %v2861, %v2865
      %v2867 = vshrl.u32 %v2804, 16
      %v2869 = vor.u32 %v2867, %v2865
      %v2871 = vshll.u32 %v2805, 16
      %v2873 = vrot.slane %v2871, 1
      %v2874 = vsel %vm297, %v2869, %v2873
      %v2875 = vshrl.u32 %v2805, 16
      %v2877 = vor.u32 %v2875, %v2873
      %v2879 = vshll.u32 %v2806, 16
      %v2881 = vrot.slane %v2879, 1
      %v2882 = vsel %vm297, %v2877, %v2881
      %v2883 = vshrl.u32 %v2806, 16
      %v2885 = vor.u32 %v2883, %v2881
      %v2887 = vshll.u32 %v2807, 16
      %v2889 = vrot.slane %v2887, 1
      %v2890 = vsel %vm297, %v2885, %v2889
      %v2891 = vshrl.u32 %v2807, 16
      %v2893 = vor.u32 %v2891, %v2889
      %v2895 = vshll.u32 %v2808, 16
      %v2897 = vrot.slane %v2895, 1
      %v2898 = vsel %vm297, %v2893, %v2897
      %v2899 = vshrl.u32 %v2808, 16
      %v2901 = vor.u32 %v2899, %v2897
      %v2903 = vshll.u32 %v2809, 16
      %v2905 = vrot.slane %v2903, 1
      %v2906 = vsel %vm297, %v2901, %v2905
      %v2907 = vshrl.u32 %v2809, 16
      %v2909 = vor.u32 %v2907, %v2905
      %v2911 = vshll.u32 %v2810, 16
      %v2913 = vrot.slane %v2911, 1
      %v2914 = vsel %vm297, %v2909, %v2913
      %v2915 = vshrl.u32 %v2810, 16
      %v2917 = vor.u32 %v2915, %v2913
      %v2919 = vshll.u32 %v2811, 16
      %v2921 = vrot.slane %v2919, 1
      %v2922 = vsel %vm297, %v2917, %v2921
      %v2923 = vshrl.u32 %v2811, 16
      %v2925 = vor.u32 %v2923, %v2921
      %v2927 = vshll.u32 %v2812, 16
      %v2929 = vrot.slane %v2927, 1
      %v2930 = vsel %vm297, %v2925, %v2929
      %v2931 = vshrl.u32 %v2812, 16
      %v2933 = vor.u32 %v2931, %v2929
      %v2935 = vshll.u32 %v2813, 16
      %v2937 = vrot.slane %v2935, 1
      %v2938 = vsel %vm297, %v2933, %v2937
      %v2939 = vshrl.u32 %v2813, 16
      %v2941 = vor.u32 %v2939, %v2937
      %v2943 = vshll.u32 %v2814, 16
      %v2945 = vrot.slane %v2943, 1
      %v2946 = vsel %vm297, %v2941, %v2945
      %v2951 = vunpack.c.l.b16 %v2728
      %v2952 = vunpack.c.l.b16 %v2729
      %v2953 = vunpack.c.l.b16 %v2730
      %v2954 = vunpack.c.l.b16 %v2731
      %v2955 = vpack.c.b16 %v2952, %v2951
      %v2956 = vpack.c.b16 %v2954, %v2953
      %v2960 = vsel %vm442, %v2826, 0
      %v2963 = vsel %vm442, %v2834, 0
      %v2966 = vsel %vm442, %v2842, 0
      %v2969 = vsel %vm442, %v2850, 0
      %v2972 = vsel %vm442, %v2858, 0
      %v2975 = vsel %vm442, %v2866, 0
      %v2978 = vsel %vm442, %v2874, 0
      %v2981 = vsel %vm442, %v2882, 0
      %v2984 = vsel %vm442, %v2890, 0
      %v2987 = vsel %vm442, %v2898, 0
      %v2990 = vsel %vm442, %v2906, 0
      %v2993 = vsel %vm442, %v2914, 0
      %v2996 = vsel %vm442, %v2922, 0
      %v2999 = vsel %vm442, %v2930, 0
      %v3002 = vsel %vm442, %v2938, 0
      %v3005 = vsel %vm442, %v2946, 0
      %3007 = vmatprep.subr.bf16.mxu0 0
      %3008 = vmatpush1.bf16.msra.mxu0 %v2955
      %3009 = vmatprep.subr.bf16.mxu0 0
      %3010 = vmatpush1.bf16.msra.mxu0 %v2956
      %3011 = vmatprep.subr.bf16.mxu0 0
      %3012 = vmatpush1.bf16.msra.mxu0 0
      %3013 = vmatprep.subr.bf16.mxu0 0
      %3014 = vmatpush1.bf16.msra.mxu0 0
      %3015 = vmatprep.subr.bf16.mxu0 0
      %3016 = vmatpush1.bf16.msra.mxu0 0
      %3017 = vmatprep.subr.bf16.mxu0 0
      %3018 = vmatpush1.bf16.msra.mxu0 0
      %3019 = vmatprep.subr.bf16.mxu0 0
      %3020 = vmatpush1.bf16.msra.mxu0 0
      %3021 = vmatprep.subr.bf16.mxu0 0
      %3022 = vmatpush1.bf16.msra.mxu0 0
      %3023 = vmatprep.subr.bf16.mxu0 0
      %3024 = vmatpush1.bf16.msra.mxu0 0
      %3025 = vmatprep.subr.bf16.mxu0 0
      %3026 = vmatpush1.bf16.msra.mxu0 0
      %3027 = vmatprep.subr.bf16.mxu0 0
      %3028 = vmatpush1.bf16.msra.mxu0 0
      %3029 = vmatprep.subr.bf16.mxu0 0
      %3030 = vmatpush1.bf16.msra.mxu0 0
      %3031 = vmatprep.subr.bf16.mxu0 0
      %3032 = vmatpush1.bf16.msra.mxu0 0
      %3033 = vmatprep.subr.bf16.mxu0 0
      %3034 = vmatpush1.bf16.msra.mxu0 0
      %3035 = vmatprep.subr.bf16.mxu0 0
      %3036 = vmatpush1.bf16.msra.mxu0 0
      %3037 = vmatprep.subr.bf16.mxu0 0
      %3038 = vmatpush1.bf16.msra.mxu0 0
      %3039 = vmatprep.mubr.bf16.mxu0 0
      %3040 = vmatmul.mubr.bf16.gmra.mrb[0].mxu0 %v2960
      %v3041 = vpop.f32.mrb[0].mxu0
      %v3042 = vadd.f32 0.0, %v3041
      %v3043 = vpop.f32.mrb[0].mxu0
      %v3044 = vpop.f32.mrb[0].mxu0
      %v3045 = vadd.f32 0.0, %v3044
      %v3046 = vpop.f32.mrb[0].mxu0
      %3047 = vmatprep.mubr.bf16.mxu0 0
      %3048 = vmatmul.mubr.bf16.gmra.mrb[0].mxu0 %v2963
      %v3049 = vpop.f32.mrb[0].mxu0
      %v3050 = vadd.f32 0.0, %v3049
      %v3051 = vpop.f32.mrb[0].mxu0
      %v3052 = vpop.f32.mrb[0].mxu0
      %v3053 = vadd.f32 0.0, %v3052
      %v3054 = vpop.f32.mrb[0].mxu0
      %3055 = vmatprep.mubr.bf16.mxu0 0
      %3056 = vmatmul.mubr.bf16.gmra.mrb[0].mxu0 %v2966
      %v3057 = vpop.f32.mrb[0].mxu0
      %v3058 = vadd.f32 0.0, %v3057
      %v3059 = vpop.f32.mrb[0].mxu0
      %v3060 = vpop.f32.mrb[0].mxu0
      %v3061 = vadd.f32 0.0, %v3060
      %v3062 = vpop.f32.mrb[0].mxu0
      %3063 = vmatprep.mubr.bf16.mxu0 0
      %3064 = vmatmul.mubr.bf16.gmra.mrb[0].mxu0 %v2969
      %v3065 = vpop.f32.mrb[0].mxu0
      %v3066 = vadd.f32 0.0, %v3065
      %v3067 = vpop.f32.mrb[0].mxu0
      %v3068 = vpop.f32.mrb[0].mxu0
      %v3069 = vadd.f32 0.0, %v3068
      %v3070 = vpop.f32.mrb[0].mxu0
      %3071 = vmatprep.mubr.bf16.mxu0 0
      %3072 = vmatmul.mubr.bf16.gmra.mrb[0].mxu0 %v2972
      %v3073 = vpop.f32.mrb[0].mxu0
      %v3074 = vadd.f32 0.0, %v3073
      %v3075 = vpop.f32.mrb[0].mxu0
      %v3076 = vpop.f32.mrb[0].mxu0
      %v3077 = vadd.f32 0.0, %v3076
      %v3078 = vpop.f32.mrb[0].mxu0
      %3079 = vmatprep.mubr.bf16.mxu0 0
      %3080 = vmatmul.mubr.bf16.gmra.mrb[0].mxu0 %v2975
      %v3081 = vpop.f32.mrb[0].mxu0
      %v3082 = vadd.f32 0.0, %v3081
      %v3083 = vpop.f32.mrb[0].mxu0
      %v3084 = vpop.f32.mrb[0].mxu0
      %v3085 = vadd.f32 0.0, %v3084
      %v3086 = vpop.f32.mrb[0].mxu0
      %3087 = vmatprep.mubr.bf16.mxu0 0
      %3088 = vmatmul.mubr.bf16.gmra.mrb[0].mxu0 %v2978
      %v3089 = vpop.f32.mrb[0].mxu0
      %v3090 = vadd.f32 0.0, %v3089
      %v3091 = vpop.f32.mrb[0].mxu0
      %v3092 = vpop.f32.mrb[0].mxu0
      %v3093 = vadd.f32 0.0, %v3092
      %v3094 = vpop.f32.mrb[0].mxu0
      %3095 = vmatprep.mubr.bf16.mxu0 0
      %3096 = vmatmul.mubr.bf16.gmra.mrb[0].mxu0 %v2981
      %v3097 = vpop.f32.mrb[0].mxu0
      %v3098 = vadd.f32 0.0, %v3097
      %v3099 = vpop.f32.mrb[0].mxu0
      %v3100 = vpop.f32.mrb[0].mxu0
      %v3101 = vadd.f32 0.0, %v3100
      %v3102 = vpop.f32.mrb[0].mxu0
      %3103 = vmatprep.mubr.bf16.mxu0 0
      %3104 = vmatmul.mubr.bf16.gmra.mrb[0].mxu0 %v2984
      %v3105 = vpop.f32.mrb[0].mxu0
      %v3106 = vadd.f32 0.0, %v3105
      %v3107 = vpop.f32.mrb[0].mxu0
      %v3108 = vpop.f32.mrb[0].mxu0
      %v3109 = vadd.f32 0.0, %v3108
      %v3110 = vpop.f32.mrb[0].mxu0
      %3111 = vmatprep.mubr.bf16.mxu0 0
      %3112 = vmatmul.mubr.bf16.gmra.mrb[0].mxu0 %v2987
      %v3113 = vpop.f32.mrb[0].mxu0
      %v3114 = vadd.f32 0.0, %v3113
      %v3115 = vpop.f32.mrb[0].mxu0
      %v3116 = vpop.f32.mrb[0].mxu0
      %v3117 = vadd.f32 0.0, %v3116
      %v3118 = vpop.f32.mrb[0].mxu0
      %3119 = vmatprep.mubr.bf16.mxu0 0
      %3120 = vmatmul.mubr.bf16.gmra.mrb[0].mxu0 %v2990
      %v3121 = vpop.f32.mrb[0].mxu0
      %v3122 = vadd.f32 0.0, %v3121
      %v3123 = vpop.f32.mrb[0].mxu0
      %v3124 = vpop.f32.mrb[0].mxu0
      %v3125 = vadd.f32 0.0, %v3124
      %v3126 = vpop.f32.mrb[0].mxu0
      %3127 = vmatprep.mubr.bf16.mxu0 0
      %3128 = vmatmul.mubr.bf16.gmra.mrb[0].mxu0 %v2993
      %v3129 = vpop.f32.mrb[0].mxu0
      %v3130 = vadd.f32 0.0, %v3129
      %v3131 = vpop.f32.mrb[0].mxu0
      %v3132 = vpop.f32.mrb[0].mxu0
      %v3133 = vadd.f32 0.0, %v3132
      %v3134 = vpop.f32.mrb[0].mxu0
      %3135 = vmatprep.mubr.bf16.mxu0 0
      %3136 = vmatmul.mubr.bf16.gmra.mrb[0].mxu0 %v2996
      %v3137 = vpop.f32.mrb[0].mxu0
      %v3138 = vadd.f32 0.0, %v3137
      %v3139 = vpop.f32.mrb[0].mxu0
      %v3140 = vpop.f32.mrb[0].mxu0
      %v3141 = vadd.f32 0.0, %v3140
      %v3142 = vpop.f32.mrb[0].mxu0
      %3143 = vmatprep.mubr.bf16.mxu0 0
      %3144 = vmatmul.mubr.bf16.gmra.mrb[0].mxu0 %v2999
      %v3145 = vpop.f32.mrb[0].mxu0
      %v3146 = vadd.f32 0.0, %v3145
      %v3147 = vpop.f32.mrb[0].mxu0
      %v3148 = vpop.f32.mrb[0].mxu0
      %v3149 = vadd.f32 0.0, %v3148
      %v3150 = vpop.f32.mrb[0].mxu0
      %3151 = vmatprep.mubr.bf16.mxu0 0
      %3152 = vmatmul.mubr.bf16.gmra.mrb[0].mxu0 %v3002
      %v3153 = vpop.f32.mrb[0].mxu0
      %v3154 = vadd.f32 0.0, %v3153
      %v3155 = vpop.f32.mrb[0].mxu0
      %v3156 = vpop.f32.mrb[0].mxu0
      %v3157 = vadd.f32 0.0, %v3156
      %v3158 = vpop.f32.mrb[0].mxu0
      %3159 = vmatprep.mubr.bf16.mxu0 0
      %3160 = vmatmul.mubr.bf16.gmra.mrb[0].mxu0 %v3005
      %v3161 = vpop.f32.mrb[0].mxu0
      %v3162 = vadd.f32 0.0, %v3161
      %v3163 = vpop.f32.mrb[0].mxu0
      %v3164 = vpop.f32.mrb[0].mxu0
      %v3165 = vadd.f32 0.0, %v3164
      %v3166 = vpop.f32.mrb[0].mxu0
      %3167 = vdwg.mxu0
      %v3168 = vadd.f32 %v2662, %v3042
      %v3169 = vadd.f32 %v2663, %v3045
      %v3170 = vadd.f32 %v2664, %v3050
      %v3171 = vadd.f32 %v2665, %v3053
      %v3172 = vadd.f32 %v2666, %v3058
      %v3173 = vadd.f32 %v2667, %v3061
      %v3174 = vadd.f32 %v2668, %v3066
      %v3175 = vadd.f32 %v2669, %v3069
      %v3176 = vadd.f32 %v2670, %v3074
      %v3177 = vadd.f32 %v2671, %v3077
      %v3178 = vadd.f32 %v2672, %v3082
      %v3179 = vadd.f32 %v2673, %v3085
      %v3180 = vadd.f32 %v2674, %v3090
      %v3181 = vadd.f32 %v2675, %v3093
      %v3182 = vadd.f32 %v2676, %v3098
      %v3183 = vadd.f32 %v2677, %v3101
      %v3184 = vadd.f32 %v2678, %v3106
      %v3185 = vadd.f32 %v2679, %v3109
      %v3186 = vadd.f32 %v2680, %v3114
      %v3187 = vadd.f32 %v2681, %v3117
      %v3188 = vadd.f32 %v2682, %v3122
      %v3189 = vadd.f32 %v2683, %v3125
      %v3190 = vadd.f32 %v2684, %v3130
      %v3191 = vadd.f32 %v2685, %v3133
      %v3192 = vadd.f32 %v2686, %v3138
      %v3193 = vadd.f32 %v2687, %v3141
      %v3194 = vadd.f32 %v2688, %v3146
      %v3195 = vadd.f32 %v2689, %v3149
      %v3196 = vadd.f32 %v2690, %v3154
      %v3197 = vadd.f32 %v2691, %v3157
      %v3198 = vadd.f32 %v2692, %v3162
      %v3199 = vadd.f32 %v2693, %v3165
      %v3200 = vld [vmem:[%s165 + $0x10] sm:$0xe]
      %s3201 = scalar_lea.vmem %s1, 128
      %v3202 = vld [vmem:[%s3201] sm:$0xf]
      %v3203 = vld [vmem:[%s3201 + $0x4] sm:$0xf]
      %v3204 = vld [vmem:[%s3201 + $0x8] sm:$0xf]
      %v3205 = vld [vmem:[%s3201 + $0xc] sm:$0xf]
      %v3207 = vunpack.c.l.b16 %v3200
      %v3208 = vpack.c.b16 %v2766, %v3207
      %v3209 = vrot.slane %v3208, 1
      %v3210 = vrot.slane %v2799, 1
      %v3211 = vsel %vm866, %v3209, %v3210
      %v3212 = vrot.slane %v2800, 1
      %v3213 = vsel %vm866, %v3210, %v3212
      %v3214 = vrot.slane %v2801, 1
      %v3215 = vsel %vm866, %v3212, %v3214
      %v3216 = vrot.slane %v2802, 1
      %v3217 = vsel %vm866, %v3214, %v3216
      %v3218 = vrot.slane %v2803, 1
      %v3219 = vsel %vm866, %v3216, %v3218
      %v3220 = vrot.slane %v2804, 1
      %v3221 = vsel %vm866, %v3218, %v3220
      %v3222 = vrot.slane %v2805, 1
      %v3223 = vsel %vm866, %v3220, %v3222
      %v3224 = vrot.slane %v2806, 1
      %v3225 = vsel %vm866, %v3222, %v3224
      %v3226 = vrot.slane %v2807, 1
      %v3227 = vsel %vm866, %v3224, %v3226
      %v3228 = vrot.slane %v2808, 1
      %v3229 = vsel %vm866, %v3226, %v3228
      %v3230 = vrot.slane %v2809, 1
      %v3231 = vsel %vm866, %v3228, %v3230
      %v3232 = vrot.slane %v2810, 1
      %v3233 = vsel %vm866, %v3230, %v3232
      %v3234 = vrot.slane %v2811, 1
      %v3235 = vsel %vm866, %v3232, %v3234
      %v3236 = vrot.slane %v2812, 1
      %v3237 = vsel %vm866, %v3234, %v3236
      %v3238 = vrot.slane %v2813, 1
      %v3239 = vsel %vm866, %v3236, %v3238
      %v3240 = vrot.slane %v2814, 1
      %v3241 = vsel %vm866, %v3238, %v3240
      %v3246 = vunpack.c.l.b16 %v3202
      %v3247 = vunpack.c.l.b16 %v3203
      %v3248 = vunpack.c.l.b16 %v3204
      %v3249 = vunpack.c.l.b16 %v3205
      %v3250 = vpack.c.b16 %v3247, %v3246
      %v3251 = vpack.c.b16 %v3249, %v3248
      %v3255 = vsel %vm442, %v3211, 0
      %v3258 = vsel %vm442, %v3213, 0
      %v3261 = vsel %vm442, %v3215, 0
      %v3264 = vsel %vm442, %v3217, 0
      %v3267 = vsel %vm442, %v3219, 0
      %v3270 = vsel %vm442, %v3221, 0
      %v3273 = vsel %vm442, %v3223, 0
      %v3276 = vsel %vm442, %v3225, 0
      %v3279 = vsel %vm442, %v3227, 0
      %v3282 = vsel %vm442, %v3229, 0
      %v3285 = vsel %vm442, %v3231, 0
      %v3288 = vsel %vm442, %v3233, 0
      %v3291 = vsel %vm442, %v3235, 0
      %v3294 = vsel %vm442, %v3237, 0
      %v3297 = vsel %vm442, %v3239, 0
      %v3300 = vsel %vm442, %v3241, 0
      %3302 = vmatprep.subr.bf16.mxu0 0
      %3303 = vmatpush1.bf16.msra.mxu0 %v3250
      %3304 = vmatprep.subr.bf16.mxu0 0
      %3305 = vmatpush1.bf16.msra.mxu0 %v3251
      %3306 = vmatprep.subr.bf16.mxu0 0
      %3307 = vmatpush1.bf16.msra.mxu0 0
      %3308 = vmatprep.subr.bf16.mxu0 0
      %3309 = vmatpush1.bf16.msra.mxu0 0
      %3310 = vmatprep.subr.bf16.mxu0 0
      %3311 = vmatpush1.bf16.msra.mxu0 0
      %3312 = vmatprep.subr.bf16.mxu0 0
      %3313 = vmatpush1.bf16.msra.mxu0 0
      %3314 = vmatprep.subr.bf16.mxu0 0
      %3315 = vmatpush1.bf16.msra.mxu0 0
      %3316 = vmatprep.subr.bf16.mxu0 0
      %3317 = vmatpush1.bf16.msra.mxu0 0
      %3318 = vmatprep.subr.bf16.mxu0 0
      %3319 = vmatpush1.bf16.msra.mxu0 0
      %3320 = vmatprep.subr.bf16.mxu0 0
      %3321 = vmatpush1.bf16.msra.mxu0 0
      %3322 = vmatprep.subr.bf16.mxu0 0
      %3323 = vmatpush1.bf16.msra.mxu0 0
      %3324 = vmatprep.subr.bf16.mxu0 0
      %3325 = vmatpush1.bf16.msra.mxu0 0
      %3326 = vmatprep.subr.bf16.mxu0 0
      %3327 = vmatpush1.bf16.msra.mxu0 0
      %3328 = vmatprep.subr.bf16.mxu0 0
      %3329 = vmatpush1.bf16.msra.mxu0 0
      %3330 = vmatprep.subr.bf16.mxu0 0
      %3331 = vmatpush1.bf16.msra.mxu0 0
      %3332 = vmatprep.subr.bf16.mxu0 0
      %3333 = vmatpush1.bf16.msra.mxu0 0
      %3334 = vmatprep.mubr.bf16.mxu0 0
      %3335 = vmatmul.mubr.bf16.gmra.mrb[0].mxu0 %v3255
      %v3336 = vpop.f32.mrb[0].mxu0
      %v3337 = vadd.f32 0.0, %v3336
      %v3338 = vpop.f32.mrb[0].mxu0
      %v3339 = vpop.f32.mrb[0].mxu0
      %v3340 = vadd.f32 0.0, %v3339
      %v3341 = vpop.f32.mrb[0].mxu0
      %3342 = vmatprep.mubr.bf16.mxu0 0
      %3343 = vmatmul.mubr.bf16.gmra.mrb[0].mxu0 %v3258
      %v3344 = vpop.f32.mrb[0].mxu0
      %v3345 = vadd.f32 0.0, %v3344
      %v3346 = vpop.f32.mrb[0].mxu0
      %v3347 = vpop.f32.mrb[0].mxu0
      %v3348 = vadd.f32 0.0, %v3347
      %v3349 = vpop.f32.mrb[0].mxu0
      %3350 = vmatprep.mubr.bf16.mxu0 0
      %3351 = vmatmul.mubr.bf16.gmra.mrb[0].mxu0 %v3261
      %v3352 = vpop.f32.mrb[0].mxu0
      %v3353 = vadd.f32 0.0, %v3352
      %v3354 = vpop.f32.mrb[0].mxu0
      %v3355 = vpop.f32.mrb[0].mxu0
      %v3356 = vadd.f32 0.0, %v3355
      %v3357 = vpop.f32.mrb[0].mxu0
      %3358 = vmatprep.mubr.bf16.mxu0 0
      %3359 = vmatmul.mubr.bf16.gmra.mrb[0].mxu0 %v3264
      %v3360 = vpop.f32.mrb[0].mxu0
      %v3361 = vadd.f32 0.0, %v3360
      %v3362 = vpop.f32.mrb[0].mxu0
      %v3363 = vpop.f32.mrb[0].mxu0
      %v3364 = vadd.f32 0.0, %v3363
      %v3365 = vpop.f32.mrb[0].mxu0
      %3366 = vmatprep.mubr.bf16.mxu0 0
      %3367 = vmatmul.mubr.bf16.gmra.mrb[0].mxu0 %v3267
      %v3368 = vpop.f32.mrb[0].mxu0
      %v3369 = vadd.f32 0.0, %v3368
      %v3370 = vpop.f32.mrb[0].mxu0
      %v3371 = vpop.f32.mrb[0].mxu0
      %v3372 = vadd.f32 0.0, %v3371
      %v3373 = vpop.f32.mrb[0].mxu0
      %3374 = vmatprep.mubr.bf16.mxu0 0
      %3375 = vmatmul.mubr.bf16.gmra.mrb[0].mxu0 %v3270
      %v3376 = vpop.f32.mrb[0].mxu0
      %v3377 = vadd.f32 0.0, %v3376
      %v3378 = vpop.f32.mrb[0].mxu0
      %v3379 = vpop.f32.mrb[0].mxu0
      %v3380 = vadd.f32 0.0, %v3379
      %v3381 = vpop.f32.mrb[0].mxu0
      %3382 = vmatprep.mubr.bf16.mxu0 0
      %3383 = vmatmul.mubr.bf16.gmra.mrb[0].mxu0 %v3273
      %v3384 = vpop.f32.mrb[0].mxu0
      %v3385 = vadd.f32 0.0, %v3384
      %v3386 = vpop.f32.mrb[0].mxu0
      %v3387 = vpop.f32.mrb[0].mxu0
      %v3388 = vadd.f32 0.0, %v3387
      %v3389 = vpop.f32.mrb[0].mxu0
      %3390 = vmatprep.mubr.bf16.mxu0 0
      %3391 = vmatmul.mubr.bf16.gmra.mrb[0].mxu0 %v3276
      %v3392 = vpop.f32.mrb[0].mxu0
      %v3393 = vadd.f32 0.0, %v3392
      %v3394 = vpop.f32.mrb[0].mxu0
      %v3395 = vpop.f32.mrb[0].mxu0
      %v3396 = vadd.f32 0.0, %v3395
      %v3397 = vpop.f32.mrb[0].mxu0
      %3398 = vmatprep.mubr.bf16.mxu0 0
      %3399 = vmatmul.mubr.bf16.gmra.mrb[0].mxu0 %v3279
      %v3400 = vpop.f32.mrb[0].mxu0
      %v3401 = vadd.f32 0.0, %v3400
      %v3402 = vpop.f32.mrb[0].mxu0
      %v3403 = vpop.f32.mrb[0].mxu0
      %v3404 = vadd.f32 0.0, %v3403
      %v3405 = vpop.f32.mrb[0].mxu0
      %3406 = vmatprep.mubr.bf16.mxu0 0
      %3407 = vmatmul.mubr.bf16.gmra.mrb[0].mxu0 %v3282
      %v3408 = vpop.f32.mrb[0].mxu0
      %v3409 = vadd.f32 0.0, %v3408
      %v3410 = vpop.f32.mrb[0].mxu0
      %v3411 = vpop.f32.mrb[0].mxu0
      %v3412 = vadd.f32 0.0, %v3411
      %v3413 = vpop.f32.mrb[0].mxu0
      %3414 = vmatprep.mubr.bf16.mxu0 0
      %3415 = vmatmul.mubr.bf16.gmra.mrb[0].mxu0 %v3285
      %v3416 = vpop.f32.mrb[0].mxu0
      %v3417 = vadd.f32 0.0, %v3416
      %v3418 = vpop.f32.mrb[0].mxu0
      %v3419 = vpop.f32.mrb[0].mxu0
      %v3420 = vadd.f32 0.0, %v3419
      %v3421 = vpop.f32.mrb[0].mxu0
      %3422 = vmatprep.mubr.bf16.mxu0 0
      %3423 = vmatmul.mubr.bf16.gmra.mrb[0].mxu0 %v3288
      %v3424 = vpop.f32.mrb[0].mxu0
      %v3425 = vadd.f32 0.0, %v3424
      %v3426 = vpop.f32.mrb[0].mxu0
      %v3427 = vpop.f32.mrb[0].mxu0
      %v3428 = vadd.f32 0.0, %v3427
      %v3429 = vpop.f32.mrb[0].mxu0
      %3430 = vmatprep.mubr.bf16.mxu0 0
      %3431 = vmatmul.mubr.bf16.gmra.mrb[0].mxu0 %v3291
      %v3432 = vpop.f32.mrb[0].mxu0
      %v3433 = vadd.f32 0.0, %v3432
      %v3434 = vpop.f32.mrb[0].mxu0
      %v3435 = vpop.f32.mrb[0].mxu0
      %v3436 = vadd.f32 0.0, %v3435
      %v3437 = vpop.f32.mrb[0].mxu0
      %3438 = vmatprep.mubr.bf16.mxu0 0
      %3439 = vmatmul.mubr.bf16.gmra.mrb[0].mxu0 %v3294
      %v3440 = vpop.f32.mrb[0].mxu0
      %v3441 = vadd.f32 0.0, %v3440
      %v3442 = vpop.f32.mrb[0].mxu0
      %v3443 = vpop.f32.mrb[0].mxu0
      %v3444 = vadd.f32 0.0, %v3443
      %v3445 = vpop.f32.mrb[0].mxu0
      %3446 = vmatprep.mubr.bf16.mxu0 0
      %3447 = vmatmul.mubr.bf16.gmra.mrb[0].mxu0 %v3297
      %v3448 = vpop.f32.mrb[0].mxu0
      %v3449 = vadd.f32 0.0, %v3448
      %v3450 = vpop.f32.mrb[0].mxu0
      %v3451 = vpop.f32.mrb[0].mxu0
      %v3452 = vadd.f32 0.0, %v3451
      %v3453 = vpop.f32.mrb[0].mxu0
      %3454 = vmatprep.mubr.bf16.mxu0 0
      %3455 = vmatmul.mubr.bf16.gmra.mrb[0].mxu0 %v3300
      %v3456 = vpop.f32.mrb[0].mxu0
      %v3457 = vadd.f32 0.0, %v3456
      %v3458 = vpop.f32.mrb[0].mxu0
      %v3459 = vpop.f32.mrb[0].mxu0
      %v3460 = vadd.f32 0.0, %v3459
      %v3461 = vpop.f32.mrb[0].mxu0
      %3462 = vdwg.mxu0
      %v3463 = vadd.f32 %v3168, %v3337
      %v3464 = vadd.f32 %v3169, %v3340
      %v3465 = vadd.f32 %v3170, %v3345
      %v3466 = vadd.f32 %v3171, %v3348
      %v3467 = vadd.f32 %v3172, %v3353
      %v3468 = vadd.f32 %v3173, %v3356
      %v3469 = vadd.f32 %v3174, %v3361
      %v3470 = vadd.f32 %v3175, %v3364
      %v3471 = vadd.f32 %v3176, %v3369
      %v3472 = vadd.f32 %v3177, %v3372
      %v3473 = vadd.f32 %v3178, %v3377
      %v3474 = vadd.f32 %v3179, %v3380
      %v3475 = vadd.f32 %v3180, %v3385
      %v3476 = vadd.f32 %v3181, %v3388
      %v3477 = vadd.f32 %v3182, %v3393
      %v3478 = vadd.f32 %v3183, %v3396
      %v3479 = vadd.f32 %v3184, %v3401
      %v3480 = vadd.f32 %v3185, %v3404
      %v3481 = vadd.f32 %v3186, %v3409
      %v3482 = vadd.f32 %v3187, %v3412
      %v3483 = vadd.f32 %v3188, %v3417
      %v3484 = vadd.f32 %v3189, %v3420
      %v3485 = vadd.f32 %v3190, %v3425
      %v3486 = vadd.f32 %v3191, %v3428
      %v3487 = vadd.f32 %v3192, %v3433
      %v3488 = vadd.f32 %v3193, %v3436
      %v3489 = vadd.f32 %v3194, %v3441
      %v3490 = vadd.f32 %v3195, %v3444
      %v3491 = vadd.f32 %v3196, %v3449
      %v3492 = vadd.f32 %v3197, %v3452
      %v3493 = vadd.f32 %v3198, %v3457
      %v3494 = vadd.f32 %v3199, %v3460
      %v3495 = vld [vmem:[%s2] sm:$0x1]
      %v3497 = vlaneseq
      %v3498 = vshrl.u32 %v3497, 7
      %v3499 = vsub.s32 0, %v3498
      %v3500 = vrot.slane %v3495, %v3499
      %v3502 = vadd.f32 %v3463, %v3500
      %v3503 = vadd.f32 %v3464, %v3500
      %v3504 = vadd.f32 %v3465, %v3500
      %v3505 = vadd.f32 %v3466, %v3500
      %v3506 = vadd.f32 %v3467, %v3500
      %v3507 = vadd.f32 %v3468, %v3500
      %v3508 = vadd.f32 %v3469, %v3500
      %v3509 = vadd.f32 %v3470, %v3500
      %v3510 = vadd.f32 %v3471, %v3500
      %v3511 = vadd.f32 %v3472, %v3500
      %v3512 = vadd.f32 %v3473, %v3500
      %v3513 = vadd.f32 %v3474, %v3500
      %v3514 = vadd.f32 %v3475, %v3500
      %v3515 = vadd.f32 %v3476, %v3500
      %v3516 = vadd.f32 %v3477, %v3500
      %v3517 = vadd.f32 %v3478, %v3500
      %v3518 = vadd.f32 %v3479, %v3500
      %v3519 = vadd.f32 %v3480, %v3500
      %v3520 = vadd.f32 %v3481, %v3500
      %v3521 = vadd.f32 %v3482, %v3500
      %v3522 = vadd.f32 %v3483, %v3500
      %v3523 = vadd.f32 %v3484, %v3500
      %v3524 = vadd.f32 %v3485, %v3500
      %v3525 = vadd.f32 %v3486, %v3500
      %v3526 = vadd.f32 %v3487, %v3500
      %v3527 = vadd.f32 %v3488, %v3500
      %v3528 = vadd.f32 %v3489, %v3500
      %v3529 = vadd.f32 %v3490, %v3500
      %v3530 = vadd.f32 %v3491, %v3500
      %v3531 = vadd.f32 %v3492, %v3500
      %v3532 = vadd.f32 %v3493, %v3500
      %v3533 = vadd.f32 %v3494, %v3500
      %v3534 = vmax.f32 %v3502, 0.0
      %v3535 = vmax.f32 %v3503, 0.0
      %v3536 = vmax.f32 %v3504, 0.0
      %v3537 = vmax.f32 %v3505, 0.0
      %v3538 = vmax.f32 %v3506, 0.0
      %v3539 = vmax.f32 %v3507, 0.0
      %v3540 = vmax.f32 %v3508, 0.0
      %v3541 = vmax.f32 %v3509, 0.0
      %v3542 = vmax.f32 %v3510, 0.0
      %v3543 = vmax.f32 %v3511, 0.0
      %v3544 = vmax.f32 %v3512, 0.0
      %v3545 = vmax.f32 %v3513, 0.0
      %v3546 = vmax.f32 %v3514, 0.0
      %v3547 = vmax.f32 %v3515, 0.0
      %v3548 = vmax.f32 %v3516, 0.0
      %v3549 = vmax.f32 %v3517, 0.0
      %v3550 = vmax.f32 %v3518, 0.0
      %v3551 = vmax.f32 %v3519, 0.0
      %v3552 = vmax.f32 %v3520, 0.0
      %v3553 = vmax.f32 %v3521, 0.0
      %v3554 = vmax.f32 %v3522, 0.0
      %v3555 = vmax.f32 %v3523, 0.0
      %v3556 = vmax.f32 %v3524, 0.0
      %v3557 = vmax.f32 %v3525, 0.0
      %v3558 = vmax.f32 %v3526, 0.0
      %v3559 = vmax.f32 %v3527, 0.0
      %v3560 = vmax.f32 %v3528, 0.0
      %v3561 = vmax.f32 %v3529, 0.0
      %v3562 = vmax.f32 %v3530, 0.0
      %v3563 = vmax.f32 %v3531, 0.0
      %v3564 = vmax.f32 %v3532, 0.0
      %v3565 = vmax.f32 %v3533, 0.0
      %vm3566 = vcmask 523264
      %3567 = vst.msk [vmem:[#allocation2] sm:$0xff] %vm3566, %v3534
      %3568 = vst.msk [vmem:[#allocation2 + $0x8] sm:$0xff] %vm3566, %v3535
      %3569 = vst.msk [vmem:[#allocation2 + $0x10] sm:$0xff] %vm3566, %v3536
      %3570 = vst.msk [vmem:[#allocation2 + $0x18] sm:$0xff] %vm3566, %v3537
      %3571 = vst.msk [vmem:[#allocation2 + $0x20] sm:$0xff] %vm3566, %v3538
      %3572 = vst.msk [vmem:[#allocation2 + $0x28] sm:$0xff] %vm3566, %v3539
      %3573 = vst.msk [vmem:[#allocation2 + $0x30] sm:$0xff] %vm3566, %v3540
      %3574 = vst.msk [vmem:[#allocation2 + $0x38] sm:$0xff] %vm3566, %v3541
      %3575 = vst.msk [vmem:[#allocation2 + $0x40] sm:$0xff] %vm3566, %v3542
      %3576 = vst.msk [vmem:[#allocation2 + $0x48] sm:$0xff] %vm3566, %v3543
      %3577 = vst.msk [vmem:[#allocation2 + $0x50] sm:$0xff] %vm3566, %v3544
      %3578 = vst.msk [vmem:[#allocation2 + $0x58] sm:$0xff] %vm3566, %v3545
      %3579 = vst.msk [vmem:[#allocation2 + $0x60] sm:$0xff] %vm3566, %v3546
      %3580 = vst.msk [vmem:[#allocation2 + $0x68] sm:$0xff] %vm3566, %v3547
      %3581 = vst.msk [vmem:[#allocation2 + $0x70] sm:$0xff] %vm3566, %v3548
      %3582 = vst.msk [vmem:[#allocation2 + $0x78] sm:$0xff] %vm3566, %v3549
      %3583 = vst.msk [vmem:[#allocation2 + $0x80] sm:$0xff] %vm3566, %v3550
      %3584 = vst.msk [vmem:[#allocation2 + $0x88] sm:$0xff] %vm3566, %v3551
      %3585 = vst.msk [vmem:[#allocation2 + $0x90] sm:$0xff] %vm3566, %v3552
      %3586 = vst.msk [vmem:[#allocation2 + $0x98] sm:$0xff] %vm3566, %v3553
      %3587 = vst.msk [vmem:[#allocation2 + $0xa0] sm:$0xff] %vm3566, %v3554
      %3588 = vst.msk [vmem:[#allocation2 + $0xa8] sm:$0xff] %vm3566, %v3555
      %3589 = vst.msk [vmem:[#allocation2 + $0xb0] sm:$0xff] %vm3566, %v3556
      %3590 = vst.msk [vmem:[#allocation2 + $0xb8] sm:$0xff] %vm3566, %v3557
      %3591 = vst.msk [vmem:[#allocation2 + $0xc0] sm:$0xff] %vm3566, %v3558
      %3592 = vst.msk [vmem:[#allocation2 + $0xc8] sm:$0xff] %vm3566, %v3559
      %3593 = vst.msk [vmem:[#allocation2 + $0xd0] sm:$0xff] %vm3566, %v3560
      %3594 = vst.msk [vmem:[#allocation2 + $0xd8] sm:$0xff] %vm3566, %v3561
      %3595 = vst.msk [vmem:[#allocation2 + $0xe0] sm:$0xff] %vm3566, %v3562
      %3596 = vst.msk [vmem:[#allocation2 + $0xe8] sm:$0xff] %vm3566, %v3563
      %3597 = vst.msk [vmem:[#allocation2 + $0xf0] sm:$0xff] %vm3566, %v3564
      %3598 = vst.msk [vmem:[#allocation2 + $0xf8] sm:$0xff] %vm3566, %v3565
      %v3599 = vld [vmem:[#allocation2 + $0x11] sm:$0xff]
      %v3600 = vld [vmem:[#allocation2 + $0x19] sm:$0x3f]
      %v3601 = vpack.c.bf16 %v3600, %v3599
      %v3603 = vunpack.c.l.b16 %v3601
      %v3604 = vunpack.c.h.b16 %v3601
      %v3605 = vpack.c.b16 %v3603, %v3603
      %v3606 = vpack.c.b16 %v3604, %v3604
      %vm3609 = vcmask 519168
      %3610 = vst.msk [vmem:[%s170] sm:$0xf] %vm3609, %v3605
      %vm3611 = vcmask 518144
      %3612 = vst.msk [vmem:[%s170 + $0x4] sm:$0x7] %vm3611, %v3606
      %v3613 = vld [vmem:[#allocation2 + $0x21] sm:$0xff]
      %v3614 = vld [vmem:[#allocation2 + $0x29] sm:$0x3f]
      %v3615 = vpack.c.bf16 %v3614, %v3613
      %v3617 = vunpack.c.l.b16 %v3615
      %v3618 = vunpack.c.h.b16 %v3615
      %v3619 = vpack.c.b16 %v3617, %v3617
      %v3620 = vpack.c.b16 %v3618, %v3618
      %s3623 = scalar_lea.vmem %s170, 8
      %3624 = vst.msk [vmem:[%s3623] sm:$0xf] %vm3609, %v3619
      %3625 = vst.msk [vmem:[%s3623 + $0x4] sm:$0x7] %vm3611, %v3620
      %v3626 = vld [vmem:[#allocation2 + $0x31] sm:$0xff]
      %v3627 = vld [vmem:[#allocation2 + $0x39] sm:$0x3f]
      %v3628 = vpack.c.bf16 %v3627, %v3626
      %v3630 = vunpack.c.l.b16 %v3628
      %v3631 = vunpack.c.h.b16 %v3628
      %v3632 = vpack.c.b16 %v3630, %v3630
      %v3633 = vpack.c.b16 %v3631, %v3631
      %s3636 = scalar_lea.vmem %s170, 16
      %3637 = vst.msk [vmem:[%s3636] sm:$0xf] %vm3609, %v3632
      %3638 = vst.msk [vmem:[%s3636 + $0x4] sm:$0x7] %vm3611, %v3633
      %v3639 = vld [vmem:[#allocation2 + $0x41] sm:$0xff]
      %v3640 = vld [vmem:[#allocation2 + $0x49] sm:$0x3f]
      %v3641 = vpack.c.bf16 %v3640, %v3639
      %v3643 = vunpack.c.l.b16 %v3641
      %v3644 = vunpack.c.h.b16 %v3641
      %v3645 = vpack.c.b16 %v3643, %v3643
      %v3646 = vpack.c.b16 %v3644, %v3644
      %s3649 = scalar_lea.vmem %s170, 24
      %3650 = vst.msk [vmem:[%s3649] sm:$0xf] %vm3609, %v3645
      %3651 = vst.msk [vmem:[%s3649 + $0x4] sm:$0x7] %vm3611, %v3646
      %v3652 = vld [vmem:[#allocation2 + $0x51] sm:$0xff]
      %v3653 = vld [vmem:[#allocation2 + $0x59] sm:$0x3f]
      %v3654 = vpack.c.bf16 %v3653, %v3652
      %v3656 = vunpack.c.l.b16 %v3654
      %v3657 = vunpack.c.h.b16 %v3654
      %v3658 = vpack.c.b16 %v3656, %v3656
      %v3659 = vpack.c.b16 %v3657, %v3657
      %s3662 = scalar_lea.vmem %s170, 32
      %3663 = vst.msk [vmem:[%s3662] sm:$0xf] %vm3609, %v3658
      %3664 = vst.msk [vmem:[%s3662 + $0x4] sm:$0x7] %vm3611, %v3659
      %v3665 = vld [vmem:[#allocation2 + $0x61] sm:$0xff]
      %v3666 = vld [vmem:[#allocation2 + $0x69] sm:$0x3f]
      %v3667 = vpack.c.bf16 %v3666, %v3665
      %v3669 = vunpack.c.l.b16 %v3667
      %v3670 = vunpack.c.h.b16 %v3667
      %v3671 = vpack.c.b16 %v3669, %v3669
      %v3672 = vpack.c.b16 %v3670, %v3670
      %s3675 = scalar_lea.vmem %s170, 40
      %3676 = vst.msk [vmem:[%s3675] sm:$0xf] %vm3609, %v3671
      %3677 = vst.msk [vmem:[%s3675 + $0x4] sm:$0x7] %vm3611, %v3672
      %v3678 = vld [vmem:[#allocation2 + $0x71] sm:$0xff]
      %v3679 = vld [vmem:[#allocation2 + $0x79] sm:$0x3f]
      %v3680 = vpack.c.bf16 %v3679, %v3678
      %v3682 = vunpack.c.l.b16 %v3680
      %v3683 = vunpack.c.h.b16 %v3680
      %v3684 = vpack.c.b16 %v3682, %v3682
      %v3685 = vpack.c.b16 %v3683, %v3683
      %s3688 = scalar_lea.vmem %s170, 48
      %3689 = vst.msk [vmem:[%s3688] sm:$0xf] %vm3609, %v3684
      %3690 = vst.msk [vmem:[%s3688 + $0x4] sm:$0x7] %vm3611, %v3685
      %v3691 = vld [vmem:[#allocation2 + $0x81] sm:$0xff]
      %v3692 = vld [vmem:[#allocation2 + $0x89] sm:$0x3f]
      %v3693 = vpack.c.bf16 %v3692, %v3691
      %v3695 = vunpack.c.l.b16 %v3693
      %v3696 = vunpack.c.h.b16 %v3693
      %v3697 = vpack.c.b16 %v3695, %v3695
      %v3698 = vpack.c.b16 %v3696, %v3696
      %s3701 = scalar_lea.vmem %s170, 56
      %3702 = vst.msk [vmem:[%s3701] sm:$0xf] %vm3609, %v3697
      %3703 = vst.msk [vmem:[%s3701 + $0x4] sm:$0x7] %vm3611, %v3698
      %v3704 = vld [vmem:[#allocation2 + $0x91] sm:$0xff]
      %v3705 = vld [vmem:[#allocation2 + $0x99] sm:$0x3f]
      %v3706 = vpack.c.bf16 %v3705, %v3704
      %v3708 = vunpack.c.l.b16 %v3706
      %v3709 = vunpack.c.h.b16 %v3706
      %v3710 = vpack.c.b16 %v3708, %v3708
      %v3711 = vpack.c.b16 %v3709, %v3709
      %s3714 = scalar_lea.vmem %s170, 64
      %3715 = vst.msk [vmem:[%s3714] sm:$0xf] %vm3609, %v3710
      %3716 = vst.msk [vmem:[%s3714 + $0x4] sm:$0x7] %vm3611, %v3711
      %v3717 = vld [vmem:[#allocation2 + $0xa1] sm:$0xff]
      %v3718 = vld [vmem:[#allocation2 + $0xa9] sm:$0x3f]
      %v3719 = vpack.c.bf16 %v3718, %v3717
      %v3721 = vunpack.c.l.b16 %v3719
      %v3722 = vunpack.c.h.b16 %v3719
      %v3723 = vpack.c.b16 %v3721, %v3721
      %v3724 = vpack.c.b16 %v3722, %v3722
      %s3727 = scalar_lea.vmem %s170, 72
      %3728 = vst.msk [vmem:[%s3727] sm:$0xf] %vm3609, %v3723
      %3729 = vst.msk [vmem:[%s3727 + $0x4] sm:$0x7] %vm3611, %v3724
      %v3730 = vld [vmem:[#allocation2 + $0xb1] sm:$0xff]
      %v3731 = vld [vmem:[#allocation2 + $0xb9] sm:$0x3f]
      %v3732 = vpack.c.bf16 %v3731, %v3730
      %v3734 = vunpack.c.l.b16 %v3732
      %v3735 = vunpack.c.h.b16 %v3732
      %v3736 = vpack.c.b16 %v3734, %v3734
      %v3737 = vpack.c.b16 %v3735, %v3735
      %s3740 = scalar_lea.vmem %s170, 80
      %3741 = vst.msk [vmem:[%s3740] sm:$0xf] %vm3609, %v3736
      %3742 = vst.msk [vmem:[%s3740 + $0x4] sm:$0x7] %vm3611, %v3737
      %v3743 = vld [vmem:[#allocation2 + $0xc1] sm:$0xff]
      %v3744 = vld [vmem:[#allocation2 + $0xc9] sm:$0x3f]
      %v3745 = vpack.c.bf16 %v3744, %v3743
      %v3747 = vunpack.c.l.b16 %v3745
      %v3748 = vunpack.c.h.b16 %v3745
      %v3749 = vpack.c.b16 %v3747, %v3747
      %v3750 = vpack.c.b16 %v3748, %v3748
      %s3753 = scalar_lea.vmem %s170, 88
      %3754 = vst.msk [vmem:[%s3753] sm:$0xf] %vm3609, %v3749
      %3755 = vst.msk [vmem:[%s3753 + $0x4] sm:$0x7] %vm3611, %v3750
      %v3756 = vld [vmem:[#allocation2 + $0xd1] sm:$0xff]
      %v3757 = vld [vmem:[#allocation2 + $0xd9] sm:$0x3f]
      %v3758 = vpack.c.bf16 %v3757, %v3756
      %v3760 = vunpack.c.l.b16 %v3758
      %v3761 = vunpack.c.h.b16 %v3758
      %v3762 = vpack.c.b16 %v3760, %v3760
      %v3763 = vpack.c.b16 %v3761, %v3761
      %s3766 = scalar_lea.vmem %s170, 96
      %3767 = vst.msk [vmem:[%s3766] sm:$0xf] %vm3609, %v3762
      %3768 = vst.msk [vmem:[%s3766 + $0x4] sm:$0x7] %vm3611, %v3763
      %v3769 = vld [vmem:[#allocation2 + $0xe1] sm:$0xff]
      %v3770 = vld [vmem:[#allocation2 + $0xe9] sm:$0x3f]
      %v3771 = vpack.c.bf16 %v3770, %v3769
      %v3773 = vunpack.c.l.b16 %v3771
      %v3774 = vunpack.c.h.b16 %v3771
      %v3775 = vpack.c.b16 %v3773, %v3773
      %v3776 = vpack.c.b16 %v3774, %v3774
      %s3779 = scalar_lea.vmem %s170, 104
      %3780 = vst.msk [vmem:[%s3779] sm:$0xf] %vm3609, %v3775
      %3781 = vst.msk [vmem:[%s3779 + $0x4] sm:$0x7] %vm3611, %v3776
      %p3782 = scmp.lt.s32.totalorder %s14, 1
      %s3783 = scalar_select %p3782, %s14, 1
      %s3784 = smul.addr %s3783, 28
      %s3785 = smul.addr %s3784, 4
      %s3786 = scalar_lea.vmem %s3, %s3785
      // Predicated region
      $region33: #{net_forward.7} parent=31 // pred_check
        %p3787 = pneg %p100
      $region34: #{net_forward.7} parent=31 // pred_check_branch
        %3789 = sbr.rel (%p3787) target = $region36
      $region35: #{net_forward.7} parent=31 // pred_region
        _
      $region36: #{net_forward.7} parent=31 // pred_fallthru
        _
    $region32: #{net_forward.7} parent=5 // pred_fallthru
      _
    %p3790 = scmp.le.s32.totalorder 2, %s9
    // Predicated region
    $region37: #{net_forward.7} parent=5 // pred_check
      %p3791 = pneg %p3790
    $region38: #{net_forward.7} parent=5 // pred_check_branch
      %3793 = sbr.rel (%p3791) target = $region40
    $region39: #{net_forward.7} parent=5 // pred_region
      %s3794 = ssub.s32 %s9, 2
      // Predicated region
      $region41: #{net_forward.7} parent=39 // pred_check
        %p3795 = pneg %p106
      $region42: #{net_forward.7} parent=39 // pred_check_branch
        %3797 = sbr.rel (%p3795) target = $region44
      $region43: #{net_forward.7} parent=39 // pred_region
        %p3798 = scmp.lt.s32.totalorder %s15, 1
        %s3799 = scalar_select %p3798, %s15, 1
        %s3800 = smul.addr %s3799, 28
        %s3801 = smul.addr %s3800, 4
        %s3802 = scalar_lea.vmem %s3, %s3801
      $region44: #{net_forward.7} parent=39 // pred_fallthru
        _
    $region40: #{net_forward.7} parent=5 // pred_fallthru
      _
  $region6: #{net_forward.7} parent=0 // loop_footer
    %s13 = sadd.s32 1, %s9
  $region7: #{net_forward.7} parent=0 // loop_footer_branch
    %8 = sbr.rel target = $region3
  $region8: #{net_forward.7} parent=0 // loop_exit
    _

</llo_original>
